<compile_context>
chip_gen: v5e
topology: v5e:2x2
jax: 0.10.0
libtpu: 0.0.40
codegen_flags: <defaults>
</compile_context>

<pallas_src>
import functools
import math

import jax
import jax.numpy as jnp
from jax import lax
from jax.experimental import pallas as pl
from jax.experimental.pallas import tpu as pltpu

BN_EPS = 1e-5
LANE = 128


def _round_up(x, m):
    return ((x + m - 1) // m) * m


def _wrap_mask(m, wp, w):
    """(m, 1) f32: 1.0 on valid output columns, 0.0 on the 2 wrap cols/row."""
    col = lax.broadcasted_iota(jnp.int32, (m, 1), 0) % wp
    return (col < w).astype(jnp.float32)


def _conv9(load_tap, w_ref):
    """3x3 conv as 9 shifted matmuls; load_tap(t) -> (m, Cin) bf16 slab."""
    acc = None
    for t in range(9):
        p = jnp.dot(load_tap(t), w_ref[t], preferred_element_type=jnp.float32)
        acc = p if acc is None else acc + p
    return acc


# ---------------------------------------------------------------------------
# Pass A: conv1 (recomputed later; here only for BN1 partial statistics)
# ---------------------------------------------------------------------------
def _conv1_stats_kernel(x_ref, w1_ref, sum_ref, sq_ref, *, m, wp, w, co):
    # x_ref: (1, FH, Ci) f32 padded flat input; w1_ref: (9, Ci, Co) bf16
    mask = _wrap_mask(m, wp, w)

    def tap(t):
        sh = (t // 3) * wp + (t % 3)
        return x_ref[0, sh:sh + m, :].astype(jnp.bfloat16)

    acc = _conv9(tap, w1_ref)
    accm = acc * mask
    sum_ref[0] = jnp.broadcast_to(jnp.sum(accm, axis=0, keepdims=True), (8, co))
    sq_ref[0] = jnp.broadcast_to(jnp.sum(accm * accm, axis=0, keepdims=True), (8, co))


# ---------------------------------------------------------------------------
# Pass B: recompute conv1 + bn1-apply + relu (bf16 VMEM scratch) + conv2
#         + BN2 partial statistics.  conv1 never touches HBM.
# ---------------------------------------------------------------------------
def _fused_conv_kernel(x_ref, s1_ref, t1_ref, w1_ref, w2_ref,
                       conv2_ref, sum_ref, sq_ref, ypad_ref,
                       *, m, wp, w, co, off, fhy):
    mask = _wrap_mask(m, wp, w)

    def tap1(t):
        sh = (t // 3) * wp + (t % 3)
        return x_ref[0, sh:sh + m, :].astype(jnp.bfloat16)

    acc1 = _conv9(tap1, w1_ref)                     # conv1 recomputed (no HBM trip)
    y = jnp.maximum(acc1 * s1_ref[...] + t1_ref[...], 0.0) * mask

    # Zero only the halo rows; the interior is fully overwritten each step.
    ypad_ref[0:off, :] = jnp.zeros((off, co), jnp.bfloat16)
    ypad_ref[off + m:, :] = jnp.zeros((fhy - (off + m), co), jnp.bfloat16)
    ypad_ref[off:off + m, :] = y.astype(jnp.bfloat16)

    def tap2(t):
        sh = off - (wp + 1) + (t // 3) * wp + (t % 3)
        return ypad_ref[sh:sh + m, :]

    acc2 = _conv9(tap2, w2_ref)
    conv2_ref[0] = acc2
    accm = acc2 * mask
    sum_ref[0] = jnp.broadcast_to(jnp.sum(accm, axis=0, keepdims=True), (8, co))
    sq_ref[0] = jnp.broadcast_to(jnp.sum(accm * accm, axis=0, keepdims=True), (8, co))


# ---------------------------------------------------------------------------
# Pass C: bn2-apply + residual (read from existing padded x) + relu
# ---------------------------------------------------------------------------
def _bn_res_relu_kernel(c2_ref, s_ref, t_ref, x_ref, o_ref, *, m, wp, c, co):
    y = c2_ref[0] * s_ref[...] + t_ref[...]
    # Flat residual window of the padded input: wrap columns are exactly the
    # zero-padding columns, so no extra masking is needed.
    res = x_ref[0, wp + 1:wp + 1 + m, :]
    if co > c:
        res = jnp.concatenate(
            [res, jnp.zeros((m, co - c), jnp.float32)], axis=-1)
    o_ref[0] = jnp.maximum(y + res, 0.0)


# ---------------------------------------------------------------------------
# pallas_call wrappers
# ---------------------------------------------------------------------------
def _conv1_stats_pass(xpad_flat, w1, m, wp, w, co):
    n, fh, c = xpad_flat.shape
    kern = functools.partial(_conv1_stats_kernel, m=m, wp=wp, w=w, co=co)
    return pl.pallas_call(
        kern,
        out_shape=(jax.ShapeDtypeStruct((n, 8, co), jnp.float32),
                   jax.ShapeDtypeStruct((n, 8, co), jnp.float32)),
        grid=(n,),
        in_specs=[pl.BlockSpec((1, fh, c), lambda i: (i, 0, 0)),
                  pl.BlockSpec((9, c, co), lambda i: (0, 0, 0))],
        out_specs=(pl.BlockSpec((1, 8, co), lambda i: (i, 0, 0)),
                   pl.BlockSpec((1, 8, co), lambda i: (i, 0, 0))),
        compiler_params=pltpu.CompilerParams(
            dimension_semantics=("parallel",)),
    )(xpad_flat, w1)


def _fused_conv_pass(xpad_flat, s1, t1, w1, w2, m, wp, w, co, off, fhy):
    n, fh, c = xpad_flat.shape
    kern = functools.partial(_fused_conv_kernel, m=m, wp=wp, w=w, co=co,
                             off=off, fhy=fhy)
    return pl.pallas_call(
        kern,
        out_shape=(jax.ShapeDtypeStruct((n, m, co), jnp.float32),
                   jax.ShapeDtypeStruct((n, 8, co), jnp.float32),
                   jax.ShapeDtypeStruct((n, 8, co), jnp.float32)),
        grid=(n,),
        in_specs=[pl.BlockSpec((1, fh, c), lambda i: (i, 0, 0)),
                  pl.BlockSpec((1, co), lambda i: (0, 0)),
                  pl.BlockSpec((1, co), lambda i: (0, 0)),
                  pl.BlockSpec((9, c, co), lambda i: (0, 0, 0)),
                  pl.BlockSpec((9, co, co), lambda i: (0, 0, 0))],
        out_specs=(pl.BlockSpec((1, m, co), lambda i: (i, 0, 0)),
                   pl.BlockSpec((1, 8, co), lambda i: (i, 0, 0)),
                   pl.BlockSpec((1, 8, co), lambda i: (i, 0, 0))),
        scratch_shapes=[pltpu.VMEM((fhy, co), jnp.bfloat16)],
        compiler_params=pltpu.CompilerParams(
            dimension_semantics=("parallel",)),
    )(xpad_flat, s1, t1, w1, w2)


def _bn_residual_pass(conv2, s2, t2, xpad_flat, m, wp, co):
    n, fh, c = xpad_flat.shape
    kern = functools.partial(_bn_res_relu_kernel, m=m, wp=wp, c=c, co=co)
    return pl.pallas_call(
        kern,
        out_shape=jax.ShapeDtypeStruct((n, m, co), jnp.float32),
        grid=(n,),
        in_specs=[pl.BlockSpec((1, m, co), lambda i: (i, 0, 0)),
                  pl.BlockSpec((1, co), lambda i: (0, 0)),
                  pl.BlockSpec((1, co), lambda i: (0, 0)),
                  pl.BlockSpec((1, fh, c), lambda i: (i, 0, 0))],
        out_specs=pl.BlockSpec((1, m, co), lambda i: (i, 0, 0)),
        compiler_params=pltpu.CompilerParams(
            dimension_semantics=("parallel",)),
    )(conv2, s2, t2, xpad_flat)


def _fold_bn(sum_p, sq_p, gamma, beta, count, co):
    """Combine per-image partials into a per-channel scale/shift (f32)."""
    tot = jnp.sum(sum_p[:, 0, :], axis=0)
    tot2 = jnp.sum(sq_p[:, 0, :], axis=0)
    mean = tot / count
    var = jnp.maximum(tot2 / count - mean * mean, 0.0)
    scale = gamma * lax.rsqrt(var + BN_EPS)
    shift = beta - mean * scale
    return scale.reshape(1, co), shift.reshape(1, co)


# ---------------------------------------------------------------------------
# Forward
# ---------------------------------------------------------------------------
def basic_block_forward(x_nchw, params):
    """BasicBlock forward. x_nchw: (N, C, H, W) f32. Returns (N, C, H, W)."""
    n, c, h, w = x_nchw.shape
    cp = _round_up(c, LANE)            # lane-dense output channels
    wp = w + 2                         # padded width (also flat-row stride)
    m = h * wp                         # flat output rows (incl. 2 wrap cols/row)
    fh = (h + 3) * wp                  # flat padded-input rows (+slack for taps)
    off = _round_up(wp + 1, 16)        # 16-aligned interior offset in ypad scratch
    fhy = _round_up(off + m + wp + 1, 16)
    count = float(n * h * w)

    x_nhwc = jnp.transpose(x_nchw, (0, 2, 3, 1))

    # Spatially padded (1 top / 2 bottom / 1 left / 1 right), flattened.
    # This single f32 array serves conv1, the recompute in Pass B, and the
    # residual read in Pass C (no separate `ident` materialization).
    xpad = jnp.pad(x_nhwc, ((0, 0), (1, 2), (1, 1), (0, 0)))
    xpad_flat = xpad.reshape(n, fh, c)

    # Weights: (3,3,cin,cout) -> (9, cin, cp) bf16, out channels zero-padded;
    # conv2 also zero-pads its input channels to cp.
    w1 = jnp.pad(params["w1"], ((0, 0), (0, 0), (0, 0), (0, cp - c)))
    w1 = w1.reshape(9, c, cp).astype(jnp.bfloat16)
    w2 = jnp.pad(params["w2"], ((0, 0), (0, 0), (0, cp - c), (0, cp - c)))
    w2 = w2.reshape(9, cp, cp).astype(jnp.bfloat16)

    g1 = jnp.pad(params["g1"], (0, cp - c))
    b1 = jnp.pad(params["b1"], (0, cp - c))
    g2 = jnp.pad(params["g2"], (0, cp - c))
    b2 = jnp.pad(params["b2"], (0, cp - c))

    # Pass A: BN1 partial stats only (conv1 never written to HBM).
    s1p, q1p = _conv1_stats_pass(xpad_flat, w1, m, wp, w, cp)
    s1, t1 = _fold_bn(s1p, q1p, g1, b1, count, cp)

    # Pass B: recompute conv1, bn1-apply + relu (bf16 scratch), conv2 + stats.
    conv2, s2p, q2p = _fused_conv_pass(xpad_flat, s1, t1, w1, w2,
                                       m, wp, w, cp, off, fhy)
    s2, t2 = _fold_bn(s2p, q2p, g2, b2, count, cp)

    # Pass C: bn2-apply + residual (from xpad_flat, f32 exact) + relu.
    out_flat = _bn_residual_pass(conv2, s2, t2, xpad_flat, m, wp, cp)

    out = out_flat.reshape(n, h, wp, cp)[:, :, :w, :c]
    return jnp.transpose(out, (0, 3, 1, 2))


# ---------------------------------------------------------------------------
# Pure-JAX reference (bf16 conv operands / f32 accumulation, like the kernel)
# ---------------------------------------------------------------------------
def _ref_conv3x3(x_nhwc, w_hwio):
    return lax.conv_general_dilated(
        x_nhwc.astype(jnp.bfloat16), w_hwio.astype(jnp.bfloat16),
        window_strides=(1, 1), padding=((1, 1), (1, 1)),
        dimension_numbers=("NHWC", "HWIO", "NHWC"),
        preferred_element_type=jnp.float32)


def _ref_bn(x, gamma, beta):
    mean = jnp.mean(x, axis=(0, 1, 2), keepdims=True)
    var = jnp.mean(jnp.square(x - mean), axis=(0, 1, 2), keepdims=True)
    return (x - mean) * lax.rsqrt(var + BN_EPS) * gamma + beta


def basic_block_reference(x_nchw, params):
    x = jnp.transpose(x_nchw, (0, 2, 3, 1))
    out = jnp.maximum(
        _ref_bn(_ref_conv3x3(x, params["w1"]), params["g1"], params["b1"]), 0.0)
    out = _ref_bn(_ref_conv3x3(out, params["w2"]), params["g2"], params["b2"]) + x
    out = jnp.maximum(out, 0.0)
    return jnp.transpose(out, (0, 3, 1, 2))


# ---------------------------------------------------------------------------
if __name__ == "__main__":
    N, C, H, W = 2, 8, 16, 16          # inplanes == planes, stride=1
    key = jax.random.PRNGKey(0)
    kx, kw1, kw2 = jax.random.split(key, 3)

    x = jax.random.normal(kx, (N, C, H, W), dtype=jnp.float32)

    fan_in = 9 * C
    scale = math.sqrt(2.0 / fan_in)
    params = {
        # weight layout (ky, kx, cin, cout), matching the kernel's tap order
        "w1": scale * jax.random.normal(kw1, (3, 3, C, C), dtype=jnp.float32),
        "w2": scale * jax.random.normal(kw2, (3, 3, C, C), dtype=jnp.float32),
        "g1": jnp.ones((C,), jnp.float32),
        "b1": jnp.zeros((C,), jnp.float32),
        "g2": jnp.ones((C,), jnp.float32),
        "b2": jnp.zeros((C,), jnp.float32),
    }

    out = jax.block_until_ready(jax.jit(basic_block_forward)(x, params))
    ref = jax.block_until_ready(basic_block_reference(x, params))

    assert out.shape == (N, C, H, W)
    max_err = jnp.max(jnp.abs(out - ref))
    assert jnp.allclose(out, ref, rtol=3e-3, atol=3e-3), \
        f"mismatch vs reference, max abs err {max_err}"

    print("KERNEL_OK")
</pallas_src>

<mosaic_0001>
module attributes {stable_mosaic.version = 11 : i64} {
  func.func @_conv1_stats_kernel(%arg0: i32, %arg1: memref<1x342x8xf32, #tpu.memory_space<vmem>>, %arg2: memref<9x8x128xbf16, #tpu.memory_space<vmem>>, %arg3: memref<1x8x128xf32, #tpu.memory_space<vmem>>, %arg4: memref<1x8x128xf32, #tpu.memory_space<vmem>>) attributes {dimension_semantics = [#tpu.dimension_semantics<parallel>], iteration_bounds = array<i64: 2>, scalar_prefetch = 0 : i64, scratch_operands = 0 : i64, tpu.core_type = #tpu.core_type<tc>, window_params = [{transform_indices = @transform_0, window_bounds = array<i64: 1, 342, 8>}, {pipeline_mode = #tpu.pipeline_mode<synchronous>, transform_indices = @transform_1, window_bounds = array<i64: 9, 8, 128>}, {transform_indices = @transform_2, window_bounds = array<i64: 1, 8, 128>}, {transform_indices = @transform_3, window_bounds = array<i64: 1, 8, 128>}]} {
    %0 = tpu.iota {dimensions = array<i32: 0>} : vector<288x1xi32>
    %c18_i32 = arith.constant 18 : i32
    %c0_i32 = arith.constant 0 : i32
    %1 = arith.cmpi eq, %c18_i32, %c0_i32 : i32
    %c1_i32 = arith.constant 1 : i32
    %2 = arith.select %1, %c1_i32, %c18_i32 : i32
    %3 = vector.broadcast %2 : i32 to vector<288x1xi32>
    %4 = arith.remsi %0, %3 : vector<288x1xi32>
    %c0_i32_0 = arith.constant 0 : i32
    %5 = vector.broadcast %c0_i32_0 : i32 to vector<288x1xi32>
    %6 = arith.cmpi ne, %4, %5 : vector<288x1xi32>
    %c0_i32_1 = arith.constant 0 : i32
    %7 = vector.broadcast %c0_i32_1 : i32 to vector<288x1xi32>
    %8 = arith.cmpi slt, %4, %7 : vector<288x1xi32>
    %c0_i32_2 = arith.constant 0 : i32
    %9 = arith.cmpi slt, %2, %c0_i32_2 : i32
    %10 = vector.broadcast %9 : i1 to vector<288x1xi1>
    %11 = vector.broadcast %10 : vector<288x1xi1> to vector<288x1xi1>
    %12 = arith.xori %8, %11 : vector<288x1xi1>
    %13 = arith.andi %12, %6 : vector<288x1xi1>
    %14 = vector.broadcast %2 : i32 to vector<288x1xi32>
    %15 = arith.addi %4, %14 : vector<288x1xi32>
    %16 = arith.select %13, %15, %4 : vector<288x1xi1>, vector<288x1xi32>
    %c16_i32 = arith.constant 16 : i32
    %17 = vector.broadcast %c16_i32 : i32 to vector<288x1xi32>
    %18 = arith.cmpi slt, %16, %17 : vector<288x1xi32>
    %19 = arith.extui %18 : vector<288x1xi1> to vector<288x1xi32>
    %20 = arith.sitofp %19 : vector<288x1xi32> to vector<288x1xf32>
    %c0 = arith.constant 0 : index
    %c0_3 = arith.constant 0 : index
    %c0_4 = arith.constant 0 : index
    %21 = vector.load %arg1[%c0, %c0_3, %c0_4] : memref<1x342x8xf32, #tpu.memory_space<vmem>>, vector<1x288x8xf32>
    %22 = vector.shape_cast %21 : vector<1x288x8xf32> to vector<288x8xf32>
    %23 = arith.truncf %22 : vector<288x8xf32> to vector<288x8xbf16>
    %c0_5 = arith.constant 0 : index
    %c0_6 = arith.constant 0 : index
    %c0_7 = arith.constant 0 : index
    %24 = vector.load %arg2[%c0_5, %c0_6, %c0_7] : memref<9x8x128xbf16, #tpu.memory_space<vmem>>, vector<1x8x128xbf16>
    %25 = vector.shape_cast %24 : vector<1x8x128xbf16> to vector<8x128xbf16>
    %cst = arith.constant dense<0.000000e+00> : vector<288x128xf32>
    %26 = tpu.matmul %23, %25, %cst {dimension_numbers = #tpu.dot_dimension_numbers<[1], [0], [0], [1], [0, 0, 1, 1], [], []>} : vector<288x8xbf16>, vector<8x128xbf16>, vector<288x128xf32> -> vector<288x128xf32>
    %c0_8 = arith.constant 0 : index
    %c1 = arith.constant 1 : index
    %c0_9 = arith.constant 0 : index
    %27 = vector.load %arg1[%c0_8, %c1, %c0_9] : memref<1x342x8xf32, #tpu.memory_space<vmem>>, vector<1x288x8xf32>
    %28 = vector.shape_cast %27 : vector<1x288x8xf32> to vector<288x8xf32>
    %29 = arith.truncf %28 : vector<288x8xf32> to vector<288x8xbf16>
    %c1_10 = arith.constant 1 : index
    %c0_11 = arith.constant 0 : index
    %c0_12 = arith.constant 0 : index
    %30 = vector.load %arg2[%c1_10, %c0_11, %c0_12] : memref<9x8x128xbf16, #tpu.memory_space<vmem>>, vector<1x8x128xbf16>
    %31 = vector.shape_cast %30 : vector<1x8x128xbf16> to vector<8x128xbf16>
    %cst_13 = arith.constant dense<0.000000e+00> : vector<288x128xf32>
    %32 = tpu.matmul %29, %31, %cst_13 {dimension_numbers = #tpu.dot_dimension_numbers<[1], [0], [0], [1], [0, 0, 1, 1], [], []>} : vector<288x8xbf16>, vector<8x128xbf16>, vector<288x128xf32> -> vector<288x128xf32>
    %33 = arith.addf %26, %32 : vector<288x128xf32>
    %c0_14 = arith.constant 0 : index
    %c2 = arith.constant 2 : index
    %c0_15 = arith.constant 0 : index
    %34 = vector.load %arg1[%c0_14, %c2, %c0_15] : memref<1x342x8xf32, #tpu.memory_space<vmem>>, vector<1x288x8xf32>
    %35 = vector.shape_cast %34 : vector<1x288x8xf32> to vector<288x8xf32>
    %36 = arith.truncf %35 : vector<288x8xf32> to vector<288x8xbf16>
    %c2_16 = arith.constant 2 : index
    %c0_17 = arith.constant 0 : index
    %c0_18 = arith.constant 0 : index
    %37 = vector.load %arg2[%c2_16, %c0_17, %c0_18] : memref<9x8x128xbf16, #tpu.memory_space<vmem>>, vector<1x8x128xbf16>
    %38 = vector.shape_cast %37 : vector<1x8x128xbf16> to vector<8x128xbf16>
    %cst_19 = arith.constant dense<0.000000e+00> : vector<288x128xf32>
    %39 = tpu.matmul %36, %38, %cst_19 {dimension_numbers = #tpu.dot_dimension_numbers<[1], [0], [0], [1], [0, 0, 1, 1], [], []>} : vector<288x8xbf16>, vector<8x128xbf16>, vector<288x128xf32> -> vector<288x128xf32>
    %40 = arith.addf %33, %39 : vector<288x128xf32>
    %c0_20 = arith.constant 0 : index
    %c18 = arith.constant 18 : index
    %c0_21 = arith.constant 0 : index
    %41 = vector.load %arg1[%c0_20, %c18, %c0_21] : memref<1x342x8xf32, #tpu.memory_space<vmem>>, vector<1x288x8xf32>
    %42 = vector.shape_cast %41 : vector<1x288x8xf32> to vector<288x8xf32>
    %43 = arith.truncf %42 : vector<288x8xf32> to vector<288x8xbf16>
    %c3 = arith.constant 3 : index
    %c0_22 = arith.constant 0 : index
    %c0_23 = arith.constant 0 : index
    %44 = vector.load %arg2[%c3, %c0_22, %c0_23] : memref<9x8x128xbf16, #tpu.memory_space<vmem>>, vector<1x8x128xbf16>
    %45 = vector.shape_cast %44 : vector<1x8x128xbf16> to vector<8x128xbf16>
    %cst_24 = arith.constant dense<0.000000e+00> : vector<288x128xf32>
    %46 = tpu.matmul %43, %45, %cst_24 {dimension_numbers = #tpu.dot_dimension_numbers<[1], [0], [0], [1], [0, 0, 1, 1], [], []>} : vector<288x8xbf16>, vector<8x128xbf16>, vector<288x128xf32> -> vector<288x128xf32>
    %47 = arith.addf %40, %46 : vector<288x128xf32>
    %c0_25 = arith.constant 0 : index
    %c19 = arith.constant 19 : index
    %c0_26 = arith.constant 0 : index
    %48 = vector.load %arg1[%c0_25, %c19, %c0_26] : memref<1x342x8xf32, #tpu.memory_space<vmem>>, vector<1x288x8xf32>
    %49 = vector.shape_cast %48 : vector<1x288x8xf32> to vector<288x8xf32>
    %50 = arith.truncf %49 : vector<288x8xf32> to vector<288x8xbf16>
    %c4 = arith.constant 4 : index
    %c0_27 = arith.constant 0 : index
    %c0_28 = arith.constant 0 : index
    %51 = vector.load %arg2[%c4, %c0_27, %c0_28] : memref<9x8x128xbf16, #tpu.memory_space<vmem>>, vector<1x8x128xbf16>
    %52 = vector.shape_cast %51 : vector<1x8x128xbf16> to vector<8x128xbf16>
    %cst_29 = arith.constant dense<0.000000e+00> : vector<288x128xf32>
    %53 = tpu.matmul %50, %52, %cst_29 {dimension_numbers = #tpu.dot_dimension_numbers<[1], [0], [0], [1], [0, 0, 1, 1], [], []>} : vector<288x8xbf16>, vector<8x128xbf16>, vector<288x128xf32> -> vector<288x128xf32>
    %54 = arith.addf %47, %53 : vector<288x128xf32>
    %c0_30 = arith.constant 0 : index
    %c20 = arith.constant 20 : index
    %c0_31 = arith.constant 0 : index
    %55 = vector.load %arg1[%c0_30, %c20, %c0_31] : memref<1x342x8xf32, #tpu.memory_space<vmem>>, vector<1x288x8xf32>
    %56 = vector.shape_cast %55 : vector<1x288x8xf32> to vector<288x8xf32>
    %57 = arith.truncf %56 : vector<288x8xf32> to vector<288x8xbf16>
    %c5 = arith.constant 5 : index
    %c0_32 = arith.constant 0 : index
    %c0_33 = arith.constant 0 : index
    %58 = vector.load %arg2[%c5, %c0_32, %c0_33] : memref<9x8x128xbf16, #tpu.memory_space<vmem>>, vector<1x8x128xbf16>
    %59 = vector.shape_cast %58 : vector<1x8x128xbf16> to vector<8x128xbf16>
    %cst_34 = arith.constant dense<0.000000e+00> : vector<288x128xf32>
    %60 = tpu.matmul %57, %59, %cst_34 {dimension_numbers = #tpu.dot_dimension_numbers<[1], [0], [0], [1], [0, 0, 1, 1], [], []>} : vector<288x8xbf16>, vector<8x128xbf16>, vector<288x128xf32> -> vector<288x128xf32>
    %61 = arith.addf %54, %60 : vector<288x128xf32>
    %c0_35 = arith.constant 0 : index
    %c36 = arith.constant 36 : index
    %c0_36 = arith.constant 0 : index
    %62 = vector.load %arg1[%c0_35, %c36, %c0_36] : memref<1x342x8xf32, #tpu.memory_space<vmem>>, vector<1x288x8xf32>
    %63 = vector.shape_cast %62 : vector<1x288x8xf32> to vector<288x8xf32>
    %64 = arith.truncf %63 : vector<288x8xf32> to vector<288x8xbf16>
    %c6 = arith.constant 6 : index
    %c0_37 = arith.constant 0 : index
    %c0_38 = arith.constant 0 : index
    %65 = vector.load %arg2[%c6, %c0_37, %c0_38] : memref<9x8x128xbf16, #tpu.memory_space<vmem>>, vector<1x8x128xbf16>
    %66 = vector.shape_cast %65 : vector<1x8x128xbf16> to vector<8x128xbf16>
    %cst_39 = arith.constant dense<0.000000e+00> : vector<288x128xf32>
    %67 = tpu.matmul %64, %66, %cst_39 {dimension_numbers = #tpu.dot_dimension_numbers<[1], [0], [0], [1], [0, 0, 1, 1], [], []>} : vector<288x8xbf16>, vector<8x128xbf16>, vector<288x128xf32> -> vector<288x128xf32>
    %68 = arith.addf %61, %67 : vector<288x128xf32>
    %c0_40 = arith.constant 0 : index
    %c37 = arith.constant 37 : index
    %c0_41 = arith.constant 0 : index
    %69 = vector.load %arg1[%c0_40, %c37, %c0_41] : memref<1x342x8xf32, #tpu.memory_space<vmem>>, vector<1x288x8xf32>
    %70 = vector.shape_cast %69 : vector<1x288x8xf32> to vector<288x8xf32>
    %71 = arith.truncf %70 : vector<288x8xf32> to vector<288x8xbf16>
    %c7 = arith.constant 7 : index
    %c0_42 = arith.constant 0 : index
    %c0_43 = arith.constant 0 : index
    %72 = vector.load %arg2[%c7, %c0_42, %c0_43] : memref<9x8x128xbf16, #tpu.memory_space<vmem>>, vector<1x8x128xbf16>
    %73 = vector.shape_cast %72 : vector<1x8x128xbf16> to vector<8x128xbf16>
    %cst_44 = arith.constant dense<0.000000e+00> : vector<288x128xf32>
    %74 = tpu.matmul %71, %73, %cst_44 {dimension_numbers = #tpu.dot_dimension_numbers<[1], [0], [0], [1], [0, 0, 1, 1], [], []>} : vector<288x8xbf16>, vector<8x128xbf16>, vector<288x128xf32> -> vector<288x128xf32>
    %75 = arith.addf %68, %74 : vector<288x128xf32>
    %c0_45 = arith.constant 0 : index
    %c38 = arith.constant 38 : index
    %c0_46 = arith.constant 0 : index
    %76 = vector.load %arg1[%c0_45, %c38, %c0_46] : memref<1x342x8xf32, #tpu.memory_space<vmem>>, vector<1x288x8xf32>
    %77 = vector.shape_cast %76 : vector<1x288x8xf32> to vector<288x8xf32>
    %78 = arith.truncf %77 : vector<288x8xf32> to vector<288x8xbf16>
    %c8 = arith.constant 8 : index
    %c0_47 = arith.constant 0 : index
    %c0_48 = arith.constant 0 : index
    %79 = vector.load %arg2[%c8, %c0_47, %c0_48] : memref<9x8x128xbf16, #tpu.memory_space<vmem>>, vector<1x8x128xbf16>
    %80 = vector.shape_cast %79 : vector<1x8x128xbf16> to vector<8x128xbf16>
    %cst_49 = arith.constant dense<0.000000e+00> : vector<288x128xf32>
    %81 = tpu.matmul %78, %80, %cst_49 {dimension_numbers = #tpu.dot_dimension_numbers<[1], [0], [0], [1], [0, 0, 1, 1], [], []>} : vector<288x8xbf16>, vector<8x128xbf16>, vector<288x128xf32> -> vector<288x128xf32>
    %82 = arith.addf %75, %81 : vector<288x128xf32>
    %83 = vector.broadcast %20 : vector<288x1xf32> to vector<288x128xf32>
    %84 = arith.mulf %82, %83 : vector<288x128xf32>
    %cst_50 = arith.constant dense<0.000000e+00> : vector<128xf32>
    %85 = vector.multi_reduction <add>, %84, %cst_50 [0] : vector<288x128xf32> to vector<128xf32>
    %86 = vector.shape_cast %85 : vector<128xf32> to vector<1x128xf32>
    %87 = vector.shape_cast %86 : vector<1x128xf32> to vector<1x128xf32>
    %88 = vector.broadcast %87 : vector<1x128xf32> to vector<8x128xf32>
    %c0_51 = arith.constant 0 : index
    %c0_52 = arith.constant 0 : index
    %c0_53 = arith.constant 0 : index
    %89 = vector.load %arg3[%c0_51, %c0_52, %c0_53] : memref<1x8x128xf32, #tpu.memory_space<vmem>>, vector<1x8x128xf32>
    %90 = vector.shape_cast %89 : vector<1x8x128xf32> to vector<8x128xf32>
    %91 = vector.shape_cast %88 : vector<8x128xf32> to vector<1x8x128xf32>
    tpu.vector_store %arg3[%c0_51, %c0_52, %c0_53], %91 {strides = array<i32>} : memref<1x8x128xf32, #tpu.memory_space<vmem>>, vector<1x8x128xf32>,
    %92 = arith.mulf %84, %84 : vector<288x128xf32>
    %cst_54 = arith.constant dense<0.000000e+00> : vector<128xf32>
    %93 = vector.multi_reduction <add>, %92, %cst_54 [0] : vector<288x128xf32> to vector<128xf32>
    %94 = vector.shape_cast %93 : vector<128xf32> to vector<1x128xf32>
    %95 = vector.shape_cast %94 : vector<1x128xf32> to vector<1x128xf32>
    %96 = vector.broadcast %95 : vector<1x128xf32> to vector<8x128xf32>
    %c0_55 = arith.constant 0 : index
    %c0_56 = arith.constant 0 : index
    %c0_57 = arith.constant 0 : index
    %97 = vector.load %arg4[%c0_55, %c0_56, %c0_57] : memref<1x8x128xf32, #tpu.memory_space<vmem>>, vector<1x8x128xf32>
    %98 = vector.shape_cast %97 : vector<1x8x128xf32> to vector<8x128xf32>
    %99 = vector.shape_cast %96 : vector<8x128xf32> to vector<1x8x128xf32>
    tpu.vector_store %arg4[%c0_55, %c0_56, %c0_57], %99 {strides = array<i32>} : memref<1x8x128xf32, #tpu.memory_space<vmem>>, vector<1x8x128xf32>,
    return
  }
  func.func @transform_0(%arg0: i32) -> (i32, i32, i32) {
    %c0_i32 = arith.constant 0 : i32
    %c0_i32_0 = arith.constant 0 : i32
    %c0_i32_1 = arith.constant 0 : i32
    return %arg0, %c0_i32, %c0_i32_0 : i32, i32, i32
  }
  func.func @transform_1(%arg0: i32) -> (i32, i32, i32) {
    %c0_i32 = arith.constant 0 : i32
    %c0_i32_0 = arith.constant 0 : i32
    %c0_i32_1 = arith.constant 0 : i32
    %c0_i32_2 = arith.constant 0 : i32
    return %c0_i32, %c0_i32_0, %c0_i32_1 : i32, i32, i32
  }
  func.func @transform_2(%arg0: i32) -> (i32, i32, i32) {
    %c0_i32 = arith.constant 0 : i32
    %c0_i32_0 = arith.constant 0 : i32
    %c0_i32_1 = arith.constant 0 : i32
    return %arg0, %c0_i32, %c0_i32_0 : i32, i32, i32
  }
  func.func @transform_3(%arg0: i32) -> (i32, i32, i32) {
    %c0_i32 = arith.constant 0 : i32
    %c0_i32_0 = arith.constant 0 : i32
    %c0_i32_1 = arith.constant 0 : i32
    return %arg0, %c0_i32, %c0_i32_0 : i32, i32, i32
  }
}

module attributes {stable_mosaic.version = 11 : i64} {
  func.func @_fused_conv_kernel(%arg0: i32, %arg1: memref<1x342x8xf32, #tpu.memory_space<vmem>>, %arg2: memref<1x128xf32, #tpu.memory_space<vmem>>, %arg3: memref<1x128xf32, #tpu.memory_space<vmem>>, %arg4: memref<9x8x128xbf16, #tpu.memory_space<vmem>>, %arg5: memref<9x128x128xbf16, #tpu.memory_space<vmem>>, %arg6: memref<1x288x128xf32, #tpu.memory_space<vmem>>, %arg7: memref<1x8x128xf32, #tpu.memory_space<vmem>>, %arg8: memref<1x8x128xf32, #tpu.memory_space<vmem>>, %arg9: memref<352x128xbf16, #tpu.memory_space<vmem>>) attributes {dimension_semantics = [#tpu.dimension_semantics<parallel>], iteration_bounds = array<i64: 2>, scalar_prefetch = 0 : i64, scratch_operands = 1 : i64, tpu.core_type = #tpu.core_type<tc>, window_params = [{transform_indices = @transform_0, window_bounds = array<i64: 1, 342, 8>}, {pipeline_mode = #tpu.pipeline_mode<synchronous>, transform_indices = @transform_1, window_bounds = array<i64: 1, 128>}, {pipeline_mode = #tpu.pipeline_mode<synchronous>, transform_indices = @transform_2, window_bounds = array<i64: 1, 128>}, {pipeline_mode = #tpu.pipeline_mode<synchronous>, transform_indices = @transform_3, window_bounds = array<i64: 9, 8, 128>}, {pipeline_mode = #tpu.pipeline_mode<synchronous>, transform_indices = @transform_4, window_bounds = array<i64: 9, 128, 128>}, {transform_indices = @transform_5, window_bounds = array<i64: 1, 288, 128>}, {transform_indices = @transform_6, window_bounds = array<i64: 1, 8, 128>}, {transform_indices = @transform_7, window_bounds = array<i64: 1, 8, 128>}]} {
    %0 = tpu.iota {dimensions = array<i32: 0>} : vector<288x1xi32>
    %c18_i32 = arith.constant 18 : i32
    %c0_i32 = arith.constant 0 : i32
    %1 = arith.cmpi eq, %c18_i32, %c0_i32 : i32
    %c1_i32 = arith.constant 1 : i32
    %2 = arith.select %1, %c1_i32, %c18_i32 : i32
    %3 = vector.broadcast %2 : i32 to vector<288x1xi32>
    %4 = arith.remsi %0, %3 : vector<288x1xi32>
    %c0_i32_0 = arith.constant 0 : i32
    %5 = vector.broadcast %c0_i32_0 : i32 to vector<288x1xi32>
    %6 = arith.cmpi ne, %4, %5 : vector<288x1xi32>
    %c0_i32_1 = arith.constant 0 : i32
    %7 = vector.broadcast %c0_i32_1 : i32 to vector<288x1xi32>
    %8 = arith.cmpi slt, %4, %7 : vector<288x1xi32>
    %c0_i32_2 = arith.constant 0 : i32
    %9 = arith.cmpi slt, %2, %c0_i32_2 : i32
    %10 = vector.broadcast %9 : i1 to vector<288x1xi1>
    %11 = vector.broadcast %10 : vector<288x1xi1> to vector<288x1xi1>
    %12 = arith.xori %8, %11 : vector<288x1xi1>
    %13 = arith.andi %12, %6 : vector<288x1xi1>
    %14 = vector.broadcast %2 : i32 to vector<288x1xi32>
    %15 = arith.addi %4, %14 : vector<288x1xi32>
    %16 = arith.select %13, %15, %4 : vector<288x1xi1>, vector<288x1xi32>
    %c16_i32 = arith.constant 16 : i32
    %17 = vector.broadcast %c16_i32 : i32 to vector<288x1xi32>
    %18 = arith.cmpi slt, %16, %17 : vector<288x1xi32>
    %19 = arith.extui %18 : vector<288x1xi1> to vector<288x1xi32>
    %20 = arith.sitofp %19 : vector<288x1xi32> to vector<288x1xf32>
    %c0 = arith.constant 0 : index
    %c0_3 = arith.constant 0 : index
    %c0_4 = arith.constant 0 : index
    %21 = vector.load %arg1[%c0, %c0_3, %c0_4] : memref<1x342x8xf32, #tpu.memory_space<vmem>>, vector<1x288x8xf32>
    %22 = vector.shape_cast %21 : vector<1x288x8xf32> to vector<288x8xf32>
    %23 = arith.truncf %22 : vector<288x8xf32> to vector<288x8xbf16>
    %c0_5 = arith.constant 0 : index
    %c0_6 = arith.constant 0 : index
    %c0_7 = arith.constant 0 : index
    %24 = vector.load %arg4[%c0_5, %c0_6, %c0_7] : memref<9x8x128xbf16, #tpu.memory_space<vmem>>, vector<1x8x128xbf16>
    %25 = vector.shape_cast %24 : vector<1x8x128xbf16> to vector<8x128xbf16>
    %cst = arith.constant dense<0.000000e+00> : vector<288x128xf32>
    %26 = tpu.matmul %23, %25, %cst {dimension_numbers = #tpu.dot_dimension_numbers<[1], [0], [0], [1], [0, 0, 1, 1], [], []>} : vector<288x8xbf16>, vector<8x128xbf16>, vector<288x128xf32> -> vector<288x128xf32>
    %c0_8 = arith.constant 0 : index
    %c1 = arith.constant 1 : index
    %c0_9 = arith.constant 0 : index
    %27 = vector.load %arg1[%c0_8, %c1, %c0_9] : memref<1x342x8xf32, #tpu.memory_space<vmem>>, vector<1x288x8xf32>
    %28 = vector.shape_cast %27 : vector<1x288x8xf32> to vector<288x8xf32>
    %29 = arith.truncf %28 : vector<288x8xf32> to vector<288x8xbf16>
    %c1_10 = arith.constant 1 : index
    %c0_11 = arith.constant 0 : index
    %c0_12 = arith.constant 0 : index
    %30 = vector.load %arg4[%c1_10, %c0_11, %c0_12] : memref<9x8x128xbf16, #tpu.memory_space<vmem>>, vector<1x8x128xbf16>
    %31 = vector.shape_cast %30 : vector<1x8x128xbf16> to vector<8x128xbf16>
    %cst_13 = arith.constant dense<0.000000e+00> : vector<288x128xf32>
    %32 = tpu.matmul %29, %31, %cst_13 {dimension_numbers = #tpu.dot_dimension_numbers<[1], [0], [0], [1], [0, 0, 1, 1], [], []>} : vector<288x8xbf16>, vector<8x128xbf16>, vector<288x128xf32> -> vector<288x128xf32>
    %33 = arith.addf %26, %32 : vector<288x128xf32>
    %c0_14 = arith.constant 0 : index
    %c2 = arith.constant 2 : index
    %c0_15 = arith.constant 0 : index
    %34 = vector.load %arg1[%c0_14, %c2, %c0_15] : memref<1x342x8xf32, #tpu.memory_space<vmem>>, vector<1x288x8xf32>
    %35 = vector.shape_cast %34 : vector<1x288x8xf32> to vector<288x8xf32>
    %36 = arith.truncf %35 : vector<288x8xf32> to vector<288x8xbf16>
    %c2_16 = arith.constant 2 : index
    %c0_17 = arith.constant 0 : index
    %c0_18 = arith.constant 0 : index
    %37 = vector.load %arg4[%c2_16, %c0_17, %c0_18] : memref<9x8x128xbf16, #tpu.memory_space<vmem>>, vector<1x8x128xbf16>
    %38 = vector.shape_cast %37 : vector<1x8x128xbf16> to vector<8x128xbf16>
    %cst_19 = arith.constant dense<0.000000e+00> : vector<288x128xf32>
    %39 = tpu.matmul %36, %38, %cst_19 {dimension_numbers = #tpu.dot_dimension_numbers<[1], [0], [0], [1], [0, 0, 1, 1], [], []>} : vector<288x8xbf16>, vector<8x128xbf16>, vector<288x128xf32> -> vector<288x128xf32>
    %40 = arith.addf %33, %39 : vector<288x128xf32>
    %c0_20 = arith.constant 0 : index
    %c18 = arith.constant 18 : index
    %c0_21 = arith.constant 0 : index
    %41 = vector.load %arg1[%c0_20, %c18, %c0_21] : memref<1x342x8xf32, #tpu.memory_space<vmem>>, vector<1x288x8xf32>
    %42 = vector.shape_cast %41 : vector<1x288x8xf32> to vector<288x8xf32>
    %43 = arith.truncf %42 : vector<288x8xf32> to vector<288x8xbf16>
    %c3 = arith.constant 3 : index
    %c0_22 = arith.constant 0 : index
    %c0_23 = arith.constant 0 : index
    %44 = vector.load %arg4[%c3, %c0_22, %c0_23] : memref<9x8x128xbf16, #tpu.memory_space<vmem>>, vector<1x8x128xbf16>
    %45 = vector.shape_cast %44 : vector<1x8x128xbf16> to vector<8x128xbf16>
    %cst_24 = arith.constant dense<0.000000e+00> : vector<288x128xf32>
    %46 = tpu.matmul %43, %45, %cst_24 {dimension_numbers = #tpu.dot_dimension_numbers<[1], [0], [0], [1], [0, 0, 1, 1], [], []>} : vector<288x8xbf16>, vector<8x128xbf16>, vector<288x128xf32> -> vector<288x128xf32>
    %47 = arith.addf %40, %46 : vector<288x128xf32>
    %c0_25 = arith.constant 0 : index
    %c19 = arith.constant 19 : index
    %c0_26 = arith.constant 0 : index
    %48 = vector.load %arg1[%c0_25, %c19, %c0_26] : memref<1x342x8xf32, #tpu.memory_space<vmem>>, vector<1x288x8xf32>
    %49 = vector.shape_cast %48 : vector<1x288x8xf32> to vector<288x8xf32>
    %50 = arith.truncf %49 : vector<288x8xf32> to vector<288x8xbf16>
    %c4 = arith.constant 4 : index
    %c0_27 = arith.constant 0 : index
    %c0_28 = arith.constant 0 : index
    %51 = vector.load %arg4[%c4, %c0_27, %c0_28] : memref<9x8x128xbf16, #tpu.memory_space<vmem>>, vector<1x8x128xbf16>
    %52 = vector.shape_cast %51 : vector<1x8x128xbf16> to vector<8x128xbf16>
    %cst_29 = arith.constant dense<0.000000e+00> : vector<288x128xf32>
    %53 = tpu.matmul %50, %52, %cst_29 {dimension_numbers = #tpu.dot_dimension_numbers<[1], [0], [0], [1], [0, 0, 1, 1], [], []>} : vector<288x8xbf16>, vector<8x128xbf16>, vector<288x128xf32> -> vector<288x128xf32>
    %54 = arith.addf %47, %53 : vector<288x128xf32>
    %c0_30 = arith.constant 0 : index
    %c20 = arith.constant 20 : index
    %c0_31 = arith.constant 0 : index
    %55 = vector.load %arg1[%c0_30, %c20, %c0_31] : memref<1x342x8xf32, #tpu.memory_space<vmem>>, vector<1x288x8xf32>
    %56 = vector.shape_cast %55 : vector<1x288x8xf32> to vector<288x8xf32>
    %57 = arith.truncf %56 : vector<288x8xf32> to vector<288x8xbf16>
    %c5 = arith.constant 5 : index
    %c0_32 = arith.constant 0 : index
    %c0_33 = arith.constant 0 : index
    %58 = vector.load %arg4[%c5, %c0_32, %c0_33] : memref<9x8x128xbf16, #tpu.memory_space<vmem>>, vector<1x8x128xbf16>
    %59 = vector.shape_cast %58 : vector<1x8x128xbf16> to vector<8x128xbf16>
    %cst_34 = arith.constant dense<0.000000e+00> : vector<288x128xf32>
    %60 = tpu.matmul %57, %59, %cst_34 {dimension_numbers = #tpu.dot_dimension_numbers<[1], [0], [0], [1], [0, 0, 1, 1], [], []>} : vector<288x8xbf16>, vector<8x128xbf16>, vector<288x128xf32> -> vector<288x128xf32>
    %61 = arith.addf %54, %60 : vector<288x128xf32>
    %c0_35 = arith.constant 0 : index
    %c36 = arith.constant 36 : index
    %c0_36 = arith.constant 0 : index
    %62 = vector.load %arg1[%c0_35, %c36, %c0_36] : memref<1x342x8xf32, #tpu.memory_space<vmem>>, vector<1x288x8xf32>
    %63 = vector.shape_cast %62 : vector<1x288x8xf32> to vector<288x8xf32>
    %64 = arith.truncf %63 : vector<288x8xf32> to vector<288x8xbf16>
    %c6 = arith.constant 6 : index
    %c0_37 = arith.constant 0 : index
    %c0_38 = arith.constant 0 : index
    %65 = vector.load %arg4[%c6, %c0_37, %c0_38] : memref<9x8x128xbf16, #tpu.memory_space<vmem>>, vector<1x8x128xbf16>
    %66 = vector.shape_cast %65 : vector<1x8x128xbf16> to vector<8x128xbf16>
    %cst_39 = arith.constant dense<0.000000e+00> : vector<288x128xf32>
    %67 = tpu.matmul %64, %66, %cst_39 {dimension_numbers = #tpu.dot_dimension_numbers<[1], [0], [0], [1], [0, 0, 1, 1], [], []>} : vector<288x8xbf16>, vector<8x128xbf16>, vector<288x128xf32> -> vector<288x128xf32>
    %68 = arith.addf %61, %67 : vector<288x128xf32>
    %c0_40 = arith.constant 0 : index
    %c37 = arith.constant 37 : index
    %c0_41 = arith.constant 0 : index
    %69 = vector.load %arg1[%c0_40, %c37, %c0_41] : memref<1x342x8xf32, #tpu.memory_space<vmem>>, vector<1x288x8xf32>
    %70 = vector.shape_cast %69 : vector<1x288x8xf32> to vector<288x8xf32>
    %71 = arith.truncf %70 : vector<288x8xf32> to vector<288x8xbf16>
    %c7 = arith.constant 7 : index
    %c0_42 = arith.constant 0 : index
    %c0_43 = arith.constant 0 : index
    %72 = vector.load %arg4[%c7, %c0_42, %c0_43] : memref<9x8x128xbf16, #tpu.memory_space<vmem>>, vector<1x8x128xbf16>
    %73 = vector.shape_cast %72 : vector<1x8x128xbf16> to vector<8x128xbf16>
    %cst_44 = arith.constant dense<0.000000e+00> : vector<288x128xf32>
    %74 = tpu.matmul %71, %73, %cst_44 {dimension_numbers = #tpu.dot_dimension_numbers<[1], [0], [0], [1], [0, 0, 1, 1], [], []>} : vector<288x8xbf16>, vector<8x128xbf16>, vector<288x128xf32> -> vector<288x128xf32>
    %75 = arith.addf %68, %74 : vector<288x128xf32>
    %c0_45 = arith.constant 0 : index
    %c38 = arith.constant 38 : index
    %c0_46 = arith.constant 0 : index
    %76 = vector.load %arg1[%c0_45, %c38, %c0_46] : memref<1x342x8xf32, #tpu.memory_space<vmem>>, vector<1x288x8xf32>
    %77 = vector.shape_cast %76 : vector<1x288x8xf32> to vector<288x8xf32>
    %78 = arith.truncf %77 : vector<288x8xf32> to vector<288x8xbf16>
    %c8 = arith.constant 8 : index
    %c0_47 = arith.constant 0 : index
    %c0_48 = arith.constant 0 : index
    %79 = vector.load %arg4[%c8, %c0_47, %c0_48] : memref<9x8x128xbf16, #tpu.memory_space<vmem>>, vector<1x8x128xbf16>
    %80 = vector.shape_cast %79 : vector<1x8x128xbf16> to vector<8x128xbf16>
    %cst_49 = arith.constant dense<0.000000e+00> : vector<288x128xf32>
    %81 = tpu.matmul %78, %80, %cst_49 {dimension_numbers = #tpu.dot_dimension_numbers<[1], [0], [0], [1], [0, 0, 1, 1], [], []>} : vector<288x8xbf16>, vector<8x128xbf16>, vector<288x128xf32> -> vector<288x128xf32>
    %82 = arith.addf %75, %81 : vector<288x128xf32>
    %c0_50 = arith.constant 0 : index
    %c0_51 = arith.constant 0 : index
    %83 = vector.load %arg2[%c0_50, %c0_51] : memref<1x128xf32, #tpu.memory_space<vmem>>, vector<1x128xf32>
    %84 = vector.broadcast %83 : vector<1x128xf32> to vector<288x128xf32>
    %85 = arith.mulf %82, %84 : vector<288x128xf32>
    %c0_52 = arith.constant 0 : index
    %c0_53 = arith.constant 0 : index
    %86 = vector.load %arg3[%c0_52, %c0_53] : memref<1x128xf32, #tpu.memory_space<vmem>>, vector<1x128xf32>
    %87 = vector.broadcast %86 : vector<1x128xf32> to vector<288x128xf32>
    %88 = arith.addf %85, %87 : vector<288x128xf32>
    %cst_54 = arith.constant 0.000000e+00 : f32
    %89 = vector.broadcast %cst_54 : f32 to vector<288x128xf32>
    %90 = arith.maximumf %88, %89 : vector<288x128xf32>
    %91 = vector.broadcast %20 : vector<288x1xf32> to vector<288x128xf32>
    %92 = arith.mulf %90, %91 : vector<288x128xf32>
    %cst_55 = arith.constant 0.000000e+00 : bf16
    %93 = vector.broadcast %cst_55 : bf16 to vector<32x128xbf16>
    %c0_56 = arith.constant 0 : index
    %c0_57 = arith.constant 0 : index
    %94 = vector.load %arg9[%c0_56, %c0_57] : memref<352x128xbf16, #tpu.memory_space<vmem>>, vector<32x128xbf16>
    tpu.vector_store %arg9[%c0_56, %c0_57], %93 {strides = array<i32>} : memref<352x128xbf16, #tpu.memory_space<vmem>>, vector<32x128xbf16>,
    %cst_58 = arith.constant 0.000000e+00 : bf16
    %95 = vector.broadcast %cst_58 : bf16 to vector<32x128xbf16>
    %c320 = arith.constant 320 : index
    %c0_59 = arith.constant 0 : index
    %96 = vector.load %arg9[%c320, %c0_59] : memref<352x128xbf16, #tpu.memory_space<vmem>>, vector<32x128xbf16>
    tpu.vector_store %arg9[%c320, %c0_59], %95 {strides = array<i32>} : memref<352x128xbf16, #tpu.memory_space<vmem>>, vector<32x128xbf16>,
    %97 = arith.truncf %92 : vector<288x128xf32> to vector<288x128xbf16>
    %c32 = arith.constant 32 : index
    %c0_60 = arith.constant 0 : index
    %98 = vector.load %arg9[%c32, %c0_60] : memref<352x128xbf16, #tpu.memory_space<vmem>>, vector<288x128xbf16>
    tpu.vector_store %arg9[%c32, %c0_60], %97 {strides = array<i32>} : memref<352x128xbf16, #tpu.memory_space<vmem>>, vector<288x128xbf16>,
    %c13 = arith.constant 13 : index
    %c0_61 = arith.constant 0 : index
    %99 = vector.load %arg9[%c13, %c0_61] : memref<352x128xbf16, #tpu.memory_space<vmem>>, vector<288x128xbf16>
    %c0_62 = arith.constant 0 : index
    %c0_63 = arith.constant 0 : index
    %c0_64 = arith.constant 0 : index
    %100 = vector.load %arg5[%c0_62, %c0_63, %c0_64] : memref<9x128x128xbf16, #tpu.memory_space<vmem>>, vector<1x128x128xbf16>
    %101 = vector.shape_cast %100 : vector<1x128x128xbf16> to vector<128x128xbf16>
    %cst_65 = arith.constant dense<0.000000e+00> : vector<288x128xf32>
    %102 = tpu.matmul %99, %101, %cst_65 {dimension_numbers = #tpu.dot_dimension_numbers<[1], [0], [0], [1], [0, 0, 1, 1], [], []>} : vector<288x128xbf16>, vector<128x128xbf16>, vector<288x128xf32> -> vector<288x128xf32>
    %c14 = arith.constant 14 : index
    %c0_66 = arith.constant 0 : index
    %103 = vector.load %arg9[%c14, %c0_66] : memref<352x128xbf16, #tpu.memory_space<vmem>>, vector<288x128xbf16>
    %c1_67 = arith.constant 1 : index
    %c0_68 = arith.constant 0 : index
    %c0_69 = arith.constant 0 : index
    %104 = vector.load %arg5[%c1_67, %c0_68, %c0_69] : memref<9x128x128xbf16, #tpu.memory_space<vmem>>, vector<1x128x128xbf16>
    %105 = vector.shape_cast %104 : vector<1x128x128xbf16> to vector<128x128xbf16>
    %cst_70 = arith.constant dense<0.000000e+00> : vector<288x128xf32>
    %106 = tpu.matmul %103, %105, %cst_70 {dimension_numbers = #tpu.dot_dimension_numbers<[1], [0], [0], [1], [0, 0, 1, 1], [], []>} : vector<288x128xbf16>, vector<128x128xbf16>, vector<288x128xf32> -> vector<288x128xf32>
    %107 = arith.addf %102, %106 : vector<288x128xf32>
    %c15 = arith.constant 15 : index
    %c0_71 = arith.constant 0 : index
    %108 = vector.load %arg9[%c15, %c0_71] : memref<352x128xbf16, #tpu.memory_space<vmem>>, vector<288x128xbf16>
    %c2_72 = arith.constant 2 : index
    %c0_73 = arith.constant 0 : index
    %c0_74 = arith.constant 0 : index
    %109 = vector.load %arg5[%c2_72, %c0_73, %c0_74] : memref<9x128x128xbf16, #tpu.memory_space<vmem>>, vector<1x128x128xbf16>
    %110 = vector.shape_cast %109 : vector<1x128x128xbf16> to vector<128x128xbf16>
    %cst_75 = arith.constant dense<0.000000e+00> : vector<288x128xf32>
    %111 = tpu.matmul %108, %110, %cst_75 {dimension_numbers = #tpu.dot_dimension_numbers<[1], [0], [0], [1], [0, 0, 1, 1], [], []>} : vector<288x128xbf16>, vector<128x128xbf16>, vector<288x128xf32> -> vector<288x128xf32>
    %112 = arith.addf %107, %111 : vector<288x128xf32>
    %c31 = arith.constant 31 : index
    %c0_76 = arith.constant 0 : index
    %113 = vector.load %arg9[%c31, %c0_76] : memref<352x128xbf16, #tpu.memory_space<vmem>>, vector<288x128xbf16>
    %c3_77 = arith.constant 3 : index
    %c0_78 = arith.constant 0 : index
    %c0_79 = arith.constant 0 : index
    %114 = vector.load %arg5[%c3_77, %c0_78, %c0_79] : memref<9x128x128xbf16, #tpu.memory_space<vmem>>, vector<1x128x128xbf16>
    %115 = vector.shape_cast %114 : vector<1x128x128xbf16> to vector<128x128xbf16>
    %cst_80 = arith.constant dense<0.000000e+00> : vector<288x128xf32>
    %116 = tpu.matmul %113, %115, %cst_80 {dimension_numbers = #tpu.dot_dimension_numbers<[1], [0], [0], [1], [0, 0, 1, 1], [], []>} : vector<288x128xbf16>, vector<128x128xbf16>, vector<288x128xf32> -> vector<288x128xf32>
    %117 = arith.addf %112, %116 : vector<288x128xf32>
    %c32_81 = arith.constant 32 : index
    %c0_82 = arith.constant 0 : index
    %118 = vector.load %arg9[%c32_81, %c0_82] : memref<352x128xbf16, #tpu.memory_space<vmem>>, vector<288x128xbf16>
    %c4_83 = arith.constant 4 : index
    %c0_84 = arith.constant 0 : index
    %c0_85 = arith.constant 0 : index
    %119 = vector.load %arg5[%c4_83, %c0_84, %c0_85] : memref<9x128x128xbf16, #tpu.memory_space<vmem>>, vector<1x128x128xbf16>
    %120 = vector.shape_cast %119 : vector<1x128x128xbf16> to vector<128x128xbf16>
    %cst_86 = arith.constant dense<0.000000e+00> : vector<288x128xf32>
    %121 = tpu.matmul %118, %120, %cst_86 {dimension_numbers = #tpu.dot_dimension_numbers<[1], [0], [0], [1], [0, 0, 1, 1], [], []>} : vector<288x128xbf16>, vector<128x128xbf16>, vector<288x128xf32> -> vector<288x128xf32>
    %122 = arith.addf %117, %121 : vector<288x128xf32>
    %c33 = arith.constant 33 : index
    %c0_87 = arith.constant 0 : index
    %123 = vector.load %arg9[%c33, %c0_87] : memref<352x128xbf16, #tpu.memory_space<vmem>>, vector<288x128xbf16>
    %c5_88 = arith.constant 5 : index
    %c0_89 = arith.constant 0 : index
    %c0_90 = arith.constant 0 : index
    %124 = vector.load %arg5[%c5_88, %c0_89, %c0_90] : memref<9x128x128xbf16, #tpu.memory_space<vmem>>, vector<1x128x128xbf16>
    %125 = vector.shape_cast %124 : vector<1x128x128xbf16> to vector<128x128xbf16>
    %cst_91 = arith.constant dense<0.000000e+00> : vector<288x128xf32>
    %126 = tpu.matmul %123, %125, %cst_91 {dimension_numbers = #tpu.dot_dimension_numbers<[1], [0], [0], [1], [0, 0, 1, 1], [], []>} : vector<288x128xbf16>, vector<128x128xbf16>, vector<288x128xf32> -> vector<288x128xf32>
    %127 = arith.addf %122, %126 : vector<288x128xf32>
    %c49 = arith.constant 49 : index
    %c0_92 = arith.constant 0 : index
    %128 = vector.load %arg9[%c49, %c0_92] : memref<352x128xbf16, #tpu.memory_space<vmem>>, vector<288x128xbf16>
    %c6_93 = arith.constant 6 : index
    %c0_94 = arith.constant 0 : index
    %c0_95 = arith.constant 0 : index
    %129 = vector.load %arg5[%c6_93, %c0_94, %c0_95] : memref<9x128x128xbf16, #tpu.memory_space<vmem>>, vector<1x128x128xbf16>
    %130 = vector.shape_cast %129 : vector<1x128x128xbf16> to vector<128x128xbf16>
    %cst_96 = arith.constant dense<0.000000e+00> : vector<288x128xf32>
    %131 = tpu.matmul %128, %130, %cst_96 {dimension_numbers = #tpu.dot_dimension_numbers<[1], [0], [0], [1], [0, 0, 1, 1], [], []>} : vector<288x128xbf16>, vector<128x128xbf16>, vector<288x128xf32> -> vector<288x128xf32>
    %132 = arith.addf %127, %131 : vector<288x128xf32>
    %c50 = arith.constant 50 : index
    %c0_97 = arith.constant 0 : index
    %133 = vector.load %arg9[%c50, %c0_97] : memref<352x128xbf16, #tpu.memory_space<vmem>>, vector<288x128xbf16>
    %c7_98 = arith.constant 7 : index
    %c0_99 = arith.constant 0 : index
    %c0_100 = arith.constant 0 : index
    %134 = vector.load %arg5[%c7_98, %c0_99, %c0_100] : memref<9x128x128xbf16, #tpu.memory_space<vmem>>, vector<1x128x128xbf16>
    %135 = vector.shape_cast %134 : vector<1x128x128xbf16> to vector<128x128xbf16>
    %cst_101 = arith.constant dense<0.000000e+00> : vector<288x128xf32>
    %136 = tpu.matmul %133, %135, %cst_101 {dimension_numbers = #tpu.dot_dimension_numbers<[1], [0], [0], [1], [0, 0, 1, 1], [], []>} : vector<288x128xbf16>, vector<128x128xbf16>, vector<288x128xf32> -> vector<288x128xf32>
    %137 = arith.addf %132, %136 : vector<288x128xf32>
    %c51 = arith.constant 51 : index
    %c0_102 = arith.constant 0 : index
    %138 = vector.load %arg9[%c51, %c0_102] : memref<352x128xbf16, #tpu.memory_space<vmem>>, vector<288x128xbf16>
    %c8_103 = arith.constant 8 : index
    %c0_104 = arith.constant 0 : index
    %c0_105 = arith.constant 0 : index
    %139 = vector.load %arg5[%c8_103, %c0_104, %c0_105] : memref<9x128x128xbf16, #tpu.memory_space<vmem>>, vector<1x128x128xbf16>
    %140 = vector.shape_cast %139 : vector<1x128x128xbf16> to vector<128x128xbf16>
    %cst_106 = arith.constant dense<0.000000e+00> : vector<288x128xf32>
    %141 = tpu.matmul %138, %140, %cst_106 {dimension_numbers = #tpu.dot_dimension_numbers<[1], [0], [0], [1], [0, 0, 1, 1], [], []>} : vector<288x128xbf16>, vector<128x128xbf16>, vector<288x128xf32> -> vector<288x128xf32>
    %142 = arith.addf %137, %141 : vector<288x128xf32>
    %c0_107 = arith.constant 0 : index
    %c0_108 = arith.constant 0 : index
    %c0_109 = arith.constant 0 : index
    %143 = vector.load %arg6[%c0_107, %c0_108, %c0_109] : memref<1x288x128xf32, #tpu.memory_space<vmem>>, vector<1x288x128xf32>
    %144 = vector.shape_cast %143 : vector<1x288x128xf32> to vector<288x128xf32>
    %145 = vector.shape_cast %142 : vector<288x128xf32> to vector<1x288x128xf32>
    tpu.vector_store %arg6[%c0_107, %c0_108, %c0_109], %145 {strides = array<i32>} : memref<1x288x128xf32, #tpu.memory_space<vmem>>, vector<1x288x128xf32>,
    %146 = vector.broadcast %20 : vector<288x1xf32> to vector<288x128xf32>
    %147 = arith.mulf %142, %146 : vector<288x128xf32>
    %cst_110 = arith.constant dense<0.000000e+00> : vector<128xf32>
    %148 = vector.multi_reduction <add>, %147, %cst_110 [0] : vector<288x128xf32> to vector<128xf32>
    %149 = vector.shape_cast %148 : vector<128xf32> to vector<1x128xf32>
    %150 = vector.shape_cast %149 : vector<1x128xf32> to vector<1x128xf32>
    %151 = vector.broadcast %150 : vector<1x128xf32> to vector<8x128xf32>
    %c0_111 = arith.constant 0 : index
    %c0_112 = arith.constant 0 : index
    %c0_113 = arith.constant 0 : index
    %152 = vector.load %arg7[%c0_111, %c0_112, %c0_113] : memref<1x8x128xf32, #tpu.memory_space<vmem>>, vector<1x8x128xf32>
    %153 = vector.shape_cast %152 : vector<1x8x128xf32> to vector<8x128xf32>
    %154 = vector.shape_cast %151 : vector<8x128xf32> to vector<1x8x128xf32>
    tpu.vector_store %arg7[%c0_111, %c0_112, %c0_113], %154 {strides = array<i32>} : memref<1x8x128xf32, #tpu.memory_space<vmem>>, vector<1x8x128xf32>,
    %155 = arith.mulf %147, %147 : vector<288x128xf32>
    %cst_114 = arith.constant dense<0.000000e+00> : vector<128xf32>
    %156 = vector.multi_reduction <add>, %155, %cst_114 [0] : vector<288x128xf32> to vector<128xf32>
    %157 = vector.shape_cast %156 : vector<128xf32> to vector<1x128xf32>
    %158 = vector.shape_cast %157 : vector<1x128xf32> to vector<1x128xf32>
    %159 = vector.broadcast %158 : vector<1x128xf32> to vector<8x128xf32>
    %c0_115 = arith.constant 0 : index
    %c0_116 = arith.constant 0 : index
    %c0_117 = arith.constant 0 : index
    %160 = vector.load %arg8[%c0_115, %c0_116, %c0_117] : memref<1x8x128xf32, #tpu.memory_space<vmem>>, vector<1x8x128xf32>
    %161 = vector.shape_cast %160 : vector<1x8x128xf32> to vector<8x128xf32>
    %162 = vector.shape_cast %159 : vector<8x128xf32> to vector<1x8x128xf32>
    tpu.vector_store %arg8[%c0_115, %c0_116, %c0_117], %162 {strides = array<i32>} : memref<1x8x128xf32, #tpu.memory_space<vmem>>, vector<1x8x128xf32>,
    return
  }
  func.func @transform_0(%arg0: i32) -> (i32, i32, i32) {
    %c0_i32 = arith.constant 0 : i32
    %c0_i32_0 = arith.constant 0 : i32
    %c0_i32_1 = arith.constant 0 : i32
    return %arg0, %c0_i32, %c0_i32_0 : i32, i32, i32
  }
  func.func @transform_1(%arg0: i32) -> (i32, i32) {
    %c0_i32 = arith.constant 0 : i32
    %c0_i32_0 = arith.constant 0 : i32
    %c0_i32_1 = arith.constant 0 : i32
    return %c0_i32, %c0_i32_0 : i32, i32
  }
  func.func @transform_2(%arg0: i32) -> (i32, i32) {
    %c0_i32 = arith.constant 0 : i32
    %c0_i32_0 = arith.constant 0 : i32
    %c0_i32_1 = arith.constant 0 : i32
    return %c0_i32, %c0_i32_0 : i32, i32
  }
  func.func @transform_3(%arg0: i32) -> (i32, i32, i32) {
    %c0_i32 = arith.constant 0 : i32
    %c0_i32_0 = arith.constant 0 : i32
    %c0_i32_1 = arith.constant 0 : i32
    %c0_i32_2 = arith.constant 0 : i32
    return %c0_i32, %c0_i32_0, %c0_i32_1 : i32, i32, i32
  }
  func.func @transform_4(%arg0: i32) -> (i32, i32, i32) {
    %c0_i32 = arith.constant 0 : i32
    %c0_i32_0 = arith.constant 0 : i32
    %c0_i32_1 = arith.constant 0 : i32
    %c0_i32_2 = arith.constant 0 : i32
    return %c0_i32, %c0_i32_0, %c0_i32_1 : i32, i32, i32
  }
  func.func @transform_5(%arg0: i32) -> (i32, i32, i32) {
    %c0_i32 = arith.constant 0 : i32
    %c0_i32_0 = arith.constant 0 : i32
    %c0_i32_1 = arith.constant 0 : i32
    return %arg0, %c0_i32, %c0_i32_0 : i32, i32, i32
  }
  func.func @transform_6(%arg0: i32) -> (i32, i32, i32) {
    %c0_i32 = arith.constant 0 : i32
    %c0_i32_0 = arith.constant 0 : i32
    %c0_i32_1 = arith.constant 0 : i32
    return %arg0, %c0_i32, %c0_i32_0 : i32, i32, i32
  }
  func.func @transform_7(%arg0: i32) -> (i32, i32, i32) {
    %c0_i32 = arith.constant 0 : i32
    %c0_i32_0 = arith.constant 0 : i32
    %c0_i32_1 = arith.constant 0 : i32
    return %arg0, %c0_i32, %c0_i32_0 : i32, i32, i32
  }
}

module attributes {stable_mosaic.version = 11 : i64} {
  func.func @_bn_res_relu_kernel(%arg0: i32, %arg1: memref<1x288x128xf32, #tpu.memory_space<vmem>>, %arg2: memref<1x128xf32, #tpu.memory_space<vmem>>, %arg3: memref<1x128xf32, #tpu.memory_space<vmem>>, %arg4: memref<1x342x8xf32, #tpu.memory_space<vmem>>, %arg5: memref<1x288x128xf32, #tpu.memory_space<vmem>>) attributes {dimension_semantics = [#tpu.dimension_semantics<parallel>], iteration_bounds = array<i64: 2>, scalar_prefetch = 0 : i64, scratch_operands = 0 : i64, tpu.core_type = #tpu.core_type<tc>, window_params = [{transform_indices = @transform_0, window_bounds = array<i64: 1, 288, 128>}, {pipeline_mode = #tpu.pipeline_mode<synchronous>, transform_indices = @transform_1, window_bounds = array<i64: 1, 128>}, {pipeline_mode = #tpu.pipeline_mode<synchronous>, transform_indices = @transform_2, window_bounds = array<i64: 1, 128>}, {transform_indices = @transform_3, window_bounds = array<i64: 1, 342, 8>}, {transform_indices = @transform_4, window_bounds = array<i64: 1, 288, 128>}]} {
    %c0 = arith.constant 0 : index
    %c0_0 = arith.constant 0 : index
    %c0_1 = arith.constant 0 : index
    %0 = vector.load %arg1[%c0, %c0_0, %c0_1] : memref<1x288x128xf32, #tpu.memory_space<vmem>>, vector<1x288x128xf32>
    %1 = vector.shape_cast %0 : vector<1x288x128xf32> to vector<288x128xf32>
    %c0_2 = arith.constant 0 : index
    %c0_3 = arith.constant 0 : index
    %2 = vector.load %arg2[%c0_2, %c0_3] : memref<1x128xf32, #tpu.memory_space<vmem>>, vector<1x128xf32>
    %3 = vector.broadcast %2 : vector<1x128xf32> to vector<288x128xf32>
    %4 = arith.mulf %1, %3 : vector<288x128xf32>
    %c0_4 = arith.constant 0 : index
    %c0_5 = arith.constant 0 : index
    %5 = vector.load %arg3[%c0_4, %c0_5] : memref<1x128xf32, #tpu.memory_space<vmem>>, vector<1x128xf32>
    %6 = vector.broadcast %5 : vector<1x128xf32> to vector<288x128xf32>
    %7 = arith.addf %4, %6 : vector<288x128xf32>
    %c0_6 = arith.constant 0 : index
    %c19 = arith.constant 19 : index
    %c0_7 = arith.constant 0 : index
    %8 = vector.load %arg4[%c0_6, %c19, %c0_7] : memref<1x342x8xf32, #tpu.memory_space<vmem>>, vector<1x288x8xf32>
    %9 = vector.shape_cast %8 : vector<1x288x8xf32> to vector<288x8xf32>
    %cst = arith.constant 0.000000e+00 : f32
    %10 = vector.broadcast %cst : f32 to vector<288x120xf32>
    %11 = tpu.concatenate %9, %10 in 1 : vector<288x8xf32>, vector<288x120xf32> -> vector<288x128xf32>
    %12 = arith.addf %7, %11 : vector<288x128xf32>
    %cst_8 = arith.constant 0.000000e+00 : f32
    %13 = vector.broadcast %cst_8 : f32 to vector<288x128xf32>
    %14 = arith.maximumf %12, %13 : vector<288x128xf32>
    %c0_9 = arith.constant 0 : index
    %c0_10 = arith.constant 0 : index
    %c0_11 = arith.constant 0 : index
    %15 = vector.load %arg5[%c0_9, %c0_10, %c0_11] : memref<1x288x128xf32, #tpu.memory_space<vmem>>, vector<1x288x128xf32>
    %16 = vector.shape_cast %15 : vector<1x288x128xf32> to vector<288x128xf32>
    %17 = vector.shape_cast %14 : vector<288x128xf32> to vector<1x288x128xf32>
    tpu.vector_store %arg5[%c0_9, %c0_10, %c0_11], %17 {strides = array<i32>} : memref<1x288x128xf32, #tpu.memory_space<vmem>>, vector<1x288x128xf32>,
    return
  }
  func.func @transform_0(%arg0: i32) -> (i32, i32, i32) {
    %c0_i32 = arith.constant 0 : i32
    %c0_i32_0 = arith.constant 0 : i32
    %c0_i32_1 = arith.constant 0 : i32
    return %arg0, %c0_i32, %c0_i32_0 : i32, i32, i32
  }
  func.func @transform_1(%arg0: i32) -> (i32, i32) {
    %c0_i32 = arith.constant 0 : i32
    %c0_i32_0 = arith.constant 0 : i32
    %c0_i32_1 = arith.constant 0 : i32
    return %c0_i32, %c0_i32_0 : i32, i32
  }
  func.func @transform_2(%arg0: i32) -> (i32, i32) {
    %c0_i32 = arith.constant 0 : i32
    %c0_i32_0 = arith.constant 0 : i32
    %c0_i32_1 = arith.constant 0 : i32
    return %c0_i32, %c0_i32_0 : i32, i32
  }
  func.func @transform_3(%arg0: i32) -> (i32, i32, i32) {
    %c0_i32 = arith.constant 0 : i32
    %c0_i32_0 = arith.constant 0 : i32
    %c0_i32_1 = arith.constant 0 : i32
    return %arg0, %c0_i32, %c0_i32_0 : i32, i32, i32
  }
  func.func @transform_4(%arg0: i32) -> (i32, i32, i32) {
    %c0_i32 = arith.constant 0 : i32
    %c0_i32_0 = arith.constant 0 : i32
    %c0_i32_1 = arith.constant 0 : i32
    return %arg0, %c0_i32, %c0_i32_0 : i32, i32, i32
  }
}

</mosaic_0001>

<llo_original>
// kernel: basic_block_forward.5
$region0: #{basic_block_forward.5}
  #allocation0 [shape = 'u32[]', space=smem, size = 0x4, offset = 0x4, fixed_abs, tag = 'smem constant byte address 0x4 - core index']
  #allocation1 [shape = 'u32[72,128]{1,0:T(1,128)}', space=vmem, size = 0x9000, scoped, tag = 'internal scratch']
  %s0 = inlined_call_operand.vmem [shape: f32[2,288,128], index: 0, kind: input, shape index: {}]
  %s1 = inlined_call_operand.vmem [shape: f32[1,128], index: 1, kind: input, shape index: {}]
  %s2 = inlined_call_operand.vmem [shape: f32[1,128], index: 2, kind: input, shape index: {}]
  %s3 = inlined_call_operand.vmem [shape: f32[2,342,8], index: 3, kind: input, shape index: {}]
  %s4 = inlined_call_operand.vmem [shape: f32[2,288,128], index: 4, kind: output, shape index: {}]
  %s5 = sld [smem:[#allocation0]]
  $region49: #{basic_block_forward.5} parent=0
    _
  %s7 = ssub.s32 1, %s5
  %s8 = scalar_select 0, %s7, %s5
  loop: start=0, step=1, limit=4
  $region2: #{basic_block_forward.5} parent=0 // loop_pre_header
    _
  $region3: #{basic_block_forward.5} parent=0 // loop_header
    %s10 = sphi 0, %s14
    %p11 = scmp.ge.s32.totalorder %s10, 4
    %s20 = sphi 0, %s22
    %s23 = sphi 0, %s20
    %s24 = sphi 0, %s23
    %s40 = sphi 0, %s24
    %s44 = sphi 0, %s44
    %s46 = sphi 0, %s44
    %s47 = sphi 0, %s46
    %s61 = sphi 0, %s47
    %s65 = sphi 0, %s65
    %s67 = sphi 0, %s65
    %s68 = sphi 0, %s67
    %s82 = sphi 0, %s68
    %s88 = sphi 0, %s90
    %s91 = sphi 0, %s88
    %s92 = sphi 0, %s91
    %s108 = sphi 0, %s92
    %s114 = sphi 0, %s116
    %s117 = sphi 0, %s114
    %s118 = sphi 0, %s117
    %s134 = sphi 0, %s118
  $region4: #{basic_block_forward.5} parent=0 // loop_header_branch
    %13 = sbr.rel (%p11) target = $region8
  $region5: #{basic_block_forward.5} parent=0 // loop_body
    %s15 = ssub.s32 %s10, 1
    %s16 = ssub.s32 %s10, 2
    %s17 = sadd.s32 %s10, 1
    %s18 = ssub.s32 %s10, %s17
    %p19 = scmp.eq.s32.totalorder %s18, 0
    %s21 = sadd.s32 %s20, 1
    %s22 = scalar_select %p19, %s20, %s21
    %p25 = pneg %p19
    %p26 = scmp.eq.s32.totalorder %s10, 1
    %p27 = por %p25, %p26
    %p28 = scmp.ne.s32.totalorder %s20, %s23
    %p29 = scmp.eq.s32.totalorder %s10, 0
    %p30 = por %p28, %p29
    %p31 = scmp.ne.s32.totalorder %s20, %s23
    %p32 = scmp.eq.s32.totalorder %s15, 1
    %p33 = por %p31, %p32
    %p34 = scmp.ne.s32.totalorder %s23, %s24
    %p35 = scmp.eq.s32.totalorder %s15, 0
    %p36 = por %p34, %p35
    %p37 = scmp.ne.s32.totalorder %s23, %s24
    %p38 = scmp.eq.s32.totalorder %s16, 1
    %p39 = por %p37, %p38
    %p41 = scmp.ne.s32.totalorder %s24, %s40
    %p42 = scmp.eq.s32.totalorder %s16, 0
    %p43 = por %p41, %p42
    %s45 = sadd.s32 %s44, 1
    %p48 = scmp.eq.s32.totalorder %s10, 1
    %p49 = scmp.ne.s32.totalorder %s44, %s46
    %p50 = scmp.eq.s32.totalorder %s10, 0
    %p51 = por %p49, %p50
    %p52 = scmp.ne.s32.totalorder %s44, %s46
    %p53 = scmp.eq.s32.totalorder %s15, 1
    %p54 = por %p52, %p53
    %p55 = scmp.ne.s32.totalorder %s46, %s47
    %p56 = scmp.eq.s32.totalorder %s15, 0
    %p57 = por %p55, %p56
    %p58 = scmp.ne.s32.totalorder %s46, %s47
    %p59 = scmp.eq.s32.totalorder %s16, 1
    %p60 = por %p58, %p59
    %p62 = scmp.ne.s32.totalorder %s47, %s61
    %p63 = scmp.eq.s32.totalorder %s16, 0
    %p64 = por %p62, %p63
    %s66 = sadd.s32 %s65, 1
    %p69 = scmp.eq.s32.totalorder %s10, 1
    %p70 = scmp.ne.s32.totalorder %s65, %s67
    %p71 = scmp.eq.s32.totalorder %s10, 0
    %p72 = por %p70, %p71
    %p73 = scmp.ne.s32.totalorder %s65, %s67
    %p74 = scmp.eq.s32.totalorder %s15, 1
    %p75 = por %p73, %p74
    %p76 = scmp.ne.s32.totalorder %s67, %s68
    %p77 = scmp.eq.s32.totalorder %s15, 0
    %p78 = por %p76, %p77
    %p79 = scmp.ne.s32.totalorder %s67, %s68
    %p80 = scmp.eq.s32.totalorder %s16, 1
    %p81 = por %p79, %p80
    %p83 = scmp.ne.s32.totalorder %s68, %s82
    %p84 = scmp.eq.s32.totalorder %s16, 0
    %p85 = por %p83, %p84
    %s86 = ssub.s32 %s10, %s17
    %p87 = scmp.eq.s32.totalorder %s86, 0
    %s89 = sadd.s32 %s88, 1
    %s90 = scalar_select %p87, %s88, %s89
    %p93 = pneg %p87
    %p94 = scmp.eq.s32.totalorder %s10, 1
    %p95 = por %p93, %p94
    %p96 = scmp.ne.s32.totalorder %s88, %s91
    %p97 = scmp.eq.s32.totalorder %s10, 0
    %p98 = por %p96, %p97
    %p99 = scmp.ne.s32.totalorder %s88, %s91
    %p100 = scmp.eq.s32.totalorder %s15, 1
    %p101 = por %p99, %p100
    %p102 = scmp.ne.s32.totalorder %s91, %s92
    %p103 = scmp.eq.s32.totalorder %s15, 0
    %p104 = por %p102, %p103
    %p105 = scmp.ne.s32.totalorder %s91, %s92
    %p106 = scmp.eq.s32.totalorder %s16, 1
    %p107 = por %p105, %p106
    %p109 = scmp.ne.s32.totalorder %s92, %s108
    %p110 = scmp.eq.s32.totalorder %s16, 0
    %p111 = por %p109, %p110
    %s112 = ssub.s32 %s10, %s17
    %p113 = scmp.eq.s32.totalorder %s112, 0
    %s115 = sadd.s32 %s114, 1
    %s116 = scalar_select %p113, %s114, %s115
    %p119 = pneg %p113
    %p120 = scmp.eq.s32.totalorder %s10, 1
    %p121 = por %p119, %p120
    %p122 = scmp.ne.s32.totalorder %s114, %s117
    %p123 = scmp.eq.s32.totalorder %s10, 0
    %p124 = por %p122, %p123
    %p125 = scmp.ne.s32.totalorder %s114, %s117
    %p126 = scmp.eq.s32.totalorder %s15, 1
    %p127 = por %p125, %p126
    %p128 = scmp.ne.s32.totalorder %s117, %s118
    %p129 = scmp.eq.s32.totalorder %s15, 0
    %p130 = por %p128, %p129
    %p131 = scmp.ne.s32.totalorder %s117, %s118
    %p132 = scmp.eq.s32.totalorder %s16, 1
    %p133 = por %p131, %p132
    %p135 = scmp.ne.s32.totalorder %s118, %s134
    %p136 = scmp.eq.s32.totalorder %s16, 0
    %p137 = por %p135, %p136
    %p138 = scmp.le.s32.totalorder 1, %s10
    %p139 = scmp.lt.s32.totalorder %s10, 3
    %p140 = pnand %p138, %p139
    %p141 = pneg %p140
    // Predicated region
    $region9: #{basic_block_forward.5} parent=5 // pred_check
      _
    $region10: #{basic_block_forward.5} parent=5 // pred_check_branch
      %143 = sbr.rel (%p140) target = $region12
    $region11: #{basic_block_forward.5} parent=5 // pred_region
      %s144 = ssub.s32 %s10, 1
      // Predicated region
      $region13: #{basic_block_forward.5} parent=11 // pred_check
        %p145 = pneg %p57
      $region14: #{basic_block_forward.5} parent=11 // pred_check_branch
        %147 = sbr.rel (%p145) target = $region16
      $region15: #{basic_block_forward.5} parent=11 // pred_region
        _
      $region16: #{basic_block_forward.5} parent=11 // pred_fallthru
        _
      // Predicated region
      $region17: #{basic_block_forward.5} parent=11 // pred_check
        %p148 = pneg %p78
      $region18: #{basic_block_forward.5} parent=11 // pred_check_branch
        %150 = sbr.rel (%p148) target = $region20
      $region19: #{basic_block_forward.5} parent=11 // pred_region
        _
      $region20: #{basic_block_forward.5} parent=11 // pred_fallthru
        _
    $region12: #{basic_block_forward.5} parent=5 // pred_fallthru
      _
    %p151 = scmp.lt.s32.totalorder %s10, 2
    // Predicated region
    $region21: #{basic_block_forward.5} parent=5 // pred_check
      %p152 = pneg %p151
    $region22: #{basic_block_forward.5} parent=5 // pred_check_branch
      %154 = sbr.rel (%p152) target = $region24
    $region23: #{basic_block_forward.5} parent=5 // pred_region
      // Predicated region
      $region25: #{basic_block_forward.5} parent=23 // pred_check
        %p155 = pneg %p30
      $region26: #{basic_block_forward.5} parent=23 // pred_check_branch
        %157 = sbr.rel (%p155) target = $region28
      $region27: #{basic_block_forward.5} parent=23 // pred_region
        %p158 = scmp.lt.s32.totalorder %s10, 1
        %s159 = scalar_select %p158, %s10, 1
        %s160 = smul.addr %s159, 36
        %s161 = smul.addr %s160, 8
        %s162 = scalar_lea.vmem %s0, %s161
      $region28: #{basic_block_forward.5} parent=23 // pred_fallthru
        _
      // Predicated region
      $region29: #{basic_block_forward.5} parent=23 // pred_check
        %p163 = pneg %p98
      $region30: #{basic_block_forward.5} parent=23 // pred_check_branch
        %165 = sbr.rel (%p163) target = $region32
      $region31: #{basic_block_forward.5} parent=23 // pred_region
        %p166 = scmp.lt.s32.totalorder %s10, 1
        %s167 = scalar_select %p166, %s10, 1
        %s168 = smul.addr %s167, 43
        %s169 = smul.addr %s168, 8
        %s170 = scalar_lea.vmem %s3, %s169
      $region32: #{basic_block_forward.5} parent=23 // pred_fallthru
        _
    $region24: #{basic_block_forward.5} parent=5 // pred_fallthru
      _
    %p171 = scmp.le.s32.totalorder 1, %s10
    %p172 = scmp.lt.s32.totalorder %s10, 3
    %p173 = pnand %p171, %p172
    %p174 = pneg %p173
    // Predicated region
    $region33: #{basic_block_forward.5} parent=5 // pred_check
      _
    $region34: #{basic_block_forward.5} parent=5 // pred_check_branch
      %176 = sbr.rel (%p173) target = $region36
    $region35: #{basic_block_forward.5} parent=5 // pred_region
      %s177 = ssub.s32 %s10, 1
      %p178 = scmp.lt.s32.totalorder %s15, 1
      %s179 = scalar_select %p178, %s15, 1
      %s180 = smul.addr %s179, 36
      %s181 = smul.addr %s180, 8
      %s182 = scalar_lea.vmem %s0, %s181
      %p183 = pneg %p36
      %p184 = pneg %p33
      %p185 = pneg %p57
      %p186 = pneg %p54
      %p187 = pneg %p78
      %p188 = pneg %p75
      %p189 = scmp.lt.s32.totalorder %s15, 1
      %s190 = scalar_select %p189, %s15, 1
      %s191 = smul.addr %s190, 43
      %s192 = smul.addr %s191, 8
      %s193 = scalar_lea.vmem %s3, %s192
      %p194 = pneg %p104
      %p195 = pneg %p101
      %p196 = pneg %p130
      %p197 = pneg %p127
      %p198 = scmp.lt.s32.totalorder %s15, 1
      %s199 = scalar_select %p198, %s15, 1
      %s200 = smul.addr %s199, 36
      %s201 = smul.addr %s200, 8
      %s202 = scalar_lea.vmem %s4, %s201
      %p203 = scmp.lt.s32.totalorder %s15, 1
      %s204 = scalar_select %p203, %s15, 1
      %s205 = smul.addr %s204, 36
      %s206 = smul.addr %s205, 8
      %s207 = scalar_lea.vmem %s0, %s206
      %p208 = scmp.lt.s32.totalorder %s15, 1
      %s209 = scalar_select %p208, %s15, 1
      %s210 = smul.addr %s209, 43
      %s211 = smul.addr %s210, 8
      %s212 = scalar_lea.vmem %s3, %s211
      %p213 = scmp.lt.s32.totalorder %s15, 1
      %s214 = scalar_select %p213, %s15, 1
      %s215 = smul.addr %s214, 36
      %s216 = smul.addr %s215, 8
      %s217 = scalar_lea.vmem %s4, %s216
      %v218 = vld [vmem:[%s207] sm:$0xff]
      %v219 = vld [vmem:[%s207 + $0x8] sm:$0xff]
      %v220 = vld [vmem:[%s207 + $0x10] sm:$0xff]
      %v221 = vld [vmem:[%s207 + $0x18] sm:$0xff]
      %v222 = vld [vmem:[%s207 + $0x20] sm:$0xff]
      %v223 = vld [vmem:[%s207 + $0x28] sm:$0xff]
      %v224 = vld [vmem:[%s207 + $0x30] sm:$0xff]
      %v225 = vld [vmem:[%s207 + $0x38] sm:$0xff]
      %v226 = vld [vmem:[%s207 + $0x40] sm:$0xff]
      %v227 = vld [vmem:[%s207 + $0x48] sm:$0xff]
      %v228 = vld [vmem:[%s207 + $0x50] sm:$0xff]
      %v229 = vld [vmem:[%s207 + $0x58] sm:$0xff]
      %v230 = vld [vmem:[%s207 + $0x60] sm:$0xff]
      %v231 = vld [vmem:[%s207 + $0x68] sm:$0xff]
      %v232 = vld [vmem:[%s207 + $0x70] sm:$0xff]
      %v233 = vld [vmem:[%s207 + $0x78] sm:$0xff]
      %v234 = vld [vmem:[%s207 + $0x80] sm:$0xff]
      %v235 = vld [vmem:[%s207 + $0x88] sm:$0xff]
      %v236 = vld [vmem:[%s207 + $0x90] sm:$0xff]
      %v237 = vld [vmem:[%s207 + $0x98] sm:$0xff]
      %v238 = vld [vmem:[%s207 + $0xa0] sm:$0xff]
      %v239 = vld [vmem:[%s207 + $0xa8] sm:$0xff]
      %v240 = vld [vmem:[%s207 + $0xb0] sm:$0xff]
      %v241 = vld [vmem:[%s207 + $0xb8] sm:$0xff]
      %v242 = vld [vmem:[%s207 + $0xc0] sm:$0xff]
      %v243 = vld [vmem:[%s207 + $0xc8] sm:$0xff]
      %v244 = vld [vmem:[%s207 + $0xd0] sm:$0xff]
      %v245 = vld [vmem:[%s207 + $0xd8] sm:$0xff]
      %v246 = vld [vmem:[%s207 + $0xe0] sm:$0xff]
      %v247 = vld [vmem:[%s207 + $0xe8] sm:$0xff]
      %v248 = vld [vmem:[%s207 + $0xf0] sm:$0xff]
      %v249 = vld [vmem:[%s207 + $0xf8] sm:$0xff]
      %v250 = vld [vmem:[%s207 + $0x100] sm:$0xff]
      %v251 = vld [vmem:[%s207 + $0x108] sm:$0xff]
      %v252 = vld [vmem:[%s207 + $0x110] sm:$0xff]
      %v253 = vld [vmem:[%s207 + $0x118] sm:$0xff]
      %v254 = vld [vmem:[%s1] sm:$0x1]
      %v256 = vperm.slane %v254, 0
      %v258 = vmul.f32 %v218, %v256
      %v259 = vmul.f32 %v219, %v256
      %v260 = vmul.f32 %v220, %v256
      %v261 = vmul.f32 %v221, %v256
      %v262 = vmul.f32 %v222, %v256
      %v263 = vmul.f32 %v223, %v256
      %v264 = vmul.f32 %v224, %v256
      %v265 = vmul.f32 %v225, %v256
      %v266 = vmul.f32 %v226, %v256
      %v267 = vmul.f32 %v227, %v256
      %v268 = vmul.f32 %v228, %v256
      %v269 = vmul.f32 %v229, %v256
      %v270 = vmul.f32 %v230, %v256
      %v271 = vmul.f32 %v231, %v256
      %v272 = vmul.f32 %v232, %v256
      %v273 = vmul.f32 %v233, %v256
      %v274 = vmul.f32 %v234, %v256
      %v275 = vmul.f32 %v235, %v256
      %v276 = vmul.f32 %v236, %v256
      %v277 = vmul.f32 %v237, %v256
      %v278 = vmul.f32 %v238, %v256
      %v279 = vmul.f32 %v239, %v256
      %v280 = vmul.f32 %v240, %v256
      %v281 = vmul.f32 %v241, %v256
      %v282 = vmul.f32 %v242, %v256
      %v283 = vmul.f32 %v243, %v256
      %v284 = vmul.f32 %v244, %v256
      %v285 = vmul.f32 %v245, %v256
      %v286 = vmul.f32 %v246, %v256
      %v287 = vmul.f32 %v247, %v256
      %v288 = vmul.f32 %v248, %v256
      %v289 = vmul.f32 %v249, %v256
      %v290 = vmul.f32 %v250, %v256
      %v291 = vmul.f32 %v251, %v256
      %v292 = vmul.f32 %v252, %v256
      %v293 = vmul.f32 %v253, %v256
      %v294 = vld [vmem:[%s2] sm:$0x1]
      %v296 = vperm.slane %v294, 0
      %v298 = vadd.f32 %v258, %v296
      %v299 = vadd.f32 %v259, %v296
      %v300 = vadd.f32 %v260, %v296
      %v301 = vadd.f32 %v261, %v296
      %v302 = vadd.f32 %v262, %v296
      %v303 = vadd.f32 %v263, %v296
      %v304 = vadd.f32 %v264, %v296
      %v305 = vadd.f32 %v265, %v296
      %v306 = vadd.f32 %v266, %v296
      %v307 = vadd.f32 %v267, %v296
      %v308 = vadd.f32 %v268, %v296
      %v309 = vadd.f32 %v269, %v296
      %v310 = vadd.f32 %v270, %v296
      %v311 = vadd.f32 %v271, %v296
      %v312 = vadd.f32 %v272, %v296
      %v313 = vadd.f32 %v273, %v296
      %v314 = vadd.f32 %v274, %v296
      %v315 = vadd.f32 %v275, %v296
      %v316 = vadd.f32 %v276, %v296
      %v317 = vadd.f32 %v277, %v296
      %v318 = vadd.f32 %v278, %v296
      %v319 = vadd.f32 %v279, %v296
      %v320 = vadd.f32 %v280, %v296
      %v321 = vadd.f32 %v281, %v296
      %v322 = vadd.f32 %v282, %v296
      %v323 = vadd.f32 %v283, %v296
      %v324 = vadd.f32 %v284, %v296
      %v325 = vadd.f32 %v285, %v296
      %v326 = vadd.f32 %v286, %v296
      %v327 = vadd.f32 %v287, %v296
      %v328 = vadd.f32 %v288, %v296
      %v329 = vadd.f32 %v289, %v296
      %v330 = vadd.f32 %v290, %v296
      %v331 = vadd.f32 %v291, %v296
      %v332 = vadd.f32 %v292, %v296
      %v333 = vadd.f32 %v293, %v296
      %v334 = vld [vmem:[%s212 + $0x13] sm:$0xff]
      %v335 = vld [vmem:[%s212 + $0x1b] sm:$0xff]
      %v336 = vld [vmem:[%s212 + $0x23] sm:$0xff]
      %v337 = vld [vmem:[%s212 + $0x2b] sm:$0xff]
      %v338 = vld [vmem:[%s212 + $0x33] sm:$0xff]
      %v339 = vld [vmem:[%s212 + $0x3b] sm:$0xff]
      %v340 = vld [vmem:[%s212 + $0x43] sm:$0xff]
      %v341 = vld [vmem:[%s212 + $0x4b] sm:$0xff]
      %v342 = vld [vmem:[%s212 + $0x53] sm:$0xff]
      %v343 = vld [vmem:[%s212 + $0x5b] sm:$0xff]
      %v344 = vld [vmem:[%s212 + $0x63] sm:$0xff]
      %v345 = vld [vmem:[%s212 + $0x6b] sm:$0xff]
      %v346 = vld [vmem:[%s212 + $0x73] sm:$0xff]
      %v347 = vld [vmem:[%s212 + $0x7b] sm:$0xff]
      %v348 = vld [vmem:[%s212 + $0x83] sm:$0xff]
      %v349 = vld [vmem:[%s212 + $0x8b] sm:$0xff]
      %v350 = vld [vmem:[%s212 + $0x93] sm:$0xff]
      %v351 = vld [vmem:[%s212 + $0x9b] sm:$0xff]
      %v352 = vld [vmem:[%s212 + $0xa3] sm:$0xff]
      %v353 = vld [vmem:[%s212 + $0xab] sm:$0xff]
      %v354 = vld [vmem:[%s212 + $0xb3] sm:$0xff]
      %v355 = vld [vmem:[%s212 + $0xbb] sm:$0xff]
      %v356 = vld [vmem:[%s212 + $0xc3] sm:$0xff]
      %v357 = vld [vmem:[%s212 + $0xcb] sm:$0xff]
      %v358 = vld [vmem:[%s212 + $0xd3] sm:$0xff]
      %v359 = vld [vmem:[%s212 + $0xdb] sm:$0xff]
      %v360 = vld [vmem:[%s212 + $0xe3] sm:$0xff]
      %v361 = vld [vmem:[%s212 + $0xeb] sm:$0xff]
      %v362 = vld [vmem:[%s212 + $0xf3] sm:$0xff]
      %v363 = vld [vmem:[%s212 + $0xfb] sm:$0xff]
      %v364 = vld [vmem:[%s212 + $0x103] sm:$0xff]
      %v365 = vld [vmem:[%s212 + $0x10b] sm:$0xff]
      %v366 = vld [vmem:[%s212 + $0x113] sm:$0xff]
      %v367 = vld [vmem:[%s212 + $0x11b] sm:$0xff]
      %v368 = vld [vmem:[%s212 + $0x123] sm:$0xff]
      %v369 = vld [vmem:[%s212 + $0x12b] sm:$0xff]
      %vm370 = vcmask 64512
      %v371 = vsel %vm370, %v334, 0.0
      %v372 = vsel %vm370, %v335, 0.0
      %v373 = vsel %vm370, %v336, 0.0
      %v374 = vsel %vm370, %v337, 0.0
      %v375 = vsel %vm370, %v338, 0.0
      %v376 = vsel %vm370, %v339, 0.0
      %v377 = vsel %vm370, %v340, 0.0
      %v378 = vsel %vm370, %v341, 0.0
      %v379 = vsel %vm370, %v342, 0.0
      %v380 = vsel %vm370, %v343, 0.0
      %v381 = vsel %vm370, %v344, 0.0
      %v382 = vsel %vm370, %v345, 0.0
      %v383 = vsel %vm370, %v346, 0.0
      %v384 = vsel %vm370, %v347, 0.0
      %v385 = vsel %vm370, %v348, 0.0
      %v386 = vsel %vm370, %v349, 0.0
      %v387 = vsel %vm370, %v350, 0.0
      %v388 = vsel %vm370, %v351, 0.0
      %v389 = vsel %vm370, %v352, 0.0
      %v390 = vsel %vm370, %v353, 0.0
      %v391 = vsel %vm370, %v354, 0.0
      %v392 = vsel %vm370, %v355, 0.0
      %v393 = vsel %vm370, %v356, 0.0
      %v394 = vsel %vm370, %v357, 0.0
      %v395 = vsel %vm370, %v358, 0.0
      %v396 = vsel %vm370, %v359, 0.0
      %v397 = vsel %vm370, %v360, 0.0
      %v398 = vsel %vm370, %v361, 0.0
      %v399 = vsel %vm370, %v362, 0.0
      %v400 = vsel %vm370, %v363, 0.0
      %v401 = vsel %vm370, %v364, 0.0
      %v402 = vsel %vm370, %v365, 0.0
      %v403 = vsel %vm370, %v366, 0.0
      %v404 = vsel %vm370, %v367, 0.0
      %v405 = vsel %vm370, %v368, 0.0
      %v406 = vsel %vm370, %v369, 0.0
      %v407 = vadd.f32 %v298, %v371
      %v408 = vadd.f32 %v299, %v372
      %v409 = vadd.f32 %v300, %v373
      %v410 = vadd.f32 %v301, %v374
      %v411 = vadd.f32 %v302, %v375
      %v412 = vadd.f32 %v303, %v376
      %v413 = vadd.f32 %v304, %v377
      %v414 = vadd.f32 %v305, %v378
      %v415 = vadd.f32 %v306, %v379
      %v416 = vadd.f32 %v307, %v380
      %v417 = vadd.f32 %v308, %v381
      %v418 = vadd.f32 %v309, %v382
      %v419 = vadd.f32 %v310, %v383
      %v420 = vadd.f32 %v311, %v384
      %v421 = vadd.f32 %v312, %v385
      %v422 = vadd.f32 %v313, %v386
      %v423 = vadd.f32 %v314, %v387
      %v424 = vadd.f32 %v315, %v388
      %v425 = vadd.f32 %v316, %v389
      %v426 = vadd.f32 %v317, %v390
      %v427 = vadd.f32 %v318, %v391
      %v428 = vadd.f32 %v319, %v392
      %v429 = vadd.f32 %v320, %v393
      %v430 = vadd.f32 %v321, %v394
      %v431 = vadd.f32 %v322, %v395
      %v432 = vadd.f32 %v323, %v396
      %v433 = vadd.f32 %v324, %v397
      %v434 = vadd.f32 %v325, %v398
      %v435 = vadd.f32 %v326, %v399
      %v436 = vadd.f32 %v327, %v400
      %v437 = vadd.f32 %v328, %v401
      %v438 = vadd.f32 %v329, %v402
      %v439 = vadd.f32 %v330, %v403
      %v440 = vadd.f32 %v331, %v404
      %v441 = vadd.f32 %v332, %v405
      %v442 = vadd.f32 %v333, %v406
      %v443 = vmax.f32 %v407, 0.0
      %v444 = vmax.f32 %v408, 0.0
      %v445 = vmax.f32 %v409, 0.0
      %v446 = vmax.f32 %v410, 0.0
      %v447 = vmax.f32 %v411, 0.0
      %v448 = vmax.f32 %v412, 0.0
      %v449 = vmax.f32 %v413, 0.0
      %v450 = vmax.f32 %v414, 0.0
      %v451 = vmax.f32 %v415, 0.0
      %v452 = vmax.f32 %v416, 0.0
      %v453 = vmax.f32 %v417, 0.0
      %v454 = vmax.f32 %v418, 0.0
      %v455 = vmax.f32 %v419, 0.0
      %v456 = vmax.f32 %v420, 0.0
      %v457 = vmax.f32 %v421, 0.0
      %v458 = vmax.f32 %v422, 0.0
      %v459 = vmax.f32 %v423, 0.0
      %v460 = vmax.f32 %v424, 0.0
      %v461 = vmax.f32 %v425, 0.0
      %v462 = vmax.f32 %v426, 0.0
      %v463 = vmax.f32 %v427, 0.0
      %v464 = vmax.f32 %v428, 0.0
      %v465 = vmax.f32 %v429, 0.0
      %v466 = vmax.f32 %v430, 0.0
      %v467 = vmax.f32 %v431, 0.0
      %v468 = vmax.f32 %v432, 0.0
      %v469 = vmax.f32 %v433, 0.0
      %v470 = vmax.f32 %v434, 0.0
      %v471 = vmax.f32 %v435, 0.0
      %v472 = vmax.f32 %v436, 0.0
      %v473 = vmax.f32 %v437, 0.0
      %v474 = vmax.f32 %v438, 0.0
      %v475 = vmax.f32 %v439, 0.0
      %v476 = vmax.f32 %v440, 0.0
      %v477 = vmax.f32 %v441, 0.0
      %v478 = vmax.f32 %v442, 0.0
      %479 = vst [vmem:[%s217] sm:$0xff] %v443
      %480 = vst [vmem:[%s217 + $0x8] sm:$0xff] %v444
      %481 = vst [vmem:[%s217 + $0x10] sm:$0xff] %v445
      %482 = vst [vmem:[%s217 + $0x18] sm:$0xff] %v446
      %483 = vst [vmem:[%s217 + $0x20] sm:$0xff] %v447
      %484 = vst [vmem:[%s217 + $0x28] sm:$0xff] %v448
      %485 = vst [vmem:[%s217 + $0x30] sm:$0xff] %v449
      %486 = vst [vmem:[%s217 + $0x38] sm:$0xff] %v450
      %487 = vst [vmem:[%s217 + $0x40] sm:$0xff] %v451
      %488 = vst [vmem:[%s217 + $0x48] sm:$0xff] %v452
      %489 = vst [vmem:[%s217 + $0x50] sm:$0xff] %v453
      %490 = vst [vmem:[%s217 + $0x58] sm:$0xff] %v454
      %491 = vst [vmem:[%s217 + $0x60] sm:$0xff] %v455
      %492 = vst [vmem:[%s217 + $0x68] sm:$0xff] %v456
      %493 = vst [vmem:[%s217 + $0x70] sm:$0xff] %v457
      %494 = vst [vmem:[%s217 + $0x78] sm:$0xff] %v458
      %495 = vst [vmem:[%s217 + $0x80] sm:$0xff] %v459
      %496 = vst [vmem:[%s217 + $0x88] sm:$0xff] %v460
      %497 = vst [vmem:[%s217 + $0x90] sm:$0xff] %v461
      %498 = vst [vmem:[%s217 + $0x98] sm:$0xff] %v462
      %499 = vst [vmem:[%s217 + $0xa0] sm:$0xff] %v463
      %500 = vst [vmem:[%s217 + $0xa8] sm:$0xff] %v464
      %501 = vst [vmem:[%s217 + $0xb0] sm:$0xff] %v465
      %502 = vst [vmem:[%s217 + $0xb8] sm:$0xff] %v466
      %503 = vst [vmem:[%s217 + $0xc0] sm:$0xff] %v467
      %504 = vst [vmem:[%s217 + $0xc8] sm:$0xff] %v468
      %505 = vst [vmem:[%s217 + $0xd0] sm:$0xff] %v469
      %506 = vst [vmem:[%s217 + $0xd8] sm:$0xff] %v470
      %507 = vst [vmem:[%s217 + $0xe0] sm:$0xff] %v471
      %508 = vst [vmem:[%s217 + $0xe8] sm:$0xff] %v472
      %509 = vst [vmem:[%s217 + $0xf0] sm:$0xff] %v473
      %510 = vst [vmem:[%s217 + $0xf8] sm:$0xff] %v474
      %511 = vst [vmem:[%s217 + $0x100] sm:$0xff] %v475
      %512 = vst [vmem:[%s217 + $0x108] sm:$0xff] %v476
      %513 = vst [vmem:[%s217 + $0x110] sm:$0xff] %v477
      %514 = vst [vmem:[%s217 + $0x118] sm:$0xff] %v478
      %p515 = scmp.lt.s32.totalorder %s15, 1
      %s516 = scalar_select %p515, %s15, 1
      %s517 = smul.addr %s516, 36
      %s518 = smul.addr %s517, 8
      %s519 = scalar_lea.vmem %s4, %s518
      // Predicated region
      $region37: #{basic_block_forward.5} parent=35 // pred_check
        %p520 = pneg %p127
      $region38: #{basic_block_forward.5} parent=35 // pred_check_branch
        %522 = sbr.rel (%p520) target = $region40
      $region39: #{basic_block_forward.5} parent=35 // pred_region
        _
      $region40: #{basic_block_forward.5} parent=35 // pred_fallthru
        _
    $region36: #{basic_block_forward.5} parent=5 // pred_fallthru
      _
    %p523 = scmp.le.s32.totalorder 2, %s10
    // Predicated region
    $region41: #{basic_block_forward.5} parent=5 // pred_check
      %p524 = pneg %p523
    $region42: #{basic_block_forward.5} parent=5 // pred_check_branch
      %526 = sbr.rel (%p524) target = $region44
    $region43: #{basic_block_forward.5} parent=5 // pred_region
      %s527 = ssub.s32 %s10, 2
      // Predicated region
      $region45: #{basic_block_forward.5} parent=43 // pred_check
        %p528 = pneg %p133
      $region46: #{basic_block_forward.5} parent=43 // pred_check_branch
        %530 = sbr.rel (%p528) target = $region48
      $region47: #{basic_block_forward.5} parent=43 // pred_region
        %p531 = scmp.lt.s32.totalorder %s16, 1
        %s532 = scalar_select %p531, %s16, 1
        %s533 = smul.addr %s532, 36
        %s534 = smul.addr %s533, 8
        %s535 = scalar_lea.vmem %s4, %s534
      $region48: #{basic_block_forward.5} parent=43 // pred_fallthru
        _
    $region44: #{basic_block_forward.5} parent=5 // pred_fallthru
      _
  $region6: #{basic_block_forward.5} parent=0 // loop_footer
    %s14 = sadd.s32 1, %s10
  $region7: #{basic_block_forward.5} parent=0 // loop_footer_branch
    %9 = sbr.rel target = $region3
  $region8: #{basic_block_forward.5} parent=0 // loop_exit
    _

// kernel: basic_block_forward.3
$region0: #{basic_block_forward.3}
  #allocation0 [shape = 'u32[]', space=smem, size = 0x4, offset = 0x4, fixed_abs, tag = 'smem constant byte address 0x4 - core index']
  #allocation1 [shape = 'u32[72,128]{1,0:T(1,128)}', space=vmem, size = 0x9000, scoped, tag = 'internal scratch']
  %s0 = inlined_call_operand.vmem [shape: f32[2,342,8], index: 0, kind: input, shape index: {}]
  %s1 = inlined_call_operand.vmem [shape: bf16[9,8,128], index: 1, kind: input, shape index: {}]
  %s2 = inlined_call_operand.vmem [shape: f32[2,8,128], index: 2, kind: output, shape index: {0}]
  %s3 = inlined_call_operand.vmem [shape: f32[2,8,128], index: 3, kind: output, shape index: {1}]
  %4 = xla_tuple %s2, %s3
  %s5 = sld [smem:[#allocation0]]
  $region49: #{basic_block_forward.3} parent=0
    _
  %s7 = ssub.s32 1, %s5
  %s8 = scalar_select 0, %s7, %s5
  loop: start=0, step=1, limit=4
  $region2: #{basic_block_forward.3} parent=0 // loop_pre_header
    _
  $region3: #{basic_block_forward.3} parent=0 // loop_header
    %s10 = sphi 0, %s14
    %p11 = scmp.ge.s32.totalorder %s10, 4
    %s20 = sphi 0, %s22
    %s23 = sphi 0, %s20
    %s24 = sphi 0, %s23
    %s40 = sphi 0, %s24
    %s44 = sphi 0, %s44
    %s46 = sphi 0, %s44
    %s47 = sphi 0, %s46
    %s61 = sphi 0, %s47
    %s67 = sphi 0, %s69
    %s70 = sphi 0, %s67
    %s71 = sphi 0, %s70
    %s87 = sphi 0, %s71
    %s93 = sphi 0, %s95
    %s96 = sphi 0, %s93
    %s97 = sphi 0, %s96
    %s113 = sphi 0, %s97
  $region4: #{basic_block_forward.3} parent=0 // loop_header_branch
    %13 = sbr.rel (%p11) target = $region8
  $region5: #{basic_block_forward.3} parent=0 // loop_body
    %s15 = ssub.s32 %s10, 1
    %s16 = ssub.s32 %s10, 2
    %s17 = sadd.s32 %s10, 1
    %s18 = ssub.s32 %s10, %s17
    %p19 = scmp.eq.s32.totalorder %s18, 0
    %s21 = sadd.s32 %s20, 1
    %s22 = scalar_select %p19, %s20, %s21
    %p25 = pneg %p19
    %p26 = scmp.eq.s32.totalorder %s10, 1
    %p27 = por %p25, %p26
    %p28 = scmp.ne.s32.totalorder %s20, %s23
    %p29 = scmp.eq.s32.totalorder %s10, 0
    %p30 = por %p28, %p29
    %p31 = scmp.ne.s32.totalorder %s20, %s23
    %p32 = scmp.eq.s32.totalorder %s15, 1
    %p33 = por %p31, %p32
    %p34 = scmp.ne.s32.totalorder %s23, %s24
    %p35 = scmp.eq.s32.totalorder %s15, 0
    %p36 = por %p34, %p35
    %p37 = scmp.ne.s32.totalorder %s23, %s24
    %p38 = scmp.eq.s32.totalorder %s16, 1
    %p39 = por %p37, %p38
    %p41 = scmp.ne.s32.totalorder %s24, %s40
    %p42 = scmp.eq.s32.totalorder %s16, 0
    %p43 = por %p41, %p42
    %s45 = sadd.s32 %s44, 1
    %p48 = scmp.eq.s32.totalorder %s10, 1
    %p49 = scmp.ne.s32.totalorder %s44, %s46
    %p50 = scmp.eq.s32.totalorder %s10, 0
    %p51 = por %p49, %p50
    %p52 = scmp.ne.s32.totalorder %s44, %s46
    %p53 = scmp.eq.s32.totalorder %s15, 1
    %p54 = por %p52, %p53
    %p55 = scmp.ne.s32.totalorder %s46, %s47
    %p56 = scmp.eq.s32.totalorder %s15, 0
    %p57 = por %p55, %p56
    %p58 = scmp.ne.s32.totalorder %s46, %s47
    %p59 = scmp.eq.s32.totalorder %s16, 1
    %p60 = por %p58, %p59
    %p62 = scmp.ne.s32.totalorder %s47, %s61
    %p63 = scmp.eq.s32.totalorder %s16, 0
    %p64 = por %p62, %p63
    %s65 = ssub.s32 %s10, %s17
    %p66 = scmp.eq.s32.totalorder %s65, 0
    %s68 = sadd.s32 %s67, 1
    %s69 = scalar_select %p66, %s67, %s68
    %p72 = pneg %p66
    %p73 = scmp.eq.s32.totalorder %s10, 1
    %p74 = por %p72, %p73
    %p75 = scmp.ne.s32.totalorder %s67, %s70
    %p76 = scmp.eq.s32.totalorder %s10, 0
    %p77 = por %p75, %p76
    %p78 = scmp.ne.s32.totalorder %s67, %s70
    %p79 = scmp.eq.s32.totalorder %s15, 1
    %p80 = por %p78, %p79
    %p81 = scmp.ne.s32.totalorder %s70, %s71
    %p82 = scmp.eq.s32.totalorder %s15, 0
    %p83 = por %p81, %p82
    %p84 = scmp.ne.s32.totalorder %s70, %s71
    %p85 = scmp.eq.s32.totalorder %s16, 1
    %p86 = por %p84, %p85
    %p88 = scmp.ne.s32.totalorder %s71, %s87
    %p89 = scmp.eq.s32.totalorder %s16, 0
    %p90 = por %p88, %p89
    %s91 = ssub.s32 %s10, %s17
    %p92 = scmp.eq.s32.totalorder %s91, 0
    %s94 = sadd.s32 %s93, 1
    %s95 = scalar_select %p92, %s93, %s94
    %p98 = pneg %p92
    %p99 = scmp.eq.s32.totalorder %s10, 1
    %p100 = por %p98, %p99
    %p101 = scmp.ne.s32.totalorder %s93, %s96
    %p102 = scmp.eq.s32.totalorder %s10, 0
    %p103 = por %p101, %p102
    %p104 = scmp.ne.s32.totalorder %s93, %s96
    %p105 = scmp.eq.s32.totalorder %s15, 1
    %p106 = por %p104, %p105
    %p107 = scmp.ne.s32.totalorder %s96, %s97
    %p108 = scmp.eq.s32.totalorder %s15, 0
    %p109 = por %p107, %p108
    %p110 = scmp.ne.s32.totalorder %s96, %s97
    %p111 = scmp.eq.s32.totalorder %s16, 1
    %p112 = por %p110, %p111
    %p114 = scmp.ne.s32.totalorder %s97, %s113
    %p115 = scmp.eq.s32.totalorder %s16, 0
    %p116 = por %p114, %p115
    %p117 = scmp.le.s32.totalorder 1, %s10
    %p118 = scmp.lt.s32.totalorder %s10, 3
    %p119 = pnand %p117, %p118
    %p120 = pneg %p119
    // Predicated region
    $region9: #{basic_block_forward.3} parent=5 // pred_check
      _
    $region10: #{basic_block_forward.3} parent=5 // pred_check_branch
      %122 = sbr.rel (%p119) target = $region12
    $region11: #{basic_block_forward.3} parent=5 // pred_region
      %s123 = ssub.s32 %s10, 1
      // Predicated region
      $region13: #{basic_block_forward.3} parent=11 // pred_check
        %p124 = pneg %p57
      $region14: #{basic_block_forward.3} parent=11 // pred_check_branch
        %126 = sbr.rel (%p124) target = $region16
      $region15: #{basic_block_forward.3} parent=11 // pred_region
        _
      $region16: #{basic_block_forward.3} parent=11 // pred_fallthru
        _
    $region12: #{basic_block_forward.3} parent=5 // pred_fallthru
      _
    %p127 = scmp.lt.s32.totalorder %s10, 2
    // Predicated region
    $region17: #{basic_block_forward.3} parent=5 // pred_check
      %p128 = pneg %p127
    $region18: #{basic_block_forward.3} parent=5 // pred_check_branch
      %130 = sbr.rel (%p128) target = $region20
    $region19: #{basic_block_forward.3} parent=5 // pred_region
      // Predicated region
      $region21: #{basic_block_forward.3} parent=19 // pred_check
        %p131 = pneg %p30
      $region22: #{basic_block_forward.3} parent=19 // pred_check_branch
        %133 = sbr.rel (%p131) target = $region24
      $region23: #{basic_block_forward.3} parent=19 // pred_region
        %p134 = scmp.lt.s32.totalorder %s10, 1
        %s135 = scalar_select %p134, %s10, 1
        %s136 = smul.addr %s135, 43
        %s137 = smul.addr %s136, 8
        %s138 = scalar_lea.vmem %s0, %s137
      $region24: #{basic_block_forward.3} parent=19 // pred_fallthru
        _
    $region20: #{basic_block_forward.3} parent=5 // pred_fallthru
      _
    %p139 = scmp.le.s32.totalorder 1, %s10
    %p140 = scmp.lt.s32.totalorder %s10, 3
    %p141 = pnand %p139, %p140
    %p142 = pneg %p141
    // Predicated region
    $region25: #{basic_block_forward.3} parent=5 // pred_check
      _
    $region26: #{basic_block_forward.3} parent=5 // pred_check_branch
      %144 = sbr.rel (%p141) target = $region28
    $region27: #{basic_block_forward.3} parent=5 // pred_region
      %s145 = ssub.s32 %s10, 1
      %p146 = scmp.lt.s32.totalorder %s15, 1
      %s147 = scalar_select %p146, %s15, 1
      %s148 = smul.addr %s147, 43
      %s149 = smul.addr %s148, 8
      %s150 = scalar_lea.vmem %s0, %s149
      %p151 = pneg %p36
      %p152 = pneg %p33
      %p153 = pneg %p57
      %p154 = pneg %p54
      %p155 = pneg %p83
      %p156 = pneg %p80
      %p157 = scmp.lt.s32.totalorder %s15, 1
      %s158 = scalar_select %p157, %s15, 1
      %s159 = smul.addr %s158, 8
      %s160 = scalar_lea.vmem %s2, %s159
      %p161 = pneg %p109
      %p162 = pneg %p106
      %p163 = scmp.lt.s32.totalorder %s15, 1
      %s164 = scalar_select %p163, %s15, 1
      %s165 = smul.addr %s164, 8
      %s166 = scalar_lea.vmem %s3, %s165
      %p167 = scmp.lt.s32.totalorder %s15, 1
      %s168 = scalar_select %p167, %s15, 1
      %s169 = smul.addr %s168, 43
      %s170 = smul.addr %s169, 8
      %s171 = scalar_lea.vmem %s0, %s170
      %p172 = scmp.lt.s32.totalorder %s15, 1
      %s173 = scalar_select %p172, %s15, 1
      %s174 = smul.addr %s173, 8
      %s175 = scalar_lea.vmem %s2, %s174
      %p176 = scmp.lt.s32.totalorder %s15, 1
      %s177 = scalar_select %p176, %s15, 1
      %s178 = smul.addr %s177, 8
      %s179 = scalar_lea.vmem %s3, %s178
      %v181 = vlaneseq
      %v182 = vshrl.u32 %v181, 7
      %v183 = vadd.s32 %v182, 8
      %v184 = vadd.s32 %v182, 16
      %v185 = vadd.s32 %v182, 24
      %v186 = vadd.s32 %v182, 32
      %v187 = vadd.s32 %v182, 40
      %v188 = vadd.s32 %v182, 48
      %v189 = vadd.s32 %v182, 56
      %v190 = vadd.s32 %v182, 64
      %v191 = vadd.s32 %v182, 72
      %v192 = vadd.s32 %v182, 80
      %v193 = vadd.s32 %v182, 88
      %v194 = vadd.s32 %v182, 96
      %v195 = vadd.s32 %v182, 104
      %v196 = vadd.s32 %v182, 112
      %v197 = vadd.s32 %v182, 120
      %v198 = vadd.s32 %v182, 128
      %v199 = vadd.s32 %v182, 136
      %v200 = vadd.s32 %v182, 144
      %v201 = vadd.s32 %v182, 152
      %v202 = vadd.s32 %v182, 160
      %v203 = vadd.s32 %v182, 168
      %v204 = vadd.s32 %v182, 176
      %v205 = vadd.s32 %v182, 184
      %v206 = vadd.s32 %v182, 192
      %v207 = vadd.s32 %v182, 200
      %v208 = vadd.s32 %v182, 208
      %v209 = vadd.s32 %v182, 216
      %v210 = vadd.s32 %v182, 224
      %v211 = vadd.s32 %v182, 232
      %v212 = vadd.s32 %v182, 240
      %v213 = vadd.s32 %v182, 248
      %v214 = vadd.s32 %v182, 256
      %v215 = vadd.s32 %v182, 264
      %v216 = vadd.s32 %v182, 272
      %v217 = vadd.s32 %v182, 280
      %vm218 = vcmp.lt.s32.totalorder %v182, 0
      %v219 = vsub.s32 0, %v182
      %v220 = vsel %vm218, %v219, %v182
      %v221 = vand.u32 %v220, 65535
      %v222 = vshrl.u32 %v220, 16
      %v224 = vmul.u32 %v221, 14564
      %v225 = vmul.u32 %v221, 58254
      %v226 = vmul.u32 %v222, 14564
      %v227 = vmul.u32 %v222, 58254
      %v228 = vshll.u32 %v225, 16
      %v229 = vshrl.u32 %v225, 16
      %v230 = vshll.u32 %v226, 16
      %v231 = vshrl.u32 %v226, 16
      %vm232 = vc.u32 %v224, %v228
      %v233 = vsel %vm232, 1, 0
      %v234 = vadd.s32 %v224, %v228
      %v235 = vadd.s32 %v227, %v233
      %vm236 = vc.u32 %v234, %v230
      %v237 = vsel %vm236, 1, 0
      %v238 = vadd.s32 %v234, %v230
      %v239 = vadd.s32 %v235, %v237
      %v240 = vadd.s32 %v239, %v229
      %v241 = vadd.s32 %v240, %v231
      %v242 = vshrl.u32 %v241, 4
      %v243 = vmul.u32 %v242, 18
      %v244 = vsub.s32 %v220, %v243
      %v245 = vsub.s32 0, %v244
      %v246 = vsel %vm218, %v245, %v244
      %vm247 = vcmp.lt.s32.totalorder %v183, 0
      %v248 = vsub.s32 0, %v183
      %v249 = vsel %vm247, %v248, %v183
      %v250 = vand.u32 %v249, 65535
      %v251 = vshrl.u32 %v249, 16
      %v253 = vmul.u32 %v250, 14564
      %v254 = vmul.u32 %v250, 58254
      %v255 = vmul.u32 %v251, 14564
      %v256 = vmul.u32 %v251, 58254
      %v257 = vshll.u32 %v254, 16
      %v258 = vshrl.u32 %v254, 16
      %v259 = vshll.u32 %v255, 16
      %v260 = vshrl.u32 %v255, 16
      %vm261 = vc.u32 %v253, %v257
      %v262 = vsel %vm261, 1, 0
      %v263 = vadd.s32 %v253, %v257
      %v264 = vadd.s32 %v256, %v262
      %vm265 = vc.u32 %v263, %v259
      %v266 = vsel %vm265, 1, 0
      %v267 = vadd.s32 %v263, %v259
      %v268 = vadd.s32 %v264, %v266
      %v269 = vadd.s32 %v268, %v258
      %v270 = vadd.s32 %v269, %v260
      %v271 = vshrl.u32 %v270, 4
      %v272 = vmul.u32 %v271, 18
      %v273 = vsub.s32 %v249, %v272
      %v274 = vsub.s32 0, %v273
      %v275 = vsel %vm247, %v274, %v273
      %vm276 = vcmp.lt.s32.totalorder %v184, 0
      %v277 = vsub.s32 0, %v184
      %v278 = vsel %vm276, %v277, %v184
      %v279 = vand.u32 %v278, 65535
      %v280 = vshrl.u32 %v278, 16
      %v282 = vmul.u32 %v279, 14564
      %v283 = vmul.u32 %v279, 58254
      %v284 = vmul.u32 %v280, 14564
      %v285 = vmul.u32 %v280, 58254
      %v286 = vshll.u32 %v283, 16
      %v287 = vshrl.u32 %v283, 16
      %v288 = vshll.u32 %v284, 16
      %v289 = vshrl.u32 %v284, 16
      %vm290 = vc.u32 %v282, %v286
      %v291 = vsel %vm290, 1, 0
      %v292 = vadd.s32 %v282, %v286
      %v293 = vadd.s32 %v285, %v291
      %vm294 = vc.u32 %v292, %v288
      %v295 = vsel %vm294, 1, 0
      %v296 = vadd.s32 %v292, %v288
      %v297 = vadd.s32 %v293, %v295
      %v298 = vadd.s32 %v297, %v287
      %v299 = vadd.s32 %v298, %v289
      %v300 = vshrl.u32 %v299, 4
      %v301 = vmul.u32 %v300, 18
      %v302 = vsub.s32 %v278, %v301
      %v303 = vsub.s32 0, %v302
      %v304 = vsel %vm276, %v303, %v302
      %vm305 = vcmp.lt.s32.totalorder %v185, 0
      %v306 = vsub.s32 0, %v185
      %v307 = vsel %vm305, %v306, %v185
      %v308 = vand.u32 %v307, 65535
      %v309 = vshrl.u32 %v307, 16
      %v311 = vmul.u32 %v308, 14564
      %v312 = vmul.u32 %v308, 58254
      %v313 = vmul.u32 %v309, 14564
      %v314 = vmul.u32 %v309, 58254
      %v315 = vshll.u32 %v312, 16
      %v316 = vshrl.u32 %v312, 16
      %v317 = vshll.u32 %v313, 16
      %v318 = vshrl.u32 %v313, 16
      %vm319 = vc.u32 %v311, %v315
      %v320 = vsel %vm319, 1, 0
      %v321 = vadd.s32 %v311, %v315
      %v322 = vadd.s32 %v314, %v320
      %vm323 = vc.u32 %v321, %v317
      %v324 = vsel %vm323, 1, 0
      %v325 = vadd.s32 %v321, %v317
      %v326 = vadd.s32 %v322, %v324
      %v327 = vadd.s32 %v326, %v316
      %v328 = vadd.s32 %v327, %v318
      %v329 = vshrl.u32 %v328, 4
      %v330 = vmul.u32 %v329, 18
      %v331 = vsub.s32 %v307, %v330
      %v332 = vsub.s32 0, %v331
      %v333 = vsel %vm305, %v332, %v331
      %vm334 = vcmp.lt.s32.totalorder %v186, 0
      %v335 = vsub.s32 0, %v186
      %v336 = vsel %vm334, %v335, %v186
      %v337 = vand.u32 %v336, 65535
      %v338 = vshrl.u32 %v336, 16
      %v340 = vmul.u32 %v337, 14564
      %v341 = vmul.u32 %v337, 58254
      %v342 = vmul.u32 %v338, 14564
      %v343 = vmul.u32 %v338, 58254
      %v344 = vshll.u32 %v341, 16
      %v345 = vshrl.u32 %v341, 16
      %v346 = vshll.u32 %v342, 16
      %v347 = vshrl.u32 %v342, 16
      %vm348 = vc.u32 %v340, %v344
      %v349 = vsel %vm348, 1, 0
      %v350 = vadd.s32 %v340, %v344
      %v351 = vadd.s32 %v343, %v349
      %vm352 = vc.u32 %v350, %v346
      %v353 = vsel %vm352, 1, 0
      %v354 = vadd.s32 %v350, %v346
      %v355 = vadd.s32 %v351, %v353
      %v356 = vadd.s32 %v355, %v345
      %v357 = vadd.s32 %v356, %v347
      %v358 = vshrl.u32 %v357, 4
      %v359 = vmul.u32 %v358, 18
      %v360 = vsub.s32 %v336, %v359
      %v361 = vsub.s32 0, %v360
      %v362 = vsel %vm334, %v361, %v360
      %vm363 = vcmp.lt.s32.totalorder %v187, 0
      %v364 = vsub.s32 0, %v187
      %v365 = vsel %vm363, %v364, %v187
      %v366 = vand.u32 %v365, 65535
      %v367 = vshrl.u32 %v365, 16
      %v369 = vmul.u32 %v366, 14564
      %v370 = vmul.u32 %v366, 58254
      %v371 = vmul.u32 %v367, 14564
      %v372 = vmul.u32 %v367, 58254
      %v373 = vshll.u32 %v370, 16
      %v374 = vshrl.u32 %v370, 16
      %v375 = vshll.u32 %v371, 16
      %v376 = vshrl.u32 %v371, 16
      %vm377 = vc.u32 %v369, %v373
      %v378 = vsel %vm377, 1, 0
      %v379 = vadd.s32 %v369, %v373
      %v380 = vadd.s32 %v372, %v378
      %vm381 = vc.u32 %v379, %v375
      %v382 = vsel %vm381, 1, 0
      %v383 = vadd.s32 %v379, %v375
      %v384 = vadd.s32 %v380, %v382
      %v385 = vadd.s32 %v384, %v374
      %v386 = vadd.s32 %v385, %v376
      %v387 = vshrl.u32 %v386, 4
      %v388 = vmul.u32 %v387, 18
      %v389 = vsub.s32 %v365, %v388
      %v390 = vsub.s32 0, %v389
      %v391 = vsel %vm363, %v390, %v389
      %vm392 = vcmp.lt.s32.totalorder %v188, 0
      %v393 = vsub.s32 0, %v188
      %v394 = vsel %vm392, %v393, %v188
      %v395 = vand.u32 %v394, 65535
      %v396 = vshrl.u32 %v394, 16
      %v398 = vmul.u32 %v395, 14564
      %v399 = vmul.u32 %v395, 58254
      %v400 = vmul.u32 %v396, 14564
      %v401 = vmul.u32 %v396, 58254
      %v402 = vshll.u32 %v399, 16
      %v403 = vshrl.u32 %v399, 16
      %v404 = vshll.u32 %v400, 16
      %v405 = vshrl.u32 %v400, 16
      %vm406 = vc.u32 %v398, %v402
      %v407 = vsel %vm406, 1, 0
      %v408 = vadd.s32 %v398, %v402
      %v409 = vadd.s32 %v401, %v407
      %vm410 = vc.u32 %v408, %v404
      %v411 = vsel %vm410, 1, 0
      %v412 = vadd.s32 %v408, %v404
      %v413 = vadd.s32 %v409, %v411
      %v414 = vadd.s32 %v413, %v403
      %v415 = vadd.s32 %v414, %v405
      %v416 = vshrl.u32 %v415, 4
      %v417 = vmul.u32 %v416, 18
      %v418 = vsub.s32 %v394, %v417
      %v419 = vsub.s32 0, %v418
      %v420 = vsel %vm392, %v419, %v418
      %vm421 = vcmp.lt.s32.totalorder %v189, 0
      %v422 = vsub.s32 0, %v189
      %v423 = vsel %vm421, %v422, %v189
      %v424 = vand.u32 %v423, 65535
      %v425 = vshrl.u32 %v423, 16
      %v427 = vmul.u32 %v424, 14564
      %v428 = vmul.u32 %v424, 58254
      %v429 = vmul.u32 %v425, 14564
      %v430 = vmul.u32 %v425, 58254
      %v431 = vshll.u32 %v428, 16
      %v432 = vshrl.u32 %v428, 16
      %v433 = vshll.u32 %v429, 16
      %v434 = vshrl.u32 %v429, 16
      %vm435 = vc.u32 %v427, %v431
      %v436 = vsel %vm435, 1, 0
      %v437 = vadd.s32 %v427, %v431
      %v438 = vadd.s32 %v430, %v436
      %vm439 = vc.u32 %v437, %v433
      %v440 = vsel %vm439, 1, 0
      %v441 = vadd.s32 %v437, %v433
      %v442 = vadd.s32 %v438, %v440
      %v443 = vadd.s32 %v442, %v432
      %v444 = vadd.s32 %v443, %v434
      %v445 = vshrl.u32 %v444, 4
      %v446 = vmul.u32 %v445, 18
      %v447 = vsub.s32 %v423, %v446
      %v448 = vsub.s32 0, %v447
      %v449 = vsel %vm421, %v448, %v447
      %vm450 = vcmp.lt.s32.totalorder %v190, 0
      %v451 = vsub.s32 0, %v190
      %v452 = vsel %vm450, %v451, %v190
      %v453 = vand.u32 %v452, 65535
      %v454 = vshrl.u32 %v452, 16
      %v456 = vmul.u32 %v453, 14564
      %v457 = vmul.u32 %v453, 58254
      %v458 = vmul.u32 %v454, 14564
      %v459 = vmul.u32 %v454, 58254
      %v460 = vshll.u32 %v457, 16
      %v461 = vshrl.u32 %v457, 16
      %v462 = vshll.u32 %v458, 16
      %v463 = vshrl.u32 %v458, 16
      %vm464 = vc.u32 %v456, %v460
      %v465 = vsel %vm464, 1, 0
      %v466 = vadd.s32 %v456, %v460
      %v467 = vadd.s32 %v459, %v465
      %vm468 = vc.u32 %v466, %v462
      %v469 = vsel %vm468, 1, 0
      %v470 = vadd.s32 %v466, %v462
      %v471 = vadd.s32 %v467, %v469
      %v472 = vadd.s32 %v471, %v461
      %v473 = vadd.s32 %v472, %v463
      %v474 = vshrl.u32 %v473, 4
      %v475 = vmul.u32 %v474, 18
      %v476 = vsub.s32 %v452, %v475
      %v477 = vsub.s32 0, %v476
      %v478 = vsel %vm450, %v477, %v476
      %vm479 = vcmp.lt.s32.totalorder %v191, 0
      %v480 = vsub.s32 0, %v191
      %v481 = vsel %vm479, %v480, %v191
      %v482 = vand.u32 %v481, 65535
      %v483 = vshrl.u32 %v481, 16
      %v485 = vmul.u32 %v482, 14564
      %v486 = vmul.u32 %v482, 58254
      %v487 = vmul.u32 %v483, 14564
      %v488 = vmul.u32 %v483, 58254
      %v489 = vshll.u32 %v486, 16
      %v490 = vshrl.u32 %v486, 16
      %v491 = vshll.u32 %v487, 16
      %v492 = vshrl.u32 %v487, 16
      %vm493 = vc.u32 %v485, %v489
      %v494 = vsel %vm493, 1, 0
      %v495 = vadd.s32 %v485, %v489
      %v496 = vadd.s32 %v488, %v494
      %vm497 = vc.u32 %v495, %v491
      %v498 = vsel %vm497, 1, 0
      %v499 = vadd.s32 %v495, %v491
      %v500 = vadd.s32 %v496, %v498
      %v501 = vadd.s32 %v500, %v490
      %v502 = vadd.s32 %v501, %v492
      %v503 = vshrl.u32 %v502, 4
      %v504 = vmul.u32 %v503, 18
      %v505 = vsub.s32 %v481, %v504
      %v506 = vsub.s32 0, %v505
      %v507 = vsel %vm479, %v506, %v505
      %vm508 = vcmp.lt.s32.totalorder %v192, 0
      %v509 = vsub.s32 0, %v192
      %v510 = vsel %vm508, %v509, %v192
      %v511 = vand.u32 %v510, 65535
      %v512 = vshrl.u32 %v510, 16
      %v514 = vmul.u32 %v511, 14564
      %v515 = vmul.u32 %v511, 58254
      %v516 = vmul.u32 %v512, 14564
      %v517 = vmul.u32 %v512, 58254
      %v518 = vshll.u32 %v515, 16
      %v519 = vshrl.u32 %v515, 16
      %v520 = vshll.u32 %v516, 16
      %v521 = vshrl.u32 %v516, 16
      %vm522 = vc.u32 %v514, %v518
      %v523 = vsel %vm522, 1, 0
      %v524 = vadd.s32 %v514, %v518
      %v525 = vadd.s32 %v517, %v523
      %vm526 = vc.u32 %v524, %v520
      %v527 = vsel %vm526, 1, 0
      %v528 = vadd.s32 %v524, %v520
      %v529 = vadd.s32 %v525, %v527
      %v530 = vadd.s32 %v529, %v519
      %v531 = vadd.s32 %v530, %v521
      %v532 = vshrl.u32 %v531, 4
      %v533 = vmul.u32 %v532, 18
      %v534 = vsub.s32 %v510, %v533
      %v535 = vsub.s32 0, %v534
      %v536 = vsel %vm508, %v535, %v534
      %vm537 = vcmp.lt.s32.totalorder %v193, 0
      %v538 = vsub.s32 0, %v193
      %v539 = vsel %vm537, %v538, %v193
      %v540 = vand.u32 %v539, 65535
      %v541 = vshrl.u32 %v539, 16
      %v543 = vmul.u32 %v540, 14564
      %v544 = vmul.u32 %v540, 58254
      %v545 = vmul.u32 %v541, 14564
      %v546 = vmul.u32 %v541, 58254
      %v547 = vshll.u32 %v544, 16
      %v548 = vshrl.u32 %v544, 16
      %v549 = vshll.u32 %v545, 16
      %v550 = vshrl.u32 %v545, 16
      %vm551 = vc.u32 %v543, %v547
      %v552 = vsel %vm551, 1, 0
      %v553 = vadd.s32 %v543, %v547
      %v554 = vadd.s32 %v546, %v552
      %vm555 = vc.u32 %v553, %v549
      %v556 = vsel %vm555, 1, 0
      %v557 = vadd.s32 %v553, %v549
      %v558 = vadd.s32 %v554, %v556
      %v559 = vadd.s32 %v558, %v548
      %v560 = vadd.s32 %v559, %v550
      %v561 = vshrl.u32 %v560, 4
      %v562 = vmul.u32 %v561, 18
      %v563 = vsub.s32 %v539, %v562
      %v564 = vsub.s32 0, %v563
      %v565 = vsel %vm537, %v564, %v563
      %vm566 = vcmp.lt.s32.totalorder %v194, 0
      %v567 = vsub.s32 0, %v194
      %v568 = vsel %vm566, %v567, %v194
      %v569 = vand.u32 %v568, 65535
      %v570 = vshrl.u32 %v568, 16
      %v572 = vmul.u32 %v569, 14564
      %v573 = vmul.u32 %v569, 58254
      %v574 = vmul.u32 %v570, 14564
      %v575 = vmul.u32 %v570, 58254
      %v576 = vshll.u32 %v573, 16
      %v577 = vshrl.u32 %v573, 16
      %v578 = vshll.u32 %v574, 16
      %v579 = vshrl.u32 %v574, 16
      %vm580 = vc.u32 %v572, %v576
      %v581 = vsel %vm580, 1, 0
      %v582 = vadd.s32 %v572, %v576
      %v583 = vadd.s32 %v575, %v581
      %vm584 = vc.u32 %v582, %v578
      %v585 = vsel %vm584, 1, 0
      %v586 = vadd.s32 %v582, %v578
      %v587 = vadd.s32 %v583, %v585
      %v588 = vadd.s32 %v587, %v577
      %v589 = vadd.s32 %v588, %v579
      %v590 = vshrl.u32 %v589, 4
      %v591 = vmul.u32 %v590, 18
      %v592 = vsub.s32 %v568, %v591
      %v593 = vsub.s32 0, %v592
      %v594 = vsel %vm566, %v593, %v592
      %vm595 = vcmp.lt.s32.totalorder %v195, 0
      %v596 = vsub.s32 0, %v195
      %v597 = vsel %vm595, %v596, %v195
      %v598 = vand.u32 %v597, 65535
      %v599 = vshrl.u32 %v597, 16
      %v601 = vmul.u32 %v598, 14564
      %v602 = vmul.u32 %v598, 58254
      %v603 = vmul.u32 %v599, 14564
      %v604 = vmul.u32 %v599, 58254
      %v605 = vshll.u32 %v602, 16
      %v606 = vshrl.u32 %v602, 16
      %v607 = vshll.u32 %v603, 16
      %v608 = vshrl.u32 %v603, 16
      %vm609 = vc.u32 %v601, %v605
      %v610 = vsel %vm609, 1, 0
      %v611 = vadd.s32 %v601, %v605
      %v612 = vadd.s32 %v604, %v610
      %vm613 = vc.u32 %v611, %v607
      %v614 = vsel %vm613, 1, 0
      %v615 = vadd.s32 %v611, %v607
      %v616 = vadd.s32 %v612, %v614
      %v617 = vadd.s32 %v616, %v606
      %v618 = vadd.s32 %v617, %v608
      %v619 = vshrl.u32 %v618, 4
      %v620 = vmul.u32 %v619, 18
      %v621 = vsub.s32 %v597, %v620
      %v622 = vsub.s32 0, %v621
      %v623 = vsel %vm595, %v622, %v621
      %vm624 = vcmp.lt.s32.totalorder %v196, 0
      %v625 = vsub.s32 0, %v196
      %v626 = vsel %vm624, %v625, %v196
      %v627 = vand.u32 %v626, 65535
      %v628 = vshrl.u32 %v626, 16
      %v630 = vmul.u32 %v627, 14564
      %v631 = vmul.u32 %v627, 58254
      %v632 = vmul.u32 %v628, 14564
      %v633 = vmul.u32 %v628, 58254
      %v634 = vshll.u32 %v631, 16
      %v635 = vshrl.u32 %v631, 16
      %v636 = vshll.u32 %v632, 16
      %v637 = vshrl.u32 %v632, 16
      %vm638 = vc.u32 %v630, %v634
      %v639 = vsel %vm638, 1, 0
      %v640 = vadd.s32 %v630, %v634
      %v641 = vadd.s32 %v633, %v639
      %vm642 = vc.u32 %v640, %v636
      %v643 = vsel %vm642, 1, 0
      %v644 = vadd.s32 %v640, %v636
      %v645 = vadd.s32 %v641, %v643
      %v646 = vadd.s32 %v645, %v635
      %v647 = vadd.s32 %v646, %v637
      %v648 = vshrl.u32 %v647, 4
      %v649 = vmul.u32 %v648, 18
      %v650 = vsub.s32 %v626, %v649
      %v651 = vsub.s32 0, %v650
      %v652 = vsel %vm624, %v651, %v650
      %vm653 = vcmp.lt.s32.totalorder %v197, 0
      %v654 = vsub.s32 0, %v197
      %v655 = vsel %vm653, %v654, %v197
      %v656 = vand.u32 %v655, 65535
      %v657 = vshrl.u32 %v655, 16
      %v659 = vmul.u32 %v656, 14564
      %v660 = vmul.u32 %v656, 58254
      %v661 = vmul.u32 %v657, 14564
      %v662 = vmul.u32 %v657, 58254
      %v663 = vshll.u32 %v660, 16
      %v664 = vshrl.u32 %v660, 16
      %v665 = vshll.u32 %v661, 16
      %v666 = vshrl.u32 %v661, 16
      %vm667 = vc.u32 %v659, %v663
      %v668 = vsel %vm667, 1, 0
      %v669 = vadd.s32 %v659, %v663
      %v670 = vadd.s32 %v662, %v668
      %vm671 = vc.u32 %v669, %v665
      %v672 = vsel %vm671, 1, 0
      %v673 = vadd.s32 %v669, %v665
      %v674 = vadd.s32 %v670, %v672
      %v675 = vadd.s32 %v674, %v664
      %v676 = vadd.s32 %v675, %v666
      %v677 = vshrl.u32 %v676, 4
      %v678 = vmul.u32 %v677, 18
      %v679 = vsub.s32 %v655, %v678
      %v680 = vsub.s32 0, %v679
      %v681 = vsel %vm653, %v680, %v679
      %vm682 = vcmp.lt.s32.totalorder %v198, 0
      %v683 = vsub.s32 0, %v198
      %v684 = vsel %vm682, %v683, %v198
      %v685 = vand.u32 %v684, 65535
      %v686 = vshrl.u32 %v684, 16
      %v688 = vmul.u32 %v685, 14564
      %v689 = vmul.u32 %v685, 58254
      %v690 = vmul.u32 %v686, 14564
      %v691 = vmul.u32 %v686, 58254
      %v692 = vshll.u32 %v689, 16
      %v693 = vshrl.u32 %v689, 16
      %v694 = vshll.u32 %v690, 16
      %v695 = vshrl.u32 %v690, 16
      %vm696 = vc.u32 %v688, %v692
      %v697 = vsel %vm696, 1, 0
      %v698 = vadd.s32 %v688, %v692
      %v699 = vadd.s32 %v691, %v697
      %vm700 = vc.u32 %v698, %v694
      %v701 = vsel %vm700, 1, 0
      %v702 = vadd.s32 %v698, %v694
      %v703 = vadd.s32 %v699, %v701
      %v704 = vadd.s32 %v703, %v693
      %v705 = vadd.s32 %v704, %v695
      %v706 = vshrl.u32 %v705, 4
      %v707 = vmul.u32 %v706, 18
      %v708 = vsub.s32 %v684, %v707
      %v709 = vsub.s32 0, %v708
      %v710 = vsel %vm682, %v709, %v708
      %vm711 = vcmp.lt.s32.totalorder %v199, 0
      %v712 = vsub.s32 0, %v199
      %v713 = vsel %vm711, %v712, %v199
      %v714 = vand.u32 %v713, 65535
      %v715 = vshrl.u32 %v713, 16
      %v717 = vmul.u32 %v714, 14564
      %v718 = vmul.u32 %v714, 58254
      %v719 = vmul.u32 %v715, 14564
      %v720 = vmul.u32 %v715, 58254
      %v721 = vshll.u32 %v718, 16
      %v722 = vshrl.u32 %v718, 16
      %v723 = vshll.u32 %v719, 16
      %v724 = vshrl.u32 %v719, 16
      %vm725 = vc.u32 %v717, %v721
      %v726 = vsel %vm725, 1, 0
      %v727 = vadd.s32 %v717, %v721
      %v728 = vadd.s32 %v720, %v726
      %vm729 = vc.u32 %v727, %v723
      %v730 = vsel %vm729, 1, 0
      %v731 = vadd.s32 %v727, %v723
      %v732 = vadd.s32 %v728, %v730
      %v733 = vadd.s32 %v732, %v722
      %v734 = vadd.s32 %v733, %v724
      %v735 = vshrl.u32 %v734, 4
      %v736 = vmul.u32 %v735, 18
      %v737 = vsub.s32 %v713, %v736
      %v738 = vsub.s32 0, %v737
      %v739 = vsel %vm711, %v738, %v737
      %vm740 = vcmp.lt.s32.totalorder %v200, 0
      %v741 = vsub.s32 0, %v200
      %v742 = vsel %vm740, %v741, %v200
      %v743 = vand.u32 %v742, 65535
      %v744 = vshrl.u32 %v742, 16
      %v746 = vmul.u32 %v743, 14564
      %v747 = vmul.u32 %v743, 58254
      %v748 = vmul.u32 %v744, 14564
      %v749 = vmul.u32 %v744, 58254
      %v750 = vshll.u32 %v747, 16
      %v751 = vshrl.u32 %v747, 16
      %v752 = vshll.u32 %v748, 16
      %v753 = vshrl.u32 %v748, 16
      %vm754 = vc.u32 %v746, %v750
      %v755 = vsel %vm754, 1, 0
      %v756 = vadd.s32 %v746, %v750
      %v757 = vadd.s32 %v749, %v755
      %vm758 = vc.u32 %v756, %v752
      %v759 = vsel %vm758, 1, 0
      %v760 = vadd.s32 %v756, %v752
      %v761 = vadd.s32 %v757, %v759
      %v762 = vadd.s32 %v761, %v751
      %v763 = vadd.s32 %v762, %v753
      %v764 = vshrl.u32 %v763, 4
      %v765 = vmul.u32 %v764, 18
      %v766 = vsub.s32 %v742, %v765
      %v767 = vsub.s32 0, %v766
      %v768 = vsel %vm740, %v767, %v766
      %vm769 = vcmp.lt.s32.totalorder %v201, 0
      %v770 = vsub.s32 0, %v201
      %v771 = vsel %vm769, %v770, %v201
      %v772 = vand.u32 %v771, 65535
      %v773 = vshrl.u32 %v771, 16
      %v775 = vmul.u32 %v772, 14564
      %v776 = vmul.u32 %v772, 58254
      %v777 = vmul.u32 %v773, 14564
      %v778 = vmul.u32 %v773, 58254
      %v779 = vshll.u32 %v776, 16
      %v780 = vshrl.u32 %v776, 16
      %v781 = vshll.u32 %v777, 16
      %v782 = vshrl.u32 %v777, 16
      %vm783 = vc.u32 %v775, %v779
      %v784 = vsel %vm783, 1, 0
      %v785 = vadd.s32 %v775, %v779
      %v786 = vadd.s32 %v778, %v784
      %vm787 = vc.u32 %v785, %v781
      %v788 = vsel %vm787, 1, 0
      %v789 = vadd.s32 %v785, %v781
      %v790 = vadd.s32 %v786, %v788
      %v791 = vadd.s32 %v790, %v780
      %v792 = vadd.s32 %v791, %v782
      %v793 = vshrl.u32 %v792, 4
      %v794 = vmul.u32 %v793, 18
      %v795 = vsub.s32 %v771, %v794
      %v796 = vsub.s32 0, %v795
      %v797 = vsel %vm769, %v796, %v795
      %vm798 = vcmp.lt.s32.totalorder %v202, 0
      %v799 = vsub.s32 0, %v202
      %v800 = vsel %vm798, %v799, %v202
      %v801 = vand.u32 %v800, 65535
      %v802 = vshrl.u32 %v800, 16
      %v804 = vmul.u32 %v801, 14564
      %v805 = vmul.u32 %v801, 58254
      %v806 = vmul.u32 %v802, 14564
      %v807 = vmul.u32 %v802, 58254
      %v808 = vshll.u32 %v805, 16
      %v809 = vshrl.u32 %v805, 16
      %v810 = vshll.u32 %v806, 16
      %v811 = vshrl.u32 %v806, 16
      %vm812 = vc.u32 %v804, %v808
      %v813 = vsel %vm812, 1, 0
      %v814 = vadd.s32 %v804, %v808
      %v815 = vadd.s32 %v807, %v813
      %vm816 = vc.u32 %v814, %v810
      %v817 = vsel %vm816, 1, 0
      %v818 = vadd.s32 %v814, %v810
      %v819 = vadd.s32 %v815, %v817
      %v820 = vadd.s32 %v819, %v809
      %v821 = vadd.s32 %v820, %v811
      %v822 = vshrl.u32 %v821, 4
      %v823 = vmul.u32 %v822, 18
      %v824 = vsub.s32 %v800, %v823
      %v825 = vsub.s32 0, %v824
      %v826 = vsel %vm798, %v825, %v824
      %vm827 = vcmp.lt.s32.totalorder %v203, 0
      %v828 = vsub.s32 0, %v203
      %v829 = vsel %vm827, %v828, %v203
      %v830 = vand.u32 %v829, 65535
      %v831 = vshrl.u32 %v829, 16
      %v833 = vmul.u32 %v830, 14564
      %v834 = vmul.u32 %v830, 58254
      %v835 = vmul.u32 %v831, 14564
      %v836 = vmul.u32 %v831, 58254
      %v837 = vshll.u32 %v834, 16
      %v838 = vshrl.u32 %v834, 16
      %v839 = vshll.u32 %v835, 16
      %v840 = vshrl.u32 %v835, 16
      %vm841 = vc.u32 %v833, %v837
      %v842 = vsel %vm841, 1, 0
      %v843 = vadd.s32 %v833, %v837
      %v844 = vadd.s32 %v836, %v842
      %vm845 = vc.u32 %v843, %v839
      %v846 = vsel %vm845, 1, 0
      %v847 = vadd.s32 %v843, %v839
      %v848 = vadd.s32 %v844, %v846
      %v849 = vadd.s32 %v848, %v838
      %v850 = vadd.s32 %v849, %v840
      %v851 = vshrl.u32 %v850, 4
      %v852 = vmul.u32 %v851, 18
      %v853 = vsub.s32 %v829, %v852
      %v854 = vsub.s32 0, %v853
      %v855 = vsel %vm827, %v854, %v853
      %vm856 = vcmp.lt.s32.totalorder %v204, 0
      %v857 = vsub.s32 0, %v204
      %v858 = vsel %vm856, %v857, %v204
      %v859 = vand.u32 %v858, 65535
      %v860 = vshrl.u32 %v858, 16
      %v862 = vmul.u32 %v859, 14564
      %v863 = vmul.u32 %v859, 58254
      %v864 = vmul.u32 %v860, 14564
      %v865 = vmul.u32 %v860, 58254
      %v866 = vshll.u32 %v863, 16
      %v867 = vshrl.u32 %v863, 16
      %v868 = vshll.u32 %v864, 16
      %v869 = vshrl.u32 %v864, 16
      %vm870 = vc.u32 %v862, %v866
      %v871 = vsel %vm870, 1, 0
      %v872 = vadd.s32 %v862, %v866
      %v873 = vadd.s32 %v865, %v871
      %vm874 = vc.u32 %v872, %v868
      %v875 = vsel %vm874, 1, 0
      %v876 = vadd.s32 %v872, %v868
      %v877 = vadd.s32 %v873, %v875
      %v878 = vadd.s32 %v877, %v867
      %v879 = vadd.s32 %v878, %v869
      %v880 = vshrl.u32 %v879, 4
      %v881 = vmul.u32 %v880, 18
      %v882 = vsub.s32 %v858, %v881
      %v883 = vsub.s32 0, %v882
      %v884 = vsel %vm856, %v883, %v882
      %vm885 = vcmp.lt.s32.totalorder %v205, 0
      %v886 = vsub.s32 0, %v205
      %v887 = vsel %vm885, %v886, %v205
      %v888 = vand.u32 %v887, 65535
      %v889 = vshrl.u32 %v887, 16
      %v891 = vmul.u32 %v888, 14564
      %v892 = vmul.u32 %v888, 58254
      %v893 = vmul.u32 %v889, 14564
      %v894 = vmul.u32 %v889, 58254
      %v895 = vshll.u32 %v892, 16
      %v896 = vshrl.u32 %v892, 16
      %v897 = vshll.u32 %v893, 16
      %v898 = vshrl.u32 %v893, 16
      %vm899 = vc.u32 %v891, %v895
      %v900 = vsel %vm899, 1, 0
      %v901 = vadd.s32 %v891, %v895
      %v902 = vadd.s32 %v894, %v900
      %vm903 = vc.u32 %v901, %v897
      %v904 = vsel %vm903, 1, 0
      %v905 = vadd.s32 %v901, %v897
      %v906 = vadd.s32 %v902, %v904
      %v907 = vadd.s32 %v906, %v896
      %v908 = vadd.s32 %v907, %v898
      %v909 = vshrl.u32 %v908, 4
      %v910 = vmul.u32 %v909, 18
      %v911 = vsub.s32 %v887, %v910
      %v912 = vsub.s32 0, %v911
      %v913 = vsel %vm885, %v912, %v911
      %vm914 = vcmp.lt.s32.totalorder %v206, 0
      %v915 = vsub.s32 0, %v206
      %v916 = vsel %vm914, %v915, %v206
      %v917 = vand.u32 %v916, 65535
      %v918 = vshrl.u32 %v916, 16
      %v920 = vmul.u32 %v917, 14564
      %v921 = vmul.u32 %v917, 58254
      %v922 = vmul.u32 %v918, 14564
      %v923 = vmul.u32 %v918, 58254
      %v924 = vshll.u32 %v921, 16
      %v925 = vshrl.u32 %v921, 16
      %v926 = vshll.u32 %v922, 16
      %v927 = vshrl.u32 %v922, 16
      %vm928 = vc.u32 %v920, %v924
      %v929 = vsel %vm928, 1, 0
      %v930 = vadd.s32 %v920, %v924
      %v931 = vadd.s32 %v923, %v929
      %vm932 = vc.u32 %v930, %v926
      %v933 = vsel %vm932, 1, 0
      %v934 = vadd.s32 %v930, %v926
      %v935 = vadd.s32 %v931, %v933
      %v936 = vadd.s32 %v935, %v925
      %v937 = vadd.s32 %v936, %v927
      %v938 = vshrl.u32 %v937, 4
      %v939 = vmul.u32 %v938, 18
      %v940 = vsub.s32 %v916, %v939
      %v941 = vsub.s32 0, %v940
      %v942 = vsel %vm914, %v941, %v940
      %vm943 = vcmp.lt.s32.totalorder %v207, 0
      %v944 = vsub.s32 0, %v207
      %v945 = vsel %vm943, %v944, %v207
      %v946 = vand.u32 %v945, 65535
      %v947 = vshrl.u32 %v945, 16
      %v949 = vmul.u32 %v946, 14564
      %v950 = vmul.u32 %v946, 58254
      %v951 = vmul.u32 %v947, 14564
      %v952 = vmul.u32 %v947, 58254
      %v953 = vshll.u32 %v950, 16
      %v954 = vshrl.u32 %v950, 16
      %v955 = vshll.u32 %v951, 16
      %v956 = vshrl.u32 %v951, 16
      %vm957 = vc.u32 %v949, %v953
      %v958 = vsel %vm957, 1, 0
      %v959 = vadd.s32 %v949, %v953
      %v960 = vadd.s32 %v952, %v958
      %vm961 = vc.u32 %v959, %v955
      %v962 = vsel %vm961, 1, 0
      %v963 = vadd.s32 %v959, %v955
      %v964 = vadd.s32 %v960, %v962
      %v965 = vadd.s32 %v964, %v954
      %v966 = vadd.s32 %v965, %v956
      %v967 = vshrl.u32 %v966, 4
      %v968 = vmul.u32 %v967, 18
      %v969 = vsub.s32 %v945, %v968
      %v970 = vsub.s32 0, %v969
      %v971 = vsel %vm943, %v970, %v969
      %vm972 = vcmp.lt.s32.totalorder %v208, 0
      %v973 = vsub.s32 0, %v208
      %v974 = vsel %vm972, %v973, %v208
      %v975 = vand.u32 %v974, 65535
      %v976 = vshrl.u32 %v974, 16
      %v978 = vmul.u32 %v975, 14564
      %v979 = vmul.u32 %v975, 58254
      %v980 = vmul.u32 %v976, 14564
      %v981 = vmul.u32 %v976, 58254
      %v982 = vshll.u32 %v979, 16
      %v983 = vshrl.u32 %v979, 16
      %v984 = vshll.u32 %v980, 16
      %v985 = vshrl.u32 %v980, 16
      %vm986 = vc.u32 %v978, %v982
      %v987 = vsel %vm986, 1, 0
      %v988 = vadd.s32 %v978, %v982
      %v989 = vadd.s32 %v981, %v987
      %vm990 = vc.u32 %v988, %v984
      %v991 = vsel %vm990, 1, 0
      %v992 = vadd.s32 %v988, %v984
      %v993 = vadd.s32 %v989, %v991
      %v994 = vadd.s32 %v993, %v983
      %v995 = vadd.s32 %v994, %v985
      %v996 = vshrl.u32 %v995, 4
      %v997 = vmul.u32 %v996, 18
      %v998 = vsub.s32 %v974, %v997
      %v999 = vsub.s32 0, %v998
      %v1000 = vsel %vm972, %v999, %v998
      %vm1001 = vcmp.lt.s32.totalorder %v209, 0
      %v1002 = vsub.s32 0, %v209
      %v1003 = vsel %vm1001, %v1002, %v209
      %v1004 = vand.u32 %v1003, 65535
      %v1005 = vshrl.u32 %v1003, 16
      %v1007 = vmul.u32 %v1004, 14564
      %v1008 = vmul.u32 %v1004, 58254
      %v1009 = vmul.u32 %v1005, 14564
      %v1010 = vmul.u32 %v1005, 58254
      %v1011 = vshll.u32 %v1008, 16
      %v1012 = vshrl.u32 %v1008, 16
      %v1013 = vshll.u32 %v1009, 16
      %v1014 = vshrl.u32 %v1009, 16
      %vm1015 = vc.u32 %v1007, %v1011
      %v1016 = vsel %vm1015, 1, 0
      %v1017 = vadd.s32 %v1007, %v1011
      %v1018 = vadd.s32 %v1010, %v1016
      %vm1019 = vc.u32 %v1017, %v1013
      %v1020 = vsel %vm1019, 1, 0
      %v1021 = vadd.s32 %v1017, %v1013
      %v1022 = vadd.s32 %v1018, %v1020
      %v1023 = vadd.s32 %v1022, %v1012
      %v1024 = vadd.s32 %v1023, %v1014
      %v1025 = vshrl.u32 %v1024, 4
      %v1026 = vmul.u32 %v1025, 18
      %v1027 = vsub.s32 %v1003, %v1026
      %v1028 = vsub.s32 0, %v1027
      %v1029 = vsel %vm1001, %v1028, %v1027
      %vm1030 = vcmp.lt.s32.totalorder %v210, 0
      %v1031 = vsub.s32 0, %v210
      %v1032 = vsel %vm1030, %v1031, %v210
      %v1033 = vand.u32 %v1032, 65535
      %v1034 = vshrl.u32 %v1032, 16
      %v1036 = vmul.u32 %v1033, 14564
      %v1037 = vmul.u32 %v1033, 58254
      %v1038 = vmul.u32 %v1034, 14564
      %v1039 = vmul.u32 %v1034, 58254
      %v1040 = vshll.u32 %v1037, 16
      %v1041 = vshrl.u32 %v1037, 16
      %v1042 = vshll.u32 %v1038, 16
      %v1043 = vshrl.u32 %v1038, 16
      %vm1044 = vc.u32 %v1036, %v1040
      %v1045 = vsel %vm1044, 1, 0
      %v1046 = vadd.s32 %v1036, %v1040
      %v1047 = vadd.s32 %v1039, %v1045
      %vm1048 = vc.u32 %v1046, %v1042
      %v1049 = vsel %vm1048, 1, 0
      %v1050 = vadd.s32 %v1046, %v1042
      %v1051 = vadd.s32 %v1047, %v1049
      %v1052 = vadd.s32 %v1051, %v1041
      %v1053 = vadd.s32 %v1052, %v1043
      %v1054 = vshrl.u32 %v1053, 4
      %v1055 = vmul.u32 %v1054, 18
      %v1056 = vsub.s32 %v1032, %v1055
      %v1057 = vsub.s32 0, %v1056
      %v1058 = vsel %vm1030, %v1057, %v1056
      %vm1059 = vcmp.lt.s32.totalorder %v211, 0
      %v1060 = vsub.s32 0, %v211
      %v1061 = vsel %vm1059, %v1060, %v211
      %v1062 = vand.u32 %v1061, 65535
      %v1063 = vshrl.u32 %v1061, 16
      %v1065 = vmul.u32 %v1062, 14564
      %v1066 = vmul.u32 %v1062, 58254
      %v1067 = vmul.u32 %v1063, 14564
      %v1068 = vmul.u32 %v1063, 58254
      %v1069 = vshll.u32 %v1066, 16
      %v1070 = vshrl.u32 %v1066, 16
      %v1071 = vshll.u32 %v1067, 16
      %v1072 = vshrl.u32 %v1067, 16
      %vm1073 = vc.u32 %v1065, %v1069
      %v1074 = vsel %vm1073, 1, 0
      %v1075 = vadd.s32 %v1065, %v1069
      %v1076 = vadd.s32 %v1068, %v1074
      %vm1077 = vc.u32 %v1075, %v1071
      %v1078 = vsel %vm1077, 1, 0
      %v1079 = vadd.s32 %v1075, %v1071
      %v1080 = vadd.s32 %v1076, %v1078
      %v1081 = vadd.s32 %v1080, %v1070
      %v1082 = vadd.s32 %v1081, %v1072
      %v1083 = vshrl.u32 %v1082, 4
      %v1084 = vmul.u32 %v1083, 18
      %v1085 = vsub.s32 %v1061, %v1084
      %v1086 = vsub.s32 0, %v1085
      %v1087 = vsel %vm1059, %v1086, %v1085
      %vm1088 = vcmp.lt.s32.totalorder %v212, 0
      %v1089 = vsub.s32 0, %v212
      %v1090 = vsel %vm1088, %v1089, %v212
      %v1091 = vand.u32 %v1090, 65535
      %v1092 = vshrl.u32 %v1090, 16
      %v1094 = vmul.u32 %v1091, 14564
      %v1095 = vmul.u32 %v1091, 58254
      %v1096 = vmul.u32 %v1092, 14564
      %v1097 = vmul.u32 %v1092, 58254
      %v1098 = vshll.u32 %v1095, 16
      %v1099 = vshrl.u32 %v1095, 16
      %v1100 = vshll.u32 %v1096, 16
      %v1101 = vshrl.u32 %v1096, 16
      %vm1102 = vc.u32 %v1094, %v1098
      %v1103 = vsel %vm1102, 1, 0
      %v1104 = vadd.s32 %v1094, %v1098
      %v1105 = vadd.s32 %v1097, %v1103
      %vm1106 = vc.u32 %v1104, %v1100
      %v1107 = vsel %vm1106, 1, 0
      %v1108 = vadd.s32 %v1104, %v1100
      %v1109 = vadd.s32 %v1105, %v1107
      %v1110 = vadd.s32 %v1109, %v1099
      %v1111 = vadd.s32 %v1110, %v1101
      %v1112 = vshrl.u32 %v1111, 4
      %v1113 = vmul.u32 %v1112, 18
      %v1114 = vsub.s32 %v1090, %v1113
      %v1115 = vsub.s32 0, %v1114
      %v1116 = vsel %vm1088, %v1115, %v1114
      %vm1117 = vcmp.lt.s32.totalorder %v213, 0
      %v1118 = vsub.s32 0, %v213
      %v1119 = vsel %vm1117, %v1118, %v213
      %v1120 = vand.u32 %v1119, 65535
      %v1121 = vshrl.u32 %v1119, 16
      %v1123 = vmul.u32 %v1120, 14564
      %v1124 = vmul.u32 %v1120, 58254
      %v1125 = vmul.u32 %v1121, 14564
      %v1126 = vmul.u32 %v1121, 58254
      %v1127 = vshll.u32 %v1124, 16
      %v1128 = vshrl.u32 %v1124, 16
      %v1129 = vshll.u32 %v1125, 16
      %v1130 = vshrl.u32 %v1125, 16
      %vm1131 = vc.u32 %v1123, %v1127
      %v1132 = vsel %vm1131, 1, 0
      %v1133 = vadd.s32 %v1123, %v1127
      %v1134 = vadd.s32 %v1126, %v1132
      %vm1135 = vc.u32 %v1133, %v1129
      %v1136 = vsel %vm1135, 1, 0
      %v1137 = vadd.s32 %v1133, %v1129
      %v1138 = vadd.s32 %v1134, %v1136
      %v1139 = vadd.s32 %v1138, %v1128
      %v1140 = vadd.s32 %v1139, %v1130
      %v1141 = vshrl.u32 %v1140, 4
      %v1142 = vmul.u32 %v1141, 18
      %v1143 = vsub.s32 %v1119, %v1142
      %v1144 = vsub.s32 0, %v1143
      %v1145 = vsel %vm1117, %v1144, %v1143
      %vm1146 = vcmp.lt.s32.totalorder %v214, 0
      %v1147 = vsub.s32 0, %v214
      %v1148 = vsel %vm1146, %v1147, %v214
      %v1149 = vand.u32 %v1148, 65535
      %v1150 = vshrl.u32 %v1148, 16
      %v1152 = vmul.u32 %v1149, 14564
      %v1153 = vmul.u32 %v1149, 58254
      %v1154 = vmul.u32 %v1150, 14564
      %v1155 = vmul.u32 %v1150, 58254
      %v1156 = vshll.u32 %v1153, 16
      %v1157 = vshrl.u32 %v1153, 16
      %v1158 = vshll.u32 %v1154, 16
      %v1159 = vshrl.u32 %v1154, 16
      %vm1160 = vc.u32 %v1152, %v1156
      %v1161 = vsel %vm1160, 1, 0
      %v1162 = vadd.s32 %v1152, %v1156
      %v1163 = vadd.s32 %v1155, %v1161
      %vm1164 = vc.u32 %v1162, %v1158
      %v1165 = vsel %vm1164, 1, 0
      %v1166 = vadd.s32 %v1162, %v1158
      %v1167 = vadd.s32 %v1163, %v1165
      %v1168 = vadd.s32 %v1167, %v1157
      %v1169 = vadd.s32 %v1168, %v1159
      %v1170 = vshrl.u32 %v1169, 4
      %v1171 = vmul.u32 %v1170, 18
      %v1172 = vsub.s32 %v1148, %v1171
      %v1173 = vsub.s32 0, %v1172
      %v1174 = vsel %vm1146, %v1173, %v1172
      %vm1175 = vcmp.lt.s32.totalorder %v215, 0
      %v1176 = vsub.s32 0, %v215
      %v1177 = vsel %vm1175, %v1176, %v215
      %v1178 = vand.u32 %v1177, 65535
      %v1179 = vshrl.u32 %v1177, 16
      %v1181 = vmul.u32 %v1178, 14564
      %v1182 = vmul.u32 %v1178, 58254
      %v1183 = vmul.u32 %v1179, 14564
      %v1184 = vmul.u32 %v1179, 58254
      %v1185 = vshll.u32 %v1182, 16
      %v1186 = vshrl.u32 %v1182, 16
      %v1187 = vshll.u32 %v1183, 16
      %v1188 = vshrl.u32 %v1183, 16
      %vm1189 = vc.u32 %v1181, %v1185
      %v1190 = vsel %vm1189, 1, 0
      %v1191 = vadd.s32 %v1181, %v1185
      %v1192 = vadd.s32 %v1184, %v1190
      %vm1193 = vc.u32 %v1191, %v1187
      %v1194 = vsel %vm1193, 1, 0
      %v1195 = vadd.s32 %v1191, %v1187
      %v1196 = vadd.s32 %v1192, %v1194
      %v1197 = vadd.s32 %v1196, %v1186
      %v1198 = vadd.s32 %v1197, %v1188
      %v1199 = vshrl.u32 %v1198, 4
      %v1200 = vmul.u32 %v1199, 18
      %v1201 = vsub.s32 %v1177, %v1200
      %v1202 = vsub.s32 0, %v1201
      %v1203 = vsel %vm1175, %v1202, %v1201
      %vm1204 = vcmp.lt.s32.totalorder %v216, 0
      %v1205 = vsub.s32 0, %v216
      %v1206 = vsel %vm1204, %v1205, %v216
      %v1207 = vand.u32 %v1206, 65535
      %v1208 = vshrl.u32 %v1206, 16
      %v1210 = vmul.u32 %v1207, 14564
      %v1211 = vmul.u32 %v1207, 58254
      %v1212 = vmul.u32 %v1208, 14564
      %v1213 = vmul.u32 %v1208, 58254
      %v1214 = vshll.u32 %v1211, 16
      %v1215 = vshrl.u32 %v1211, 16
      %v1216 = vshll.u32 %v1212, 16
      %v1217 = vshrl.u32 %v1212, 16
      %vm1218 = vc.u32 %v1210, %v1214
      %v1219 = vsel %vm1218, 1, 0
      %v1220 = vadd.s32 %v1210, %v1214
      %v1221 = vadd.s32 %v1213, %v1219
      %vm1222 = vc.u32 %v1220, %v1216
      %v1223 = vsel %vm1222, 1, 0
      %v1224 = vadd.s32 %v1220, %v1216
      %v1225 = vadd.s32 %v1221, %v1223
      %v1226 = vadd.s32 %v1225, %v1215
      %v1227 = vadd.s32 %v1226, %v1217
      %v1228 = vshrl.u32 %v1227, 4
      %v1229 = vmul.u32 %v1228, 18
      %v1230 = vsub.s32 %v1206, %v1229
      %v1231 = vsub.s32 0, %v1230
      %v1232 = vsel %vm1204, %v1231, %v1230
      %vm1233 = vcmp.lt.s32.totalorder %v217, 0
      %v1234 = vsub.s32 0, %v217
      %v1235 = vsel %vm1233, %v1234, %v217
      %v1236 = vand.u32 %v1235, 65535
      %v1237 = vshrl.u32 %v1235, 16
      %v1239 = vmul.u32 %v1236, 14564
      %v1240 = vmul.u32 %v1236, 58254
      %v1241 = vmul.u32 %v1237, 14564
      %v1242 = vmul.u32 %v1237, 58254
      %v1243 = vshll.u32 %v1240, 16
      %v1244 = vshrl.u32 %v1240, 16
      %v1245 = vshll.u32 %v1241, 16
      %v1246 = vshrl.u32 %v1241, 16
      %vm1247 = vc.u32 %v1239, %v1243
      %v1248 = vsel %vm1247, 1, 0
      %v1249 = vadd.s32 %v1239, %v1243
      %v1250 = vadd.s32 %v1242, %v1248
      %vm1251 = vc.u32 %v1249, %v1245
      %v1252 = vsel %vm1251, 1, 0
      %v1253 = vadd.s32 %v1249, %v1245
      %v1254 = vadd.s32 %v1250, %v1252
      %v1255 = vadd.s32 %v1254, %v1244
      %v1256 = vadd.s32 %v1255, %v1246
      %v1257 = vshrl.u32 %v1256, 4
      %v1258 = vmul.u32 %v1257, 18
      %v1259 = vsub.s32 %v1235, %v1258
      %v1260 = vsub.s32 0, %v1259
      %v1261 = vsel %vm1233, %v1260, %v1259
      %vm1262 = vcmp.ne.s32.totalorder %v246, 0
      %vm1263 = vcmp.ne.s32.totalorder %v275, 0
      %vm1264 = vcmp.ne.s32.totalorder %v304, 0
      %vm1265 = vcmp.ne.s32.totalorder %v333, 0
      %vm1266 = vcmp.ne.s32.totalorder %v362, 0
      %vm1267 = vcmp.ne.s32.totalorder %v391, 0
      %vm1268 = vcmp.ne.s32.totalorder %v420, 0
      %vm1269 = vcmp.ne.s32.totalorder %v449, 0
      %vm1270 = vcmp.ne.s32.totalorder %v478, 0
      %vm1271 = vcmp.ne.s32.totalorder %v507, 0
      %vm1272 = vcmp.ne.s32.totalorder %v536, 0
      %vm1273 = vcmp.ne.s32.totalorder %v565, 0
      %vm1274 = vcmp.ne.s32.totalorder %v594, 0
      %vm1275 = vcmp.ne.s32.totalorder %v623, 0
      %vm1276 = vcmp.ne.s32.totalorder %v652, 0
      %vm1277 = vcmp.ne.s32.totalorder %v681, 0
      %vm1278 = vcmp.ne.s32.totalorder %v710, 0
      %vm1279 = vcmp.ne.s32.totalorder %v739, 0
      %vm1280 = vcmp.ne.s32.totalorder %v768, 0
      %vm1281 = vcmp.ne.s32.totalorder %v797, 0
      %vm1282 = vcmp.ne.s32.totalorder %v826, 0
      %vm1283 = vcmp.ne.s32.totalorder %v855, 0
      %vm1284 = vcmp.ne.s32.totalorder %v884, 0
      %vm1285 = vcmp.ne.s32.totalorder %v913, 0
      %vm1286 = vcmp.ne.s32.totalorder %v942, 0
      %vm1287 = vcmp.ne.s32.totalorder %v971, 0
      %vm1288 = vcmp.ne.s32.totalorder %v1000, 0
      %vm1289 = vcmp.ne.s32.totalorder %v1029, 0
      %vm1290 = vcmp.ne.s32.totalorder %v1058, 0
      %vm1291 = vcmp.ne.s32.totalorder %v1087, 0
      %vm1292 = vcmp.ne.s32.totalorder %v1116, 0
      %vm1293 = vcmp.ne.s32.totalorder %v1145, 0
      %vm1294 = vcmp.ne.s32.totalorder %v1174, 0
      %vm1295 = vcmp.ne.s32.totalorder %v1203, 0
      %vm1296 = vcmp.ne.s32.totalorder %v1232, 0
      %vm1297 = vcmp.ne.s32.totalorder %v1261, 0
      %vm1298 = vcmp.lt.s32.totalorder %v246, 0
      %vm1299 = vcmp.lt.s32.totalorder %v275, 0
      %vm1300 = vcmp.lt.s32.totalorder %v304, 0
      %vm1301 = vcmp.lt.s32.totalorder %v333, 0
      %vm1302 = vcmp.lt.s32.totalorder %v362, 0
      %vm1303 = vcmp.lt.s32.totalorder %v391, 0
      %vm1304 = vcmp.lt.s32.totalorder %v420, 0
      %vm1305 = vcmp.lt.s32.totalorder %v449, 0
      %vm1306 = vcmp.lt.s32.totalorder %v478, 0
      %vm1307 = vcmp.lt.s32.totalorder %v507, 0
      %vm1308 = vcmp.lt.s32.totalorder %v536, 0
      %vm1309 = vcmp.lt.s32.totalorder %v565, 0
      %vm1310 = vcmp.lt.s32.totalorder %v594, 0
      %vm1311 = vcmp.lt.s32.totalorder %v623, 0
      %vm1312 = vcmp.lt.s32.totalorder %v652, 0
      %vm1313 = vcmp.lt.s32.totalorder %v681, 0
      %vm1314 = vcmp.lt.s32.totalorder %v710, 0
      %vm1315 = vcmp.lt.s32.totalorder %v739, 0
      %vm1316 = vcmp.lt.s32.totalorder %v768, 0
      %vm1317 = vcmp.lt.s32.totalorder %v797, 0
      %vm1318 = vcmp.lt.s32.totalorder %v826, 0
      %vm1319 = vcmp.lt.s32.totalorder %v855, 0
      %vm1320 = vcmp.lt.s32.totalorder %v884, 0
      %vm1321 = vcmp.lt.s32.totalorder %v913, 0
      %vm1322 = vcmp.lt.s32.totalorder %v942, 0
      %vm1323 = vcmp.lt.s32.totalorder %v971, 0
      %vm1324 = vcmp.lt.s32.totalorder %v1000, 0
      %vm1325 = vcmp.lt.s32.totalorder %v1029, 0
      %vm1326 = vcmp.lt.s32.totalorder %v1058, 0
      %vm1327 = vcmp.lt.s32.totalorder %v1087, 0
      %vm1328 = vcmp.lt.s32.totalorder %v1116, 0
      %vm1329 = vcmp.lt.s32.totalorder %v1145, 0
      %vm1330 = vcmp.lt.s32.totalorder %v1174, 0
      %vm1331 = vcmp.lt.s32.totalorder %v1203, 0
      %vm1332 = vcmp.lt.s32.totalorder %v1232, 0
      %vm1333 = vcmp.lt.s32.totalorder %v1261, 0
      %vm1334 = vmand %vm1298, %vm1262
      %vm1335 = vmand %vm1299, %vm1263
      %vm1336 = vmand %vm1300, %vm1264
      %vm1337 = vmand %vm1301, %vm1265
      %vm1338 = vmand %vm1302, %vm1266
      %vm1339 = vmand %vm1303, %vm1267
      %vm1340 = vmand %vm1304, %vm1268
      %vm1341 = vmand %vm1305, %vm1269
      %vm1342 = vmand %vm1306, %vm1270
      %vm1343 = vmand %vm1307, %vm1271
      %vm1344 = vmand %vm1308, %vm1272
      %vm1345 = vmand %vm1309, %vm1273
      %vm1346 = vmand %vm1310, %vm1274
      %vm1347 = vmand %vm1311, %vm1275
      %vm1348 = vmand %vm1312, %vm1276
      %vm1349 = vmand %vm1313, %vm1277
      %vm1350 = vmand %vm1314, %vm1278
      %vm1351 = vmand %vm1315, %vm1279
      %vm1352 = vmand %vm1316, %vm1280
      %vm1353 = vmand %vm1317, %vm1281
      %vm1354 = vmand %vm1318, %vm1282
      %vm1355 = vmand %vm1319, %vm1283
      %vm1356 = vmand %vm1320, %vm1284
      %vm1357 = vmand %vm1321, %vm1285
      %vm1358 = vmand %vm1322, %vm1286
      %vm1359 = vmand %vm1323, %vm1287
      %vm1360 = vmand %vm1324, %vm1288
      %vm1361 = vmand %vm1325, %vm1289
      %vm1362 = vmand %vm1326, %vm1290
      %vm1363 = vmand %vm1327, %vm1291
      %vm1364 = vmand %vm1328, %vm1292
      %vm1365 = vmand %vm1329, %vm1293
      %vm1366 = vmand %vm1330, %vm1294
      %vm1367 = vmand %vm1331, %vm1295
      %vm1368 = vmand %vm1332, %vm1296
      %vm1369 = vmand %vm1333, %vm1297
      %v1370 = vadd.s32 %v246, 18
      %v1371 = vadd.s32 %v275, 18
      %v1372 = vadd.s32 %v304, 18
      %v1373 = vadd.s32 %v333, 18
      %v1374 = vadd.s32 %v362, 18
      %v1375 = vadd.s32 %v391, 18
      %v1376 = vadd.s32 %v420, 18
      %v1377 = vadd.s32 %v449, 18
      %v1378 = vadd.s32 %v478, 18
      %v1379 = vadd.s32 %v507, 18
      %v1380 = vadd.s32 %v536, 18
      %v1381 = vadd.s32 %v565, 18
      %v1382 = vadd.s32 %v594, 18
      %v1383 = vadd.s32 %v623, 18
      %v1384 = vadd.s32 %v652, 18
      %v1385 = vadd.s32 %v681, 18
      %v1386 = vadd.s32 %v710, 18
      %v1387 = vadd.s32 %v739, 18
      %v1388 = vadd.s32 %v768, 18
      %v1389 = vadd.s32 %v797, 18
      %v1390 = vadd.s32 %v826, 18
      %v1391 = vadd.s32 %v855, 18
      %v1392 = vadd.s32 %v884, 18
      %v1393 = vadd.s32 %v913, 18
      %v1394 = vadd.s32 %v942, 18
      %v1395 = vadd.s32 %v971, 18
      %v1396 = vadd.s32 %v1000, 18
      %v1397 = vadd.s32 %v1029, 18
      %v1398 = vadd.s32 %v1058, 18
      %v1399 = vadd.s32 %v1087, 18
      %v1400 = vadd.s32 %v1116, 18
      %v1401 = vadd.s32 %v1145, 18
      %v1402 = vadd.s32 %v1174, 18
      %v1403 = vadd.s32 %v1203, 18
      %v1404 = vadd.s32 %v1232, 18
      %v1405 = vadd.s32 %v1261, 18
      %v1406 = vsel %vm1334, %v1370, %v246
      %v1407 = vsel %vm1335, %v1371, %v275
      %v1408 = vsel %vm1336, %v1372, %v304
      %v1409 = vsel %vm1337, %v1373, %v333
      %v1410 = vsel %vm1338, %v1374, %v362
      %v1411 = vsel %vm1339, %v1375, %v391
      %v1412 = vsel %vm1340, %v1376, %v420
      %v1413 = vsel %vm1341, %v1377, %v449
      %v1414 = vsel %vm1342, %v1378, %v478
      %v1415 = vsel %vm1343, %v1379, %v507
      %v1416 = vsel %vm1344, %v1380, %v536
      %v1417 = vsel %vm1345, %v1381, %v565
      %v1418 = vsel %vm1346, %v1382, %v594
      %v1419 = vsel %vm1347, %v1383, %v623
      %v1420 = vsel %vm1348, %v1384, %v652
      %v1421 = vsel %vm1349, %v1385, %v681
      %v1422 = vsel %vm1350, %v1386, %v710
      %v1423 = vsel %vm1351, %v1387, %v739
      %v1424 = vsel %vm1352, %v1388, %v768
      %v1425 = vsel %vm1353, %v1389, %v797
      %v1426 = vsel %vm1354, %v1390, %v826
      %v1427 = vsel %vm1355, %v1391, %v855
      %v1428 = vsel %vm1356, %v1392, %v884
      %v1429 = vsel %vm1357, %v1393, %v913
      %v1430 = vsel %vm1358, %v1394, %v942
      %v1431 = vsel %vm1359, %v1395, %v971
      %v1432 = vsel %vm1360, %v1396, %v1000
      %v1433 = vsel %vm1361, %v1397, %v1029
      %v1434 = vsel %vm1362, %v1398, %v1058
      %v1435 = vsel %vm1363, %v1399, %v1087
      %v1436 = vsel %vm1364, %v1400, %v1116
      %v1437 = vsel %vm1365, %v1401, %v1145
      %v1438 = vsel %vm1366, %v1402, %v1174
      %v1439 = vsel %vm1367, %v1403, %v1203
      %v1440 = vsel %vm1368, %v1404, %v1232
      %v1441 = vsel %vm1369, %v1405, %v1261
      %vm1442 = vcmp.lt.s32.totalorder %v1406, 16
      %vm1443 = vcmp.lt.s32.totalorder %v1407, 16
      %vm1444 = vcmp.lt.s32.totalorder %v1408, 16
      %vm1445 = vcmp.lt.s32.totalorder %v1409, 16
      %vm1446 = vcmp.lt.s32.totalorder %v1410, 16
      %vm1447 = vcmp.lt.s32.totalorder %v1411, 16
      %vm1448 = vcmp.lt.s32.totalorder %v1412, 16
      %vm1449 = vcmp.lt.s32.totalorder %v1413, 16
      %vm1450 = vcmp.lt.s32.totalorder %v1414, 16
      %vm1451 = vcmp.lt.s32.totalorder %v1415, 16
      %vm1452 = vcmp.lt.s32.totalorder %v1416, 16
      %vm1453 = vcmp.lt.s32.totalorder %v1417, 16
      %vm1454 = vcmp.lt.s32.totalorder %v1418, 16
      %vm1455 = vcmp.lt.s32.totalorder %v1419, 16
      %vm1456 = vcmp.lt.s32.totalorder %v1420, 16
      %vm1457 = vcmp.lt.s32.totalorder %v1421, 16
      %vm1458 = vcmp.lt.s32.totalorder %v1422, 16
      %vm1459 = vcmp.lt.s32.totalorder %v1423, 16
      %vm1460 = vcmp.lt.s32.totalorder %v1424, 16
      %vm1461 = vcmp.lt.s32.totalorder %v1425, 16
      %vm1462 = vcmp.lt.s32.totalorder %v1426, 16
      %vm1463 = vcmp.lt.s32.totalorder %v1427, 16
      %vm1464 = vcmp.lt.s32.totalorder %v1428, 16
      %vm1465 = vcmp.lt.s32.totalorder %v1429, 16
      %vm1466 = vcmp.lt.s32.totalorder %v1430, 16
      %vm1467 = vcmp.lt.s32.totalorder %v1431, 16
      %vm1468 = vcmp.lt.s32.totalorder %v1432, 16
      %vm1469 = vcmp.lt.s32.totalorder %v1433, 16
      %vm1470 = vcmp.lt.s32.totalorder %v1434, 16
      %vm1471 = vcmp.lt.s32.totalorder %v1435, 16
      %vm1472 = vcmp.lt.s32.totalorder %v1436, 16
      %vm1473 = vcmp.lt.s32.totalorder %v1437, 16
      %vm1474 = vcmp.lt.s32.totalorder %v1438, 16
      %vm1475 = vcmp.lt.s32.totalorder %v1439, 16
      %vm1476 = vcmp.lt.s32.totalorder %v1440, 16
      %vm1477 = vcmp.lt.s32.totalorder %v1441, 16
      %v1478 = vsel %vm1442, 1, 0
      %v1479 = vsel %vm1443, 1, 0
      %v1480 = vsel %vm1444, 1, 0
      %v1481 = vsel %vm1445, 1, 0
      %v1482 = vsel %vm1446, 1, 0
      %v1483 = vsel %vm1447, 1, 0
      %v1484 = vsel %vm1448, 1, 0
      %v1485 = vsel %vm1449, 1, 0
      %v1486 = vsel %vm1450, 1, 0
      %v1487 = vsel %vm1451, 1, 0
      %v1488 = vsel %vm1452, 1, 0
      %v1489 = vsel %vm1453, 1, 0
      %v1490 = vsel %vm1454, 1, 0
      %v1491 = vsel %vm1455, 1, 0
      %v1492 = vsel %vm1456, 1, 0
      %v1493 = vsel %vm1457, 1, 0
      %v1494 = vsel %vm1458, 1, 0
      %v1495 = vsel %vm1459, 1, 0
      %v1496 = vsel %vm1460, 1, 0
      %v1497 = vsel %vm1461, 1, 0
      %v1498 = vsel %vm1462, 1, 0
      %v1499 = vsel %vm1463, 1, 0
      %v1500 = vsel %vm1464, 1, 0
      %v1501 = vsel %vm1465, 1, 0
      %v1502 = vsel %vm1466, 1, 0
      %v1503 = vsel %vm1467, 1, 0
      %v1504 = vsel %vm1468, 1, 0
      %v1505 = vsel %vm1469, 1, 0
      %v1506 = vsel %vm1470, 1, 0
      %v1507 = vsel %vm1471, 1, 0
      %v1508 = vsel %vm1472, 1, 0
      %v1509 = vsel %vm1473, 1, 0
      %v1510 = vsel %vm1474, 1, 0
      %v1511 = vsel %vm1475, 1, 0
      %v1512 = vsel %vm1476, 1, 0
      %v1513 = vsel %vm1477, 1, 0
      %v1514 = vcvt.s32.f32 %v1478
      %v1515 = vcvt.s32.f32 %v1479
      %v1516 = vcvt.s32.f32 %v1480
      %v1517 = vcvt.s32.f32 %v1481
      %v1518 = vcvt.s32.f32 %v1482
      %v1519 = vcvt.s32.f32 %v1483
      %v1520 = vcvt.s32.f32 %v1484
      %v1521 = vcvt.s32.f32 %v1485
      %v1522 = vcvt.s32.f32 %v1486
      %v1523 = vcvt.s32.f32 %v1487
      %v1524 = vcvt.s32.f32 %v1488
      %v1525 = vcvt.s32.f32 %v1489
      %v1526 = vcvt.s32.f32 %v1490
      %v1527 = vcvt.s32.f32 %v1491
      %v1528 = vcvt.s32.f32 %v1492
      %v1529 = vcvt.s32.f32 %v1493
      %v1530 = vcvt.s32.f32 %v1494
      %v1531 = vcvt.s32.f32 %v1495
      %v1532 = vcvt.s32.f32 %v1496
      %v1533 = vcvt.s32.f32 %v1497
      %v1534 = vcvt.s32.f32 %v1498
      %v1535 = vcvt.s32.f32 %v1499
      %v1536 = vcvt.s32.f32 %v1500
      %v1537 = vcvt.s32.f32 %v1501
      %v1538 = vcvt.s32.f32 %v1502
      %v1539 = vcvt.s32.f32 %v1503
      %v1540 = vcvt.s32.f32 %v1504
      %v1541 = vcvt.s32.f32 %v1505
      %v1542 = vcvt.s32.f32 %v1506
      %v1543 = vcvt.s32.f32 %v1507
      %v1544 = vcvt.s32.f32 %v1508
      %v1545 = vcvt.s32.f32 %v1509
      %v1546 = vcvt.s32.f32 %v1510
      %v1547 = vcvt.s32.f32 %v1511
      %v1548 = vcvt.s32.f32 %v1512
      %v1549 = vcvt.s32.f32 %v1513
      %v1550 = vld [vmem:[%s171] sm:$0xff]
      %v1551 = vld [vmem:[%s171 + $0x8] sm:$0xff]
      %v1552 = vld [vmem:[%s171 + $0x10] sm:$0xff]
      %v1553 = vld [vmem:[%s171 + $0x18] sm:$0xff]
      %v1554 = vld [vmem:[%s171 + $0x20] sm:$0xff]
      %v1555 = vld [vmem:[%s171 + $0x28] sm:$0xff]
      %v1556 = vld [vmem:[%s171 + $0x30] sm:$0xff]
      %v1557 = vld [vmem:[%s171 + $0x38] sm:$0xff]
      %v1558 = vld [vmem:[%s171 + $0x40] sm:$0xff]
      %v1559 = vld [vmem:[%s171 + $0x48] sm:$0xff]
      %v1560 = vld [vmem:[%s171 + $0x50] sm:$0xff]
      %v1561 = vld [vmem:[%s171 + $0x58] sm:$0xff]
      %v1562 = vld [vmem:[%s171 + $0x60] sm:$0xff]
      %v1563 = vld [vmem:[%s171 + $0x68] sm:$0xff]
      %v1564 = vld [vmem:[%s171 + $0x70] sm:$0xff]
      %v1565 = vld [vmem:[%s171 + $0x78] sm:$0xff]
      %v1566 = vld [vmem:[%s171 + $0x80] sm:$0xff]
      %v1567 = vld [vmem:[%s171 + $0x88] sm:$0xff]
      %v1568 = vld [vmem:[%s171 + $0x90] sm:$0xff]
      %v1569 = vld [vmem:[%s171 + $0x98] sm:$0xff]
      %v1570 = vld [vmem:[%s171 + $0xa0] sm:$0xff]
      %v1571 = vld [vmem:[%s171 + $0xa8] sm:$0xff]
      %v1572 = vld [vmem:[%s171 + $0xb0] sm:$0xff]
      %v1573 = vld [vmem:[%s171 + $0xb8] sm:$0xff]
      %v1574 = vld [vmem:[%s171 + $0xc0] sm:$0xff]
      %v1575 = vld [vmem:[%s171 + $0xc8] sm:$0xff]
      %v1576 = vld [vmem:[%s171 + $0xd0] sm:$0xff]
      %v1577 = vld [vmem:[%s171 + $0xd8] sm:$0xff]
      %v1578 = vld [vmem:[%s171 + $0xe0] sm:$0xff]
      %v1579 = vld [vmem:[%s171 + $0xe8] sm:$0xff]
      %v1580 = vld [vmem:[%s171 + $0xf0] sm:$0xff]
      %v1581 = vld [vmem:[%s171 + $0xf8] sm:$0xff]
      %v1582 = vld [vmem:[%s171 + $0x100] sm:$0xff]
      %v1583 = vld [vmem:[%s171 + $0x108] sm:$0xff]
      %v1584 = vld [vmem:[%s171 + $0x110] sm:$0xff]
      %v1585 = vld [vmem:[%s171 + $0x118] sm:$0xff]
      %v1586 = vpack.c.bf16 %v1551, %v1550
      %v1587 = vpack.c.bf16 %v1553, %v1552
      %v1588 = vpack.c.bf16 %v1555, %v1554
      %v1589 = vpack.c.bf16 %v1557, %v1556
      %v1590 = vpack.c.bf16 %v1559, %v1558
      %v1591 = vpack.c.bf16 %v1561, %v1560
      %v1592 = vpack.c.bf16 %v1563, %v1562
      %v1593 = vpack.c.bf16 %v1565, %v1564
      %v1594 = vpack.c.bf16 %v1567, %v1566
      %v1595 = vpack.c.bf16 %v1569, %v1568
      %v1596 = vpack.c.bf16 %v1571, %v1570
      %v1597 = vpack.c.bf16 %v1573, %v1572
      %v1598 = vpack.c.bf16 %v1575, %v1574
      %v1599 = vpack.c.bf16 %v1577, %v1576
      %v1600 = vpack.c.bf16 %v1579, %v1578
      %v1601 = vpack.c.bf16 %v1581, %v1580
      %v1602 = vpack.c.bf16 %v1583, %v1582
      %v1603 = vpack.c.bf16 %v1585, %v1584
      %v1604 = vld [vmem:[%s1] sm:$0xf]
      %v1605 = vld [vmem:[%s171 + $0x1] sm:$0xff]
      %v1606 = vld [vmem:[%s171 + $0x9] sm:$0xff]
      %v1607 = vld [vmem:[%s171 + $0x11] sm:$0xff]
      %v1608 = vld [vmem:[%s171 + $0x19] sm:$0xff]
      %v1609 = vld [vmem:[%s171 + $0x21] sm:$0xff]
      %v1610 = vld [vmem:[%s171 + $0x29] sm:$0xff]
      %v1611 = vld [vmem:[%s171 + $0x31] sm:$0xff]
      %v1612 = vld [vmem:[%s171 + $0x39] sm:$0xff]
      %v1613 = vld [vmem:[%s171 + $0x41] sm:$0xff]
      %v1614 = vld [vmem:[%s171 + $0x49] sm:$0xff]
      %v1615 = vld [vmem:[%s171 + $0x51] sm:$0xff]
      %v1616 = vld [vmem:[%s171 + $0x59] sm:$0xff]
      %v1617 = vld [vmem:[%s171 + $0x61] sm:$0xff]
      %v1618 = vld [vmem:[%s171 + $0x69] sm:$0xff]
      %v1619 = vld [vmem:[%s171 + $0x71] sm:$0xff]
      %v1620 = vld [vmem:[%s171 + $0x79] sm:$0xff]
      %v1621 = vld [vmem:[%s171 + $0x81] sm:$0xff]
      %v1622 = vld [vmem:[%s171 + $0x89] sm:$0xff]
      %v1623 = vld [vmem:[%s171 + $0x91] sm:$0xff]
      %v1624 = vld [vmem:[%s171 + $0x99] sm:$0xff]
      %v1625 = vld [vmem:[%s171 + $0xa1] sm:$0xff]
      %v1626 = vld [vmem:[%s171 + $0xa9] sm:$0xff]
      %v1627 = vld [vmem:[%s171 + $0xb1] sm:$0xff]
      %v1628 = vld [vmem:[%s171 + $0xb9] sm:$0xff]
      %v1629 = vld [vmem:[%s171 + $0xc1] sm:$0xff]
      %v1630 = vld [vmem:[%s171 + $0xc9] sm:$0xff]
      %v1631 = vld [vmem:[%s171 + $0xd1] sm:$0xff]
      %v1632 = vld [vmem:[%s171 + $0xd9] sm:$0xff]
      %v1633 = vld [vmem:[%s171 + $0xe1] sm:$0xff]
      %v1634 = vld [vmem:[%s171 + $0xe9] sm:$0xff]
      %v1635 = vld [vmem:[%s171 + $0xf1] sm:$0xff]
      %v1636 = vld [vmem:[%s171 + $0xf9] sm:$0xff]
      %v1637 = vld [vmem:[%s171 + $0x101] sm:$0xff]
      %v1638 = vld [vmem:[%s171 + $0x109] sm:$0xff]
      %v1639 = vld [vmem:[%s171 + $0x111] sm:$0xff]
      %v1640 = vld [vmem:[%s171 + $0x119] sm:$0xff]
      %v1641 = vpack.c.bf16 %v1606, %v1605
      %v1642 = vpack.c.bf16 %v1608, %v1607
      %v1643 = vpack.c.bf16 %v1610, %v1609
      %v1644 = vpack.c.bf16 %v1612, %v1611
      %v1645 = vpack.c.bf16 %v1614, %v1613
      %v1646 = vpack.c.bf16 %v1616, %v1615
      %v1647 = vpack.c.bf16 %v1618, %v1617
      %v1648 = vpack.c.bf16 %v1620, %v1619
      %v1649 = vpack.c.bf16 %v1622, %v1621
      %v1650 = vpack.c.bf16 %v1624, %v1623
      %v1651 = vpack.c.bf16 %v1626, %v1625
      %v1652 = vpack.c.bf16 %v1628, %v1627
      %v1653 = vpack.c.bf16 %v1630, %v1629
      %v1654 = vpack.c.bf16 %v1632, %v1631
      %v1655 = vpack.c.bf16 %v1634, %v1633
      %v1656 = vpack.c.bf16 %v1636, %v1635
      %v1657 = vpack.c.bf16 %v1638, %v1637
      %v1658 = vpack.c.bf16 %v1640, %v1639
      %s1659 = scalar_lea.vmem %s1, 4
      %v1660 = vld [vmem:[%s1659] sm:$0xf]
      %vm1661 = vcmask 64512
      %v1663 = vsel %vm1661, %v1641, 0
      %v1666 = vsel %vm1661, %v1642, 0
      %v1669 = vsel %vm1661, %v1643, 0
      %v1672 = vsel %vm1661, %v1644, 0
      %v1675 = vsel %vm1661, %v1645, 0
      %v1678 = vsel %vm1661, %v1646, 0
      %v1681 = vsel %vm1661, %v1647, 0
      %v1684 = vsel %vm1661, %v1648, 0
      %v1687 = vsel %vm1661, %v1649, 0
      %v1690 = vsel %vm1661, %v1650, 0
      %v1693 = vsel %vm1661, %v1651, 0
      %v1696 = vsel %vm1661, %v1652, 0
      %v1699 = vsel %vm1661, %v1653, 0
      %v1702 = vsel %vm1661, %v1654, 0
      %v1705 = vsel %vm1661, %v1655, 0
      %v1708 = vsel %vm1661, %v1656, 0
      %v1711 = vsel %vm1661, %v1657, 0
      %v1714 = vsel %vm1661, %v1658, 0
      %vm1716 = vcmask 1043456
      %v1718 = vsel %vm1716, %v1660, 0
      %1720 = vmatpush.bf16.msra.mxu0 0
      %1721 = vmatpush.bf16.msra.mxu0 0
      %1722 = vmatpush.bf16.msra.mxu0 0
      %1723 = vmatpush.bf16.msra.mxu0 0
      %1724 = vmatpush.bf16.msra.mxu0 0
      %1725 = vmatpush.bf16.msra.mxu0 0
      %1726 = vmatpush.bf16.msra.mxu0 0
      %1727 = vmatpush.bf16.msra.mxu0 %v1718
      %1728 = vmatmul.bf16.gmra.mxu0 %v1663
      %v1729 = vpop.f32.mrf.mxu0
      %v1730 = vadd.f32 0.0, %v1729
      %v1731 = vpop.f32.mrf.mxu0
      %v1732 = vadd.f32 0.0, %v1731
      %1733 = vmatmul.bf16.gmra.mxu0 %v1666
      %v1734 = vpop.f32.mrf.mxu0
      %v1735 = vadd.f32 0.0, %v1734
      %v1736 = vpop.f32.mrf.mxu0
      %v1737 = vadd.f32 0.0, %v1736
      %1738 = vmatmul.bf16.gmra.mxu0 %v1669
      %v1739 = vpop.f32.mrf.mxu0
      %v1740 = vadd.f32 0.0, %v1739
      %v1741 = vpop.f32.mrf.mxu0
      %v1742 = vadd.f32 0.0, %v1741
      %1743 = vmatmul.bf16.gmra.mxu0 %v1672
      %v1744 = vpop.f32.mrf.mxu0
      %v1745 = vadd.f32 0.0, %v1744
      %v1746 = vpop.f32.mrf.mxu0
      %v1747 = vadd.f32 0.0, %v1746
      %1748 = vmatmul.bf16.gmra.mxu0 %v1675
      %v1749 = vpop.f32.mrf.mxu0
      %v1750 = vadd.f32 0.0, %v1749
      %v1751 = vpop.f32.mrf.mxu0
      %v1752 = vadd.f32 0.0, %v1751
      %1753 = vmatmul.bf16.gmra.mxu0 %v1678
      %v1754 = vpop.f32.mrf.mxu0
      %v1755 = vadd.f32 0.0, %v1754
      %v1756 = vpop.f32.mrf.mxu0
      %v1757 = vadd.f32 0.0, %v1756
      %1758 = vmatmul.bf16.gmra.mxu0 %v1681
      %v1759 = vpop.f32.mrf.mxu0
      %v1760 = vadd.f32 0.0, %v1759
      %v1761 = vpop.f32.mrf.mxu0
      %v1762 = vadd.f32 0.0, %v1761
      %1763 = vmatmul.bf16.gmra.mxu0 %v1684
      %v1764 = vpop.f32.mrf.mxu0
      %v1765 = vadd.f32 0.0, %v1764
      %v1766 = vpop.f32.mrf.mxu0
      %v1767 = vadd.f32 0.0, %v1766
      %1768 = vmatmul.bf16.gmra.mxu0 %v1687
      %v1769 = vpop.f32.mrf.mxu0
      %v1770 = vadd.f32 0.0, %v1769
      %v1771 = vpop.f32.mrf.mxu0
      %v1772 = vadd.f32 0.0, %v1771
      %1773 = vmatmul.bf16.gmra.mxu0 %v1690
      %v1774 = vpop.f32.mrf.mxu0
      %v1775 = vadd.f32 0.0, %v1774
      %v1776 = vpop.f32.mrf.mxu0
      %v1777 = vadd.f32 0.0, %v1776
      %1778 = vmatmul.bf16.gmra.mxu0 %v1693
      %v1779 = vpop.f32.mrf.mxu0
      %v1780 = vadd.f32 0.0, %v1779
      %v1781 = vpop.f32.mrf.mxu0
      %v1782 = vadd.f32 0.0, %v1781
      %1783 = vmatmul.bf16.gmra.mxu0 %v1696
      %v1784 = vpop.f32.mrf.mxu0
      %v1785 = vadd.f32 0.0, %v1784
      %v1786 = vpop.f32.mrf.mxu0
      %v1787 = vadd.f32 0.0, %v1786
      %1788 = vmatmul.bf16.gmra.mxu0 %v1699
      %v1789 = vpop.f32.mrf.mxu0
      %v1790 = vadd.f32 0.0, %v1789
      %v1791 = vpop.f32.mrf.mxu0
      %v1792 = vadd.f32 0.0, %v1791
      %1793 = vmatmul.bf16.gmra.mxu0 %v1702
      %v1794 = vpop.f32.mrf.mxu0
      %v1795 = vadd.f32 0.0, %v1794
      %v1796 = vpop.f32.mrf.mxu0
      %v1797 = vadd.f32 0.0, %v1796
      %1798 = vmatmul.bf16.gmra.mxu0 %v1705
      %v1799 = vpop.f32.mrf.mxu0
      %v1800 = vadd.f32 0.0, %v1799
      %v1801 = vpop.f32.mrf.mxu0
      %v1802 = vadd.f32 0.0, %v1801
      %1803 = vmatmul.bf16.gmra.mxu0 %v1708
      %v1804 = vpop.f32.mrf.mxu0
      %v1805 = vadd.f32 0.0, %v1804
      %v1806 = vpop.f32.mrf.mxu0
      %v1807 = vadd.f32 0.0, %v1806
      %1808 = vmatmul.bf16.gmra.mxu0 %v1711
      %v1809 = vpop.f32.mrf.mxu0
      %v1810 = vadd.f32 0.0, %v1809
      %v1811 = vpop.f32.mrf.mxu0
      %v1812 = vadd.f32 0.0, %v1811
      %1813 = vmatmul.bf16.gmra.mxu0 %v1714
      %v1814 = vpop.f32.mrf.mxu0
      %v1815 = vadd.f32 0.0, %v1814
      %v1816 = vpop.f32.mrf.mxu0
      %v1817 = vadd.f32 0.0, %v1816
      %1818 = vdwg.mxu0
      %v1820 = vsel %vm1661, %v1586, 0
      %v1823 = vsel %vm1661, %v1587, 0
      %v1826 = vsel %vm1661, %v1588, 0
      %v1829 = vsel %vm1661, %v1589, 0
      %v1832 = vsel %vm1661, %v1590, 0
      %v1835 = vsel %vm1661, %v1591, 0
      %v1838 = vsel %vm1661, %v1592, 0
      %v1841 = vsel %vm1661, %v1593, 0
      %v1844 = vsel %vm1661, %v1594, 0
      %v1847 = vsel %vm1661, %v1595, 0
      %v1850 = vsel %vm1661, %v1596, 0
      %v1853 = vsel %vm1661, %v1597, 0
      %v1856 = vsel %vm1661, %v1598, 0
      %v1859 = vsel %vm1661, %v1599, 0
      %v1862 = vsel %vm1661, %v1600, 0
      %v1865 = vsel %vm1661, %v1601, 0
      %v1868 = vsel %vm1661, %v1602, 0
      %v1871 = vsel %vm1661, %v1603, 0
      %v1874 = vsel %vm1716, %v1604, 0
      %1876 = vmatpush.bf16.msra.mxu0 0
      %1877 = vmatpush.bf16.msra.mxu0 0
      %1878 = vmatpush.bf16.msra.mxu0 0
      %1879 = vmatpush.bf16.msra.mxu0 0
      %1880 = vmatpush.bf16.msra.mxu0 0
      %1881 = vmatpush.bf16.msra.mxu0 0
      %1882 = vmatpush.bf16.msra.mxu0 0
      %1883 = vmatpush.bf16.msra.mxu0 %v1874
      %1884 = vmatmul.bf16.gmra.mxu0 %v1820
      %v1885 = vpop.f32.mrf.mxu0
      %v1886 = vadd.f32 %v1730, %v1885
      %v1887 = vpop.f32.mrf.mxu0
      %v1888 = vadd.f32 %v1732, %v1887
      %1889 = vmatmul.bf16.gmra.mxu0 %v1823
      %v1890 = vpop.f32.mrf.mxu0
      %v1891 = vadd.f32 %v1735, %v1890
      %v1892 = vpop.f32.mrf.mxu0
      %v1893 = vadd.f32 %v1737, %v1892
      %1894 = vmatmul.bf16.gmra.mxu0 %v1826
      %v1895 = vpop.f32.mrf.mxu0
      %v1896 = vadd.f32 %v1740, %v1895
      %v1897 = vpop.f32.mrf.mxu0
      %v1898 = vadd.f32 %v1742, %v1897
      %1899 = vmatmul.bf16.gmra.mxu0 %v1829
      %v1900 = vpop.f32.mrf.mxu0
      %v1901 = vadd.f32 %v1745, %v1900
      %v1902 = vpop.f32.mrf.mxu0
      %v1903 = vadd.f32 %v1747, %v1902
      %1904 = vmatmul.bf16.gmra.mxu0 %v1832
      %v1905 = vpop.f32.mrf.mxu0
      %v1906 = vadd.f32 %v1750, %v1905
      %v1907 = vpop.f32.mrf.mxu0
      %v1908 = vadd.f32 %v1752, %v1907
      %1909 = vmatmul.bf16.gmra.mxu0 %v1835
      %v1910 = vpop.f32.mrf.mxu0
      %v1911 = vadd.f32 %v1755, %v1910
      %v1912 = vpop.f32.mrf.mxu0
      %v1913 = vadd.f32 %v1757, %v1912
      %1914 = vmatmul.bf16.gmra.mxu0 %v1838
      %v1915 = vpop.f32.mrf.mxu0
      %v1916 = vadd.f32 %v1760, %v1915
      %v1917 = vpop.f32.mrf.mxu0
      %v1918 = vadd.f32 %v1762, %v1917
      %1919 = vmatmul.bf16.gmra.mxu0 %v1841
      %v1920 = vpop.f32.mrf.mxu0
      %v1921 = vadd.f32 %v1765, %v1920
      %v1922 = vpop.f32.mrf.mxu0
      %v1923 = vadd.f32 %v1767, %v1922
      %1924 = vmatmul.bf16.gmra.mxu0 %v1844
      %v1925 = vpop.f32.mrf.mxu0
      %v1926 = vadd.f32 %v1770, %v1925
      %v1927 = vpop.f32.mrf.mxu0
      %v1928 = vadd.f32 %v1772, %v1927
      %1929 = vmatmul.bf16.gmra.mxu0 %v1847
      %v1930 = vpop.f32.mrf.mxu0
      %v1931 = vadd.f32 %v1775, %v1930
      %v1932 = vpop.f32.mrf.mxu0
      %v1933 = vadd.f32 %v1777, %v1932
      %1934 = vmatmul.bf16.gmra.mxu0 %v1850
      %v1935 = vpop.f32.mrf.mxu0
      %v1936 = vadd.f32 %v1780, %v1935
      %v1937 = vpop.f32.mrf.mxu0
      %v1938 = vadd.f32 %v1782, %v1937
      %1939 = vmatmul.bf16.gmra.mxu0 %v1853
      %v1940 = vpop.f32.mrf.mxu0
      %v1941 = vadd.f32 %v1785, %v1940
      %v1942 = vpop.f32.mrf.mxu0
      %v1943 = vadd.f32 %v1787, %v1942
      %1944 = vmatmul.bf16.gmra.mxu0 %v1856
      %v1945 = vpop.f32.mrf.mxu0
      %v1946 = vadd.f32 %v1790, %v1945
      %v1947 = vpop.f32.mrf.mxu0
      %v1948 = vadd.f32 %v1792, %v1947
      %1949 = vmatmul.bf16.gmra.mxu0 %v1859
      %v1950 = vpop.f32.mrf.mxu0
      %v1951 = vadd.f32 %v1795, %v1950
      %v1952 = vpop.f32.mrf.mxu0
      %v1953 = vadd.f32 %v1797, %v1952
      %1954 = vmatmul.bf16.gmra.mxu0 %v1862
      %v1955 = vpop.f32.mrf.mxu0
      %v1956 = vadd.f32 %v1800, %v1955
      %v1957 = vpop.f32.mrf.mxu0
      %v1958 = vadd.f32 %v1802, %v1957
      %1959 = vmatmul.bf16.gmra.mxu0 %v1865
      %v1960 = vpop.f32.mrf.mxu0
      %v1961 = vadd.f32 %v1805, %v1960
      %v1962 = vpop.f32.mrf.mxu0
      %v1963 = vadd.f32 %v1807, %v1962
      %1964 = vmatmul.bf16.gmra.mxu0 %v1868
      %v1965 = vpop.f32.mrf.mxu0
      %v1966 = vadd.f32 %v1810, %v1965
      %v1967 = vpop.f32.mrf.mxu0
      %v1968 = vadd.f32 %v1812, %v1967
      %1969 = vmatmul.bf16.gmra.mxu0 %v1871
      %v1970 = vpop.f32.mrf.mxu0
      %v1971 = vadd.f32 %v1815, %v1970
      %v1972 = vpop.f32.mrf.mxu0
      %v1973 = vadd.f32 %v1817, %v1972
      %1974 = vdwg.mxu0
      %v1975 = vld [vmem:[%s171 + $0x2] sm:$0xff]
      %v1976 = vld [vmem:[%s171 + $0xa] sm:$0xff]
      %v1977 = vld [vmem:[%s171 + $0x12] sm:$0xff]
      %v1978 = vld [vmem:[%s171 + $0x1a] sm:$0xff]
      %v1979 = vld [vmem:[%s171 + $0x22] sm:$0xff]
      %v1980 = vld [vmem:[%s171 + $0x2a] sm:$0xff]
      %v1981 = vld [vmem:[%s171 + $0x32] sm:$0xff]
      %v1982 = vld [vmem:[%s171 + $0x3a] sm:$0xff]
      %v1983 = vld [vmem:[%s171 + $0x42] sm:$0xff]
      %v1984 = vld [vmem:[%s171 + $0x4a] sm:$0xff]
      %v1985 = vld [vmem:[%s171 + $0x52] sm:$0xff]
      %v1986 = vld [vmem:[%s171 + $0x5a] sm:$0xff]
      %v1987 = vld [vmem:[%s171 + $0x62] sm:$0xff]
      %v1988 = vld [vmem:[%s171 + $0x6a] sm:$0xff]
      %v1989 = vld [vmem:[%s171 + $0x72] sm:$0xff]
      %v1990 = vld [vmem:[%s171 + $0x7a] sm:$0xff]
      %v1991 = vld [vmem:[%s171 + $0x82] sm:$0xff]
      %v1992 = vld [vmem:[%s171 + $0x8a] sm:$0xff]
      %v1993 = vld [vmem:[%s171 + $0x92] sm:$0xff]
      %v1994 = vld [vmem:[%s171 + $0x9a] sm:$0xff]
      %v1995 = vld [vmem:[%s171 + $0xa2] sm:$0xff]
      %v1996 = vld [vmem:[%s171 + $0xaa] sm:$0xff]
      %v1997 = vld [vmem:[%s171 + $0xb2] sm:$0xff]
      %v1998 = vld [vmem:[%s171 + $0xba] sm:$0xff]
      %v1999 = vld [vmem:[%s171 + $0xc2] sm:$0xff]
      %v2000 = vld [vmem:[%s171 + $0xca] sm:$0xff]
      %v2001 = vld [vmem:[%s171 + $0xd2] sm:$0xff]
      %v2002 = vld [vmem:[%s171 + $0xda] sm:$0xff]
      %v2003 = vld [vmem:[%s171 + $0xe2] sm:$0xff]
      %v2004 = vld [vmem:[%s171 + $0xea] sm:$0xff]
      %v2005 = vld [vmem:[%s171 + $0xf2] sm:$0xff]
      %v2006 = vld [vmem:[%s171 + $0xfa] sm:$0xff]
      %v2007 = vld [vmem:[%s171 + $0x102] sm:$0xff]
      %v2008 = vld [vmem:[%s171 + $0x10a] sm:$0xff]
      %v2009 = vld [vmem:[%s171 + $0x112] sm:$0xff]
      %v2010 = vld [vmem:[%s171 + $0x11a] sm:$0xff]
      %v2011 = vpack.c.bf16 %v1976, %v1975
      %v2012 = vpack.c.bf16 %v1978, %v1977
      %v2013 = vpack.c.bf16 %v1980, %v1979
      %v2014 = vpack.c.bf16 %v1982, %v1981
      %v2015 = vpack.c.bf16 %v1984, %v1983
      %v2016 = vpack.c.bf16 %v1986, %v1985
      %v2017 = vpack.c.bf16 %v1988, %v1987
      %v2018 = vpack.c.bf16 %v1990, %v1989
      %v2019 = vpack.c.bf16 %v1992, %v1991
      %v2020 = vpack.c.bf16 %v1994, %v1993
      %v2021 = vpack.c.bf16 %v1996, %v1995
      %v2022 = vpack.c.bf16 %v1998, %v1997
      %v2023 = vpack.c.bf16 %v2000, %v1999
      %v2024 = vpack.c.bf16 %v2002, %v2001
      %v2025 = vpack.c.bf16 %v2004, %v2003
      %v2026 = vpack.c.bf16 %v2006, %v2005
      %v2027 = vpack.c.bf16 %v2008, %v2007
      %v2028 = vpack.c.bf16 %v2010, %v2009
      %s2029 = scalar_lea.vmem %s1, 8
      %v2030 = vld [vmem:[%s2029] sm:$0xf]
      %v2032 = vsel %vm1661, %v2011, 0
      %v2035 = vsel %vm1661, %v2012, 0
      %v2038 = vsel %vm1661, %v2013, 0
      %v2041 = vsel %vm1661, %v2014, 0
      %v2044 = vsel %vm1661, %v2015, 0
      %v2047 = vsel %vm1661, %v2016, 0
      %v2050 = vsel %vm1661, %v2017, 0
      %v2053 = vsel %vm1661, %v2018, 0
      %v2056 = vsel %vm1661, %v2019, 0
      %v2059 = vsel %vm1661, %v2020, 0
      %v2062 = vsel %vm1661, %v2021, 0
      %v2065 = vsel %vm1661, %v2022, 0
      %v2068 = vsel %vm1661, %v2023, 0
      %v2071 = vsel %vm1661, %v2024, 0
      %v2074 = vsel %vm1661, %v2025, 0
      %v2077 = vsel %vm1661, %v2026, 0
      %v2080 = vsel %vm1661, %v2027, 0
      %v2083 = vsel %vm1661, %v2028, 0
      %v2086 = vsel %vm1716, %v2030, 0
      %2088 = vmatpush.bf16.msra.mxu0 0
      %2089 = vmatpush.bf16.msra.mxu0 0
      %2090 = vmatpush.bf16.msra.mxu0 0
      %2091 = vmatpush.bf16.msra.mxu0 0
      %2092 = vmatpush.bf16.msra.mxu0 0
      %2093 = vmatpush.bf16.msra.mxu0 0
      %2094 = vmatpush.bf16.msra.mxu0 0
      %2095 = vmatpush.bf16.msra.mxu0 %v2086
      %2096 = vmatmul.bf16.gmra.mxu0 %v2032
      %v2097 = vpop.f32.mrf.mxu0
      %v2098 = vadd.f32 0.0, %v2097
      %v2099 = vpop.f32.mrf.mxu0
      %v2100 = vadd.f32 0.0, %v2099
      %2101 = vmatmul.bf16.gmra.mxu0 %v2035
      %v2102 = vpop.f32.mrf.mxu0
      %v2103 = vadd.f32 0.0, %v2102
      %v2104 = vpop.f32.mrf.mxu0
      %v2105 = vadd.f32 0.0, %v2104
      %2106 = vmatmul.bf16.gmra.mxu0 %v2038
      %v2107 = vpop.f32.mrf.mxu0
      %v2108 = vadd.f32 0.0, %v2107
      %v2109 = vpop.f32.mrf.mxu0
      %v2110 = vadd.f32 0.0, %v2109
      %2111 = vmatmul.bf16.gmra.mxu0 %v2041
      %v2112 = vpop.f32.mrf.mxu0
      %v2113 = vadd.f32 0.0, %v2112
      %v2114 = vpop.f32.mrf.mxu0
      %v2115 = vadd.f32 0.0, %v2114
      %2116 = vmatmul.bf16.gmra.mxu0 %v2044
      %v2117 = vpop.f32.mrf.mxu0
      %v2118 = vadd.f32 0.0, %v2117
      %v2119 = vpop.f32.mrf.mxu0
      %v2120 = vadd.f32 0.0, %v2119
      %2121 = vmatmul.bf16.gmra.mxu0 %v2047
      %v2122 = vpop.f32.mrf.mxu0
      %v2123 = vadd.f32 0.0, %v2122
      %v2124 = vpop.f32.mrf.mxu0
      %v2125 = vadd.f32 0.0, %v2124
      %2126 = vmatmul.bf16.gmra.mxu0 %v2050
      %v2127 = vpop.f32.mrf.mxu0
      %v2128 = vadd.f32 0.0, %v2127
      %v2129 = vpop.f32.mrf.mxu0
      %v2130 = vadd.f32 0.0, %v2129
      %2131 = vmatmul.bf16.gmra.mxu0 %v2053
      %v2132 = vpop.f32.mrf.mxu0
      %v2133 = vadd.f32 0.0, %v2132
      %v2134 = vpop.f32.mrf.mxu0
      %v2135 = vadd.f32 0.0, %v2134
      %2136 = vmatmul.bf16.gmra.mxu0 %v2056
      %v2137 = vpop.f32.mrf.mxu0
      %v2138 = vadd.f32 0.0, %v2137
      %v2139 = vpop.f32.mrf.mxu0
      %v2140 = vadd.f32 0.0, %v2139
      %2141 = vmatmul.bf16.gmra.mxu0 %v2059
      %v2142 = vpop.f32.mrf.mxu0
      %v2143 = vadd.f32 0.0, %v2142
      %v2144 = vpop.f32.mrf.mxu0
      %v2145 = vadd.f32 0.0, %v2144
      %2146 = vmatmul.bf16.gmra.mxu0 %v2062
      %v2147 = vpop.f32.mrf.mxu0
      %v2148 = vadd.f32 0.0, %v2147
      %v2149 = vpop.f32.mrf.mxu0
      %v2150 = vadd.f32 0.0, %v2149
      %2151 = vmatmul.bf16.gmra.mxu0 %v2065
      %v2152 = vpop.f32.mrf.mxu0
      %v2153 = vadd.f32 0.0, %v2152
      %v2154 = vpop.f32.mrf.mxu0
      %v2155 = vadd.f32 0.0, %v2154
      %2156 = vmatmul.bf16.gmra.mxu0 %v2068
      %v2157 = vpop.f32.mrf.mxu0
      %v2158 = vadd.f32 0.0, %v2157
      %v2159 = vpop.f32.mrf.mxu0
      %v2160 = vadd.f32 0.0, %v2159
      %2161 = vmatmul.bf16.gmra.mxu0 %v2071
      %v2162 = vpop.f32.mrf.mxu0
      %v2163 = vadd.f32 0.0, %v2162
      %v2164 = vpop.f32.mrf.mxu0
      %v2165 = vadd.f32 0.0, %v2164
      %2166 = vmatmul.bf16.gmra.mxu0 %v2074
      %v2167 = vpop.f32.mrf.mxu0
      %v2168 = vadd.f32 0.0, %v2167
      %v2169 = vpop.f32.mrf.mxu0
      %v2170 = vadd.f32 0.0, %v2169
      %2171 = vmatmul.bf16.gmra.mxu0 %v2077
      %v2172 = vpop.f32.mrf.mxu0
      %v2173 = vadd.f32 0.0, %v2172
      %v2174 = vpop.f32.mrf.mxu0
      %v2175 = vadd.f32 0.0, %v2174
      %2176 = vmatmul.bf16.gmra.mxu0 %v2080
      %v2177 = vpop.f32.mrf.mxu0
      %v2178 = vadd.f32 0.0, %v2177
      %v2179 = vpop.f32.mrf.mxu0
      %v2180 = vadd.f32 0.0, %v2179
      %2181 = vmatmul.bf16.gmra.mxu0 %v2083
      %v2182 = vpop.f32.mrf.mxu0
      %v2183 = vadd.f32 0.0, %v2182
      %v2184 = vpop.f32.mrf.mxu0
      %v2185 = vadd.f32 0.0, %v2184
      %2186 = vdwg.mxu0
      %v2187 = vadd.f32 %v1886, %v2098
      %v2188 = vadd.f32 %v1888, %v2100
      %v2189 = vadd.f32 %v1891, %v2103
      %v2190 = vadd.f32 %v1893, %v2105
      %v2191 = vadd.f32 %v1896, %v2108
      %v2192 = vadd.f32 %v1898, %v2110
      %v2193 = vadd.f32 %v1901, %v2113
      %v2194 = vadd.f32 %v1903, %v2115
      %v2195 = vadd.f32 %v1906, %v2118
      %v2196 = vadd.f32 %v1908, %v2120
      %v2197 = vadd.f32 %v1911, %v2123
      %v2198 = vadd.f32 %v1913, %v2125
      %v2199 = vadd.f32 %v1916, %v2128
      %v2200 = vadd.f32 %v1918, %v2130
      %v2201 = vadd.f32 %v1921, %v2133
      %v2202 = vadd.f32 %v1923, %v2135
      %v2203 = vadd.f32 %v1926, %v2138
      %v2204 = vadd.f32 %v1928, %v2140
      %v2205 = vadd.f32 %v1931, %v2143
      %v2206 = vadd.f32 %v1933, %v2145
      %v2207 = vadd.f32 %v1936, %v2148
      %v2208 = vadd.f32 %v1938, %v2150
      %v2209 = vadd.f32 %v1941, %v2153
      %v2210 = vadd.f32 %v1943, %v2155
      %v2211 = vadd.f32 %v1946, %v2158
      %v2212 = vadd.f32 %v1948, %v2160
      %v2213 = vadd.f32 %v1951, %v2163
      %v2214 = vadd.f32 %v1953, %v2165
      %v2215 = vadd.f32 %v1956, %v2168
      %v2216 = vadd.f32 %v1958, %v2170
      %v2217 = vadd.f32 %v1961, %v2173
      %v2218 = vadd.f32 %v1963, %v2175
      %v2219 = vadd.f32 %v1966, %v2178
      %v2220 = vadd.f32 %v1968, %v2180
      %v2221 = vadd.f32 %v1971, %v2183
      %v2222 = vadd.f32 %v1973, %v2185
      %v2223 = vld [vmem:[%s171 + $0x12] sm:$0xff]
      %v2224 = vld [vmem:[%s171 + $0x1a] sm:$0xff]
      %v2225 = vld [vmem:[%s171 + $0x22] sm:$0xff]
      %v2226 = vld [vmem:[%s171 + $0x2a] sm:$0xff]
      %v2227 = vld [vmem:[%s171 + $0x32] sm:$0xff]
      %v2228 = vld [vmem:[%s171 + $0x3a] sm:$0xff]
      %v2229 = vld [vmem:[%s171 + $0x42] sm:$0xff]
      %v2230 = vld [vmem:[%s171 + $0x4a] sm:$0xff]
      %v2231 = vld [vmem:[%s171 + $0x52] sm:$0xff]
      %v2232 = vld [vmem:[%s171 + $0x5a] sm:$0xff]
      %v2233 = vld [vmem:[%s171 + $0x62] sm:$0xff]
      %v2234 = vld [vmem:[%s171 + $0x6a] sm:$0xff]
      %v2235 = vld [vmem:[%s171 + $0x72] sm:$0xff]
      %v2236 = vld [vmem:[%s171 + $0x7a] sm:$0xff]
      %v2237 = vld [vmem:[%s171 + $0x82] sm:$0xff]
      %v2238 = vld [vmem:[%s171 + $0x8a] sm:$0xff]
      %v2239 = vld [vmem:[%s171 + $0x92] sm:$0xff]
      %v2240 = vld [vmem:[%s171 + $0x9a] sm:$0xff]
      %v2241 = vld [vmem:[%s171 + $0xa2] sm:$0xff]
      %v2242 = vld [vmem:[%s171 + $0xaa] sm:$0xff]
      %v2243 = vld [vmem:[%s171 + $0xb2] sm:$0xff]
      %v2244 = vld [vmem:[%s171 + $0xba] sm:$0xff]
      %v2245 = vld [vmem:[%s171 + $0xc2] sm:$0xff]
      %v2246 = vld [vmem:[%s171 + $0xca] sm:$0xff]
      %v2247 = vld [vmem:[%s171 + $0xd2] sm:$0xff]
      %v2248 = vld [vmem:[%s171 + $0xda] sm:$0xff]
      %v2249 = vld [vmem:[%s171 + $0xe2] sm:$0xff]
      %v2250 = vld [vmem:[%s171 + $0xea] sm:$0xff]
      %v2251 = vld [vmem:[%s171 + $0xf2] sm:$0xff]
      %v2252 = vld [vmem:[%s171 + $0xfa] sm:$0xff]
      %v2253 = vld [vmem:[%s171 + $0x102] sm:$0xff]
      %v2254 = vld [vmem:[%s171 + $0x10a] sm:$0xff]
      %v2255 = vld [vmem:[%s171 + $0x112] sm:$0xff]
      %v2256 = vld [vmem:[%s171 + $0x11a] sm:$0xff]
      %v2257 = vld [vmem:[%s171 + $0x122] sm:$0xff]
      %v2258 = vld [vmem:[%s171 + $0x12a] sm:$0xff]
      %v2259 = vpack.c.bf16 %v2224, %v2223
      %v2260 = vpack.c.bf16 %v2226, %v2225
      %v2261 = vpack.c.bf16 %v2228, %v2227
      %v2262 = vpack.c.bf16 %v2230, %v2229
      %v2263 = vpack.c.bf16 %v2232, %v2231
      %v2264 = vpack.c.bf16 %v2234, %v2233
      %v2265 = vpack.c.bf16 %v2236, %v2235
      %v2266 = vpack.c.bf16 %v2238, %v2237
      %v2267 = vpack.c.bf16 %v2240, %v2239
      %v2268 = vpack.c.bf16 %v2242, %v2241
      %v2269 = vpack.c.bf16 %v2244, %v2243
      %v2270 = vpack.c.bf16 %v2246, %v2245
      %v2271 = vpack.c.bf16 %v2248, %v2247
      %v2272 = vpack.c.bf16 %v2250, %v2249
      %v2273 = vpack.c.bf16 %v2252, %v2251
      %v2274 = vpack.c.bf16 %v2254, %v2253
      %v2275 = vpack.c.bf16 %v2256, %v2255
      %v2276 = vpack.c.bf16 %v2258, %v2257
      %s2277 = scalar_lea.vmem %s1, 12
      %v2278 = vld [vmem:[%s2277] sm:$0xf]
      %v2280 = vsel %vm1661, %v2259, 0
      %v2283 = vsel %vm1661, %v2260, 0
      %v2286 = vsel %vm1661, %v2261, 0
      %v2289 = vsel %vm1661, %v2262, 0
      %v2292 = vsel %vm1661, %v2263, 0
      %v2295 = vsel %vm1661, %v2264, 0
      %v2298 = vsel %vm1661, %v2265, 0
      %v2301 = vsel %vm1661, %v2266, 0
      %v2304 = vsel %vm1661, %v2267, 0
      %v2307 = vsel %vm1661, %v2268, 0
      %v2310 = vsel %vm1661, %v2269, 0
      %v2313 = vsel %vm1661, %v2270, 0
      %v2316 = vsel %vm1661, %v2271, 0
      %v2319 = vsel %vm1661, %v2272, 0
      %v2322 = vsel %vm1661, %v2273, 0
      %v2325 = vsel %vm1661, %v2274, 0
      %v2328 = vsel %vm1661, %v2275, 0
      %v2331 = vsel %vm1661, %v2276, 0
      %v2334 = vsel %vm1716, %v2278, 0
      %2336 = vmatpush.bf16.msra.mxu0 0
      %2337 = vmatpush.bf16.msra.mxu0 0
      %2338 = vmatpush.bf16.msra.mxu0 0
      %2339 = vmatpush.bf16.msra.mxu0 0
      %2340 = vmatpush.bf16.msra.mxu0 0
      %2341 = vmatpush.bf16.msra.mxu0 0
      %2342 = vmatpush.bf16.msra.mxu0 0
      %2343 = vmatpush.bf16.msra.mxu0 %v2334
      %2344 = vmatmul.bf16.gmra.mxu0 %v2280
      %v2345 = vpop.f32.mrf.mxu0
      %v2346 = vadd.f32 0.0, %v2345
      %v2347 = vpop.f32.mrf.mxu0
      %v2348 = vadd.f32 0.0, %v2347
      %2349 = vmatmul.bf16.gmra.mxu0 %v2283
      %v2350 = vpop.f32.mrf.mxu0
      %v2351 = vadd.f32 0.0, %v2350
      %v2352 = vpop.f32.mrf.mxu0
      %v2353 = vadd.f32 0.0, %v2352
      %2354 = vmatmul.bf16.gmra.mxu0 %v2286
      %v2355 = vpop.f32.mrf.mxu0
      %v2356 = vadd.f32 0.0, %v2355
      %v2357 = vpop.f32.mrf.mxu0
      %v2358 = vadd.f32 0.0, %v2357
      %2359 = vmatmul.bf16.gmra.mxu0 %v2289
      %v2360 = vpop.f32.mrf.mxu0
      %v2361 = vadd.f32 0.0, %v2360
      %v2362 = vpop.f32.mrf.mxu0
      %v2363 = vadd.f32 0.0, %v2362
      %2364 = vmatmul.bf16.gmra.mxu0 %v2292
      %v2365 = vpop.f32.mrf.mxu0
      %v2366 = vadd.f32 0.0, %v2365
      %v2367 = vpop.f32.mrf.mxu0
      %v2368 = vadd.f32 0.0, %v2367
      %2369 = vmatmul.bf16.gmra.mxu0 %v2295
      %v2370 = vpop.f32.mrf.mxu0
      %v2371 = vadd.f32 0.0, %v2370
      %v2372 = vpop.f32.mrf.mxu0
      %v2373 = vadd.f32 0.0, %v2372
      %2374 = vmatmul.bf16.gmra.mxu0 %v2298
      %v2375 = vpop.f32.mrf.mxu0
      %v2376 = vadd.f32 0.0, %v2375
      %v2377 = vpop.f32.mrf.mxu0
      %v2378 = vadd.f32 0.0, %v2377
      %2379 = vmatmul.bf16.gmra.mxu0 %v2301
      %v2380 = vpop.f32.mrf.mxu0
      %v2381 = vadd.f32 0.0, %v2380
      %v2382 = vpop.f32.mrf.mxu0
      %v2383 = vadd.f32 0.0, %v2382
      %2384 = vmatmul.bf16.gmra.mxu0 %v2304
      %v2385 = vpop.f32.mrf.mxu0
      %v2386 = vadd.f32 0.0, %v2385
      %v2387 = vpop.f32.mrf.mxu0
      %v2388 = vadd.f32 0.0, %v2387
      %2389 = vmatmul.bf16.gmra.mxu0 %v2307
      %v2390 = vpop.f32.mrf.mxu0
      %v2391 = vadd.f32 0.0, %v2390
      %v2392 = vpop.f32.mrf.mxu0
      %v2393 = vadd.f32 0.0, %v2392
      %2394 = vmatmul.bf16.gmra.mxu0 %v2310
      %v2395 = vpop.f32.mrf.mxu0
      %v2396 = vadd.f32 0.0, %v2395
      %v2397 = vpop.f32.mrf.mxu0
      %v2398 = vadd.f32 0.0, %v2397
      %2399 = vmatmul.bf16.gmra.mxu0 %v2313
      %v2400 = vpop.f32.mrf.mxu0
      %v2401 = vadd.f32 0.0, %v2400
      %v2402 = vpop.f32.mrf.mxu0
      %v2403 = vadd.f32 0.0, %v2402
      %2404 = vmatmul.bf16.gmra.mxu0 %v2316
      %v2405 = vpop.f32.mrf.mxu0
      %v2406 = vadd.f32 0.0, %v2405
      %v2407 = vpop.f32.mrf.mxu0
      %v2408 = vadd.f32 0.0, %v2407
      %2409 = vmatmul.bf16.gmra.mxu0 %v2319
      %v2410 = vpop.f32.mrf.mxu0
      %v2411 = vadd.f32 0.0, %v2410
      %v2412 = vpop.f32.mrf.mxu0
      %v2413 = vadd.f32 0.0, %v2412
      %2414 = vmatmul.bf16.gmra.mxu0 %v2322
      %v2415 = vpop.f32.mrf.mxu0
      %v2416 = vadd.f32 0.0, %v2415
      %v2417 = vpop.f32.mrf.mxu0
      %v2418 = vadd.f32 0.0, %v2417
      %2419 = vmatmul.bf16.gmra.mxu0 %v2325
      %v2420 = vpop.f32.mrf.mxu0
      %v2421 = vadd.f32 0.0, %v2420
      %v2422 = vpop.f32.mrf.mxu0
      %v2423 = vadd.f32 0.0, %v2422
      %2424 = vmatmul.bf16.gmra.mxu0 %v2328
      %v2425 = vpop.f32.mrf.mxu0
      %v2426 = vadd.f32 0.0, %v2425
      %v2427 = vpop.f32.mrf.mxu0
      %v2428 = vadd.f32 0.0, %v2427
      %2429 = vmatmul.bf16.gmra.mxu0 %v2331
      %v2430 = vpop.f32.mrf.mxu0
      %v2431 = vadd.f32 0.0, %v2430
      %v2432 = vpop.f32.mrf.mxu0
      %v2433 = vadd.f32 0.0, %v2432
      %2434 = vdwg.mxu0
      %v2435 = vadd.f32 %v2187, %v2346
      %v2436 = vadd.f32 %v2188, %v2348
      %v2437 = vadd.f32 %v2189, %v2351
      %v2438 = vadd.f32 %v2190, %v2353
      %v2439 = vadd.f32 %v2191, %v2356
      %v2440 = vadd.f32 %v2192, %v2358
      %v2441 = vadd.f32 %v2193, %v2361
      %v2442 = vadd.f32 %v2194, %v2363
      %v2443 = vadd.f32 %v2195, %v2366
      %v2444 = vadd.f32 %v2196, %v2368
      %v2445 = vadd.f32 %v2197, %v2371
      %v2446 = vadd.f32 %v2198, %v2373
      %v2447 = vadd.f32 %v2199, %v2376
      %v2448 = vadd.f32 %v2200, %v2378
      %v2449 = vadd.f32 %v2201, %v2381
      %v2450 = vadd.f32 %v2202, %v2383
      %v2451 = vadd.f32 %v2203, %v2386
      %v2452 = vadd.f32 %v2204, %v2388
      %v2453 = vadd.f32 %v2205, %v2391
      %v2454 = vadd.f32 %v2206, %v2393
      %v2455 = vadd.f32 %v2207, %v2396
      %v2456 = vadd.f32 %v2208, %v2398
      %v2457 = vadd.f32 %v2209, %v2401
      %v2458 = vadd.f32 %v2210, %v2403
      %v2459 = vadd.f32 %v2211, %v2406
      %v2460 = vadd.f32 %v2212, %v2408
      %v2461 = vadd.f32 %v2213, %v2411
      %v2462 = vadd.f32 %v2214, %v2413
      %v2463 = vadd.f32 %v2215, %v2416
      %v2464 = vadd.f32 %v2216, %v2418
      %v2465 = vadd.f32 %v2217, %v2421
      %v2466 = vadd.f32 %v2218, %v2423
      %v2467 = vadd.f32 %v2219, %v2426
      %v2468 = vadd.f32 %v2220, %v2428
      %v2469 = vadd.f32 %v2221, %v2431
      %v2470 = vadd.f32 %v2222, %v2433
      %v2471 = vld [vmem:[%s171 + $0x13] sm:$0xff]
      %v2472 = vld [vmem:[%s171 + $0x1b] sm:$0xff]
      %v2473 = vld [vmem:[%s171 + $0x23] sm:$0xff]
      %v2474 = vld [vmem:[%s171 + $0x2b] sm:$0xff]
      %v2475 = vld [vmem:[%s171 + $0x33] sm:$0xff]
      %v2476 = vld [vmem:[%s171 + $0x3b] sm:$0xff]
      %v2477 = vld [vmem:[%s171 + $0x43] sm:$0xff]
      %v2478 = vld [vmem:[%s171 + $0x4b] sm:$0xff]
      %v2479 = vld [vmem:[%s171 + $0x53] sm:$0xff]
      %v2480 = vld [vmem:[%s171 + $0x5b] sm:$0xff]
      %v2481 = vld [vmem:[%s171 + $0x63] sm:$0xff]
      %v2482 = vld [vmem:[%s171 + $0x6b] sm:$0xff]
      %v2483 = vld [vmem:[%s171 + $0x73] sm:$0xff]
      %v2484 = vld [vmem:[%s171 + $0x7b] sm:$0xff]
      %v2485 = vld [vmem:[%s171 + $0x83] sm:$0xff]
      %v2486 = vld [vmem:[%s171 + $0x8b] sm:$0xff]
      %v2487 = vld [vmem:[%s171 + $0x93] sm:$0xff]
      %v2488 = vld [vmem:[%s171 + $0x9b] sm:$0xff]
      %v2489 = vld [vmem:[%s171 + $0xa3] sm:$0xff]
      %v2490 = vld [vmem:[%s171 + $0xab] sm:$0xff]
      %v2491 = vld [vmem:[%s171 + $0xb3] sm:$0xff]
      %v2492 = vld [vmem:[%s171 + $0xbb] sm:$0xff]
      %v2493 = vld [vmem:[%s171 + $0xc3] sm:$0xff]
      %v2494 = vld [vmem:[%s171 + $0xcb] sm:$0xff]
      %v2495 = vld [vmem:[%s171 + $0xd3] sm:$0xff]
      %v2496 = vld [vmem:[%s171 + $0xdb] sm:$0xff]
      %v2497 = vld [vmem:[%s171 + $0xe3] sm:$0xff]
      %v2498 = vld [vmem:[%s171 + $0xeb] sm:$0xff]
      %v2499 = vld [vmem:[%s171 + $0xf3] sm:$0xff]
      %v2500 = vld [vmem:[%s171 + $0xfb] sm:$0xff]
      %v2501 = vld [vmem:[%s171 + $0x103] sm:$0xff]
      %v2502 = vld [vmem:[%s171 + $0x10b] sm:$0xff]
      %v2503 = vld [vmem:[%s171 + $0x113] sm:$0xff]
      %v2504 = vld [vmem:[%s171 + $0x11b] sm:$0xff]
      %v2505 = vld [vmem:[%s171 + $0x123] sm:$0xff]
      %v2506 = vld [vmem:[%s171 + $0x12b] sm:$0xff]
      %v2507 = vpack.c.bf16 %v2472, %v2471
      %v2508 = vpack.c.bf16 %v2474, %v2473
      %v2509 = vpack.c.bf16 %v2476, %v2475
      %v2510 = vpack.c.bf16 %v2478, %v2477
      %v2511 = vpack.c.bf16 %v2480, %v2479
      %v2512 = vpack.c.bf16 %v2482, %v2481
      %v2513 = vpack.c.bf16 %v2484, %v2483
      %v2514 = vpack.c.bf16 %v2486, %v2485
      %v2515 = vpack.c.bf16 %v2488, %v2487
      %v2516 = vpack.c.bf16 %v2490, %v2489
      %v2517 = vpack.c.bf16 %v2492, %v2491
      %v2518 = vpack.c.bf16 %v2494, %v2493
      %v2519 = vpack.c.bf16 %v2496, %v2495
      %v2520 = vpack.c.bf16 %v2498, %v2497
      %v2521 = vpack.c.bf16 %v2500, %v2499
      %v2522 = vpack.c.bf16 %v2502, %v2501
      %v2523 = vpack.c.bf16 %v2504, %v2503
      %v2524 = vpack.c.bf16 %v2506, %v2505
      %s2525 = scalar_lea.vmem %s1, 16
      %v2526 = vld [vmem:[%s2525] sm:$0xf]
      %v2528 = vsel %vm1661, %v2507, 0
      %v2531 = vsel %vm1661, %v2508, 0
      %v2534 = vsel %vm1661, %v2509, 0
      %v2537 = vsel %vm1661, %v2510, 0
      %v2540 = vsel %vm1661, %v2511, 0
      %v2543 = vsel %vm1661, %v2512, 0
      %v2546 = vsel %vm1661, %v2513, 0
      %v2549 = vsel %vm1661, %v2514, 0
      %v2552 = vsel %vm1661, %v2515, 0
      %v2555 = vsel %vm1661, %v2516, 0
      %v2558 = vsel %vm1661, %v2517, 0
      %v2561 = vsel %vm1661, %v2518, 0
      %v2564 = vsel %vm1661, %v2519, 0
      %v2567 = vsel %vm1661, %v2520, 0
      %v2570 = vsel %vm1661, %v2521, 0
      %v2573 = vsel %vm1661, %v2522, 0
      %v2576 = vsel %vm1661, %v2523, 0
      %v2579 = vsel %vm1661, %v2524, 0
      %v2582 = vsel %vm1716, %v2526, 0
      %2584 = vmatpush.bf16.msra.mxu0 0
      %2585 = vmatpush.bf16.msra.mxu0 0
      %2586 = vmatpush.bf16.msra.mxu0 0
      %2587 = vmatpush.bf16.msra.mxu0 0
      %2588 = vmatpush.bf16.msra.mxu0 0
      %2589 = vmatpush.bf16.msra.mxu0 0
      %2590 = vmatpush.bf16.msra.mxu0 0
      %2591 = vmatpush.bf16.msra.mxu0 %v2582
      %2592 = vmatmul.bf16.gmra.mxu0 %v2528
      %v2593 = vpop.f32.mrf.mxu0
      %v2594 = vadd.f32 0.0, %v2593
      %v2595 = vpop.f32.mrf.mxu0
      %v2596 = vadd.f32 0.0, %v2595
      %2597 = vmatmul.bf16.gmra.mxu0 %v2531
      %v2598 = vpop.f32.mrf.mxu0
      %v2599 = vadd.f32 0.0, %v2598
      %v2600 = vpop.f32.mrf.mxu0
      %v2601 = vadd.f32 0.0, %v2600
      %2602 = vmatmul.bf16.gmra.mxu0 %v2534
      %v2603 = vpop.f32.mrf.mxu0
      %v2604 = vadd.f32 0.0, %v2603
      %v2605 = vpop.f32.mrf.mxu0
      %v2606 = vadd.f32 0.0, %v2605
      %2607 = vmatmul.bf16.gmra.mxu0 %v2537
      %v2608 = vpop.f32.mrf.mxu0
      %v2609 = vadd.f32 0.0, %v2608
      %v2610 = vpop.f32.mrf.mxu0
      %v2611 = vadd.f32 0.0, %v2610
      %2612 = vmatmul.bf16.gmra.mxu0 %v2540
      %v2613 = vpop.f32.mrf.mxu0
      %v2614 = vadd.f32 0.0, %v2613
      %v2615 = vpop.f32.mrf.mxu0
      %v2616 = vadd.f32 0.0, %v2615
      %2617 = vmatmul.bf16.gmra.mxu0 %v2543
      %v2618 = vpop.f32.mrf.mxu0
      %v2619 = vadd.f32 0.0, %v2618
      %v2620 = vpop.f32.mrf.mxu0
      %v2621 = vadd.f32 0.0, %v2620
      %2622 = vmatmul.bf16.gmra.mxu0 %v2546
      %v2623 = vpop.f32.mrf.mxu0
      %v2624 = vadd.f32 0.0, %v2623
      %v2625 = vpop.f32.mrf.mxu0
      %v2626 = vadd.f32 0.0, %v2625
      %2627 = vmatmul.bf16.gmra.mxu0 %v2549
      %v2628 = vpop.f32.mrf.mxu0
      %v2629 = vadd.f32 0.0, %v2628
      %v2630 = vpop.f32.mrf.mxu0
      %v2631 = vadd.f32 0.0, %v2630
      %2632 = vmatmul.bf16.gmra.mxu0 %v2552
      %v2633 = vpop.f32.mrf.mxu0
      %v2634 = vadd.f32 0.0, %v2633
      %v2635 = vpop.f32.mrf.mxu0
      %v2636 = vadd.f32 0.0, %v2635
      %2637 = vmatmul.bf16.gmra.mxu0 %v2555
      %v2638 = vpop.f32.mrf.mxu0
      %v2639 = vadd.f32 0.0, %v2638
      %v2640 = vpop.f32.mrf.mxu0
      %v2641 = vadd.f32 0.0, %v2640
      %2642 = vmatmul.bf16.gmra.mxu0 %v2558
      %v2643 = vpop.f32.mrf.mxu0
      %v2644 = vadd.f32 0.0, %v2643
      %v2645 = vpop.f32.mrf.mxu0
      %v2646 = vadd.f32 0.0, %v2645
      %2647 = vmatmul.bf16.gmra.mxu0 %v2561
      %v2648 = vpop.f32.mrf.mxu0
      %v2649 = vadd.f32 0.0, %v2648
      %v2650 = vpop.f32.mrf.mxu0
      %v2651 = vadd.f32 0.0, %v2650
      %2652 = vmatmul.bf16.gmra.mxu0 %v2564
      %v2653 = vpop.f32.mrf.mxu0
      %v2654 = vadd.f32 0.0, %v2653
      %v2655 = vpop.f32.mrf.mxu0
      %v2656 = vadd.f32 0.0, %v2655
      %2657 = vmatmul.bf16.gmra.mxu0 %v2567
      %v2658 = vpop.f32.mrf.mxu0
      %v2659 = vadd.f32 0.0, %v2658
      %v2660 = vpop.f32.mrf.mxu0
      %v2661 = vadd.f32 0.0, %v2660
      %2662 = vmatmul.bf16.gmra.mxu0 %v2570
      %v2663 = vpop.f32.mrf.mxu0
      %v2664 = vadd.f32 0.0, %v2663
      %v2665 = vpop.f32.mrf.mxu0
      %v2666 = vadd.f32 0.0, %v2665
      %2667 = vmatmul.bf16.gmra.mxu0 %v2573
      %v2668 = vpop.f32.mrf.mxu0
      %v2669 = vadd.f32 0.0, %v2668
      %v2670 = vpop.f32.mrf.mxu0
      %v2671 = vadd.f32 0.0, %v2670
      %2672 = vmatmul.bf16.gmra.mxu0 %v2576
      %v2673 = vpop.f32.mrf.mxu0
      %v2674 = vadd.f32 0.0, %v2673
      %v2675 = vpop.f32.mrf.mxu0
      %v2676 = vadd.f32 0.0, %v2675
      %2677 = vmatmul.bf16.gmra.mxu0 %v2579
      %v2678 = vpop.f32.mrf.mxu0
      %v2679 = vadd.f32 0.0, %v2678
      %v2680 = vpop.f32.mrf.mxu0
      %v2681 = vadd.f32 0.0, %v2680
      %2682 = vdwg.mxu0
      %v2683 = vadd.f32 %v2435, %v2594
      %v2684 = vadd.f32 %v2436, %v2596
      %v2685 = vadd.f32 %v2437, %v2599
      %v2686 = vadd.f32 %v2438, %v2601
      %v2687 = vadd.f32 %v2439, %v2604
      %v2688 = vadd.f32 %v2440, %v2606
      %v2689 = vadd.f32 %v2441, %v2609
      %v2690 = vadd.f32 %v2442, %v2611
      %v2691 = vadd.f32 %v2443, %v2614
      %v2692 = vadd.f32 %v2444, %v2616
      %v2693 = vadd.f32 %v2445, %v2619
      %v2694 = vadd.f32 %v2446, %v2621
      %v2695 = vadd.f32 %v2447, %v2624
      %v2696 = vadd.f32 %v2448, %v2626
      %v2697 = vadd.f32 %v2449, %v2629
      %v2698 = vadd.f32 %v2450, %v2631
      %v2699 = vadd.f32 %v2451, %v2634
      %v2700 = vadd.f32 %v2452, %v2636
      %v2701 = vadd.f32 %v2453, %v2639
      %v2702 = vadd.f32 %v2454, %v2641
      %v2703 = vadd.f32 %v2455, %v2644
      %v2704 = vadd.f32 %v2456, %v2646
      %v2705 = vadd.f32 %v2457, %v2649
      %v2706 = vadd.f32 %v2458, %v2651
      %v2707 = vadd.f32 %v2459, %v2654
      %v2708 = vadd.f32 %v2460, %v2656
      %v2709 = vadd.f32 %v2461, %v2659
      %v2710 = vadd.f32 %v2462, %v2661
      %v2711 = vadd.f32 %v2463, %v2664
      %v2712 = vadd.f32 %v2464, %v2666
      %v2713 = vadd.f32 %v2465, %v2669
      %v2714 = vadd.f32 %v2466, %v2671
      %v2715 = vadd.f32 %v2467, %v2674
      %v2716 = vadd.f32 %v2468, %v2676
      %v2717 = vadd.f32 %v2469, %v2679
      %v2718 = vadd.f32 %v2470, %v2681
      %v2719 = vld [vmem:[%s171 + $0x14] sm:$0xff]
      %v2720 = vld [vmem:[%s171 + $0x1c] sm:$0xff]
      %v2721 = vld [vmem:[%s171 + $0x24] sm:$0xff]
      %v2722 = vld [vmem:[%s171 + $0x2c] sm:$0xff]
      %v2723 = vld [vmem:[%s171 + $0x34] sm:$0xff]
      %v2724 = vld [vmem:[%s171 + $0x3c] sm:$0xff]
      %v2725 = vld [vmem:[%s171 + $0x44] sm:$0xff]
      %v2726 = vld [vmem:[%s171 + $0x4c] sm:$0xff]
      %v2727 = vld [vmem:[%s171 + $0x54] sm:$0xff]
      %v2728 = vld [vmem:[%s171 + $0x5c] sm:$0xff]
      %v2729 = vld [vmem:[%s171 + $0x64] sm:$0xff]
      %v2730 = vld [vmem:[%s171 + $0x6c] sm:$0xff]
      %v2731 = vld [vmem:[%s171 + $0x74] sm:$0xff]
      %v2732 = vld [vmem:[%s171 + $0x7c] sm:$0xff]
      %v2733 = vld [vmem:[%s171 + $0x84] sm:$0xff]
      %v2734 = vld [vmem:[%s171 + $0x8c] sm:$0xff]
      %v2735 = vld [vmem:[%s171 + $0x94] sm:$0xff]
      %v2736 = vld [vmem:[%s171 + $0x9c] sm:$0xff]
      %v2737 = vld [vmem:[%s171 + $0xa4] sm:$0xff]
      %v2738 = vld [vmem:[%s171 + $0xac] sm:$0xff]
      %v2739 = vld [vmem:[%s171 + $0xb4] sm:$0xff]
      %v2740 = vld [vmem:[%s171 + $0xbc] sm:$0xff]
      %v2741 = vld [vmem:[%s171 + $0xc4] sm:$0xff]
      %v2742 = vld [vmem:[%s171 + $0xcc] sm:$0xff]
      %v2743 = vld [vmem:[%s171 + $0xd4] sm:$0xff]
      %v2744 = vld [vmem:[%s171 + $0xdc] sm:$0xff]
      %v2745 = vld [vmem:[%s171 + $0xe4] sm:$0xff]
      %v2746 = vld [vmem:[%s171 + $0xec] sm:$0xff]
      %v2747 = vld [vmem:[%s171 + $0xf4] sm:$0xff]
      %v2748 = vld [vmem:[%s171 + $0xfc] sm:$0xff]
      %v2749 = vld [vmem:[%s171 + $0x104] sm:$0xff]
      %v2750 = vld [vmem:[%s171 + $0x10c] sm:$0xff]
      %v2751 = vld [vmem:[%s171 + $0x114] sm:$0xff]
      %v2752 = vld [vmem:[%s171 + $0x11c] sm:$0xff]
      %v2753 = vld [vmem:[%s171 + $0x124] sm:$0xff]
      %v2754 = vld [vmem:[%s171 + $0x12c] sm:$0xff]
      %v2755 = vpack.c.bf16 %v2720, %v2719
      %v2756 = vpack.c.bf16 %v2722, %v2721
      %v2757 = vpack.c.bf16 %v2724, %v2723
      %v2758 = vpack.c.bf16 %v2726, %v2725
      %v2759 = vpack.c.bf16 %v2728, %v2727
      %v2760 = vpack.c.bf16 %v2730, %v2729
      %v2761 = vpack.c.bf16 %v2732, %v2731
      %v2762 = vpack.c.bf16 %v2734, %v2733
      %v2763 = vpack.c.bf16 %v2736, %v2735
      %v2764 = vpack.c.bf16 %v2738, %v2737
      %v2765 = vpack.c.bf16 %v2740, %v2739
      %v2766 = vpack.c.bf16 %v2742, %v2741
      %v2767 = vpack.c.bf16 %v2744, %v2743
      %v2768 = vpack.c.bf16 %v2746, %v2745
      %v2769 = vpack.c.bf16 %v2748, %v2747
      %v2770 = vpack.c.bf16 %v2750, %v2749
      %v2771 = vpack.c.bf16 %v2752, %v2751
      %v2772 = vpack.c.bf16 %v2754, %v2753
      %s2773 = scalar_lea.vmem %s1, 20
      %v2774 = vld [vmem:[%s2773] sm:$0xf]
      %v2776 = vsel %vm1661, %v2755, 0
      %v2779 = vsel %vm1661, %v2756, 0
      %v2782 = vsel %vm1661, %v2757, 0
      %v2785 = vsel %vm1661, %v2758, 0
      %v2788 = vsel %vm1661, %v2759, 0
      %v2791 = vsel %vm1661, %v2760, 0
      %v2794 = vsel %vm1661, %v2761, 0
      %v2797 = vsel %vm1661, %v2762, 0
      %v2800 = vsel %vm1661, %v2763, 0
      %v2803 = vsel %vm1661, %v2764, 0
      %v2806 = vsel %vm1661, %v2765, 0
      %v2809 = vsel %vm1661, %v2766, 0
      %v2812 = vsel %vm1661, %v2767, 0
      %v2815 = vsel %vm1661, %v2768, 0
      %v2818 = vsel %vm1661, %v2769, 0
      %v2821 = vsel %vm1661, %v2770, 0
      %v2824 = vsel %vm1661, %v2771, 0
      %v2827 = vsel %vm1661, %v2772, 0
      %v2830 = vsel %vm1716, %v2774, 0
      %2832 = vmatpush.bf16.msra.mxu0 0
      %2833 = vmatpush.bf16.msra.mxu0 0
      %2834 = vmatpush.bf16.msra.mxu0 0
      %2835 = vmatpush.bf16.msra.mxu0 0
      %2836 = vmatpush.bf16.msra.mxu0 0
      %2837 = vmatpush.bf16.msra.mxu0 0
      %2838 = vmatpush.bf16.msra.mxu0 0
      %2839 = vmatpush.bf16.msra.mxu0 %v2830
      %2840 = vmatmul.bf16.gmra.mxu0 %v2776
      %v2841 = vpop.f32.mrf.mxu0
      %v2842 = vadd.f32 0.0, %v2841
      %v2843 = vpop.f32.mrf.mxu0
      %v2844 = vadd.f32 0.0, %v2843
      %2845 = vmatmul.bf16.gmra.mxu0 %v2779
      %v2846 = vpop.f32.mrf.mxu0
      %v2847 = vadd.f32 0.0, %v2846
      %v2848 = vpop.f32.mrf.mxu0
      %v2849 = vadd.f32 0.0, %v2848
      %2850 = vmatmul.bf16.gmra.mxu0 %v2782
      %v2851 = vpop.f32.mrf.mxu0
      %v2852 = vadd.f32 0.0, %v2851
      %v2853 = vpop.f32.mrf.mxu0
      %v2854 = vadd.f32 0.0, %v2853
      %2855 = vmatmul.bf16.gmra.mxu0 %v2785
      %v2856 = vpop.f32.mrf.mxu0
      %v2857 = vadd.f32 0.0, %v2856
      %v2858 = vpop.f32.mrf.mxu0
      %v2859 = vadd.f32 0.0, %v2858
      %2860 = vmatmul.bf16.gmra.mxu0 %v2788
      %v2861 = vpop.f32.mrf.mxu0
      %v2862 = vadd.f32 0.0, %v2861
      %v2863 = vpop.f32.mrf.mxu0
      %v2864 = vadd.f32 0.0, %v2863
      %2865 = vmatmul.bf16.gmra.mxu0 %v2791
      %v2866 = vpop.f32.mrf.mxu0
      %v2867 = vadd.f32 0.0, %v2866
      %v2868 = vpop.f32.mrf.mxu0
      %v2869 = vadd.f32 0.0, %v2868
      %2870 = vmatmul.bf16.gmra.mxu0 %v2794
      %v2871 = vpop.f32.mrf.mxu0
      %v2872 = vadd.f32 0.0, %v2871
      %v2873 = vpop.f32.mrf.mxu0
      %v2874 = vadd.f32 0.0, %v2873
      %2875 = vmatmul.bf16.gmra.mxu0 %v2797
      %v2876 = vpop.f32.mrf.mxu0
      %v2877 = vadd.f32 0.0, %v2876
      %v2878 = vpop.f32.mrf.mxu0
      %v2879 = vadd.f32 0.0, %v2878
      %2880 = vmatmul.bf16.gmra.mxu0 %v2800
      %v2881 = vpop.f32.mrf.mxu0
      %v2882 = vadd.f32 0.0, %v2881
      %v2883 = vpop.f32.mrf.mxu0
      %v2884 = vadd.f32 0.0, %v2883
      %2885 = vmatmul.bf16.gmra.mxu0 %v2803
      %v2886 = vpop.f32.mrf.mxu0
      %v2887 = vadd.f32 0.0, %v2886
      %v2888 = vpop.f32.mrf.mxu0
      %v2889 = vadd.f32 0.0, %v2888
      %2890 = vmatmul.bf16.gmra.mxu0 %v2806
      %v2891 = vpop.f32.mrf.mxu0
      %v2892 = vadd.f32 0.0, %v2891
      %v2893 = vpop.f32.mrf.mxu0
      %v2894 = vadd.f32 0.0, %v2893
      %2895 = vmatmul.bf16.gmra.mxu0 %v2809
      %v2896 = vpop.f32.mrf.mxu0
      %v2897 = vadd.f32 0.0, %v2896
      %v2898 = vpop.f32.mrf.mxu0
      %v2899 = vadd.f32 0.0, %v2898
      %2900 = vmatmul.bf16.gmra.mxu0 %v2812
      %v2901 = vpop.f32.mrf.mxu0
      %v2902 = vadd.f32 0.0, %v2901
      %v2903 = vpop.f32.mrf.mxu0
      %v2904 = vadd.f32 0.0, %v2903
      %2905 = vmatmul.bf16.gmra.mxu0 %v2815
      %v2906 = vpop.f32.mrf.mxu0
      %v2907 = vadd.f32 0.0, %v2906
      %v2908 = vpop.f32.mrf.mxu0
      %v2909 = vadd.f32 0.0, %v2908
      %2910 = vmatmul.bf16.gmra.mxu0 %v2818
      %v2911 = vpop.f32.mrf.mxu0
      %v2912 = vadd.f32 0.0, %v2911
      %v2913 = vpop.f32.mrf.mxu0
      %v2914 = vadd.f32 0.0, %v2913
      %2915 = vmatmul.bf16.gmra.mxu0 %v2821
      %v2916 = vpop.f32.mrf.mxu0
      %v2917 = vadd.f32 0.0, %v2916
      %v2918 = vpop.f32.mrf.mxu0
      %v2919 = vadd.f32 0.0, %v2918
      %2920 = vmatmul.bf16.gmra.mxu0 %v2824
      %v2921 = vpop.f32.mrf.mxu0
      %v2922 = vadd.f32 0.0, %v2921
      %v2923 = vpop.f32.mrf.mxu0
      %v2924 = vadd.f32 0.0, %v2923
      %2925 = vmatmul.bf16.gmra.mxu0 %v2827
      %v2926 = vpop.f32.mrf.mxu0
      %v2927 = vadd.f32 0.0, %v2926
      %v2928 = vpop.f32.mrf.mxu0
      %v2929 = vadd.f32 0.0, %v2928
      %2930 = vdwg.mxu0
      %v2931 = vadd.f32 %v2683, %v2842
      %v2932 = vadd.f32 %v2684, %v2844
      %v2933 = vadd.f32 %v2685, %v2847
      %v2934 = vadd.f32 %v2686, %v2849
      %v2935 = vadd.f32 %v2687, %v2852
      %v2936 = vadd.f32 %v2688, %v2854
      %v2937 = vadd.f32 %v2689, %v2857
      %v2938 = vadd.f32 %v2690, %v2859
      %v2939 = vadd.f32 %v2691, %v2862
      %v2940 = vadd.f32 %v2692, %v2864
      %v2941 = vadd.f32 %v2693, %v2867
      %v2942 = vadd.f32 %v2694, %v2869
      %v2943 = vadd.f32 %v2695, %v2872
      %v2944 = vadd.f32 %v2696, %v2874
      %v2945 = vadd.f32 %v2697, %v2877
      %v2946 = vadd.f32 %v2698, %v2879
      %v2947 = vadd.f32 %v2699, %v2882
      %v2948 = vadd.f32 %v2700, %v2884
      %v2949 = vadd.f32 %v2701, %v2887
      %v2950 = vadd.f32 %v2702, %v2889
      %v2951 = vadd.f32 %v2703, %v2892
      %v2952 = vadd.f32 %v2704, %v2894
      %v2953 = vadd.f32 %v2705, %v2897
      %v2954 = vadd.f32 %v2706, %v2899
      %v2955 = vadd.f32 %v2707, %v2902
      %v2956 = vadd.f32 %v2708, %v2904
      %v2957 = vadd.f32 %v2709, %v2907
      %v2958 = vadd.f32 %v2710, %v2909
      %v2959 = vadd.f32 %v2711, %v2912
      %v2960 = vadd.f32 %v2712, %v2914
      %v2961 = vadd.f32 %v2713, %v2917
      %v2962 = vadd.f32 %v2714, %v2919
      %v2963 = vadd.f32 %v2715, %v2922
      %v2964 = vadd.f32 %v2716, %v2924
      %v2965 = vadd.f32 %v2717, %v2927
      %v2966 = vadd.f32 %v2718, %v2929
      %v2967 = vld [vmem:[%s171 + $0x24] sm:$0xff]
      %v2968 = vld [vmem:[%s171 + $0x2c] sm:$0xff]
      %v2969 = vld [vmem:[%s171 + $0x34] sm:$0xff]
      %v2970 = vld [vmem:[%s171 + $0x3c] sm:$0xff]
      %v2971 = vld [vmem:[%s171 + $0x44] sm:$0xff]
      %v2972 = vld [vmem:[%s171 + $0x4c] sm:$0xff]
      %v2973 = vld [vmem:[%s171 + $0x54] sm:$0xff]
      %v2974 = vld [vmem:[%s171 + $0x5c] sm:$0xff]
      %v2975 = vld [vmem:[%s171 + $0x64] sm:$0xff]
      %v2976 = vld [vmem:[%s171 + $0x6c] sm:$0xff]
      %v2977 = vld [vmem:[%s171 + $0x74] sm:$0xff]
      %v2978 = vld [vmem:[%s171 + $0x7c] sm:$0xff]
      %v2979 = vld [vmem:[%s171 + $0x84] sm:$0xff]
      %v2980 = vld [vmem:[%s171 + $0x8c] sm:$0xff]
      %v2981 = vld [vmem:[%s171 + $0x94] sm:$0xff]
      %v2982 = vld [vmem:[%s171 + $0x9c] sm:$0xff]
      %v2983 = vld [vmem:[%s171 + $0xa4] sm:$0xff]
      %v2984 = vld [vmem:[%s171 + $0xac] sm:$0xff]
      %v2985 = vld [vmem:[%s171 + $0xb4] sm:$0xff]
      %v2986 = vld [vmem:[%s171 + $0xbc] sm:$0xff]
      %v2987 = vld [vmem:[%s171 + $0xc4] sm:$0xff]
      %v2988 = vld [vmem:[%s171 + $0xcc] sm:$0xff]
      %v2989 = vld [vmem:[%s171 + $0xd4] sm:$0xff]
      %v2990 = vld [vmem:[%s171 + $0xdc] sm:$0xff]
      %v2991 = vld [vmem:[%s171 + $0xe4] sm:$0xff]
      %v2992 = vld [vmem:[%s171 + $0xec] sm:$0xff]
      %v2993 = vld [vmem:[%s171 + $0xf4] sm:$0xff]
      %v2994 = vld [vmem:[%s171 + $0xfc] sm:$0xff]
      %v2995 = vld [vmem:[%s171 + $0x104] sm:$0xff]
      %v2996 = vld [vmem:[%s171 + $0x10c] sm:$0xff]
      %v2997 = vld [vmem:[%s171 + $0x114] sm:$0xff]
      %v2998 = vld [vmem:[%s171 + $0x11c] sm:$0xff]
      %v2999 = vld [vmem:[%s171 + $0x124] sm:$0xff]
      %v3000 = vld [vmem:[%s171 + $0x12c] sm:$0xff]
      %v3001 = vld [vmem:[%s171 + $0x134] sm:$0xff]
      %v3002 = vld [vmem:[%s171 + $0x13c] sm:$0xff]
      %v3003 = vpack.c.bf16 %v2968, %v2967
      %v3004 = vpack.c.bf16 %v2970, %v2969
      %v3005 = vpack.c.bf16 %v2972, %v2971
      %v3006 = vpack.c.bf16 %v2974, %v2973
      %v3007 = vpack.c.bf16 %v2976, %v2975
      %v3008 = vpack.c.bf16 %v2978, %v2977
      %v3009 = vpack.c.bf16 %v2980, %v2979
      %v3010 = vpack.c.bf16 %v2982, %v2981
      %v3011 = vpack.c.bf16 %v2984, %v2983
      %v3012 = vpack.c.bf16 %v2986, %v2985
      %v3013 = vpack.c.bf16 %v2988, %v2987
      %v3014 = vpack.c.bf16 %v2990, %v2989
      %v3015 = vpack.c.bf16 %v2992, %v2991
      %v3016 = vpack.c.bf16 %v2994, %v2993
      %v3017 = vpack.c.bf16 %v2996, %v2995
      %v3018 = vpack.c.bf16 %v2998, %v2997
      %v3019 = vpack.c.bf16 %v3000, %v2999
      %v3020 = vpack.c.bf16 %v3002, %v3001
      %s3021 = scalar_lea.vmem %s1, 24
      %v3022 = vld [vmem:[%s3021] sm:$0xf]
      %v3024 = vsel %vm1661, %v3003, 0
      %v3027 = vsel %vm1661, %v3004, 0
      %v3030 = vsel %vm1661, %v3005, 0
      %v3033 = vsel %vm1661, %v3006, 0
      %v3036 = vsel %vm1661, %v3007, 0
      %v3039 = vsel %vm1661, %v3008, 0
      %v3042 = vsel %vm1661, %v3009, 0
      %v3045 = vsel %vm1661, %v3010, 0
      %v3048 = vsel %vm1661, %v3011, 0
      %v3051 = vsel %vm1661, %v3012, 0
      %v3054 = vsel %vm1661, %v3013, 0
      %v3057 = vsel %vm1661, %v3014, 0
      %v3060 = vsel %vm1661, %v3015, 0
      %v3063 = vsel %vm1661, %v3016, 0
      %v3066 = vsel %vm1661, %v3017, 0
      %v3069 = vsel %vm1661, %v3018, 0
      %v3072 = vsel %vm1661, %v3019, 0
      %v3075 = vsel %vm1661, %v3020, 0
      %v3078 = vsel %vm1716, %v3022, 0
      %3080 = vmatpush.bf16.msra.mxu0 0
      %3081 = vmatpush.bf16.msra.mxu0 0
      %3082 = vmatpush.bf16.msra.mxu0 0
      %3083 = vmatpush.bf16.msra.mxu0 0
      %3084 = vmatpush.bf16.msra.mxu0 0
      %3085 = vmatpush.bf16.msra.mxu0 0
      %3086 = vmatpush.bf16.msra.mxu0 0
      %3087 = vmatpush.bf16.msra.mxu0 %v3078
      %3088 = vmatmul.bf16.gmra.mxu0 %v3024
      %v3089 = vpop.f32.mrf.mxu0
      %v3090 = vadd.f32 0.0, %v3089
      %v3091 = vpop.f32.mrf.mxu0
      %v3092 = vadd.f32 0.0, %v3091
      %3093 = vmatmul.bf16.gmra.mxu0 %v3027
      %v3094 = vpop.f32.mrf.mxu0
      %v3095 = vadd.f32 0.0, %v3094
      %v3096 = vpop.f32.mrf.mxu0
      %v3097 = vadd.f32 0.0, %v3096
      %3098 = vmatmul.bf16.gmra.mxu0 %v3030
      %v3099 = vpop.f32.mrf.mxu0
      %v3100 = vadd.f32 0.0, %v3099
      %v3101 = vpop.f32.mrf.mxu0
      %v3102 = vadd.f32 0.0, %v3101
      %3103 = vmatmul.bf16.gmra.mxu0 %v3033
      %v3104 = vpop.f32.mrf.mxu0
      %v3105 = vadd.f32 0.0, %v3104
      %v3106 = vpop.f32.mrf.mxu0
      %v3107 = vadd.f32 0.0, %v3106
      %3108 = vmatmul.bf16.gmra.mxu0 %v3036
      %v3109 = vpop.f32.mrf.mxu0
      %v3110 = vadd.f32 0.0, %v3109
      %v3111 = vpop.f32.mrf.mxu0
      %v3112 = vadd.f32 0.0, %v3111
      %3113 = vmatmul.bf16.gmra.mxu0 %v3039
      %v3114 = vpop.f32.mrf.mxu0
      %v3115 = vadd.f32 0.0, %v3114
      %v3116 = vpop.f32.mrf.mxu0
      %v3117 = vadd.f32 0.0, %v3116
      %3118 = vmatmul.bf16.gmra.mxu0 %v3042
      %v3119 = vpop.f32.mrf.mxu0
      %v3120 = vadd.f32 0.0, %v3119
      %v3121 = vpop.f32.mrf.mxu0
      %v3122 = vadd.f32 0.0, %v3121
      %3123 = vmatmul.bf16.gmra.mxu0 %v3045
      %v3124 = vpop.f32.mrf.mxu0
      %v3125 = vadd.f32 0.0, %v3124
      %v3126 = vpop.f32.mrf.mxu0
      %v3127 = vadd.f32 0.0, %v3126
      %3128 = vmatmul.bf16.gmra.mxu0 %v3048
      %v3129 = vpop.f32.mrf.mxu0
      %v3130 = vadd.f32 0.0, %v3129
      %v3131 = vpop.f32.mrf.mxu0
      %v3132 = vadd.f32 0.0, %v3131
      %3133 = vmatmul.bf16.gmra.mxu0 %v3051
      %v3134 = vpop.f32.mrf.mxu0
      %v3135 = vadd.f32 0.0, %v3134
      %v3136 = vpop.f32.mrf.mxu0
      %v3137 = vadd.f32 0.0, %v3136
      %3138 = vmatmul.bf16.gmra.mxu0 %v3054
      %v3139 = vpop.f32.mrf.mxu0
      %v3140 = vadd.f32 0.0, %v3139
      %v3141 = vpop.f32.mrf.mxu0
      %v3142 = vadd.f32 0.0, %v3141
      %3143 = vmatmul.bf16.gmra.mxu0 %v3057
      %v3144 = vpop.f32.mrf.mxu0
      %v3145 = vadd.f32 0.0, %v3144
      %v3146 = vpop.f32.mrf.mxu0
      %v3147 = vadd.f32 0.0, %v3146
      %3148 = vmatmul.bf16.gmra.mxu0 %v3060
      %v3149 = vpop.f32.mrf.mxu0
      %v3150 = vadd.f32 0.0, %v3149
      %v3151 = vpop.f32.mrf.mxu0
      %v3152 = vadd.f32 0.0, %v3151
      %3153 = vmatmul.bf16.gmra.mxu0 %v3063
      %v3154 = vpop.f32.mrf.mxu0
      %v3155 = vadd.f32 0.0, %v3154
      %v3156 = vpop.f32.mrf.mxu0
      %v3157 = vadd.f32 0.0, %v3156
      %3158 = vmatmul.bf16.gmra.mxu0 %v3066
      %v3159 = vpop.f32.mrf.mxu0
      %v3160 = vadd.f32 0.0, %v3159
      %v3161 = vpop.f32.mrf.mxu0
      %v3162 = vadd.f32 0.0, %v3161
      %3163 = vmatmul.bf16.gmra.mxu0 %v3069
      %v3164 = vpop.f32.mrf.mxu0
      %v3165 = vadd.f32 0.0, %v3164
      %v3166 = vpop.f32.mrf.mxu0
      %v3167 = vadd.f32 0.0, %v3166
      %3168 = vmatmul.bf16.gmra.mxu0 %v3072
      %v3169 = vpop.f32.mrf.mxu0
      %v3170 = vadd.f32 0.0, %v3169
      %v3171 = vpop.f32.mrf.mxu0
      %v3172 = vadd.f32 0.0, %v3171
      %3173 = vmatmul.bf16.gmra.mxu0 %v3075
      %v3174 = vpop.f32.mrf.mxu0
      %v3175 = vadd.f32 0.0, %v3174
      %v3176 = vpop.f32.mrf.mxu0
      %v3177 = vadd.f32 0.0, %v3176
      %3178 = vdwg.mxu0
      %v3179 = vadd.f32 %v2931, %v3090
      %v3180 = vadd.f32 %v2932, %v3092
      %v3181 = vadd.f32 %v2933, %v3095
      %v3182 = vadd.f32 %v2934, %v3097
      %v3183 = vadd.f32 %v2935, %v3100
      %v3184 = vadd.f32 %v2936, %v3102
      %v3185 = vadd.f32 %v2937, %v3105
      %v3186 = vadd.f32 %v2938, %v3107
      %v3187 = vadd.f32 %v2939, %v3110
      %v3188 = vadd.f32 %v2940, %v3112
      %v3189 = vadd.f32 %v2941, %v3115
      %v3190 = vadd.f32 %v2942, %v3117
      %v3191 = vadd.f32 %v2943, %v3120
      %v3192 = vadd.f32 %v2944, %v3122
      %v3193 = vadd.f32 %v2945, %v3125
      %v3194 = vadd.f32 %v2946, %v3127
      %v3195 = vadd.f32 %v2947, %v3130
      %v3196 = vadd.f32 %v2948, %v3132
      %v3197 = vadd.f32 %v2949, %v3135
      %v3198 = vadd.f32 %v2950, %v3137
      %v3199 = vadd.f32 %v2951, %v3140
      %v3200 = vadd.f32 %v2952, %v3142
      %v3201 = vadd.f32 %v2953, %v3145
      %v3202 = vadd.f32 %v2954, %v3147
      %v3203 = vadd.f32 %v2955, %v3150
      %v3204 = vadd.f32 %v2956, %v3152
      %v3205 = vadd.f32 %v2957, %v3155
      %v3206 = vadd.f32 %v2958, %v3157
      %v3207 = vadd.f32 %v2959, %v3160
      %v3208 = vadd.f32 %v2960, %v3162
      %v3209 = vadd.f32 %v2961, %v3165
      %v3210 = vadd.f32 %v2962, %v3167
      %v3211 = vadd.f32 %v2963, %v3170
      %v3212 = vadd.f32 %v2964, %v3172
      %v3213 = vadd.f32 %v2965, %v3175
      %v3214 = vadd.f32 %v2966, %v3177
      %v3215 = vld [vmem:[%s171 + $0x25] sm:$0xff]
      %v3216 = vld [vmem:[%s171 + $0x2d] sm:$0xff]
      %v3217 = vld [vmem:[%s171 + $0x35] sm:$0xff]
      %v3218 = vld [vmem:[%s171 + $0x3d] sm:$0xff]
      %v3219 = vld [vmem:[%s171 + $0x45] sm:$0xff]
      %v3220 = vld [vmem:[%s171 + $0x4d] sm:$0xff]
      %v3221 = vld [vmem:[%s171 + $0x55] sm:$0xff]
      %v3222 = vld [vmem:[%s171 + $0x5d] sm:$0xff]
      %v3223 = vld [vmem:[%s171 + $0x65] sm:$0xff]
      %v3224 = vld [vmem:[%s171 + $0x6d] sm:$0xff]
      %v3225 = vld [vmem:[%s171 + $0x75] sm:$0xff]
      %v3226 = vld [vmem:[%s171 + $0x7d] sm:$0xff]
      %v3227 = vld [vmem:[%s171 + $0x85] sm:$0xff]
      %v3228 = vld [vmem:[%s171 + $0x8d] sm:$0xff]
      %v3229 = vld [vmem:[%s171 + $0x95] sm:$0xff]
      %v3230 = vld [vmem:[%s171 + $0x9d] sm:$0xff]
      %v3231 = vld [vmem:[%s171 + $0xa5] sm:$0xff]
      %v3232 = vld [vmem:[%s171 + $0xad] sm:$0xff]
      %v3233 = vld [vmem:[%s171 + $0xb5] sm:$0xff]
      %v3234 = vld [vmem:[%s171 + $0xbd] sm:$0xff]
      %v3235 = vld [vmem:[%s171 + $0xc5] sm:$0xff]
      %v3236 = vld [vmem:[%s171 + $0xcd] sm:$0xff]
      %v3237 = vld [vmem:[%s171 + $0xd5] sm:$0xff]
      %v3238 = vld [vmem:[%s171 + $0xdd] sm:$0xff]
      %v3239 = vld [vmem:[%s171 + $0xe5] sm:$0xff]
      %v3240 = vld [vmem:[%s171 + $0xed] sm:$0xff]
      %v3241 = vld [vmem:[%s171 + $0xf5] sm:$0xff]
      %v3242 = vld [vmem:[%s171 + $0xfd] sm:$0xff]
      %v3243 = vld [vmem:[%s171 + $0x105] sm:$0xff]
      %v3244 = vld [vmem:[%s171 + $0x10d] sm:$0xff]
      %v3245 = vld [vmem:[%s171 + $0x115] sm:$0xff]
      %v3246 = vld [vmem:[%s171 + $0x11d] sm:$0xff]
      %v3247 = vld [vmem:[%s171 + $0x125] sm:$0xff]
      %v3248 = vld [vmem:[%s171 + $0x12d] sm:$0xff]
      %v3249 = vld [vmem:[%s171 + $0x135] sm:$0xff]
      %v3250 = vld [vmem:[%s171 + $0x13d] sm:$0xff]
      %v3251 = vpack.c.bf16 %v3216, %v3215
      %v3252 = vpack.c.bf16 %v3218, %v3217
      %v3253 = vpack.c.bf16 %v3220, %v3219
      %v3254 = vpack.c.bf16 %v3222, %v3221
      %v3255 = vpack.c.bf16 %v3224, %v3223
      %v3256 = vpack.c.bf16 %v3226, %v3225
      %v3257 = vpack.c.bf16 %v3228, %v3227
      %v3258 = vpack.c.bf16 %v3230, %v3229
      %v3259 = vpack.c.bf16 %v3232, %v3231
      %v3260 = vpack.c.bf16 %v3234, %v3233
      %v3261 = vpack.c.bf16 %v3236, %v3235
      %v3262 = vpack.c.bf16 %v3238, %v3237
      %v3263 = vpack.c.bf16 %v3240, %v3239
      %v3264 = vpack.c.bf16 %v3242, %v3241
      %v3265 = vpack.c.bf16 %v3244, %v3243
      %v3266 = vpack.c.bf16 %v3246, %v3245
      %v3267 = vpack.c.bf16 %v3248, %v3247
      %v3268 = vpack.c.bf16 %v3250, %v3249
      %s3269 = scalar_lea.vmem %s1, 28
      %v3270 = vld [vmem:[%s3269] sm:$0xf]
      %v3272 = vsel %vm1661, %v3251, 0
      %v3275 = vsel %vm1661, %v3252, 0
      %v3278 = vsel %vm1661, %v3253, 0
      %v3281 = vsel %vm1661, %v3254, 0
      %v3284 = vsel %vm1661, %v3255, 0
      %v3287 = vsel %vm1661, %v3256, 0
      %v3290 = vsel %vm1661, %v3257, 0
      %v3293 = vsel %vm1661, %v3258, 0
      %v3296 = vsel %vm1661, %v3259, 0
      %v3299 = vsel %vm1661, %v3260, 0
      %v3302 = vsel %vm1661, %v3261, 0
      %v3305 = vsel %vm1661, %v3262, 0
      %v3308 = vsel %vm1661, %v3263, 0
      %v3311 = vsel %vm1661, %v3264, 0
      %v3314 = vsel %vm1661, %v3265, 0
      %v3317 = vsel %vm1661, %v3266, 0
      %v3320 = vsel %vm1661, %v3267, 0
      %v3323 = vsel %vm1661, %v3268, 0
      %v3326 = vsel %vm1716, %v3270, 0
      %3328 = vmatpush.bf16.msra.mxu0 0
      %3329 = vmatpush.bf16.msra.mxu0 0
      %3330 = vmatpush.bf16.msra.mxu0 0
      %3331 = vmatpush.bf16.msra.mxu0 0
      %3332 = vmatpush.bf16.msra.mxu0 0
      %3333 = vmatpush.bf16.msra.mxu0 0
      %3334 = vmatpush.bf16.msra.mxu0 0
      %3335 = vmatpush.bf16.msra.mxu0 %v3326
      %3336 = vmatmul.bf16.gmra.mxu0 %v3272
      %v3337 = vpop.f32.mrf.mxu0
      %v3338 = vadd.f32 0.0, %v3337
      %v3339 = vpop.f32.mrf.mxu0
      %v3340 = vadd.f32 0.0, %v3339
      %3341 = vmatmul.bf16.gmra.mxu0 %v3275
      %v3342 = vpop.f32.mrf.mxu0
      %v3343 = vadd.f32 0.0, %v3342
      %v3344 = vpop.f32.mrf.mxu0
      %v3345 = vadd.f32 0.0, %v3344
      %3346 = vmatmul.bf16.gmra.mxu0 %v3278
      %v3347 = vpop.f32.mrf.mxu0
      %v3348 = vadd.f32 0.0, %v3347
      %v3349 = vpop.f32.mrf.mxu0
      %v3350 = vadd.f32 0.0, %v3349
      %3351 = vmatmul.bf16.gmra.mxu0 %v3281
      %v3352 = vpop.f32.mrf.mxu0
      %v3353 = vadd.f32 0.0, %v3352
      %v3354 = vpop.f32.mrf.mxu0
      %v3355 = vadd.f32 0.0, %v3354
      %3356 = vmatmul.bf16.gmra.mxu0 %v3284
      %v3357 = vpop.f32.mrf.mxu0
      %v3358 = vadd.f32 0.0, %v3357
      %v3359 = vpop.f32.mrf.mxu0
      %v3360 = vadd.f32 0.0, %v3359
      %3361 = vmatmul.bf16.gmra.mxu0 %v3287
      %v3362 = vpop.f32.mrf.mxu0
      %v3363 = vadd.f32 0.0, %v3362
      %v3364 = vpop.f32.mrf.mxu0
      %v3365 = vadd.f32 0.0, %v3364
      %3366 = vmatmul.bf16.gmra.mxu0 %v3290
      %v3367 = vpop.f32.mrf.mxu0
      %v3368 = vadd.f32 0.0, %v3367
      %v3369 = vpop.f32.mrf.mxu0
      %v3370 = vadd.f32 0.0, %v3369
      %3371 = vmatmul.bf16.gmra.mxu0 %v3293
      %v3372 = vpop.f32.mrf.mxu0
      %v3373 = vadd.f32 0.0, %v3372
      %v3374 = vpop.f32.mrf.mxu0
      %v3375 = vadd.f32 0.0, %v3374
      %3376 = vmatmul.bf16.gmra.mxu0 %v3296
      %v3377 = vpop.f32.mrf.mxu0
      %v3378 = vadd.f32 0.0, %v3377
      %v3379 = vpop.f32.mrf.mxu0
      %v3380 = vadd.f32 0.0, %v3379
      %3381 = vmatmul.bf16.gmra.mxu0 %v3299
      %v3382 = vpop.f32.mrf.mxu0
      %v3383 = vadd.f32 0.0, %v3382
      %v3384 = vpop.f32.mrf.mxu0
      %v3385 = vadd.f32 0.0, %v3384
      %3386 = vmatmul.bf16.gmra.mxu0 %v3302
      %v3387 = vpop.f32.mrf.mxu0
      %v3388 = vadd.f32 0.0, %v3387
      %v3389 = vpop.f32.mrf.mxu0
      %v3390 = vadd.f32 0.0, %v3389
      %3391 = vmatmul.bf16.gmra.mxu0 %v3305
      %v3392 = vpop.f32.mrf.mxu0
      %v3393 = vadd.f32 0.0, %v3392
      %v3394 = vpop.f32.mrf.mxu0
      %v3395 = vadd.f32 0.0, %v3394
      %3396 = vmatmul.bf16.gmra.mxu0 %v3308
      %v3397 = vpop.f32.mrf.mxu0
      %v3398 = vadd.f32 0.0, %v3397
      %v3399 = vpop.f32.mrf.mxu0
      %v3400 = vadd.f32 0.0, %v3399
      %3401 = vmatmul.bf16.gmra.mxu0 %v3311
      %v3402 = vpop.f32.mrf.mxu0
      %v3403 = vadd.f32 0.0, %v3402
      %v3404 = vpop.f32.mrf.mxu0
      %v3405 = vadd.f32 0.0, %v3404
      %3406 = vmatmul.bf16.gmra.mxu0 %v3314
      %v3407 = vpop.f32.mrf.mxu0
      %v3408 = vadd.f32 0.0, %v3407
      %v3409 = vpop.f32.mrf.mxu0
      %v3410 = vadd.f32 0.0, %v3409
      %3411 = vmatmul.bf16.gmra.mxu0 %v3317
      %v3412 = vpop.f32.mrf.mxu0
      %v3413 = vadd.f32 0.0, %v3412
      %v3414 = vpop.f32.mrf.mxu0
      %v3415 = vadd.f32 0.0, %v3414
      %3416 = vmatmul.bf16.gmra.mxu0 %v3320
      %v3417 = vpop.f32.mrf.mxu0
      %v3418 = vadd.f32 0.0, %v3417
      %v3419 = vpop.f32.mrf.mxu0
      %v3420 = vadd.f32 0.0, %v3419
      %3421 = vmatmul.bf16.gmra.mxu0 %v3323
      %v3422 = vpop.f32.mrf.mxu0
      %v3423 = vadd.f32 0.0, %v3422
      %v3424 = vpop.f32.mrf.mxu0
      %v3425 = vadd.f32 0.0, %v3424
      %3426 = vdwg.mxu0
      %v3427 = vadd.f32 %v3179, %v3338
      %v3428 = vadd.f32 %v3180, %v3340
      %v3429 = vadd.f32 %v3181, %v3343
      %v3430 = vadd.f32 %v3182, %v3345
      %v3431 = vadd.f32 %v3183, %v3348
      %v3432 = vadd.f32 %v3184, %v3350
      %v3433 = vadd.f32 %v3185, %v3353
      %v3434 = vadd.f32 %v3186, %v3355
      %v3435 = vadd.f32 %v3187, %v3358
      %v3436 = vadd.f32 %v3188, %v3360
      %v3437 = vadd.f32 %v3189, %v3363
      %v3438 = vadd.f32 %v3190, %v3365
      %v3439 = vadd.f32 %v3191, %v3368
      %v3440 = vadd.f32 %v3192, %v3370
      %v3441 = vadd.f32 %v3193, %v3373
      %v3442 = vadd.f32 %v3194, %v3375
      %v3443 = vadd.f32 %v3195, %v3378
      %v3444 = vadd.f32 %v3196, %v3380
      %v3445 = vadd.f32 %v3197, %v3383
      %v3446 = vadd.f32 %v3198, %v3385
      %v3447 = vadd.f32 %v3199, %v3388
      %v3448 = vadd.f32 %v3200, %v3390
      %v3449 = vadd.f32 %v3201, %v3393
      %v3450 = vadd.f32 %v3202, %v3395
      %v3451 = vadd.f32 %v3203, %v3398
      %v3452 = vadd.f32 %v3204, %v3400
      %v3453 = vadd.f32 %v3205, %v3403
      %v3454 = vadd.f32 %v3206, %v3405
      %v3455 = vadd.f32 %v3207, %v3408
      %v3456 = vadd.f32 %v3208, %v3410
      %v3457 = vadd.f32 %v3209, %v3413
      %v3458 = vadd.f32 %v3210, %v3415
      %v3459 = vadd.f32 %v3211, %v3418
      %v3460 = vadd.f32 %v3212, %v3420
      %v3461 = vadd.f32 %v3213, %v3423
      %v3462 = vadd.f32 %v3214, %v3425
      %v3463 = vld [vmem:[%s171 + $0x26] sm:$0xff]
      %v3464 = vld [vmem:[%s171 + $0x2e] sm:$0xff]
      %v3465 = vld [vmem:[%s171 + $0x36] sm:$0xff]
      %v3466 = vld [vmem:[%s171 + $0x3e] sm:$0xff]
      %v3467 = vld [vmem:[%s171 + $0x46] sm:$0xff]
      %v3468 = vld [vmem:[%s171 + $0x4e] sm:$0xff]
      %v3469 = vld [vmem:[%s171 + $0x56] sm:$0xff]
      %v3470 = vld [vmem:[%s171 + $0x5e] sm:$0xff]
      %v3471 = vld [vmem:[%s171 + $0x66] sm:$0xff]
      %v3472 = vld [vmem:[%s171 + $0x6e] sm:$0xff]
      %v3473 = vld [vmem:[%s171 + $0x76] sm:$0xff]
      %v3474 = vld [vmem:[%s171 + $0x7e] sm:$0xff]
      %v3475 = vld [vmem:[%s171 + $0x86] sm:$0xff]
      %v3476 = vld [vmem:[%s171 + $0x8e] sm:$0xff]
      %v3477 = vld [vmem:[%s171 + $0x96] sm:$0xff]
      %v3478 = vld [vmem:[%s171 + $0x9e] sm:$0xff]
      %v3479 = vld [vmem:[%s171 + $0xa6] sm:$0xff]
      %v3480 = vld [vmem:[%s171 + $0xae] sm:$0xff]
      %v3481 = vld [vmem:[%s171 + $0xb6] sm:$0xff]
      %v3482 = vld [vmem:[%s171 + $0xbe] sm:$0xff]
      %v3483 = vld [vmem:[%s171 + $0xc6] sm:$0xff]
      %v3484 = vld [vmem:[%s171 + $0xce] sm:$0xff]
      %v3485 = vld [vmem:[%s171 + $0xd6] sm:$0xff]
      %v3486 = vld [vmem:[%s171 + $0xde] sm:$0xff]
      %v3487 = vld [vmem:[%s171 + $0xe6] sm:$0xff]
      %v3488 = vld [vmem:[%s171 + $0xee] sm:$0xff]
      %v3489 = vld [vmem:[%s171 + $0xf6] sm:$0xff]
      %v3490 = vld [vmem:[%s171 + $0xfe] sm:$0xff]
      %v3491 = vld [vmem:[%s171 + $0x106] sm:$0xff]
      %v3492 = vld [vmem:[%s171 + $0x10e] sm:$0xff]
      %v3493 = vld [vmem:[%s171 + $0x116] sm:$0xff]
      %v3494 = vld [vmem:[%s171 + $0x11e] sm:$0xff]
      %v3495 = vld [vmem:[%s171 + $0x126] sm:$0xff]
      %v3496 = vld [vmem:[%s171 + $0x12e] sm:$0xff]
      %v3497 = vld [vmem:[%s171 + $0x136] sm:$0xff]
      %v3498 = vld [vmem:[%s171 + $0x13e] sm:$0xff]
      %v3499 = vpack.c.bf16 %v3464, %v3463
      %v3500 = vpack.c.bf16 %v3466, %v3465
      %v3501 = vpack.c.bf16 %v3468, %v3467
      %v3502 = vpack.c.bf16 %v3470, %v3469
      %v3503 = vpack.c.bf16 %v3472, %v3471
      %v3504 = vpack.c.bf16 %v3474, %v3473
      %v3505 = vpack.c.bf16 %v3476, %v3475
      %v3506 = vpack.c.bf16 %v3478, %v3477
      %v3507 = vpack.c.bf16 %v3480, %v3479
      %v3508 = vpack.c.bf16 %v3482, %v3481
      %v3509 = vpack.c.bf16 %v3484, %v3483
      %v3510 = vpack.c.bf16 %v3486, %v3485
      %v3511 = vpack.c.bf16 %v3488, %v3487
      %v3512 = vpack.c.bf16 %v3490, %v3489
      %v3513 = vpack.c.bf16 %v3492, %v3491
      %v3514 = vpack.c.bf16 %v3494, %v3493
      %v3515 = vpack.c.bf16 %v3496, %v3495
      %v3516 = vpack.c.bf16 %v3498, %v3497
      %s3517 = scalar_lea.vmem %s1, 32
      %v3518 = vld [vmem:[%s3517] sm:$0xf]
      %v3520 = vsel %vm1661, %v3499, 0
      %v3523 = vsel %vm1661, %v3500, 0
      %v3526 = vsel %vm1661, %v3501, 0
      %v3529 = vsel %vm1661, %v3502, 0
      %v3532 = vsel %vm1661, %v3503, 0
      %v3535 = vsel %vm1661, %v3504, 0
      %v3538 = vsel %vm1661, %v3505, 0
      %v3541 = vsel %vm1661, %v3506, 0
      %v3544 = vsel %vm1661, %v3507, 0
      %v3547 = vsel %vm1661, %v3508, 0
      %v3550 = vsel %vm1661, %v3509, 0
      %v3553 = vsel %vm1661, %v3510, 0
      %v3556 = vsel %vm1661, %v3511, 0
      %v3559 = vsel %vm1661, %v3512, 0
      %v3562 = vsel %vm1661, %v3513, 0
      %v3565 = vsel %vm1661, %v3514, 0
      %v3568 = vsel %vm1661, %v3515, 0
      %v3571 = vsel %vm1661, %v3516, 0
      %v3574 = vsel %vm1716, %v3518, 0
      %3576 = vmatpush.bf16.msra.mxu0 0
      %3577 = vmatpush.bf16.msra.mxu0 0
      %3578 = vmatpush.bf16.msra.mxu0 0
      %3579 = vmatpush.bf16.msra.mxu0 0
      %3580 = vmatpush.bf16.msra.mxu0 0
      %3581 = vmatpush.bf16.msra.mxu0 0
      %3582 = vmatpush.bf16.msra.mxu0 0
      %3583 = vmatpush.bf16.msra.mxu0 %v3574
      %3584 = vmatmul.bf16.gmra.mxu0 %v3520
      %v3585 = vpop.f32.mrf.mxu0
      %v3586 = vadd.f32 0.0, %v3585
      %v3587 = vpop.f32.mrf.mxu0
      %v3588 = vadd.f32 0.0, %v3587
      %3589 = vmatmul.bf16.gmra.mxu0 %v3523
      %v3590 = vpop.f32.mrf.mxu0
      %v3591 = vadd.f32 0.0, %v3590
      %v3592 = vpop.f32.mrf.mxu0
      %v3593 = vadd.f32 0.0, %v3592
      %3594 = vmatmul.bf16.gmra.mxu0 %v3526
      %v3595 = vpop.f32.mrf.mxu0
      %v3596 = vadd.f32 0.0, %v3595
      %v3597 = vpop.f32.mrf.mxu0
      %v3598 = vadd.f32 0.0, %v3597
      %3599 = vmatmul.bf16.gmra.mxu0 %v3529
      %v3600 = vpop.f32.mrf.mxu0
      %v3601 = vadd.f32 0.0, %v3600
      %v3602 = vpop.f32.mrf.mxu0
      %v3603 = vadd.f32 0.0, %v3602
      %3604 = vmatmul.bf16.gmra.mxu0 %v3532
      %v3605 = vpop.f32.mrf.mxu0
      %v3606 = vadd.f32 0.0, %v3605
      %v3607 = vpop.f32.mrf.mxu0
      %v3608 = vadd.f32 0.0, %v3607
      %3609 = vmatmul.bf16.gmra.mxu0 %v3535
      %v3610 = vpop.f32.mrf.mxu0
      %v3611 = vadd.f32 0.0, %v3610
      %v3612 = vpop.f32.mrf.mxu0
      %v3613 = vadd.f32 0.0, %v3612
      %3614 = vmatmul.bf16.gmra.mxu0 %v3538
      %v3615 = vpop.f32.mrf.mxu0
      %v3616 = vadd.f32 0.0, %v3615
      %v3617 = vpop.f32.mrf.mxu0
      %v3618 = vadd.f32 0.0, %v3617
      %3619 = vmatmul.bf16.gmra.mxu0 %v3541
      %v3620 = vpop.f32.mrf.mxu0
      %v3621 = vadd.f32 0.0, %v3620
      %v3622 = vpop.f32.mrf.mxu0
      %v3623 = vadd.f32 0.0, %v3622
      %3624 = vmatmul.bf16.gmra.mxu0 %v3544
      %v3625 = vpop.f32.mrf.mxu0
      %v3626 = vadd.f32 0.0, %v3625
      %v3627 = vpop.f32.mrf.mxu0
      %v3628 = vadd.f32 0.0, %v3627
      %3629 = vmatmul.bf16.gmra.mxu0 %v3547
      %v3630 = vpop.f32.mrf.mxu0
      %v3631 = vadd.f32 0.0, %v3630
      %v3632 = vpop.f32.mrf.mxu0
      %v3633 = vadd.f32 0.0, %v3632
      %3634 = vmatmul.bf16.gmra.mxu0 %v3550
      %v3635 = vpop.f32.mrf.mxu0
      %v3636 = vadd.f32 0.0, %v3635
      %v3637 = vpop.f32.mrf.mxu0
      %v3638 = vadd.f32 0.0, %v3637
      %3639 = vmatmul.bf16.gmra.mxu0 %v3553
      %v3640 = vpop.f32.mrf.mxu0
      %v3641 = vadd.f32 0.0, %v3640
      %v3642 = vpop.f32.mrf.mxu0
      %v3643 = vadd.f32 0.0, %v3642
      %3644 = vmatmul.bf16.gmra.mxu0 %v3556
      %v3645 = vpop.f32.mrf.mxu0
      %v3646 = vadd.f32 0.0, %v3645
      %v3647 = vpop.f32.mrf.mxu0
      %v3648 = vadd.f32 0.0, %v3647
      %3649 = vmatmul.bf16.gmra.mxu0 %v3559
      %v3650 = vpop.f32.mrf.mxu0
      %v3651 = vadd.f32 0.0, %v3650
      %v3652 = vpop.f32.mrf.mxu0
      %v3653 = vadd.f32 0.0, %v3652
      %3654 = vmatmul.bf16.gmra.mxu0 %v3562
      %v3655 = vpop.f32.mrf.mxu0
      %v3656 = vadd.f32 0.0, %v3655
      %v3657 = vpop.f32.mrf.mxu0
      %v3658 = vadd.f32 0.0, %v3657
      %3659 = vmatmul.bf16.gmra.mxu0 %v3565
      %v3660 = vpop.f32.mrf.mxu0
      %v3661 = vadd.f32 0.0, %v3660
      %v3662 = vpop.f32.mrf.mxu0
      %v3663 = vadd.f32 0.0, %v3662
      %3664 = vmatmul.bf16.gmra.mxu0 %v3568
      %v3665 = vpop.f32.mrf.mxu0
      %v3666 = vadd.f32 0.0, %v3665
      %v3667 = vpop.f32.mrf.mxu0
      %v3668 = vadd.f32 0.0, %v3667
      %3669 = vmatmul.bf16.gmra.mxu0 %v3571
      %v3670 = vpop.f32.mrf.mxu0
      %v3671 = vadd.f32 0.0, %v3670
      %v3672 = vpop.f32.mrf.mxu0
      %v3673 = vadd.f32 0.0, %v3672
      %3674 = vdwg.mxu0
      %v3675 = vadd.f32 %v3427, %v3586
      %v3676 = vadd.f32 %v3428, %v3588
      %v3677 = vadd.f32 %v3429, %v3591
      %v3678 = vadd.f32 %v3430, %v3593
      %v3679 = vadd.f32 %v3431, %v3596
      %v3680 = vadd.f32 %v3432, %v3598
      %v3681 = vadd.f32 %v3433, %v3601
      %v3682 = vadd.f32 %v3434, %v3603
      %v3683 = vadd.f32 %v3435, %v3606
      %v3684 = vadd.f32 %v3436, %v3608
      %v3685 = vadd.f32 %v3437, %v3611
      %v3686 = vadd.f32 %v3438, %v3613
      %v3687 = vadd.f32 %v3439, %v3616
      %v3688 = vadd.f32 %v3440, %v3618
      %v3689 = vadd.f32 %v3441, %v3621
      %v3690 = vadd.f32 %v3442, %v3623
      %v3691 = vadd.f32 %v3443, %v3626
      %v3692 = vadd.f32 %v3444, %v3628
      %v3693 = vadd.f32 %v3445, %v3631
      %v3694 = vadd.f32 %v3446, %v3633
      %v3695 = vadd.f32 %v3447, %v3636
      %v3696 = vadd.f32 %v3448, %v3638
      %v3697 = vadd.f32 %v3449, %v3641
      %v3698 = vadd.f32 %v3450, %v3643
      %v3699 = vadd.f32 %v3451, %v3646
      %v3700 = vadd.f32 %v3452, %v3648
      %v3701 = vadd.f32 %v3453, %v3651
      %v3702 = vadd.f32 %v3454, %v3653
      %v3703 = vadd.f32 %v3455, %v3656
      %v3704 = vadd.f32 %v3456, %v3658
      %v3705 = vadd.f32 %v3457, %v3661
      %v3706 = vadd.f32 %v3458, %v3663
      %v3707 = vadd.f32 %v3459, %v3666
      %v3708 = vadd.f32 %v3460, %v3668
      %v3709 = vadd.f32 %v3461, %v3671
      %v3710 = vadd.f32 %v3462, %v3673
      %v3711 = vmul.f32 %v3675, %v1514
      %v3712 = vmul.f32 %v3676, %v1515
      %v3713 = vmul.f32 %v3677, %v1516
      %v3714 = vmul.f32 %v3678, %v1517
      %v3715 = vmul.f32 %v3679, %v1518
      %v3716 = vmul.f32 %v3680, %v1519
      %v3717 = vmul.f32 %v3681, %v1520
      %v3718 = vmul.f32 %v3682, %v1521
      %v3719 = vmul.f32 %v3683, %v1522
      %v3720 = vmul.f32 %v3684, %v1523
      %v3721 = vmul.f32 %v3685, %v1524
      %v3722 = vmul.f32 %v3686, %v1525
      %v3723 = vmul.f32 %v3687, %v1526
      %v3724 = vmul.f32 %v3688, %v1527
      %v3725 = vmul.f32 %v3689, %v1528
      %v3726 = vmul.f32 %v3690, %v1529
      %v3727 = vmul.f32 %v3691, %v1530
      %v3728 = vmul.f32 %v3692, %v1531
      %v3729 = vmul.f32 %v3693, %v1532
      %v3730 = vmul.f32 %v3694, %v1533
      %v3731 = vmul.f32 %v3695, %v1534
      %v3732 = vmul.f32 %v3696, %v1535
      %v3733 = vmul.f32 %v3697, %v1536
      %v3734 = vmul.f32 %v3698, %v1537
      %v3735 = vmul.f32 %v3699, %v1538
      %v3736 = vmul.f32 %v3700, %v1539
      %v3737 = vmul.f32 %v3701, %v1540
      %v3738 = vmul.f32 %v3702, %v1541
      %v3739 = vmul.f32 %v3703, %v1542
      %v3740 = vmul.f32 %v3704, %v1543
      %v3741 = vmul.f32 %v3705, %v1544
      %v3742 = vmul.f32 %v3706, %v1545
      %v3743 = vmul.f32 %v3707, %v1546
      %v3744 = vmul.f32 %v3708, %v1547
      %v3745 = vmul.f32 %v3709, %v1548
      %v3746 = vmul.f32 %v3710, %v1549
      %v3747 = vadd.f32 %v3711, %v3712
      %v3748 = vadd.f32 %v3747, %v3713
      %v3749 = vadd.f32 %v3748, %v3714
      %v3750 = vadd.f32 %v3749, %v3715
      %v3751 = vadd.f32 %v3750, %v3716
      %v3752 = vadd.f32 %v3751, %v3717
      %v3753 = vadd.f32 %v3752, %v3718
      %v3754 = vadd.f32 %v3753, %v3719
      %v3755 = vadd.f32 %v3754, %v3720
      %v3756 = vadd.f32 %v3755, %v3721
      %v3757 = vadd.f32 %v3756, %v3722
      %v3758 = vadd.f32 %v3757, %v3723
      %v3759 = vadd.f32 %v3758, %v3724
      %v3760 = vadd.f32 %v3759, %v3725
      %v3761 = vadd.f32 %v3760, %v3726
      %v3762 = vadd.f32 %v3761, %v3727
      %v3763 = vadd.f32 %v3762, %v3728
      %v3764 = vadd.f32 %v3763, %v3729
      %v3765 = vadd.f32 %v3764, %v3730
      %v3766 = vadd.f32 %v3765, %v3731
      %v3767 = vadd.f32 %v3766, %v3732
      %v3768 = vadd.f32 %v3767, %v3733
      %v3769 = vadd.f32 %v3768, %v3734
      %v3770 = vadd.f32 %v3769, %v3735
      %v3771 = vadd.f32 %v3770, %v3736
      %v3772 = vadd.f32 %v3771, %v3737
      %v3773 = vadd.f32 %v3772, %v3738
      %v3774 = vadd.f32 %v3773, %v3739
      %v3775 = vadd.f32 %v3774, %v3740
      %v3776 = vadd.f32 %v3775, %v3741
      %v3777 = vadd.f32 %v3776, %v3742
      %v3778 = vadd.f32 %v3777, %v3743
      %v3779 = vadd.f32 %v3778, %v3744
      %v3780 = vadd.f32 %v3779, %v3745
      %v3781 = vadd.f32 %v3780, %v3746
      %v3782 = vrot.slane %v3781, 4
      %v3783 = vadd.f32 %v3781, %v3782
      %v3784 = vrot.slane %v3783, 2
      %v3785 = vadd.f32 %v3783, %v3784
      %v3786 = vrot.slane %v3785, 1
      %v3787 = vadd.f32 %v3785, %v3786
      %3788 = vst [vmem:[%s175] sm:$0xff] %v3787
      %v3789 = vmul.f32 %v3711, %v3711
      %v3790 = vmul.f32 %v3712, %v3712
      %v3791 = vmul.f32 %v3713, %v3713
      %v3792 = vmul.f32 %v3714, %v3714
      %v3793 = vmul.f32 %v3715, %v3715
      %v3794 = vmul.f32 %v3716, %v3716
      %v3795 = vmul.f32 %v3717, %v3717
      %v3796 = vmul.f32 %v3718, %v3718
      %v3797 = vmul.f32 %v3719, %v3719
      %v3798 = vmul.f32 %v3720, %v3720
      %v3799 = vmul.f32 %v3721, %v3721
      %v3800 = vmul.f32 %v3722, %v3722
      %v3801 = vmul.f32 %v3723, %v3723
      %v3802 = vmul.f32 %v3724, %v3724
      %v3803 = vmul.f32 %v3725, %v3725
      %v3804 = vmul.f32 %v3726, %v3726
      %v3805 = vmul.f32 %v3727, %v3727
      %v3806 = vmul.f32 %v3728, %v3728
      %v3807 = vmul.f32 %v3729, %v3729
      %v3808 = vmul.f32 %v3730, %v3730
      %v3809 = vmul.f32 %v3731, %v3731
      %v3810 = vmul.f32 %v3732, %v3732
      %v3811 = vmul.f32 %v3733, %v3733
      %v3812 = vmul.f32 %v3734, %v3734
      %v3813 = vmul.f32 %v3735, %v3735
      %v3814 = vmul.f32 %v3736, %v3736
      %v3815 = vmul.f32 %v3737, %v3737
      %v3816 = vmul.f32 %v3738, %v3738
      %v3817 = vmul.f32 %v3739, %v3739
      %v3818 = vmul.f32 %v3740, %v3740
      %v3819 = vmul.f32 %v3741, %v3741
      %v3820 = vmul.f32 %v3742, %v3742
      %v3821 = vmul.f32 %v3743, %v3743
      %v3822 = vmul.f32 %v3744, %v3744
      %v3823 = vmul.f32 %v3745, %v3745
      %v3824 = vmul.f32 %v3746, %v3746
      %v3825 = vadd.f32 %v3789, %v3790
      %v3826 = vadd.f32 %v3825, %v3791
      %v3827 = vadd.f32 %v3826, %v3792
      %v3828 = vadd.f32 %v3827, %v3793
      %v3829 = vadd.f32 %v3828, %v3794
      %v3830 = vadd.f32 %v3829, %v3795
      %v3831 = vadd.f32 %v3830, %v3796
      %v3832 = vadd.f32 %v3831, %v3797
      %v3833 = vadd.f32 %v3832, %v3798
      %v3834 = vadd.f32 %v3833, %v3799
      %v3835 = vadd.f32 %v3834, %v3800
      %v3836 = vadd.f32 %v3835, %v3801
      %v3837 = vadd.f32 %v3836, %v3802
      %v3838 = vadd.f32 %v3837, %v3803
      %v3839 = vadd.f32 %v3838, %v3804
      %v3840 = vadd.f32 %v3839, %v3805
      %v3841 = vadd.f32 %v3840, %v3806
      %v3842 = vadd.f32 %v3841, %v3807
      %v3843 = vadd.f32 %v3842, %v3808
      %v3844 = vadd.f32 %v3843, %v3809
      %v3845 = vadd.f32 %v3844, %v3810
      %v3846 = vadd.f32 %v3845, %v3811
      %v3847 = vadd.f32 %v3846, %v3812
      %v3848 = vadd.f32 %v3847, %v3813
      %v3849 = vadd.f32 %v3848, %v3814
      %v3850 = vadd.f32 %v3849, %v3815
      %v3851 = vadd.f32 %v3850, %v3816
      %v3852 = vadd.f32 %v3851, %v3817
      %v3853 = vadd.f32 %v3852, %v3818
      %v3854 = vadd.f32 %v3853, %v3819
      %v3855 = vadd.f32 %v3854, %v3820
      %v3856 = vadd.f32 %v3855, %v3821
      %v3857 = vadd.f32 %v3856, %v3822
      %v3858 = vadd.f32 %v3857, %v3823
      %v3859 = vadd.f32 %v3858, %v3824
      %v3860 = vrot.slane %v3859, 4
      %v3861 = vadd.f32 %v3859, %v3860
      %v3862 = vrot.slane %v3861, 2
      %v3863 = vadd.f32 %v3861, %v3862
      %v3864 = vrot.slane %v3863, 1
      %v3865 = vadd.f32 %v3863, %v3864
      %3866 = vst [vmem:[%s179] sm:$0xff] %v3865
      %p3867 = scmp.lt.s32.totalorder %s15, 1
      %s3868 = scalar_select %p3867, %s15, 1
      %s3869 = smul.addr %s3868, 8
      %s3870 = scalar_lea.vmem %s2, %s3869
      %p3871 = scmp.lt.s32.totalorder %s15, 1
      %s3872 = scalar_select %p3871, %s15, 1
      %s3873 = smul.addr %s3872, 8
      %s3874 = scalar_lea.vmem %s3, %s3873
      // Predicated region
      $region29: #{basic_block_forward.3} parent=27 // pred_check
        %p3875 = pneg %p80
      $region30: #{basic_block_forward.3} parent=27 // pred_check_branch
        %3877 = sbr.rel (%p3875) target = $region32
      $region31: #{basic_block_forward.3} parent=27 // pred_region
        _
      $region32: #{basic_block_forward.3} parent=27 // pred_fallthru
        _
      // Predicated region
      $region33: #{basic_block_forward.3} parent=27 // pred_check
        %p3878 = pneg %p106
      $region34: #{basic_block_forward.3} parent=27 // pred_check_branch
        %3880 = sbr.rel (%p3878) target = $region36
      $region35: #{basic_block_forward.3} parent=27 // pred_region
        _
      $region36: #{basic_block_forward.3} parent=27 // pred_fallthru
        _
    $region28: #{basic_block_forward.3} parent=5 // pred_fallthru
      _
    %p3881 = scmp.le.s32.totalorder 2, %s10
    // Predicated region
    $region37: #{basic_block_forward.3} parent=5 // pred_check
      %p3882 = pneg %p3881
    $region38: #{basic_block_forward.3} parent=5 // pred_check_branch
      %3884 = sbr.rel (%p3882) target = $region40
    $region39: #{basic_block_forward.3} parent=5 // pred_region
      %s3885 = ssub.s32 %s10, 2
      // Predicated region
      $region41: #{basic_block_forward.3} parent=39 // pred_check
        %p3886 = pneg %p86
      $region42: #{basic_block_forward.3} parent=39 // pred_check_branch
        %3888 = sbr.rel (%p3886) target = $region44
      $region43: #{basic_block_forward.3} parent=39 // pred_region
        %p3889 = scmp.lt.s32.totalorder %s16, 1
        %s3890 = scalar_select %p3889, %s16, 1
        %s3891 = smul.addr %s3890, 8
        %s3892 = scalar_lea.vmem %s2, %s3891
      $region44: #{basic_block_forward.3} parent=39 // pred_fallthru
        _
      // Predicated region
      $region45: #{basic_block_forward.3} parent=39 // pred_check
        %p3893 = pneg %p112
      $region46: #{basic_block_forward.3} parent=39 // pred_check_branch
        %3895 = sbr.rel (%p3893) target = $region48
      $region47: #{basic_block_forward.3} parent=39 // pred_region
        %p3896 = scmp.lt.s32.totalorder %s16, 1
        %s3897 = scalar_select %p3896, %s16, 1
        %s3898 = smul.addr %s3897, 8
        %s3899 = scalar_lea.vmem %s3, %s3898
      $region48: #{basic_block_forward.3} parent=39 // pred_fallthru
        _
    $region40: #{basic_block_forward.3} parent=5 // pred_fallthru
      _
  $region6: #{basic_block_forward.3} parent=0 // loop_footer
    %s14 = sadd.s32 1, %s10
  $region7: #{basic_block_forward.3} parent=0 // loop_footer_branch
    %9 = sbr.rel target = $region3
  $region8: #{basic_block_forward.3} parent=0 // loop_exit
    _

// kernel: basic_block_forward.4
$region0: #{basic_block_forward.4}
  #allocation0 [shape = 'u32[]', space=smem, size = 0x4, offset = 0x4, fixed_abs, tag = 'smem constant byte address 0x4 - core index']
  #allocation1 [shape = 'u32[72,128]{1,0:T(1,128)}', space=vmem, size = 0x9000, scoped, tag = 'internal scratch']
  #allocation2 [shape = 'bf16[352,128]{1,0:T(8,128)(2,1)}', space=vmem, size = 0x16000, scoped, tag = 'scratch operand']
  %s0 = inlined_call_operand.vmem [shape: f32[2,342,8], index: 0, kind: input, shape index: {}]
  %s1 = inlined_call_operand.vmem [shape: f32[1,128], index: 1, kind: input, shape index: {}]
  %s2 = inlined_call_operand.vmem [shape: f32[1,128], index: 2, kind: input, shape index: {}]
  %s3 = inlined_call_operand.vmem [shape: bf16[9,8,128], index: 3, kind: input, shape index: {}]
  %s4 = inlined_call_operand.vmem [shape: bf16[9,128,128], index: 4, kind: input, shape index: {}]
  %s5 = inlined_call_operand.vmem [shape: f32[2,288,128], index: 5, kind: output, shape index: {0}]
  %s6 = inlined_call_operand.vmem [shape: f32[2,8,128], index: 6, kind: output, shape index: {1}]
  %s7 = inlined_call_operand.vmem [shape: f32[2,8,128], index: 7, kind: output, shape index: {2}]
  %8 = xla_tuple %s5, %s6, %s7
  %s9 = sld [smem:[#allocation0]]
  $region69: #{basic_block_forward.4} parent=0
    _
  %s11 = ssub.s32 1, %s9
  %s12 = scalar_select 0, %s11, %s9
  loop: start=0, step=1, limit=4
  $region2: #{basic_block_forward.4} parent=0 // loop_pre_header
    _
  $region3: #{basic_block_forward.4} parent=0 // loop_header
    %s14 = sphi 0, %s18
    %p15 = scmp.ge.s32.totalorder %s14, 4
    %s24 = sphi 0, %s26
    %s27 = sphi 0, %s24
    %s28 = sphi 0, %s27
    %s44 = sphi 0, %s28
    %s48 = sphi 0, %s48
    %s50 = sphi 0, %s48
    %s51 = sphi 0, %s50
    %s65 = sphi 0, %s51
    %s69 = sphi 0, %s69
    %s71 = sphi 0, %s69
    %s72 = sphi 0, %s71
    %s86 = sphi 0, %s72
    %s90 = sphi 0, %s90
    %s92 = sphi 0, %s90
    %s93 = sphi 0, %s92
    %s107 = sphi 0, %s93
    %s111 = sphi 0, %s111
    %s113 = sphi 0, %s111
    %s114 = sphi 0, %s113
    %s128 = sphi 0, %s114
    %s134 = sphi 0, %s136
    %s137 = sphi 0, %s134
    %s138 = sphi 0, %s137
    %s154 = sphi 0, %s138
    %s160 = sphi 0, %s162
    %s163 = sphi 0, %s160
    %s164 = sphi 0, %s163
    %s180 = sphi 0, %s164
    %s186 = sphi 0, %s188
    %s189 = sphi 0, %s186
    %s190 = sphi 0, %s189
    %s206 = sphi 0, %s190
  $region4: #{basic_block_forward.4} parent=0 // loop_header_branch
    %17 = sbr.rel (%p15) target = $region8
  $region5: #{basic_block_forward.4} parent=0 // loop_body
    %s19 = ssub.s32 %s14, 1
    %s20 = ssub.s32 %s14, 2
    %s21 = sadd.s32 %s14, 1
    %s22 = ssub.s32 %s14, %s21
    %p23 = scmp.eq.s32.totalorder %s22, 0
    %s25 = sadd.s32 %s24, 1
    %s26 = scalar_select %p23, %s24, %s25
    %p29 = pneg %p23
    %p30 = scmp.eq.s32.totalorder %s14, 1
    %p31 = por %p29, %p30
    %p32 = scmp.ne.s32.totalorder %s24, %s27
    %p33 = scmp.eq.s32.totalorder %s14, 0
    %p34 = por %p32, %p33
    %p35 = scmp.ne.s32.totalorder %s24, %s27
    %p36 = scmp.eq.s32.totalorder %s19, 1
    %p37 = por %p35, %p36
    %p38 = scmp.ne.s32.totalorder %s27, %s28
    %p39 = scmp.eq.s32.totalorder %s19, 0
    %p40 = por %p38, %p39
    %p41 = scmp.ne.s32.totalorder %s27, %s28
    %p42 = scmp.eq.s32.totalorder %s20, 1
    %p43 = por %p41, %p42
    %p45 = scmp.ne.s32.totalorder %s28, %s44
    %p46 = scmp.eq.s32.totalorder %s20, 0
    %p47 = por %p45, %p46
    %s49 = sadd.s32 %s48, 1
    %p52 = scmp.eq.s32.totalorder %s14, 1
    %p53 = scmp.ne.s32.totalorder %s48, %s50
    %p54 = scmp.eq.s32.totalorder %s14, 0
    %p55 = por %p53, %p54
    %p56 = scmp.ne.s32.totalorder %s48, %s50
    %p57 = scmp.eq.s32.totalorder %s19, 1
    %p58 = por %p56, %p57
    %p59 = scmp.ne.s32.totalorder %s50, %s51
    %p60 = scmp.eq.s32.totalorder %s19, 0
    %p61 = por %p59, %p60
    %p62 = scmp.ne.s32.totalorder %s50, %s51
    %p63 = scmp.eq.s32.totalorder %s20, 1
    %p64 = por %p62, %p63
    %p66 = scmp.ne.s32.totalorder %s51, %s65
    %p67 = scmp.eq.s32.totalorder %s20, 0
    %p68 = por %p66, %p67
    %s70 = sadd.s32 %s69, 1
    %p73 = scmp.eq.s32.totalorder %s14, 1
    %p74 = scmp.ne.s32.totalorder %s69, %s71
    %p75 = scmp.eq.s32.totalorder %s14, 0
    %p76 = por %p74, %p75
    %p77 = scmp.ne.s32.totalorder %s69, %s71
    %p78 = scmp.eq.s32.totalorder %s19, 1
    %p79 = por %p77, %p78
    %p80 = scmp.ne.s32.totalorder %s71, %s72
    %p81 = scmp.eq.s32.totalorder %s19, 0
    %p82 = por %p80, %p81
    %p83 = scmp.ne.s32.totalorder %s71, %s72
    %p84 = scmp.eq.s32.totalorder %s20, 1
    %p85 = por %p83, %p84
    %p87 = scmp.ne.s32.totalorder %s72, %s86
    %p88 = scmp.eq.s32.totalorder %s20, 0
    %p89 = por %p87, %p88
    %s91 = sadd.s32 %s90, 1
    %p94 = scmp.eq.s32.totalorder %s14, 1
    %p95 = scmp.ne.s32.totalorder %s90, %s92
    %p96 = scmp.eq.s32.totalorder %s14, 0
    %p97 = por %p95, %p96
    %p98 = scmp.ne.s32.totalorder %s90, %s92
    %p99 = scmp.eq.s32.totalorder %s19, 1
    %p100 = por %p98, %p99
    %p101 = scmp.ne.s32.totalorder %s92, %s93
    %p102 = scmp.eq.s32.totalorder %s19, 0
    %p103 = por %p101, %p102
    %p104 = scmp.ne.s32.totalorder %s92, %s93
    %p105 = scmp.eq.s32.totalorder %s20, 1
    %p106 = por %p104, %p105
    %p108 = scmp.ne.s32.totalorder %s93, %s107
    %p109 = scmp.eq.s32.totalorder %s20, 0
    %p110 = por %p108, %p109
    %s112 = sadd.s32 %s111, 1
    %p115 = scmp.eq.s32.totalorder %s14, 1
    %p116 = scmp.ne.s32.totalorder %s111, %s113
    %p117 = scmp.eq.s32.totalorder %s14, 0
    %p118 = por %p116, %p117
    %p119 = scmp.ne.s32.totalorder %s111, %s113
    %p120 = scmp.eq.s32.totalorder %s19, 1
    %p121 = por %p119, %p120
    %p122 = scmp.ne.s32.totalorder %s113, %s114
    %p123 = scmp.eq.s32.totalorder %s19, 0
    %p124 = por %p122, %p123
    %p125 = scmp.ne.s32.totalorder %s113, %s114
    %p126 = scmp.eq.s32.totalorder %s20, 1
    %p127 = por %p125, %p126
    %p129 = scmp.ne.s32.totalorder %s114, %s128
    %p130 = scmp.eq.s32.totalorder %s20, 0
    %p131 = por %p129, %p130
    %s132 = ssub.s32 %s14, %s21
    %p133 = scmp.eq.s32.totalorder %s132, 0
    %s135 = sadd.s32 %s134, 1
    %s136 = scalar_select %p133, %s134, %s135
    %p139 = pneg %p133
    %p140 = scmp.eq.s32.totalorder %s14, 1
    %p141 = por %p139, %p140
    %p142 = scmp.ne.s32.totalorder %s134, %s137
    %p143 = scmp.eq.s32.totalorder %s14, 0
    %p144 = por %p142, %p143
    %p145 = scmp.ne.s32.totalorder %s134, %s137
    %p146 = scmp.eq.s32.totalorder %s19, 1
    %p147 = por %p145, %p146
    %p148 = scmp.ne.s32.totalorder %s137, %s138
    %p149 = scmp.eq.s32.totalorder %s19, 0
    %p150 = por %p148, %p149
    %p151 = scmp.ne.s32.totalorder %s137, %s138
    %p152 = scmp.eq.s32.totalorder %s20, 1
    %p153 = por %p151, %p152
    %p155 = scmp.ne.s32.totalorder %s138, %s154
    %p156 = scmp.eq.s32.totalorder %s20, 0
    %p157 = por %p155, %p156
    %s158 = ssub.s32 %s14, %s21
    %p159 = scmp.eq.s32.totalorder %s158, 0
    %s161 = sadd.s32 %s160, 1
    %s162 = scalar_select %p159, %s160, %s161
    %p165 = pneg %p159
    %p166 = scmp.eq.s32.totalorder %s14, 1
    %p167 = por %p165, %p166
    %p168 = scmp.ne.s32.totalorder %s160, %s163
    %p169 = scmp.eq.s32.totalorder %s14, 0
    %p170 = por %p168, %p169
    %p171 = scmp.ne.s32.totalorder %s160, %s163
    %p172 = scmp.eq.s32.totalorder %s19, 1
    %p173 = por %p171, %p172
    %p174 = scmp.ne.s32.totalorder %s163, %s164
    %p175 = scmp.eq.s32.totalorder %s19, 0
    %p176 = por %p174, %p175
    %p177 = scmp.ne.s32.totalorder %s163, %s164
    %p178 = scmp.eq.s32.totalorder %s20, 1
    %p179 = por %p177, %p178
    %p181 = scmp.ne.s32.totalorder %s164, %s180
    %p182 = scmp.eq.s32.totalorder %s20, 0
    %p183 = por %p181, %p182
    %s184 = ssub.s32 %s14, %s21
    %p185 = scmp.eq.s32.totalorder %s184, 0
    %s187 = sadd.s32 %s186, 1
    %s188 = scalar_select %p185, %s186, %s187
    %p191 = pneg %p185
    %p192 = scmp.eq.s32.totalorder %s14, 1
    %p193 = por %p191, %p192
    %p194 = scmp.ne.s32.totalorder %s186, %s189
    %p195 = scmp.eq.s32.totalorder %s14, 0
    %p196 = por %p194, %p195
    %p197 = scmp.ne.s32.totalorder %s186, %s189
    %p198 = scmp.eq.s32.totalorder %s19, 1
    %p199 = por %p197, %p198
    %p200 = scmp.ne.s32.totalorder %s189, %s190
    %p201 = scmp.eq.s32.totalorder %s19, 0
    %p202 = por %p200, %p201
    %p203 = scmp.ne.s32.totalorder %s189, %s190
    %p204 = scmp.eq.s32.totalorder %s20, 1
    %p205 = por %p203, %p204
    %p207 = scmp.ne.s32.totalorder %s190, %s206
    %p208 = scmp.eq.s32.totalorder %s20, 0
    %p209 = por %p207, %p208
    %p210 = scmp.le.s32.totalorder 1, %s14
    %p211 = scmp.lt.s32.totalorder %s14, 3
    %p212 = pnand %p210, %p211
    %p213 = pneg %p212
    // Predicated region
    $region9: #{basic_block_forward.4} parent=5 // pred_check
      _
    $region10: #{basic_block_forward.4} parent=5 // pred_check_branch
      %215 = sbr.rel (%p212) target = $region12
    $region11: #{basic_block_forward.4} parent=5 // pred_region
      %s216 = ssub.s32 %s14, 1
      // Predicated region
      $region13: #{basic_block_forward.4} parent=11 // pred_check
        %p217 = pneg %p61
      $region14: #{basic_block_forward.4} parent=11 // pred_check_branch
        %219 = sbr.rel (%p217) target = $region16
      $region15: #{basic_block_forward.4} parent=11 // pred_region
        _
      $region16: #{basic_block_forward.4} parent=11 // pred_fallthru
        _
      // Predicated region
      $region17: #{basic_block_forward.4} parent=11 // pred_check
        %p220 = pneg %p82
      $region18: #{basic_block_forward.4} parent=11 // pred_check_branch
        %222 = sbr.rel (%p220) target = $region20
      $region19: #{basic_block_forward.4} parent=11 // pred_region
        _
      $region20: #{basic_block_forward.4} parent=11 // pred_fallthru
        _
      // Predicated region
      $region21: #{basic_block_forward.4} parent=11 // pred_check
        %p223 = pneg %p103
      $region22: #{basic_block_forward.4} parent=11 // pred_check_branch
        %225 = sbr.rel (%p223) target = $region24
      $region23: #{basic_block_forward.4} parent=11 // pred_region
        _
      $region24: #{basic_block_forward.4} parent=11 // pred_fallthru
        _
      // Predicated region
      $region25: #{basic_block_forward.4} parent=11 // pred_check
        %p226 = pneg %p124
      $region26: #{basic_block_forward.4} parent=11 // pred_check_branch
        %228 = sbr.rel (%p226) target = $region28
      $region27: #{basic_block_forward.4} parent=11 // pred_region
        _
      $region28: #{basic_block_forward.4} parent=11 // pred_fallthru
        _
    $region12: #{basic_block_forward.4} parent=5 // pred_fallthru
      _
    %p229 = scmp.lt.s32.totalorder %s14, 2
    // Predicated region
    $region29: #{basic_block_forward.4} parent=5 // pred_check
      %p230 = pneg %p229
    $region30: #{basic_block_forward.4} parent=5 // pred_check_branch
      %232 = sbr.rel (%p230) target = $region32
    $region31: #{basic_block_forward.4} parent=5 // pred_region
      // Predicated region
      $region33: #{basic_block_forward.4} parent=31 // pred_check
        %p233 = pneg %p34
      $region34: #{basic_block_forward.4} parent=31 // pred_check_branch
        %235 = sbr.rel (%p233) target = $region36
      $region35: #{basic_block_forward.4} parent=31 // pred_region
        %p236 = scmp.lt.s32.totalorder %s14, 1
        %s237 = scalar_select %p236, %s14, 1
        %s238 = smul.addr %s237, 43
        %s239 = smul.addr %s238, 8
        %s240 = scalar_lea.vmem %s0, %s239
      $region36: #{basic_block_forward.4} parent=31 // pred_fallthru
        _
    $region32: #{basic_block_forward.4} parent=5 // pred_fallthru
      _
    %p241 = scmp.le.s32.totalorder 1, %s14
    %p242 = scmp.lt.s32.totalorder %s14, 3
    %p243 = pnand %p241, %p242
    %p244 = pneg %p243
    // Predicated region
    $region37: #{basic_block_forward.4} parent=5 // pred_check
      _
    $region38: #{basic_block_forward.4} parent=5 // pred_check_branch
      %246 = sbr.rel (%p243) target = $region40
    $region39: #{basic_block_forward.4} parent=5 // pred_region
      %s247 = ssub.s32 %s14, 1
      %p248 = scmp.lt.s32.totalorder %s19, 1
      %s249 = scalar_select %p248, %s19, 1
      %s250 = smul.addr %s249, 43
      %s251 = smul.addr %s250, 8
      %s252 = scalar_lea.vmem %s0, %s251
      %p253 = pneg %p40
      %p254 = pneg %p37
      %p255 = pneg %p61
      %p256 = pneg %p58
      %p257 = pneg %p82
      %p258 = pneg %p79
      %p259 = pneg %p103
      %p260 = pneg %p100
      %p261 = pneg %p124
      %p262 = pneg %p121
      %p263 = pneg %p150
      %p264 = pneg %p147
      %p265 = scmp.lt.s32.totalorder %s19, 1
      %s266 = scalar_select %p265, %s19, 1
      %s267 = smul.addr %s266, 36
      %s268 = smul.addr %s267, 8
      %s269 = scalar_lea.vmem %s5, %s268
      %p270 = pneg %p176
      %p271 = pneg %p173
      %p272 = scmp.lt.s32.totalorder %s19, 1
      %s273 = scalar_select %p272, %s19, 1
      %s274 = smul.addr %s273, 8
      %s275 = scalar_lea.vmem %s6, %s274
      %p276 = pneg %p202
      %p277 = pneg %p199
      %p278 = scmp.lt.s32.totalorder %s19, 1
      %s279 = scalar_select %p278, %s19, 1
      %s280 = smul.addr %s279, 8
      %s281 = scalar_lea.vmem %s7, %s280
      %p282 = scmp.lt.s32.totalorder %s19, 1
      %s283 = scalar_select %p282, %s19, 1
      %s284 = smul.addr %s283, 43
      %s285 = smul.addr %s284, 8
      %s286 = scalar_lea.vmem %s0, %s285
      %p287 = scmp.lt.s32.totalorder %s19, 1
      %s288 = scalar_select %p287, %s19, 1
      %s289 = smul.addr %s288, 36
      %s290 = smul.addr %s289, 8
      %s291 = scalar_lea.vmem %s5, %s290
      %p292 = scmp.lt.s32.totalorder %s19, 1
      %s293 = scalar_select %p292, %s19, 1
      %s294 = smul.addr %s293, 8
      %s295 = scalar_lea.vmem %s6, %s294
      %p296 = scmp.lt.s32.totalorder %s19, 1
      %s297 = scalar_select %p296, %s19, 1
      %s298 = smul.addr %s297, 8
      %s299 = scalar_lea.vmem %s7, %s298
      %v301 = vlaneseq
      %v302 = vshrl.u32 %v301, 7
      %v303 = vadd.s32 %v302, 8
      %v304 = vadd.s32 %v302, 16
      %v305 = vadd.s32 %v302, 24
      %v306 = vadd.s32 %v302, 32
      %v307 = vadd.s32 %v302, 40
      %v308 = vadd.s32 %v302, 48
      %v309 = vadd.s32 %v302, 56
      %v310 = vadd.s32 %v302, 64
      %v311 = vadd.s32 %v302, 72
      %v312 = vadd.s32 %v302, 80
      %v313 = vadd.s32 %v302, 88
      %v314 = vadd.s32 %v302, 96
      %v315 = vadd.s32 %v302, 104
      %v316 = vadd.s32 %v302, 112
      %v317 = vadd.s32 %v302, 120
      %v318 = vadd.s32 %v302, 128
      %v319 = vadd.s32 %v302, 136
      %v320 = vadd.s32 %v302, 144
      %v321 = vadd.s32 %v302, 152
      %v322 = vadd.s32 %v302, 160
      %v323 = vadd.s32 %v302, 168
      %v324 = vadd.s32 %v302, 176
      %v325 = vadd.s32 %v302, 184
      %v326 = vadd.s32 %v302, 192
      %v327 = vadd.s32 %v302, 200
      %v328 = vadd.s32 %v302, 208
      %v329 = vadd.s32 %v302, 216
      %v330 = vadd.s32 %v302, 224
      %v331 = vadd.s32 %v302, 232
      %v332 = vadd.s32 %v302, 240
      %v333 = vadd.s32 %v302, 248
      %v334 = vadd.s32 %v302, 256
      %v335 = vadd.s32 %v302, 264
      %v336 = vadd.s32 %v302, 272
      %v337 = vadd.s32 %v302, 280
      %vm338 = vcmp.lt.s32.totalorder %v302, 0
      %v339 = vsub.s32 0, %v302
      %v340 = vsel %vm338, %v339, %v302
      %v341 = vand.u32 %v340, 65535
      %v342 = vshrl.u32 %v340, 16
      %v344 = vmul.u32 %v341, 14564
      %v345 = vmul.u32 %v341, 58254
      %v346 = vmul.u32 %v342, 14564
      %v347 = vmul.u32 %v342, 58254
      %v348 = vshll.u32 %v345, 16
      %v349 = vshrl.u32 %v345, 16
      %v350 = vshll.u32 %v346, 16
      %v351 = vshrl.u32 %v346, 16
      %vm352 = vc.u32 %v344, %v348
      %v353 = vsel %vm352, 1, 0
      %v354 = vadd.s32 %v344, %v348
      %v355 = vadd.s32 %v347, %v353
      %vm356 = vc.u32 %v354, %v350
      %v357 = vsel %vm356, 1, 0
      %v358 = vadd.s32 %v354, %v350
      %v359 = vadd.s32 %v355, %v357
      %v360 = vadd.s32 %v359, %v349
      %v361 = vadd.s32 %v360, %v351
      %v362 = vshrl.u32 %v361, 4
      %v363 = vmul.u32 %v362, 18
      %v364 = vsub.s32 %v340, %v363
      %v365 = vsub.s32 0, %v364
      %v366 = vsel %vm338, %v365, %v364
      %vm367 = vcmp.lt.s32.totalorder %v303, 0
      %v368 = vsub.s32 0, %v303
      %v369 = vsel %vm367, %v368, %v303
      %v370 = vand.u32 %v369, 65535
      %v371 = vshrl.u32 %v369, 16
      %v373 = vmul.u32 %v370, 14564
      %v374 = vmul.u32 %v370, 58254
      %v375 = vmul.u32 %v371, 14564
      %v376 = vmul.u32 %v371, 58254
      %v377 = vshll.u32 %v374, 16
      %v378 = vshrl.u32 %v374, 16
      %v379 = vshll.u32 %v375, 16
      %v380 = vshrl.u32 %v375, 16
      %vm381 = vc.u32 %v373, %v377
      %v382 = vsel %vm381, 1, 0
      %v383 = vadd.s32 %v373, %v377
      %v384 = vadd.s32 %v376, %v382
      %vm385 = vc.u32 %v383, %v379
      %v386 = vsel %vm385, 1, 0
      %v387 = vadd.s32 %v383, %v379
      %v388 = vadd.s32 %v384, %v386
      %v389 = vadd.s32 %v388, %v378
      %v390 = vadd.s32 %v389, %v380
      %v391 = vshrl.u32 %v390, 4
      %v392 = vmul.u32 %v391, 18
      %v393 = vsub.s32 %v369, %v392
      %v394 = vsub.s32 0, %v393
      %v395 = vsel %vm367, %v394, %v393
      %vm396 = vcmp.lt.s32.totalorder %v304, 0
      %v397 = vsub.s32 0, %v304
      %v398 = vsel %vm396, %v397, %v304
      %v399 = vand.u32 %v398, 65535
      %v400 = vshrl.u32 %v398, 16
      %v402 = vmul.u32 %v399, 14564
      %v403 = vmul.u32 %v399, 58254
      %v404 = vmul.u32 %v400, 14564
      %v405 = vmul.u32 %v400, 58254
      %v406 = vshll.u32 %v403, 16
      %v407 = vshrl.u32 %v403, 16
      %v408 = vshll.u32 %v404, 16
      %v409 = vshrl.u32 %v404, 16
      %vm410 = vc.u32 %v402, %v406
      %v411 = vsel %vm410, 1, 0
      %v412 = vadd.s32 %v402, %v406
      %v413 = vadd.s32 %v405, %v411
      %vm414 = vc.u32 %v412, %v408
      %v415 = vsel %vm414, 1, 0
      %v416 = vadd.s32 %v412, %v408
      %v417 = vadd.s32 %v413, %v415
      %v418 = vadd.s32 %v417, %v407
      %v419 = vadd.s32 %v418, %v409
      %v420 = vshrl.u32 %v419, 4
      %v421 = vmul.u32 %v420, 18
      %v422 = vsub.s32 %v398, %v421
      %v423 = vsub.s32 0, %v422
      %v424 = vsel %vm396, %v423, %v422
      %vm425 = vcmp.lt.s32.totalorder %v305, 0
      %v426 = vsub.s32 0, %v305
      %v427 = vsel %vm425, %v426, %v305
      %v428 = vand.u32 %v427, 65535
      %v429 = vshrl.u32 %v427, 16
      %v431 = vmul.u32 %v428, 14564
      %v432 = vmul.u32 %v428, 58254
      %v433 = vmul.u32 %v429, 14564
      %v434 = vmul.u32 %v429, 58254
      %v435 = vshll.u32 %v432, 16
      %v436 = vshrl.u32 %v432, 16
      %v437 = vshll.u32 %v433, 16
      %v438 = vshrl.u32 %v433, 16
      %vm439 = vc.u32 %v431, %v435
      %v440 = vsel %vm439, 1, 0
      %v441 = vadd.s32 %v431, %v435
      %v442 = vadd.s32 %v434, %v440
      %vm443 = vc.u32 %v441, %v437
      %v444 = vsel %vm443, 1, 0
      %v445 = vadd.s32 %v441, %v437
      %v446 = vadd.s32 %v442, %v444
      %v447 = vadd.s32 %v446, %v436
      %v448 = vadd.s32 %v447, %v438
      %v449 = vshrl.u32 %v448, 4
      %v450 = vmul.u32 %v449, 18
      %v451 = vsub.s32 %v427, %v450
      %v452 = vsub.s32 0, %v451
      %v453 = vsel %vm425, %v452, %v451
      %vm454 = vcmp.lt.s32.totalorder %v306, 0
      %v455 = vsub.s32 0, %v306
      %v456 = vsel %vm454, %v455, %v306
      %v457 = vand.u32 %v456, 65535
      %v458 = vshrl.u32 %v456, 16
      %v460 = vmul.u32 %v457, 14564
      %v461 = vmul.u32 %v457, 58254
      %v462 = vmul.u32 %v458, 14564
      %v463 = vmul.u32 %v458, 58254
      %v464 = vshll.u32 %v461, 16
      %v465 = vshrl.u32 %v461, 16
      %v466 = vshll.u32 %v462, 16
      %v467 = vshrl.u32 %v462, 16
      %vm468 = vc.u32 %v460, %v464
      %v469 = vsel %vm468, 1, 0
      %v470 = vadd.s32 %v460, %v464
      %v471 = vadd.s32 %v463, %v469
      %vm472 = vc.u32 %v470, %v466
      %v473 = vsel %vm472, 1, 0
      %v474 = vadd.s32 %v470, %v466
      %v475 = vadd.s32 %v471, %v473
      %v476 = vadd.s32 %v475, %v465
      %v477 = vadd.s32 %v476, %v467
      %v478 = vshrl.u32 %v477, 4
      %v479 = vmul.u32 %v478, 18
      %v480 = vsub.s32 %v456, %v479
      %v481 = vsub.s32 0, %v480
      %v482 = vsel %vm454, %v481, %v480
      %vm483 = vcmp.lt.s32.totalorder %v307, 0
      %v484 = vsub.s32 0, %v307
      %v485 = vsel %vm483, %v484, %v307
      %v486 = vand.u32 %v485, 65535
      %v487 = vshrl.u32 %v485, 16
      %v489 = vmul.u32 %v486, 14564
      %v490 = vmul.u32 %v486, 58254
      %v491 = vmul.u32 %v487, 14564
      %v492 = vmul.u32 %v487, 58254
      %v493 = vshll.u32 %v490, 16
      %v494 = vshrl.u32 %v490, 16
      %v495 = vshll.u32 %v491, 16
      %v496 = vshrl.u32 %v491, 16
      %vm497 = vc.u32 %v489, %v493
      %v498 = vsel %vm497, 1, 0
      %v499 = vadd.s32 %v489, %v493
      %v500 = vadd.s32 %v492, %v498
      %vm501 = vc.u32 %v499, %v495
      %v502 = vsel %vm501, 1, 0
      %v503 = vadd.s32 %v499, %v495
      %v504 = vadd.s32 %v500, %v502
      %v505 = vadd.s32 %v504, %v494
      %v506 = vadd.s32 %v505, %v496
      %v507 = vshrl.u32 %v506, 4
      %v508 = vmul.u32 %v507, 18
      %v509 = vsub.s32 %v485, %v508
      %v510 = vsub.s32 0, %v509
      %v511 = vsel %vm483, %v510, %v509
      %vm512 = vcmp.lt.s32.totalorder %v308, 0
      %v513 = vsub.s32 0, %v308
      %v514 = vsel %vm512, %v513, %v308
      %v515 = vand.u32 %v514, 65535
      %v516 = vshrl.u32 %v514, 16
      %v518 = vmul.u32 %v515, 14564
      %v519 = vmul.u32 %v515, 58254
      %v520 = vmul.u32 %v516, 14564
      %v521 = vmul.u32 %v516, 58254
      %v522 = vshll.u32 %v519, 16
      %v523 = vshrl.u32 %v519, 16
      %v524 = vshll.u32 %v520, 16
      %v525 = vshrl.u32 %v520, 16
      %vm526 = vc.u32 %v518, %v522
      %v527 = vsel %vm526, 1, 0
      %v528 = vadd.s32 %v518, %v522
      %v529 = vadd.s32 %v521, %v527
      %vm530 = vc.u32 %v528, %v524
      %v531 = vsel %vm530, 1, 0
      %v532 = vadd.s32 %v528, %v524
      %v533 = vadd.s32 %v529, %v531
      %v534 = vadd.s32 %v533, %v523
      %v535 = vadd.s32 %v534, %v525
      %v536 = vshrl.u32 %v535, 4
      %v537 = vmul.u32 %v536, 18
      %v538 = vsub.s32 %v514, %v537
      %v539 = vsub.s32 0, %v538
      %v540 = vsel %vm512, %v539, %v538
      %vm541 = vcmp.lt.s32.totalorder %v309, 0
      %v542 = vsub.s32 0, %v309
      %v543 = vsel %vm541, %v542, %v309
      %v544 = vand.u32 %v543, 65535
      %v545 = vshrl.u32 %v543, 16
      %v547 = vmul.u32 %v544, 14564
      %v548 = vmul.u32 %v544, 58254
      %v549 = vmul.u32 %v545, 14564
      %v550 = vmul.u32 %v545, 58254
      %v551 = vshll.u32 %v548, 16
      %v552 = vshrl.u32 %v548, 16
      %v553 = vshll.u32 %v549, 16
      %v554 = vshrl.u32 %v549, 16
      %vm555 = vc.u32 %v547, %v551
      %v556 = vsel %vm555, 1, 0
      %v557 = vadd.s32 %v547, %v551
      %v558 = vadd.s32 %v550, %v556
      %vm559 = vc.u32 %v557, %v553
      %v560 = vsel %vm559, 1, 0
      %v561 = vadd.s32 %v557, %v553
      %v562 = vadd.s32 %v558, %v560
      %v563 = vadd.s32 %v562, %v552
      %v564 = vadd.s32 %v563, %v554
      %v565 = vshrl.u32 %v564, 4
      %v566 = vmul.u32 %v565, 18
      %v567 = vsub.s32 %v543, %v566
      %v568 = vsub.s32 0, %v567
      %v569 = vsel %vm541, %v568, %v567
      %vm570 = vcmp.lt.s32.totalorder %v310, 0
      %v571 = vsub.s32 0, %v310
      %v572 = vsel %vm570, %v571, %v310
      %v573 = vand.u32 %v572, 65535
      %v574 = vshrl.u32 %v572, 16
      %v576 = vmul.u32 %v573, 14564
      %v577 = vmul.u32 %v573, 58254
      %v578 = vmul.u32 %v574, 14564
      %v579 = vmul.u32 %v574, 58254
      %v580 = vshll.u32 %v577, 16
      %v581 = vshrl.u32 %v577, 16
      %v582 = vshll.u32 %v578, 16
      %v583 = vshrl.u32 %v578, 16
      %vm584 = vc.u32 %v576, %v580
      %v585 = vsel %vm584, 1, 0
      %v586 = vadd.s32 %v576, %v580
      %v587 = vadd.s32 %v579, %v585
      %vm588 = vc.u32 %v586, %v582
      %v589 = vsel %vm588, 1, 0
      %v590 = vadd.s32 %v586, %v582
      %v591 = vadd.s32 %v587, %v589
      %v592 = vadd.s32 %v591, %v581
      %v593 = vadd.s32 %v592, %v583
      %v594 = vshrl.u32 %v593, 4
      %v595 = vmul.u32 %v594, 18
      %v596 = vsub.s32 %v572, %v595
      %v597 = vsub.s32 0, %v596
      %v598 = vsel %vm570, %v597, %v596
      %vm599 = vcmp.lt.s32.totalorder %v311, 0
      %v600 = vsub.s32 0, %v311
      %v601 = vsel %vm599, %v600, %v311
      %v602 = vand.u32 %v601, 65535
      %v603 = vshrl.u32 %v601, 16
      %v605 = vmul.u32 %v602, 14564
      %v606 = vmul.u32 %v602, 58254
      %v607 = vmul.u32 %v603, 14564
      %v608 = vmul.u32 %v603, 58254
      %v609 = vshll.u32 %v606, 16
      %v610 = vshrl.u32 %v606, 16
      %v611 = vshll.u32 %v607, 16
      %v612 = vshrl.u32 %v607, 16
      %vm613 = vc.u32 %v605, %v609
      %v614 = vsel %vm613, 1, 0
      %v615 = vadd.s32 %v605, %v609
      %v616 = vadd.s32 %v608, %v614
      %vm617 = vc.u32 %v615, %v611
      %v618 = vsel %vm617, 1, 0
      %v619 = vadd.s32 %v615, %v611
      %v620 = vadd.s32 %v616, %v618
      %v621 = vadd.s32 %v620, %v610
      %v622 = vadd.s32 %v621, %v612
      %v623 = vshrl.u32 %v622, 4
      %v624 = vmul.u32 %v623, 18
      %v625 = vsub.s32 %v601, %v624
      %v626 = vsub.s32 0, %v625
      %v627 = vsel %vm599, %v626, %v625
      %vm628 = vcmp.lt.s32.totalorder %v312, 0
      %v629 = vsub.s32 0, %v312
      %v630 = vsel %vm628, %v629, %v312
      %v631 = vand.u32 %v630, 65535
      %v632 = vshrl.u32 %v630, 16
      %v634 = vmul.u32 %v631, 14564
      %v635 = vmul.u32 %v631, 58254
      %v636 = vmul.u32 %v632, 14564
      %v637 = vmul.u32 %v632, 58254
      %v638 = vshll.u32 %v635, 16
      %v639 = vshrl.u32 %v635, 16
      %v640 = vshll.u32 %v636, 16
      %v641 = vshrl.u32 %v636, 16
      %vm642 = vc.u32 %v634, %v638
      %v643 = vsel %vm642, 1, 0
      %v644 = vadd.s32 %v634, %v638
      %v645 = vadd.s32 %v637, %v643
      %vm646 = vc.u32 %v644, %v640
      %v647 = vsel %vm646, 1, 0
      %v648 = vadd.s32 %v644, %v640
      %v649 = vadd.s32 %v645, %v647
      %v650 = vadd.s32 %v649, %v639
      %v651 = vadd.s32 %v650, %v641
      %v652 = vshrl.u32 %v651, 4
      %v653 = vmul.u32 %v652, 18
      %v654 = vsub.s32 %v630, %v653
      %v655 = vsub.s32 0, %v654
      %v656 = vsel %vm628, %v655, %v654
      %vm657 = vcmp.lt.s32.totalorder %v313, 0
      %v658 = vsub.s32 0, %v313
      %v659 = vsel %vm657, %v658, %v313
      %v660 = vand.u32 %v659, 65535
      %v661 = vshrl.u32 %v659, 16
      %v663 = vmul.u32 %v660, 14564
      %v664 = vmul.u32 %v660, 58254
      %v665 = vmul.u32 %v661, 14564
      %v666 = vmul.u32 %v661, 58254
      %v667 = vshll.u32 %v664, 16
      %v668 = vshrl.u32 %v664, 16
      %v669 = vshll.u32 %v665, 16
      %v670 = vshrl.u32 %v665, 16
      %vm671 = vc.u32 %v663, %v667
      %v672 = vsel %vm671, 1, 0
      %v673 = vadd.s32 %v663, %v667
      %v674 = vadd.s32 %v666, %v672
      %vm675 = vc.u32 %v673, %v669
      %v676 = vsel %vm675, 1, 0
      %v677 = vadd.s32 %v673, %v669
      %v678 = vadd.s32 %v674, %v676
      %v679 = vadd.s32 %v678, %v668
      %v680 = vadd.s32 %v679, %v670
      %v681 = vshrl.u32 %v680, 4
      %v682 = vmul.u32 %v681, 18
      %v683 = vsub.s32 %v659, %v682
      %v684 = vsub.s32 0, %v683
      %v685 = vsel %vm657, %v684, %v683
      %vm686 = vcmp.lt.s32.totalorder %v314, 0
      %v687 = vsub.s32 0, %v314
      %v688 = vsel %vm686, %v687, %v314
      %v689 = vand.u32 %v688, 65535
      %v690 = vshrl.u32 %v688, 16
      %v692 = vmul.u32 %v689, 14564
      %v693 = vmul.u32 %v689, 58254
      %v694 = vmul.u32 %v690, 14564
      %v695 = vmul.u32 %v690, 58254
      %v696 = vshll.u32 %v693, 16
      %v697 = vshrl.u32 %v693, 16
      %v698 = vshll.u32 %v694, 16
      %v699 = vshrl.u32 %v694, 16
      %vm700 = vc.u32 %v692, %v696
      %v701 = vsel %vm700, 1, 0
      %v702 = vadd.s32 %v692, %v696
      %v703 = vadd.s32 %v695, %v701
      %vm704 = vc.u32 %v702, %v698
      %v705 = vsel %vm704, 1, 0
      %v706 = vadd.s32 %v702, %v698
      %v707 = vadd.s32 %v703, %v705
      %v708 = vadd.s32 %v707, %v697
      %v709 = vadd.s32 %v708, %v699
      %v710 = vshrl.u32 %v709, 4
      %v711 = vmul.u32 %v710, 18
      %v712 = vsub.s32 %v688, %v711
      %v713 = vsub.s32 0, %v712
      %v714 = vsel %vm686, %v713, %v712
      %vm715 = vcmp.lt.s32.totalorder %v315, 0
      %v716 = vsub.s32 0, %v315
      %v717 = vsel %vm715, %v716, %v315
      %v718 = vand.u32 %v717, 65535
      %v719 = vshrl.u32 %v717, 16
      %v721 = vmul.u32 %v718, 14564
      %v722 = vmul.u32 %v718, 58254
      %v723 = vmul.u32 %v719, 14564
      %v724 = vmul.u32 %v719, 58254
      %v725 = vshll.u32 %v722, 16
      %v726 = vshrl.u32 %v722, 16
      %v727 = vshll.u32 %v723, 16
      %v728 = vshrl.u32 %v723, 16
      %vm729 = vc.u32 %v721, %v725
      %v730 = vsel %vm729, 1, 0
      %v731 = vadd.s32 %v721, %v725
      %v732 = vadd.s32 %v724, %v730
      %vm733 = vc.u32 %v731, %v727
      %v734 = vsel %vm733, 1, 0
      %v735 = vadd.s32 %v731, %v727
      %v736 = vadd.s32 %v732, %v734
      %v737 = vadd.s32 %v736, %v726
      %v738 = vadd.s32 %v737, %v728
      %v739 = vshrl.u32 %v738, 4
      %v740 = vmul.u32 %v739, 18
      %v741 = vsub.s32 %v717, %v740
      %v742 = vsub.s32 0, %v741
      %v743 = vsel %vm715, %v742, %v741
      %vm744 = vcmp.lt.s32.totalorder %v316, 0
      %v745 = vsub.s32 0, %v316
      %v746 = vsel %vm744, %v745, %v316
      %v747 = vand.u32 %v746, 65535
      %v748 = vshrl.u32 %v746, 16
      %v750 = vmul.u32 %v747, 14564
      %v751 = vmul.u32 %v747, 58254
      %v752 = vmul.u32 %v748, 14564
      %v753 = vmul.u32 %v748, 58254
      %v754 = vshll.u32 %v751, 16
      %v755 = vshrl.u32 %v751, 16
      %v756 = vshll.u32 %v752, 16
      %v757 = vshrl.u32 %v752, 16
      %vm758 = vc.u32 %v750, %v754
      %v759 = vsel %vm758, 1, 0
      %v760 = vadd.s32 %v750, %v754
      %v761 = vadd.s32 %v753, %v759
      %vm762 = vc.u32 %v760, %v756
      %v763 = vsel %vm762, 1, 0
      %v764 = vadd.s32 %v760, %v756
      %v765 = vadd.s32 %v761, %v763
      %v766 = vadd.s32 %v765, %v755
      %v767 = vadd.s32 %v766, %v757
      %v768 = vshrl.u32 %v767, 4
      %v769 = vmul.u32 %v768, 18
      %v770 = vsub.s32 %v746, %v769
      %v771 = vsub.s32 0, %v770
      %v772 = vsel %vm744, %v771, %v770
      %vm773 = vcmp.lt.s32.totalorder %v317, 0
      %v774 = vsub.s32 0, %v317
      %v775 = vsel %vm773, %v774, %v317
      %v776 = vand.u32 %v775, 65535
      %v777 = vshrl.u32 %v775, 16
      %v779 = vmul.u32 %v776, 14564
      %v780 = vmul.u32 %v776, 58254
      %v781 = vmul.u32 %v777, 14564
      %v782 = vmul.u32 %v777, 58254
      %v783 = vshll.u32 %v780, 16
      %v784 = vshrl.u32 %v780, 16
      %v785 = vshll.u32 %v781, 16
      %v786 = vshrl.u32 %v781, 16
      %vm787 = vc.u32 %v779, %v783
      %v788 = vsel %vm787, 1, 0
      %v789 = vadd.s32 %v779, %v783
      %v790 = vadd.s32 %v782, %v788
      %vm791 = vc.u32 %v789, %v785
      %v792 = vsel %vm791, 1, 0
      %v793 = vadd.s32 %v789, %v785
      %v794 = vadd.s32 %v790, %v792
      %v795 = vadd.s32 %v794, %v784
      %v796 = vadd.s32 %v795, %v786
      %v797 = vshrl.u32 %v796, 4
      %v798 = vmul.u32 %v797, 18
      %v799 = vsub.s32 %v775, %v798
      %v800 = vsub.s32 0, %v799
      %v801 = vsel %vm773, %v800, %v799
      %vm802 = vcmp.lt.s32.totalorder %v318, 0
      %v803 = vsub.s32 0, %v318
      %v804 = vsel %vm802, %v803, %v318
      %v805 = vand.u32 %v804, 65535
      %v806 = vshrl.u32 %v804, 16
      %v808 = vmul.u32 %v805, 14564
      %v809 = vmul.u32 %v805, 58254
      %v810 = vmul.u32 %v806, 14564
      %v811 = vmul.u32 %v806, 58254
      %v812 = vshll.u32 %v809, 16
      %v813 = vshrl.u32 %v809, 16
      %v814 = vshll.u32 %v810, 16
      %v815 = vshrl.u32 %v810, 16
      %vm816 = vc.u32 %v808, %v812
      %v817 = vsel %vm816, 1, 0
      %v818 = vadd.s32 %v808, %v812
      %v819 = vadd.s32 %v811, %v817
      %vm820 = vc.u32 %v818, %v814
      %v821 = vsel %vm820, 1, 0
      %v822 = vadd.s32 %v818, %v814
      %v823 = vadd.s32 %v819, %v821
      %v824 = vadd.s32 %v823, %v813
      %v825 = vadd.s32 %v824, %v815
      %v826 = vshrl.u32 %v825, 4
      %v827 = vmul.u32 %v826, 18
      %v828 = vsub.s32 %v804, %v827
      %v829 = vsub.s32 0, %v828
      %v830 = vsel %vm802, %v829, %v828
      %vm831 = vcmp.lt.s32.totalorder %v319, 0
      %v832 = vsub.s32 0, %v319
      %v833 = vsel %vm831, %v832, %v319
      %v834 = vand.u32 %v833, 65535
      %v835 = vshrl.u32 %v833, 16
      %v837 = vmul.u32 %v834, 14564
      %v838 = vmul.u32 %v834, 58254
      %v839 = vmul.u32 %v835, 14564
      %v840 = vmul.u32 %v835, 58254
      %v841 = vshll.u32 %v838, 16
      %v842 = vshrl.u32 %v838, 16
      %v843 = vshll.u32 %v839, 16
      %v844 = vshrl.u32 %v839, 16
      %vm845 = vc.u32 %v837, %v841
      %v846 = vsel %vm845, 1, 0
      %v847 = vadd.s32 %v837, %v841
      %v848 = vadd.s32 %v840, %v846
      %vm849 = vc.u32 %v847, %v843
      %v850 = vsel %vm849, 1, 0
      %v851 = vadd.s32 %v847, %v843
      %v852 = vadd.s32 %v848, %v850
      %v853 = vadd.s32 %v852, %v842
      %v854 = vadd.s32 %v853, %v844
      %v855 = vshrl.u32 %v854, 4
      %v856 = vmul.u32 %v855, 18
      %v857 = vsub.s32 %v833, %v856
      %v858 = vsub.s32 0, %v857
      %v859 = vsel %vm831, %v858, %v857
      %vm860 = vcmp.lt.s32.totalorder %v320, 0
      %v861 = vsub.s32 0, %v320
      %v862 = vsel %vm860, %v861, %v320
      %v863 = vand.u32 %v862, 65535
      %v864 = vshrl.u32 %v862, 16
      %v866 = vmul.u32 %v863, 14564
      %v867 = vmul.u32 %v863, 58254
      %v868 = vmul.u32 %v864, 14564
      %v869 = vmul.u32 %v864, 58254
      %v870 = vshll.u32 %v867, 16
      %v871 = vshrl.u32 %v867, 16
      %v872 = vshll.u32 %v868, 16
      %v873 = vshrl.u32 %v868, 16
      %vm874 = vc.u32 %v866, %v870
      %v875 = vsel %vm874, 1, 0
      %v876 = vadd.s32 %v866, %v870
      %v877 = vadd.s32 %v869, %v875
      %vm878 = vc.u32 %v876, %v872
      %v879 = vsel %vm878, 1, 0
      %v880 = vadd.s32 %v876, %v872
      %v881 = vadd.s32 %v877, %v879
      %v882 = vadd.s32 %v881, %v871
      %v883 = vadd.s32 %v882, %v873
      %v884 = vshrl.u32 %v883, 4
      %v885 = vmul.u32 %v884, 18
      %v886 = vsub.s32 %v862, %v885
      %v887 = vsub.s32 0, %v886
      %v888 = vsel %vm860, %v887, %v886
      %vm889 = vcmp.lt.s32.totalorder %v321, 0
      %v890 = vsub.s32 0, %v321
      %v891 = vsel %vm889, %v890, %v321
      %v892 = vand.u32 %v891, 65535
      %v893 = vshrl.u32 %v891, 16
      %v895 = vmul.u32 %v892, 14564
      %v896 = vmul.u32 %v892, 58254
      %v897 = vmul.u32 %v893, 14564
      %v898 = vmul.u32 %v893, 58254
      %v899 = vshll.u32 %v896, 16
      %v900 = vshrl.u32 %v896, 16
      %v901 = vshll.u32 %v897, 16
      %v902 = vshrl.u32 %v897, 16
      %vm903 = vc.u32 %v895, %v899
      %v904 = vsel %vm903, 1, 0
      %v905 = vadd.s32 %v895, %v899
      %v906 = vadd.s32 %v898, %v904
      %vm907 = vc.u32 %v905, %v901
      %v908 = vsel %vm907, 1, 0
      %v909 = vadd.s32 %v905, %v901
      %v910 = vadd.s32 %v906, %v908
      %v911 = vadd.s32 %v910, %v900
      %v912 = vadd.s32 %v911, %v902
      %v913 = vshrl.u32 %v912, 4
      %v914 = vmul.u32 %v913, 18
      %v915 = vsub.s32 %v891, %v914
      %v916 = vsub.s32 0, %v915
      %v917 = vsel %vm889, %v916, %v915
      %vm918 = vcmp.lt.s32.totalorder %v322, 0
      %v919 = vsub.s32 0, %v322
      %v920 = vsel %vm918, %v919, %v322
      %v921 = vand.u32 %v920, 65535
      %v922 = vshrl.u32 %v920, 16
      %v924 = vmul.u32 %v921, 14564
      %v925 = vmul.u32 %v921, 58254
      %v926 = vmul.u32 %v922, 14564
      %v927 = vmul.u32 %v922, 58254
      %v928 = vshll.u32 %v925, 16
      %v929 = vshrl.u32 %v925, 16
      %v930 = vshll.u32 %v926, 16
      %v931 = vshrl.u32 %v926, 16
      %vm932 = vc.u32 %v924, %v928
      %v933 = vsel %vm932, 1, 0
      %v934 = vadd.s32 %v924, %v928
      %v935 = vadd.s32 %v927, %v933
      %vm936 = vc.u32 %v934, %v930
      %v937 = vsel %vm936, 1, 0
      %v938 = vadd.s32 %v934, %v930
      %v939 = vadd.s32 %v935, %v937
      %v940 = vadd.s32 %v939, %v929
      %v941 = vadd.s32 %v940, %v931
      %v942 = vshrl.u32 %v941, 4
      %v943 = vmul.u32 %v942, 18
      %v944 = vsub.s32 %v920, %v943
      %v945 = vsub.s32 0, %v944
      %v946 = vsel %vm918, %v945, %v944
      %vm947 = vcmp.lt.s32.totalorder %v323, 0
      %v948 = vsub.s32 0, %v323
      %v949 = vsel %vm947, %v948, %v323
      %v950 = vand.u32 %v949, 65535
      %v951 = vshrl.u32 %v949, 16
      %v953 = vmul.u32 %v950, 14564
      %v954 = vmul.u32 %v950, 58254
      %v955 = vmul.u32 %v951, 14564
      %v956 = vmul.u32 %v951, 58254
      %v957 = vshll.u32 %v954, 16
      %v958 = vshrl.u32 %v954, 16
      %v959 = vshll.u32 %v955, 16
      %v960 = vshrl.u32 %v955, 16
      %vm961 = vc.u32 %v953, %v957
      %v962 = vsel %vm961, 1, 0
      %v963 = vadd.s32 %v953, %v957
      %v964 = vadd.s32 %v956, %v962
      %vm965 = vc.u32 %v963, %v959
      %v966 = vsel %vm965, 1, 0
      %v967 = vadd.s32 %v963, %v959
      %v968 = vadd.s32 %v964, %v966
      %v969 = vadd.s32 %v968, %v958
      %v970 = vadd.s32 %v969, %v960
      %v971 = vshrl.u32 %v970, 4
      %v972 = vmul.u32 %v971, 18
      %v973 = vsub.s32 %v949, %v972
      %v974 = vsub.s32 0, %v973
      %v975 = vsel %vm947, %v974, %v973
      %vm976 = vcmp.lt.s32.totalorder %v324, 0
      %v977 = vsub.s32 0, %v324
      %v978 = vsel %vm976, %v977, %v324
      %v979 = vand.u32 %v978, 65535
      %v980 = vshrl.u32 %v978, 16
      %v982 = vmul.u32 %v979, 14564
      %v983 = vmul.u32 %v979, 58254
      %v984 = vmul.u32 %v980, 14564
      %v985 = vmul.u32 %v980, 58254
      %v986 = vshll.u32 %v983, 16
      %v987 = vshrl.u32 %v983, 16
      %v988 = vshll.u32 %v984, 16
      %v989 = vshrl.u32 %v984, 16
      %vm990 = vc.u32 %v982, %v986
      %v991 = vsel %vm990, 1, 0
      %v992 = vadd.s32 %v982, %v986
      %v993 = vadd.s32 %v985, %v991
      %vm994 = vc.u32 %v992, %v988
      %v995 = vsel %vm994, 1, 0
      %v996 = vadd.s32 %v992, %v988
      %v997 = vadd.s32 %v993, %v995
      %v998 = vadd.s32 %v997, %v987
      %v999 = vadd.s32 %v998, %v989
      %v1000 = vshrl.u32 %v999, 4
      %v1001 = vmul.u32 %v1000, 18
      %v1002 = vsub.s32 %v978, %v1001
      %v1003 = vsub.s32 0, %v1002
      %v1004 = vsel %vm976, %v1003, %v1002
      %vm1005 = vcmp.lt.s32.totalorder %v325, 0
      %v1006 = vsub.s32 0, %v325
      %v1007 = vsel %vm1005, %v1006, %v325
      %v1008 = vand.u32 %v1007, 65535
      %v1009 = vshrl.u32 %v1007, 16
      %v1011 = vmul.u32 %v1008, 14564
      %v1012 = vmul.u32 %v1008, 58254
      %v1013 = vmul.u32 %v1009, 14564
      %v1014 = vmul.u32 %v1009, 58254
      %v1015 = vshll.u32 %v1012, 16
      %v1016 = vshrl.u32 %v1012, 16
      %v1017 = vshll.u32 %v1013, 16
      %v1018 = vshrl.u32 %v1013, 16
      %vm1019 = vc.u32 %v1011, %v1015
      %v1020 = vsel %vm1019, 1, 0
      %v1021 = vadd.s32 %v1011, %v1015
      %v1022 = vadd.s32 %v1014, %v1020
      %vm1023 = vc.u32 %v1021, %v1017
      %v1024 = vsel %vm1023, 1, 0
      %v1025 = vadd.s32 %v1021, %v1017
      %v1026 = vadd.s32 %v1022, %v1024
      %v1027 = vadd.s32 %v1026, %v1016
      %v1028 = vadd.s32 %v1027, %v1018
      %v1029 = vshrl.u32 %v1028, 4
      %v1030 = vmul.u32 %v1029, 18
      %v1031 = vsub.s32 %v1007, %v1030
      %v1032 = vsub.s32 0, %v1031
      %v1033 = vsel %vm1005, %v1032, %v1031
      %vm1034 = vcmp.lt.s32.totalorder %v326, 0
      %v1035 = vsub.s32 0, %v326
      %v1036 = vsel %vm1034, %v1035, %v326
      %v1037 = vand.u32 %v1036, 65535
      %v1038 = vshrl.u32 %v1036, 16
      %v1040 = vmul.u32 %v1037, 14564
      %v1041 = vmul.u32 %v1037, 58254
      %v1042 = vmul.u32 %v1038, 14564
      %v1043 = vmul.u32 %v1038, 58254
      %v1044 = vshll.u32 %v1041, 16
      %v1045 = vshrl.u32 %v1041, 16
      %v1046 = vshll.u32 %v1042, 16
      %v1047 = vshrl.u32 %v1042, 16
      %vm1048 = vc.u32 %v1040, %v1044
      %v1049 = vsel %vm1048, 1, 0
      %v1050 = vadd.s32 %v1040, %v1044
      %v1051 = vadd.s32 %v1043, %v1049
      %vm1052 = vc.u32 %v1050, %v1046
      %v1053 = vsel %vm1052, 1, 0
      %v1054 = vadd.s32 %v1050, %v1046
      %v1055 = vadd.s32 %v1051, %v1053
      %v1056 = vadd.s32 %v1055, %v1045
      %v1057 = vadd.s32 %v1056, %v1047
      %v1058 = vshrl.u32 %v1057, 4
      %v1059 = vmul.u32 %v1058, 18
      %v1060 = vsub.s32 %v1036, %v1059
      %v1061 = vsub.s32 0, %v1060
      %v1062 = vsel %vm1034, %v1061, %v1060
      %vm1063 = vcmp.lt.s32.totalorder %v327, 0
      %v1064 = vsub.s32 0, %v327
      %v1065 = vsel %vm1063, %v1064, %v327
      %v1066 = vand.u32 %v1065, 65535
      %v1067 = vshrl.u32 %v1065, 16
      %v1069 = vmul.u32 %v1066, 14564
      %v1070 = vmul.u32 %v1066, 58254
      %v1071 = vmul.u32 %v1067, 14564
      %v1072 = vmul.u32 %v1067, 58254
      %v1073 = vshll.u32 %v1070, 16
      %v1074 = vshrl.u32 %v1070, 16
      %v1075 = vshll.u32 %v1071, 16
      %v1076 = vshrl.u32 %v1071, 16
      %vm1077 = vc.u32 %v1069, %v1073
      %v1078 = vsel %vm1077, 1, 0
      %v1079 = vadd.s32 %v1069, %v1073
      %v1080 = vadd.s32 %v1072, %v1078
      %vm1081 = vc.u32 %v1079, %v1075
      %v1082 = vsel %vm1081, 1, 0
      %v1083 = vadd.s32 %v1079, %v1075
      %v1084 = vadd.s32 %v1080, %v1082
      %v1085 = vadd.s32 %v1084, %v1074
      %v1086 = vadd.s32 %v1085, %v1076
      %v1087 = vshrl.u32 %v1086, 4
      %v1088 = vmul.u32 %v1087, 18
      %v1089 = vsub.s32 %v1065, %v1088
      %v1090 = vsub.s32 0, %v1089
      %v1091 = vsel %vm1063, %v1090, %v1089
      %vm1092 = vcmp.lt.s32.totalorder %v328, 0
      %v1093 = vsub.s32 0, %v328
      %v1094 = vsel %vm1092, %v1093, %v328
      %v1095 = vand.u32 %v1094, 65535
      %v1096 = vshrl.u32 %v1094, 16
      %v1098 = vmul.u32 %v1095, 14564
      %v1099 = vmul.u32 %v1095, 58254
      %v1100 = vmul.u32 %v1096, 14564
      %v1101 = vmul.u32 %v1096, 58254
      %v1102 = vshll.u32 %v1099, 16
      %v1103 = vshrl.u32 %v1099, 16
      %v1104 = vshll.u32 %v1100, 16
      %v1105 = vshrl.u32 %v1100, 16
      %vm1106 = vc.u32 %v1098, %v1102
      %v1107 = vsel %vm1106, 1, 0
      %v1108 = vadd.s32 %v1098, %v1102
      %v1109 = vadd.s32 %v1101, %v1107
      %vm1110 = vc.u32 %v1108, %v1104
      %v1111 = vsel %vm1110, 1, 0
      %v1112 = vadd.s32 %v1108, %v1104
      %v1113 = vadd.s32 %v1109, %v1111
      %v1114 = vadd.s32 %v1113, %v1103
      %v1115 = vadd.s32 %v1114, %v1105
      %v1116 = vshrl.u32 %v1115, 4
      %v1117 = vmul.u32 %v1116, 18
      %v1118 = vsub.s32 %v1094, %v1117
      %v1119 = vsub.s32 0, %v1118
      %v1120 = vsel %vm1092, %v1119, %v1118
      %vm1121 = vcmp.lt.s32.totalorder %v329, 0
      %v1122 = vsub.s32 0, %v329
      %v1123 = vsel %vm1121, %v1122, %v329
      %v1124 = vand.u32 %v1123, 65535
      %v1125 = vshrl.u32 %v1123, 16
      %v1127 = vmul.u32 %v1124, 14564
      %v1128 = vmul.u32 %v1124, 58254
      %v1129 = vmul.u32 %v1125, 14564
      %v1130 = vmul.u32 %v1125, 58254
      %v1131 = vshll.u32 %v1128, 16
      %v1132 = vshrl.u32 %v1128, 16
      %v1133 = vshll.u32 %v1129, 16
      %v1134 = vshrl.u32 %v1129, 16
      %vm1135 = vc.u32 %v1127, %v1131
      %v1136 = vsel %vm1135, 1, 0
      %v1137 = vadd.s32 %v1127, %v1131
      %v1138 = vadd.s32 %v1130, %v1136
      %vm1139 = vc.u32 %v1137, %v1133
      %v1140 = vsel %vm1139, 1, 0
      %v1141 = vadd.s32 %v1137, %v1133
      %v1142 = vadd.s32 %v1138, %v1140
      %v1143 = vadd.s32 %v1142, %v1132
      %v1144 = vadd.s32 %v1143, %v1134
      %v1145 = vshrl.u32 %v1144, 4
      %v1146 = vmul.u32 %v1145, 18
      %v1147 = vsub.s32 %v1123, %v1146
      %v1148 = vsub.s32 0, %v1147
      %v1149 = vsel %vm1121, %v1148, %v1147
      %vm1150 = vcmp.lt.s32.totalorder %v330, 0
      %v1151 = vsub.s32 0, %v330
      %v1152 = vsel %vm1150, %v1151, %v330
      %v1153 = vand.u32 %v1152, 65535
      %v1154 = vshrl.u32 %v1152, 16
      %v1156 = vmul.u32 %v1153, 14564
      %v1157 = vmul.u32 %v1153, 58254
      %v1158 = vmul.u32 %v1154, 14564
      %v1159 = vmul.u32 %v1154, 58254
      %v1160 = vshll.u32 %v1157, 16
      %v1161 = vshrl.u32 %v1157, 16
      %v1162 = vshll.u32 %v1158, 16
      %v1163 = vshrl.u32 %v1158, 16
      %vm1164 = vc.u32 %v1156, %v1160
      %v1165 = vsel %vm1164, 1, 0
      %v1166 = vadd.s32 %v1156, %v1160
      %v1167 = vadd.s32 %v1159, %v1165
      %vm1168 = vc.u32 %v1166, %v1162
      %v1169 = vsel %vm1168, 1, 0
      %v1170 = vadd.s32 %v1166, %v1162
      %v1171 = vadd.s32 %v1167, %v1169
      %v1172 = vadd.s32 %v1171, %v1161
      %v1173 = vadd.s32 %v1172, %v1163
      %v1174 = vshrl.u32 %v1173, 4
      %v1175 = vmul.u32 %v1174, 18
      %v1176 = vsub.s32 %v1152, %v1175
      %v1177 = vsub.s32 0, %v1176
      %v1178 = vsel %vm1150, %v1177, %v1176
      %vm1179 = vcmp.lt.s32.totalorder %v331, 0
      %v1180 = vsub.s32 0, %v331
      %v1181 = vsel %vm1179, %v1180, %v331
      %v1182 = vand.u32 %v1181, 65535
      %v1183 = vshrl.u32 %v1181, 16
      %v1185 = vmul.u32 %v1182, 14564
      %v1186 = vmul.u32 %v1182, 58254
      %v1187 = vmul.u32 %v1183, 14564
      %v1188 = vmul.u32 %v1183, 58254
      %v1189 = vshll.u32 %v1186, 16
      %v1190 = vshrl.u32 %v1186, 16
      %v1191 = vshll.u32 %v1187, 16
      %v1192 = vshrl.u32 %v1187, 16
      %vm1193 = vc.u32 %v1185, %v1189
      %v1194 = vsel %vm1193, 1, 0
      %v1195 = vadd.s32 %v1185, %v1189
      %v1196 = vadd.s32 %v1188, %v1194
      %vm1197 = vc.u32 %v1195, %v1191
      %v1198 = vsel %vm1197, 1, 0
      %v1199 = vadd.s32 %v1195, %v1191
      %v1200 = vadd.s32 %v1196, %v1198
      %v1201 = vadd.s32 %v1200, %v1190
      %v1202 = vadd.s32 %v1201, %v1192
      %v1203 = vshrl.u32 %v1202, 4
      %v1204 = vmul.u32 %v1203, 18
      %v1205 = vsub.s32 %v1181, %v1204
      %v1206 = vsub.s32 0, %v1205
      %v1207 = vsel %vm1179, %v1206, %v1205
      %vm1208 = vcmp.lt.s32.totalorder %v332, 0
      %v1209 = vsub.s32 0, %v332
      %v1210 = vsel %vm1208, %v1209, %v332
      %v1211 = vand.u32 %v1210, 65535
      %v1212 = vshrl.u32 %v1210, 16
      %v1214 = vmul.u32 %v1211, 14564
      %v1215 = vmul.u32 %v1211, 58254
      %v1216 = vmul.u32 %v1212, 14564
      %v1217 = vmul.u32 %v1212, 58254
      %v1218 = vshll.u32 %v1215, 16
      %v1219 = vshrl.u32 %v1215, 16
      %v1220 = vshll.u32 %v1216, 16
      %v1221 = vshrl.u32 %v1216, 16
      %vm1222 = vc.u32 %v1214, %v1218
      %v1223 = vsel %vm1222, 1, 0
      %v1224 = vadd.s32 %v1214, %v1218
      %v1225 = vadd.s32 %v1217, %v1223
      %vm1226 = vc.u32 %v1224, %v1220
      %v1227 = vsel %vm1226, 1, 0
      %v1228 = vadd.s32 %v1224, %v1220
      %v1229 = vadd.s32 %v1225, %v1227
      %v1230 = vadd.s32 %v1229, %v1219
      %v1231 = vadd.s32 %v1230, %v1221
      %v1232 = vshrl.u32 %v1231, 4
      %v1233 = vmul.u32 %v1232, 18
      %v1234 = vsub.s32 %v1210, %v1233
      %v1235 = vsub.s32 0, %v1234
      %v1236 = vsel %vm1208, %v1235, %v1234
      %vm1237 = vcmp.lt.s32.totalorder %v333, 0
      %v1238 = vsub.s32 0, %v333
      %v1239 = vsel %vm1237, %v1238, %v333
      %v1240 = vand.u32 %v1239, 65535
      %v1241 = vshrl.u32 %v1239, 16
      %v1243 = vmul.u32 %v1240, 14564
      %v1244 = vmul.u32 %v1240, 58254
      %v1245 = vmul.u32 %v1241, 14564
      %v1246 = vmul.u32 %v1241, 58254
      %v1247 = vshll.u32 %v1244, 16
      %v1248 = vshrl.u32 %v1244, 16
      %v1249 = vshll.u32 %v1245, 16
      %v1250 = vshrl.u32 %v1245, 16
      %vm1251 = vc.u32 %v1243, %v1247
      %v1252 = vsel %vm1251, 1, 0
      %v1253 = vadd.s32 %v1243, %v1247
      %v1254 = vadd.s32 %v1246, %v1252
      %vm1255 = vc.u32 %v1253, %v1249
      %v1256 = vsel %vm1255, 1, 0
      %v1257 = vadd.s32 %v1253, %v1249
      %v1258 = vadd.s32 %v1254, %v1256
      %v1259 = vadd.s32 %v1258, %v1248
      %v1260 = vadd.s32 %v1259, %v1250
      %v1261 = vshrl.u32 %v1260, 4
      %v1262 = vmul.u32 %v1261, 18
      %v1263 = vsub.s32 %v1239, %v1262
      %v1264 = vsub.s32 0, %v1263
      %v1265 = vsel %vm1237, %v1264, %v1263
      %vm1266 = vcmp.lt.s32.totalorder %v334, 0
      %v1267 = vsub.s32 0, %v334
      %v1268 = vsel %vm1266, %v1267, %v334
      %v1269 = vand.u32 %v1268, 65535
      %v1270 = vshrl.u32 %v1268, 16
      %v1272 = vmul.u32 %v1269, 14564
      %v1273 = vmul.u32 %v1269, 58254
      %v1274 = vmul.u32 %v1270, 14564
      %v1275 = vmul.u32 %v1270, 58254
      %v1276 = vshll.u32 %v1273, 16
      %v1277 = vshrl.u32 %v1273, 16
      %v1278 = vshll.u32 %v1274, 16
      %v1279 = vshrl.u32 %v1274, 16
      %vm1280 = vc.u32 %v1272, %v1276
      %v1281 = vsel %vm1280, 1, 0
      %v1282 = vadd.s32 %v1272, %v1276
      %v1283 = vadd.s32 %v1275, %v1281
      %vm1284 = vc.u32 %v1282, %v1278
      %v1285 = vsel %vm1284, 1, 0
      %v1286 = vadd.s32 %v1282, %v1278
      %v1287 = vadd.s32 %v1283, %v1285
      %v1288 = vadd.s32 %v1287, %v1277
      %v1289 = vadd.s32 %v1288, %v1279
      %v1290 = vshrl.u32 %v1289, 4
      %v1291 = vmul.u32 %v1290, 18
      %v1292 = vsub.s32 %v1268, %v1291
      %v1293 = vsub.s32 0, %v1292
      %v1294 = vsel %vm1266, %v1293, %v1292
      %vm1295 = vcmp.lt.s32.totalorder %v335, 0
      %v1296 = vsub.s32 0, %v335
      %v1297 = vsel %vm1295, %v1296, %v335
      %v1298 = vand.u32 %v1297, 65535
      %v1299 = vshrl.u32 %v1297, 16
      %v1301 = vmul.u32 %v1298, 14564
      %v1302 = vmul.u32 %v1298, 58254
      %v1303 = vmul.u32 %v1299, 14564
      %v1304 = vmul.u32 %v1299, 58254
      %v1305 = vshll.u32 %v1302, 16
      %v1306 = vshrl.u32 %v1302, 16
      %v1307 = vshll.u32 %v1303, 16
      %v1308 = vshrl.u32 %v1303, 16
      %vm1309 = vc.u32 %v1301, %v1305
      %v1310 = vsel %vm1309, 1, 0
      %v1311 = vadd.s32 %v1301, %v1305
      %v1312 = vadd.s32 %v1304, %v1310
      %vm1313 = vc.u32 %v1311, %v1307
      %v1314 = vsel %vm1313, 1, 0
      %v1315 = vadd.s32 %v1311, %v1307
      %v1316 = vadd.s32 %v1312, %v1314
      %v1317 = vadd.s32 %v1316, %v1306
      %v1318 = vadd.s32 %v1317, %v1308
      %v1319 = vshrl.u32 %v1318, 4
      %v1320 = vmul.u32 %v1319, 18
      %v1321 = vsub.s32 %v1297, %v1320
      %v1322 = vsub.s32 0, %v1321
      %v1323 = vsel %vm1295, %v1322, %v1321
      %vm1324 = vcmp.lt.s32.totalorder %v336, 0
      %v1325 = vsub.s32 0, %v336
      %v1326 = vsel %vm1324, %v1325, %v336
      %v1327 = vand.u32 %v1326, 65535
      %v1328 = vshrl.u32 %v1326, 16
      %v1330 = vmul.u32 %v1327, 14564
      %v1331 = vmul.u32 %v1327, 58254
      %v1332 = vmul.u32 %v1328, 14564
      %v1333 = vmul.u32 %v1328, 58254
      %v1334 = vshll.u32 %v1331, 16
      %v1335 = vshrl.u32 %v1331, 16
      %v1336 = vshll.u32 %v1332, 16
      %v1337 = vshrl.u32 %v1332, 16
      %vm1338 = vc.u32 %v1330, %v1334
      %v1339 = vsel %vm1338, 1, 0
      %v1340 = vadd.s32 %v1330, %v1334
      %v1341 = vadd.s32 %v1333, %v1339
      %vm1342 = vc.u32 %v1340, %v1336
      %v1343 = vsel %vm1342, 1, 0
      %v1344 = vadd.s32 %v1340, %v1336
      %v1345 = vadd.s32 %v1341, %v1343
      %v1346 = vadd.s32 %v1345, %v1335
      %v1347 = vadd.s32 %v1346, %v1337
      %v1348 = vshrl.u32 %v1347, 4
      %v1349 = vmul.u32 %v1348, 18
      %v1350 = vsub.s32 %v1326, %v1349
      %v1351 = vsub.s32 0, %v1350
      %v1352 = vsel %vm1324, %v1351, %v1350
      %vm1353 = vcmp.lt.s32.totalorder %v337, 0
      %v1354 = vsub.s32 0, %v337
      %v1355 = vsel %vm1353, %v1354, %v337
      %v1356 = vand.u32 %v1355, 65535
      %v1357 = vshrl.u32 %v1355, 16
      %v1359 = vmul.u32 %v1356, 14564
      %v1360 = vmul.u32 %v1356, 58254
      %v1361 = vmul.u32 %v1357, 14564
      %v1362 = vmul.u32 %v1357, 58254
      %v1363 = vshll.u32 %v1360, 16
      %v1364 = vshrl.u32 %v1360, 16
      %v1365 = vshll.u32 %v1361, 16
      %v1366 = vshrl.u32 %v1361, 16
      %vm1367 = vc.u32 %v1359, %v1363
      %v1368 = vsel %vm1367, 1, 0
      %v1369 = vadd.s32 %v1359, %v1363
      %v1370 = vadd.s32 %v1362, %v1368
      %vm1371 = vc.u32 %v1369, %v1365
      %v1372 = vsel %vm1371, 1, 0
      %v1373 = vadd.s32 %v1369, %v1365
      %v1374 = vadd.s32 %v1370, %v1372
      %v1375 = vadd.s32 %v1374, %v1364
      %v1376 = vadd.s32 %v1375, %v1366
      %v1377 = vshrl.u32 %v1376, 4
      %v1378 = vmul.u32 %v1377, 18
      %v1379 = vsub.s32 %v1355, %v1378
      %v1380 = vsub.s32 0, %v1379
      %v1381 = vsel %vm1353, %v1380, %v1379
      %vm1382 = vcmp.ne.s32.totalorder %v366, 0
      %vm1383 = vcmp.ne.s32.totalorder %v395, 0
      %vm1384 = vcmp.ne.s32.totalorder %v424, 0
      %vm1385 = vcmp.ne.s32.totalorder %v453, 0
      %vm1386 = vcmp.ne.s32.totalorder %v482, 0
      %vm1387 = vcmp.ne.s32.totalorder %v511, 0
      %vm1388 = vcmp.ne.s32.totalorder %v540, 0
      %vm1389 = vcmp.ne.s32.totalorder %v569, 0
      %vm1390 = vcmp.ne.s32.totalorder %v598, 0
      %vm1391 = vcmp.ne.s32.totalorder %v627, 0
      %vm1392 = vcmp.ne.s32.totalorder %v656, 0
      %vm1393 = vcmp.ne.s32.totalorder %v685, 0
      %vm1394 = vcmp.ne.s32.totalorder %v714, 0
      %vm1395 = vcmp.ne.s32.totalorder %v743, 0
      %vm1396 = vcmp.ne.s32.totalorder %v772, 0
      %vm1397 = vcmp.ne.s32.totalorder %v801, 0
      %vm1398 = vcmp.ne.s32.totalorder %v830, 0
      %vm1399 = vcmp.ne.s32.totalorder %v859, 0
      %vm1400 = vcmp.ne.s32.totalorder %v888, 0
      %vm1401 = vcmp.ne.s32.totalorder %v917, 0
      %vm1402 = vcmp.ne.s32.totalorder %v946, 0
      %vm1403 = vcmp.ne.s32.totalorder %v975, 0
      %vm1404 = vcmp.ne.s32.totalorder %v1004, 0
      %vm1405 = vcmp.ne.s32.totalorder %v1033, 0
      %vm1406 = vcmp.ne.s32.totalorder %v1062, 0
      %vm1407 = vcmp.ne.s32.totalorder %v1091, 0
      %vm1408 = vcmp.ne.s32.totalorder %v1120, 0
      %vm1409 = vcmp.ne.s32.totalorder %v1149, 0
      %vm1410 = vcmp.ne.s32.totalorder %v1178, 0
      %vm1411 = vcmp.ne.s32.totalorder %v1207, 0
      %vm1412 = vcmp.ne.s32.totalorder %v1236, 0
      %vm1413 = vcmp.ne.s32.totalorder %v1265, 0
      %vm1414 = vcmp.ne.s32.totalorder %v1294, 0
      %vm1415 = vcmp.ne.s32.totalorder %v1323, 0
      %vm1416 = vcmp.ne.s32.totalorder %v1352, 0
      %vm1417 = vcmp.ne.s32.totalorder %v1381, 0
      %vm1418 = vcmp.lt.s32.totalorder %v366, 0
      %vm1419 = vcmp.lt.s32.totalorder %v395, 0
      %vm1420 = vcmp.lt.s32.totalorder %v424, 0
      %vm1421 = vcmp.lt.s32.totalorder %v453, 0
      %vm1422 = vcmp.lt.s32.totalorder %v482, 0
      %vm1423 = vcmp.lt.s32.totalorder %v511, 0
      %vm1424 = vcmp.lt.s32.totalorder %v540, 0
      %vm1425 = vcmp.lt.s32.totalorder %v569, 0
      %vm1426 = vcmp.lt.s32.totalorder %v598, 0
      %vm1427 = vcmp.lt.s32.totalorder %v627, 0
      %vm1428 = vcmp.lt.s32.totalorder %v656, 0
      %vm1429 = vcmp.lt.s32.totalorder %v685, 0
      %vm1430 = vcmp.lt.s32.totalorder %v714, 0
      %vm1431 = vcmp.lt.s32.totalorder %v743, 0
      %vm1432 = vcmp.lt.s32.totalorder %v772, 0
      %vm1433 = vcmp.lt.s32.totalorder %v801, 0
      %vm1434 = vcmp.lt.s32.totalorder %v830, 0
      %vm1435 = vcmp.lt.s32.totalorder %v859, 0
      %vm1436 = vcmp.lt.s32.totalorder %v888, 0
      %vm1437 = vcmp.lt.s32.totalorder %v917, 0
      %vm1438 = vcmp.lt.s32.totalorder %v946, 0
      %vm1439 = vcmp.lt.s32.totalorder %v975, 0
      %vm1440 = vcmp.lt.s32.totalorder %v1004, 0
      %vm1441 = vcmp.lt.s32.totalorder %v1033, 0
      %vm1442 = vcmp.lt.s32.totalorder %v1062, 0
      %vm1443 = vcmp.lt.s32.totalorder %v1091, 0
      %vm1444 = vcmp.lt.s32.totalorder %v1120, 0
      %vm1445 = vcmp.lt.s32.totalorder %v1149, 0
      %vm1446 = vcmp.lt.s32.totalorder %v1178, 0
      %vm1447 = vcmp.lt.s32.totalorder %v1207, 0
      %vm1448 = vcmp.lt.s32.totalorder %v1236, 0
      %vm1449 = vcmp.lt.s32.totalorder %v1265, 0
      %vm1450 = vcmp.lt.s32.totalorder %v1294, 0
      %vm1451 = vcmp.lt.s32.totalorder %v1323, 0
      %vm1452 = vcmp.lt.s32.totalorder %v1352, 0
      %vm1453 = vcmp.lt.s32.totalorder %v1381, 0
      %vm1454 = vmand %vm1418, %vm1382
      %vm1455 = vmand %vm1419, %vm1383
      %vm1456 = vmand %vm1420, %vm1384
      %vm1457 = vmand %vm1421, %vm1385
      %vm1458 = vmand %vm1422, %vm1386
      %vm1459 = vmand %vm1423, %vm1387
      %vm1460 = vmand %vm1424, %vm1388
      %vm1461 = vmand %vm1425, %vm1389
      %vm1462 = vmand %vm1426, %vm1390
      %vm1463 = vmand %vm1427, %vm1391
      %vm1464 = vmand %vm1428, %vm1392
      %vm1465 = vmand %vm1429, %vm1393
      %vm1466 = vmand %vm1430, %vm1394
      %vm1467 = vmand %vm1431, %vm1395
      %vm1468 = vmand %vm1432, %vm1396
      %vm1469 = vmand %vm1433, %vm1397
      %vm1470 = vmand %vm1434, %vm1398
      %vm1471 = vmand %vm1435, %vm1399
      %vm1472 = vmand %vm1436, %vm1400
      %vm1473 = vmand %vm1437, %vm1401
      %vm1474 = vmand %vm1438, %vm1402
      %vm1475 = vmand %vm1439, %vm1403
      %vm1476 = vmand %vm1440, %vm1404
      %vm1477 = vmand %vm1441, %vm1405
      %vm1478 = vmand %vm1442, %vm1406
      %vm1479 = vmand %vm1443, %vm1407
      %vm1480 = vmand %vm1444, %vm1408
      %vm1481 = vmand %vm1445, %vm1409
      %vm1482 = vmand %vm1446, %vm1410
      %vm1483 = vmand %vm1447, %vm1411
      %vm1484 = vmand %vm1448, %vm1412
      %vm1485 = vmand %vm1449, %vm1413
      %vm1486 = vmand %vm1450, %vm1414
      %vm1487 = vmand %vm1451, %vm1415
      %vm1488 = vmand %vm1452, %vm1416
      %vm1489 = vmand %vm1453, %vm1417
      %v1490 = vadd.s32 %v366, 18
      %v1491 = vadd.s32 %v395, 18
      %v1492 = vadd.s32 %v424, 18
      %v1493 = vadd.s32 %v453, 18
      %v1494 = vadd.s32 %v482, 18
      %v1495 = vadd.s32 %v511, 18
      %v1496 = vadd.s32 %v540, 18
      %v1497 = vadd.s32 %v569, 18
      %v1498 = vadd.s32 %v598, 18
      %v1499 = vadd.s32 %v627, 18
      %v1500 = vadd.s32 %v656, 18
      %v1501 = vadd.s32 %v685, 18
      %v1502 = vadd.s32 %v714, 18
      %v1503 = vadd.s32 %v743, 18
      %v1504 = vadd.s32 %v772, 18
      %v1505 = vadd.s32 %v801, 18
      %v1506 = vadd.s32 %v830, 18
      %v1507 = vadd.s32 %v859, 18
      %v1508 = vadd.s32 %v888, 18
      %v1509 = vadd.s32 %v917, 18
      %v1510 = vadd.s32 %v946, 18
      %v1511 = vadd.s32 %v975, 18
      %v1512 = vadd.s32 %v1004, 18
      %v1513 = vadd.s32 %v1033, 18
      %v1514 = vadd.s32 %v1062, 18
      %v1515 = vadd.s32 %v1091, 18
      %v1516 = vadd.s32 %v1120, 18
      %v1517 = vadd.s32 %v1149, 18
      %v1518 = vadd.s32 %v1178, 18
      %v1519 = vadd.s32 %v1207, 18
      %v1520 = vadd.s32 %v1236, 18
      %v1521 = vadd.s32 %v1265, 18
      %v1522 = vadd.s32 %v1294, 18
      %v1523 = vadd.s32 %v1323, 18
      %v1524 = vadd.s32 %v1352, 18
      %v1525 = vadd.s32 %v1381, 18
      %v1526 = vsel %vm1454, %v1490, %v366
      %v1527 = vsel %vm1455, %v1491, %v395
      %v1528 = vsel %vm1456, %v1492, %v424
      %v1529 = vsel %vm1457, %v1493, %v453
      %v1530 = vsel %vm1458, %v1494, %v482
      %v1531 = vsel %vm1459, %v1495, %v511
      %v1532 = vsel %vm1460, %v1496, %v540
      %v1533 = vsel %vm1461, %v1497, %v569
      %v1534 = vsel %vm1462, %v1498, %v598
      %v1535 = vsel %vm1463, %v1499, %v627
      %v1536 = vsel %vm1464, %v1500, %v656
      %v1537 = vsel %vm1465, %v1501, %v685
      %v1538 = vsel %vm1466, %v1502, %v714
      %v1539 = vsel %vm1467, %v1503, %v743
      %v1540 = vsel %vm1468, %v1504, %v772
      %v1541 = vsel %vm1469, %v1505, %v801
      %v1542 = vsel %vm1470, %v1506, %v830
      %v1543 = vsel %vm1471, %v1507, %v859
      %v1544 = vsel %vm1472, %v1508, %v888
      %v1545 = vsel %vm1473, %v1509, %v917
      %v1546 = vsel %vm1474, %v1510, %v946
      %v1547 = vsel %vm1475, %v1511, %v975
      %v1548 = vsel %vm1476, %v1512, %v1004
      %v1549 = vsel %vm1477, %v1513, %v1033
      %v1550 = vsel %vm1478, %v1514, %v1062
      %v1551 = vsel %vm1479, %v1515, %v1091
      %v1552 = vsel %vm1480, %v1516, %v1120
      %v1553 = vsel %vm1481, %v1517, %v1149
      %v1554 = vsel %vm1482, %v1518, %v1178
      %v1555 = vsel %vm1483, %v1519, %v1207
      %v1556 = vsel %vm1484, %v1520, %v1236
      %v1557 = vsel %vm1485, %v1521, %v1265
      %v1558 = vsel %vm1486, %v1522, %v1294
      %v1559 = vsel %vm1487, %v1523, %v1323
      %v1560 = vsel %vm1488, %v1524, %v1352
      %v1561 = vsel %vm1489, %v1525, %v1381
      %vm1562 = vcmp.lt.s32.totalorder %v1526, 16
      %vm1563 = vcmp.lt.s32.totalorder %v1527, 16
      %vm1564 = vcmp.lt.s32.totalorder %v1528, 16
      %vm1565 = vcmp.lt.s32.totalorder %v1529, 16
      %vm1566 = vcmp.lt.s32.totalorder %v1530, 16
      %vm1567 = vcmp.lt.s32.totalorder %v1531, 16
      %vm1568 = vcmp.lt.s32.totalorder %v1532, 16
      %vm1569 = vcmp.lt.s32.totalorder %v1533, 16
      %vm1570 = vcmp.lt.s32.totalorder %v1534, 16
      %vm1571 = vcmp.lt.s32.totalorder %v1535, 16
      %vm1572 = vcmp.lt.s32.totalorder %v1536, 16
      %vm1573 = vcmp.lt.s32.totalorder %v1537, 16
      %vm1574 = vcmp.lt.s32.totalorder %v1538, 16
      %vm1575 = vcmp.lt.s32.totalorder %v1539, 16
      %vm1576 = vcmp.lt.s32.totalorder %v1540, 16
      %vm1577 = vcmp.lt.s32.totalorder %v1541, 16
      %vm1578 = vcmp.lt.s32.totalorder %v1542, 16
      %vm1579 = vcmp.lt.s32.totalorder %v1543, 16
      %vm1580 = vcmp.lt.s32.totalorder %v1544, 16
      %vm1581 = vcmp.lt.s32.totalorder %v1545, 16
      %vm1582 = vcmp.lt.s32.totalorder %v1546, 16
      %vm1583 = vcmp.lt.s32.totalorder %v1547, 16
      %vm1584 = vcmp.lt.s32.totalorder %v1548, 16
      %vm1585 = vcmp.lt.s32.totalorder %v1549, 16
      %vm1586 = vcmp.lt.s32.totalorder %v1550, 16
      %vm1587 = vcmp.lt.s32.totalorder %v1551, 16
      %vm1588 = vcmp.lt.s32.totalorder %v1552, 16
      %vm1589 = vcmp.lt.s32.totalorder %v1553, 16
      %vm1590 = vcmp.lt.s32.totalorder %v1554, 16
      %vm1591 = vcmp.lt.s32.totalorder %v1555, 16
      %vm1592 = vcmp.lt.s32.totalorder %v1556, 16
      %vm1593 = vcmp.lt.s32.totalorder %v1557, 16
      %vm1594 = vcmp.lt.s32.totalorder %v1558, 16
      %vm1595 = vcmp.lt.s32.totalorder %v1559, 16
      %vm1596 = vcmp.lt.s32.totalorder %v1560, 16
      %vm1597 = vcmp.lt.s32.totalorder %v1561, 16
      %v1598 = vsel %vm1562, 1, 0
      %v1599 = vsel %vm1563, 1, 0
      %v1600 = vsel %vm1564, 1, 0
      %v1601 = vsel %vm1565, 1, 0
      %v1602 = vsel %vm1566, 1, 0
      %v1603 = vsel %vm1567, 1, 0
      %v1604 = vsel %vm1568, 1, 0
      %v1605 = vsel %vm1569, 1, 0
      %v1606 = vsel %vm1570, 1, 0
      %v1607 = vsel %vm1571, 1, 0
      %v1608 = vsel %vm1572, 1, 0
      %v1609 = vsel %vm1573, 1, 0
      %v1610 = vsel %vm1574, 1, 0
      %v1611 = vsel %vm1575, 1, 0
      %v1612 = vsel %vm1576, 1, 0
      %v1613 = vsel %vm1577, 1, 0
      %v1614 = vsel %vm1578, 1, 0
      %v1615 = vsel %vm1579, 1, 0
      %v1616 = vsel %vm1580, 1, 0
      %v1617 = vsel %vm1581, 1, 0
      %v1618 = vsel %vm1582, 1, 0
      %v1619 = vsel %vm1583, 1, 0
      %v1620 = vsel %vm1584, 1, 0
      %v1621 = vsel %vm1585, 1, 0
      %v1622 = vsel %vm1586, 1, 0
      %v1623 = vsel %vm1587, 1, 0
      %v1624 = vsel %vm1588, 1, 0
      %v1625 = vsel %vm1589, 1, 0
      %v1626 = vsel %vm1590, 1, 0
      %v1627 = vsel %vm1591, 1, 0
      %v1628 = vsel %vm1592, 1, 0
      %v1629 = vsel %vm1593, 1, 0
      %v1630 = vsel %vm1594, 1, 0
      %v1631 = vsel %vm1595, 1, 0
      %v1632 = vsel %vm1596, 1, 0
      %v1633 = vsel %vm1597, 1, 0
      %v1634 = vcvt.s32.f32 %v1598
      %v1635 = vcvt.s32.f32 %v1599
      %v1636 = vcvt.s32.f32 %v1600
      %v1637 = vcvt.s32.f32 %v1601
      %v1638 = vcvt.s32.f32 %v1602
      %v1639 = vcvt.s32.f32 %v1603
      %v1640 = vcvt.s32.f32 %v1604
      %v1641 = vcvt.s32.f32 %v1605
      %v1642 = vcvt.s32.f32 %v1606
      %v1643 = vcvt.s32.f32 %v1607
      %v1644 = vcvt.s32.f32 %v1608
      %v1645 = vcvt.s32.f32 %v1609
      %v1646 = vcvt.s32.f32 %v1610
      %v1647 = vcvt.s32.f32 %v1611
      %v1648 = vcvt.s32.f32 %v1612
      %v1649 = vcvt.s32.f32 %v1613
      %v1650 = vcvt.s32.f32 %v1614
      %v1651 = vcvt.s32.f32 %v1615
      %v1652 = vcvt.s32.f32 %v1616
      %v1653 = vcvt.s32.f32 %v1617
      %v1654 = vcvt.s32.f32 %v1618
      %v1655 = vcvt.s32.f32 %v1619
      %v1656 = vcvt.s32.f32 %v1620
      %v1657 = vcvt.s32.f32 %v1621
      %v1658 = vcvt.s32.f32 %v1622
      %v1659 = vcvt.s32.f32 %v1623
      %v1660 = vcvt.s32.f32 %v1624
      %v1661 = vcvt.s32.f32 %v1625
      %v1662 = vcvt.s32.f32 %v1626
      %v1663 = vcvt.s32.f32 %v1627
      %v1664 = vcvt.s32.f32 %v1628
      %v1665 = vcvt.s32.f32 %v1629
      %v1666 = vcvt.s32.f32 %v1630
      %v1667 = vcvt.s32.f32 %v1631
      %v1668 = vcvt.s32.f32 %v1632
      %v1669 = vcvt.s32.f32 %v1633
      %v1670 = vld [vmem:[%s286] sm:$0xff]
      %v1671 = vld [vmem:[%s286 + $0x8] sm:$0xff]
      %v1672 = vld [vmem:[%s286 + $0x10] sm:$0xff]
      %v1673 = vld [vmem:[%s286 + $0x18] sm:$0xff]
      %v1674 = vld [vmem:[%s286 + $0x20] sm:$0xff]
      %v1675 = vld [vmem:[%s286 + $0x28] sm:$0xff]
      %v1676 = vld [vmem:[%s286 + $0x30] sm:$0xff]
      %v1677 = vld [vmem:[%s286 + $0x38] sm:$0xff]
      %v1678 = vld [vmem:[%s286 + $0x40] sm:$0xff]
      %v1679 = vld [vmem:[%s286 + $0x48] sm:$0xff]
      %v1680 = vld [vmem:[%s286 + $0x50] sm:$0xff]
      %v1681 = vld [vmem:[%s286 + $0x58] sm:$0xff]
      %v1682 = vld [vmem:[%s286 + $0x60] sm:$0xff]
      %v1683 = vld [vmem:[%s286 + $0x68] sm:$0xff]
      %v1684 = vld [vmem:[%s286 + $0x70] sm:$0xff]
      %v1685 = vld [vmem:[%s286 + $0x78] sm:$0xff]
      %v1686 = vld [vmem:[%s286 + $0x80] sm:$0xff]
      %v1687 = vld [vmem:[%s286 + $0x88] sm:$0xff]
      %v1688 = vld [vmem:[%s286 + $0x90] sm:$0xff]
      %v1689 = vld [vmem:[%s286 + $0x98] sm:$0xff]
      %v1690 = vld [vmem:[%s286 + $0xa0] sm:$0xff]
      %v1691 = vld [vmem:[%s286 + $0xa8] sm:$0xff]
      %v1692 = vld [vmem:[%s286 + $0xb0] sm:$0xff]
      %v1693 = vld [vmem:[%s286 + $0xb8] sm:$0xff]
      %v1694 = vld [vmem:[%s286 + $0xc0] sm:$0xff]
      %v1695 = vld [vmem:[%s286 + $0xc8] sm:$0xff]
      %v1696 = vld [vmem:[%s286 + $0xd0] sm:$0xff]
      %v1697 = vld [vmem:[%s286 + $0xd8] sm:$0xff]
      %v1698 = vld [vmem:[%s286 + $0xe0] sm:$0xff]
      %v1699 = vld [vmem:[%s286 + $0xe8] sm:$0xff]
      %v1700 = vld [vmem:[%s286 + $0xf0] sm:$0xff]
      %v1701 = vld [vmem:[%s286 + $0xf8] sm:$0xff]
      %v1702 = vld [vmem:[%s286 + $0x100] sm:$0xff]
      %v1703 = vld [vmem:[%s286 + $0x108] sm:$0xff]
      %v1704 = vld [vmem:[%s286 + $0x110] sm:$0xff]
      %v1705 = vld [vmem:[%s286 + $0x118] sm:$0xff]
      %v1706 = vpack.c.bf16 %v1671, %v1670
      %v1707 = vpack.c.bf16 %v1673, %v1672
      %v1708 = vpack.c.bf16 %v1675, %v1674
      %v1709 = vpack.c.bf16 %v1677, %v1676
      %v1710 = vpack.c.bf16 %v1679, %v1678
      %v1711 = vpack.c.bf16 %v1681, %v1680
      %v1712 = vpack.c.bf16 %v1683, %v1682
      %v1713 = vpack.c.bf16 %v1685, %v1684
      %v1714 = vpack.c.bf16 %v1687, %v1686
      %v1715 = vpack.c.bf16 %v1689, %v1688
      %v1716 = vpack.c.bf16 %v1691, %v1690
      %v1717 = vpack.c.bf16 %v1693, %v1692
      %v1718 = vpack.c.bf16 %v1695, %v1694
      %v1719 = vpack.c.bf16 %v1697, %v1696
      %v1720 = vpack.c.bf16 %v1699, %v1698
      %v1721 = vpack.c.bf16 %v1701, %v1700
      %v1722 = vpack.c.bf16 %v1703, %v1702
      %v1723 = vpack.c.bf16 %v1705, %v1704
      %v1724 = vld [vmem:[%s3] sm:$0xf]
      %v1725 = vld [vmem:[%s286 + $0x1] sm:$0xff]
      %v1726 = vld [vmem:[%s286 + $0x9] sm:$0xff]
      %v1727 = vld [vmem:[%s286 + $0x11] sm:$0xff]
      %v1728 = vld [vmem:[%s286 + $0x19] sm:$0xff]
      %v1729 = vld [vmem:[%s286 + $0x21] sm:$0xff]
      %v1730 = vld [vmem:[%s286 + $0x29] sm:$0xff]
      %v1731 = vld [vmem:[%s286 + $0x31] sm:$0xff]
      %v1732 = vld [vmem:[%s286 + $0x39] sm:$0xff]
      %v1733 = vld [vmem:[%s286 + $0x41] sm:$0xff]
      %v1734 = vld [vmem:[%s286 + $0x49] sm:$0xff]
      %v1735 = vld [vmem:[%s286 + $0x51] sm:$0xff]
      %v1736 = vld [vmem:[%s286 + $0x59] sm:$0xff]
      %v1737 = vld [vmem:[%s286 + $0x61] sm:$0xff]
      %v1738 = vld [vmem:[%s286 + $0x69] sm:$0xff]
      %v1739 = vld [vmem:[%s286 + $0x71] sm:$0xff]
      %v1740 = vld [vmem:[%s286 + $0x79] sm:$0xff]
      %v1741 = vld [vmem:[%s286 + $0x81] sm:$0xff]
      %v1742 = vld [vmem:[%s286 + $0x89] sm:$0xff]
      %v1743 = vld [vmem:[%s286 + $0x91] sm:$0xff]
      %v1744 = vld [vmem:[%s286 + $0x99] sm:$0xff]
      %v1745 = vld [vmem:[%s286 + $0xa1] sm:$0xff]
      %v1746 = vld [vmem:[%s286 + $0xa9] sm:$0xff]
      %v1747 = vld [vmem:[%s286 + $0xb1] sm:$0xff]
      %v1748 = vld [vmem:[%s286 + $0xb9] sm:$0xff]
      %v1749 = vld [vmem:[%s286 + $0xc1] sm:$0xff]
      %v1750 = vld [vmem:[%s286 + $0xc9] sm:$0xff]
      %v1751 = vld [vmem:[%s286 + $0xd1] sm:$0xff]
      %v1752 = vld [vmem:[%s286 + $0xd9] sm:$0xff]
      %v1753 = vld [vmem:[%s286 + $0xe1] sm:$0xff]
      %v1754 = vld [vmem:[%s286 + $0xe9] sm:$0xff]
      %v1755 = vld [vmem:[%s286 + $0xf1] sm:$0xff]
      %v1756 = vld [vmem:[%s286 + $0xf9] sm:$0xff]
      %v1757 = vld [vmem:[%s286 + $0x101] sm:$0xff]
      %v1758 = vld [vmem:[%s286 + $0x109] sm:$0xff]
      %v1759 = vld [vmem:[%s286 + $0x111] sm:$0xff]
      %v1760 = vld [vmem:[%s286 + $0x119] sm:$0xff]
      %v1761 = vpack.c.bf16 %v1726, %v1725
      %v1762 = vpack.c.bf16 %v1728, %v1727
      %v1763 = vpack.c.bf16 %v1730, %v1729
      %v1764 = vpack.c.bf16 %v1732, %v1731
      %v1765 = vpack.c.bf16 %v1734, %v1733
      %v1766 = vpack.c.bf16 %v1736, %v1735
      %v1767 = vpack.c.bf16 %v1738, %v1737
      %v1768 = vpack.c.bf16 %v1740, %v1739
      %v1769 = vpack.c.bf16 %v1742, %v1741
      %v1770 = vpack.c.bf16 %v1744, %v1743
      %v1771 = vpack.c.bf16 %v1746, %v1745
      %v1772 = vpack.c.bf16 %v1748, %v1747
      %v1773 = vpack.c.bf16 %v1750, %v1749
      %v1774 = vpack.c.bf16 %v1752, %v1751
      %v1775 = vpack.c.bf16 %v1754, %v1753
      %v1776 = vpack.c.bf16 %v1756, %v1755
      %v1777 = vpack.c.bf16 %v1758, %v1757
      %v1778 = vpack.c.bf16 %v1760, %v1759
      %s1779 = scalar_lea.vmem %s3, 4
      %v1780 = vld [vmem:[%s1779] sm:$0xf]
      %vm1781 = vcmask 64512
      %v1783 = vsel %vm1781, %v1761, 0
      %v1786 = vsel %vm1781, %v1762, 0
      %v1789 = vsel %vm1781, %v1763, 0
      %v1792 = vsel %vm1781, %v1764, 0
      %v1795 = vsel %vm1781, %v1765, 0
      %v1798 = vsel %vm1781, %v1766, 0
      %v1801 = vsel %vm1781, %v1767, 0
      %v1804 = vsel %vm1781, %v1768, 0
      %v1807 = vsel %vm1781, %v1769, 0
      %v1810 = vsel %vm1781, %v1770, 0
      %v1813 = vsel %vm1781, %v1771, 0
      %v1816 = vsel %vm1781, %v1772, 0
      %v1819 = vsel %vm1781, %v1773, 0
      %v1822 = vsel %vm1781, %v1774, 0
      %v1825 = vsel %vm1781, %v1775, 0
      %v1828 = vsel %vm1781, %v1776, 0
      %v1831 = vsel %vm1781, %v1777, 0
      %v1834 = vsel %vm1781, %v1778, 0
      %vm1836 = vcmask 1043456
      %v1838 = vsel %vm1836, %v1780, 0
      %1840 = vmatpush.bf16.msra.mxu0 0
      %1841 = vmatpush.bf16.msra.mxu0 0
      %1842 = vmatpush.bf16.msra.mxu0 0
      %1843 = vmatpush.bf16.msra.mxu0 0
      %1844 = vmatpush.bf16.msra.mxu0 0
      %1845 = vmatpush.bf16.msra.mxu0 0
      %1846 = vmatpush.bf16.msra.mxu0 0
      %1847 = vmatpush.bf16.msra.mxu0 %v1838
      %1848 = vmatmul.bf16.gmra.mxu0 %v1783
      %v1849 = vpop.f32.mrf.mxu0
      %v1850 = vadd.f32 0.0, %v1849
      %v1851 = vpop.f32.mrf.mxu0
      %v1852 = vadd.f32 0.0, %v1851
      %1853 = vmatmul.bf16.gmra.mxu0 %v1786
      %v1854 = vpop.f32.mrf.mxu0
      %v1855 = vadd.f32 0.0, %v1854
      %v1856 = vpop.f32.mrf.mxu0
      %v1857 = vadd.f32 0.0, %v1856
      %1858 = vmatmul.bf16.gmra.mxu0 %v1789
      %v1859 = vpop.f32.mrf.mxu0
      %v1860 = vadd.f32 0.0, %v1859
      %v1861 = vpop.f32.mrf.mxu0
      %v1862 = vadd.f32 0.0, %v1861
      %1863 = vmatmul.bf16.gmra.mxu0 %v1792
      %v1864 = vpop.f32.mrf.mxu0
      %v1865 = vadd.f32 0.0, %v1864
      %v1866 = vpop.f32.mrf.mxu0
      %v1867 = vadd.f32 0.0, %v1866
      %1868 = vmatmul.bf16.gmra.mxu0 %v1795
      %v1869 = vpop.f32.mrf.mxu0
      %v1870 = vadd.f32 0.0, %v1869
      %v1871 = vpop.f32.mrf.mxu0
      %v1872 = vadd.f32 0.0, %v1871
      %1873 = vmatmul.bf16.gmra.mxu0 %v1798
      %v1874 = vpop.f32.mrf.mxu0
      %v1875 = vadd.f32 0.0, %v1874
      %v1876 = vpop.f32.mrf.mxu0
      %v1877 = vadd.f32 0.0, %v1876
      %1878 = vmatmul.bf16.gmra.mxu0 %v1801
      %v1879 = vpop.f32.mrf.mxu0
      %v1880 = vadd.f32 0.0, %v1879
      %v1881 = vpop.f32.mrf.mxu0
      %v1882 = vadd.f32 0.0, %v1881
      %1883 = vmatmul.bf16.gmra.mxu0 %v1804
      %v1884 = vpop.f32.mrf.mxu0
      %v1885 = vadd.f32 0.0, %v1884
      %v1886 = vpop.f32.mrf.mxu0
      %v1887 = vadd.f32 0.0, %v1886
      %1888 = vmatmul.bf16.gmra.mxu0 %v1807
      %v1889 = vpop.f32.mrf.mxu0
      %v1890 = vadd.f32 0.0, %v1889
      %v1891 = vpop.f32.mrf.mxu0
      %v1892 = vadd.f32 0.0, %v1891
      %1893 = vmatmul.bf16.gmra.mxu0 %v1810
      %v1894 = vpop.f32.mrf.mxu0
      %v1895 = vadd.f32 0.0, %v1894
      %v1896 = vpop.f32.mrf.mxu0
      %v1897 = vadd.f32 0.0, %v1896
      %1898 = vmatmul.bf16.gmra.mxu0 %v1813
      %v1899 = vpop.f32.mrf.mxu0
      %v1900 = vadd.f32 0.0, %v1899
      %v1901 = vpop.f32.mrf.mxu0
      %v1902 = vadd.f32 0.0, %v1901
      %1903 = vmatmul.bf16.gmra.mxu0 %v1816
      %v1904 = vpop.f32.mrf.mxu0
      %v1905 = vadd.f32 0.0, %v1904
      %v1906 = vpop.f32.mrf.mxu0
      %v1907 = vadd.f32 0.0, %v1906
      %1908 = vmatmul.bf16.gmra.mxu0 %v1819
      %v1909 = vpop.f32.mrf.mxu0
      %v1910 = vadd.f32 0.0, %v1909
      %v1911 = vpop.f32.mrf.mxu0
      %v1912 = vadd.f32 0.0, %v1911
      %1913 = vmatmul.bf16.gmra.mxu0 %v1822
      %v1914 = vpop.f32.mrf.mxu0
      %v1915 = vadd.f32 0.0, %v1914
      %v1916 = vpop.f32.mrf.mxu0
      %v1917 = vadd.f32 0.0, %v1916
      %1918 = vmatmul.bf16.gmra.mxu0 %v1825
      %v1919 = vpop.f32.mrf.mxu0
      %v1920 = vadd.f32 0.0, %v1919
      %v1921 = vpop.f32.mrf.mxu0
      %v1922 = vadd.f32 0.0, %v1921
      %1923 = vmatmul.bf16.gmra.mxu0 %v1828
      %v1924 = vpop.f32.mrf.mxu0
      %v1925 = vadd.f32 0.0, %v1924
      %v1926 = vpop.f32.mrf.mxu0
      %v1927 = vadd.f32 0.0, %v1926
      %1928 = vmatmul.bf16.gmra.mxu0 %v1831
      %v1929 = vpop.f32.mrf.mxu0
      %v1930 = vadd.f32 0.0, %v1929
      %v1931 = vpop.f32.mrf.mxu0
      %v1932 = vadd.f32 0.0, %v1931
      %1933 = vmatmul.bf16.gmra.mxu0 %v1834
      %v1934 = vpop.f32.mrf.mxu0
      %v1935 = vadd.f32 0.0, %v1934
      %v1936 = vpop.f32.mrf.mxu0
      %v1937 = vadd.f32 0.0, %v1936
      %1938 = vdwg.mxu0
      %v1940 = vsel %vm1781, %v1706, 0
      %v1943 = vsel %vm1781, %v1707, 0
      %v1946 = vsel %vm1781, %v1708, 0
      %v1949 = vsel %vm1781, %v1709, 0
      %v1952 = vsel %vm1781, %v1710, 0
      %v1955 = vsel %vm1781, %v1711, 0
      %v1958 = vsel %vm1781, %v1712, 0
      %v1961 = vsel %vm1781, %v1713, 0
      %v1964 = vsel %vm1781, %v1714, 0
      %v1967 = vsel %vm1781, %v1715, 0
      %v1970 = vsel %vm1781, %v1716, 0
      %v1973 = vsel %vm1781, %v1717, 0
      %v1976 = vsel %vm1781, %v1718, 0
      %v1979 = vsel %vm1781, %v1719, 0
      %v1982 = vsel %vm1781, %v1720, 0
      %v1985 = vsel %vm1781, %v1721, 0
      %v1988 = vsel %vm1781, %v1722, 0
      %v1991 = vsel %vm1781, %v1723, 0
      %v1994 = vsel %vm1836, %v1724, 0
      %1996 = vmatpush.bf16.msra.mxu0 0
      %1997 = vmatpush.bf16.msra.mxu0 0
      %1998 = vmatpush.bf16.msra.mxu0 0
      %1999 = vmatpush.bf16.msra.mxu0 0
      %2000 = vmatpush.bf16.msra.mxu0 0
      %2001 = vmatpush.bf16.msra.mxu0 0
      %2002 = vmatpush.bf16.msra.mxu0 0
      %2003 = vmatpush.bf16.msra.mxu0 %v1994
      %2004 = vmatmul.bf16.gmra.mxu0 %v1940
      %v2005 = vpop.f32.mrf.mxu0
      %v2006 = vadd.f32 %v1850, %v2005
      %v2007 = vpop.f32.mrf.mxu0
      %v2008 = vadd.f32 %v1852, %v2007
      %2009 = vmatmul.bf16.gmra.mxu0 %v1943
      %v2010 = vpop.f32.mrf.mxu0
      %v2011 = vadd.f32 %v1855, %v2010
      %v2012 = vpop.f32.mrf.mxu0
      %v2013 = vadd.f32 %v1857, %v2012
      %2014 = vmatmul.bf16.gmra.mxu0 %v1946
      %v2015 = vpop.f32.mrf.mxu0
      %v2016 = vadd.f32 %v1860, %v2015
      %v2017 = vpop.f32.mrf.mxu0
      %v2018 = vadd.f32 %v1862, %v2017
      %2019 = vmatmul.bf16.gmra.mxu0 %v1949
      %v2020 = vpop.f32.mrf.mxu0
      %v2021 = vadd.f32 %v1865, %v2020
      %v2022 = vpop.f32.mrf.mxu0
      %v2023 = vadd.f32 %v1867, %v2022
      %2024 = vmatmul.bf16.gmra.mxu0 %v1952
      %v2025 = vpop.f32.mrf.mxu0
      %v2026 = vadd.f32 %v1870, %v2025
      %v2027 = vpop.f32.mrf.mxu0
      %v2028 = vadd.f32 %v1872, %v2027
      %2029 = vmatmul.bf16.gmra.mxu0 %v1955
      %v2030 = vpop.f32.mrf.mxu0
      %v2031 = vadd.f32 %v1875, %v2030
      %v2032 = vpop.f32.mrf.mxu0
      %v2033 = vadd.f32 %v1877, %v2032
      %2034 = vmatmul.bf16.gmra.mxu0 %v1958
      %v2035 = vpop.f32.mrf.mxu0
      %v2036 = vadd.f32 %v1880, %v2035
      %v2037 = vpop.f32.mrf.mxu0
      %v2038 = vadd.f32 %v1882, %v2037
      %2039 = vmatmul.bf16.gmra.mxu0 %v1961
      %v2040 = vpop.f32.mrf.mxu0
      %v2041 = vadd.f32 %v1885, %v2040
      %v2042 = vpop.f32.mrf.mxu0
      %v2043 = vadd.f32 %v1887, %v2042
      %2044 = vmatmul.bf16.gmra.mxu0 %v1964
      %v2045 = vpop.f32.mrf.mxu0
      %v2046 = vadd.f32 %v1890, %v2045
      %v2047 = vpop.f32.mrf.mxu0
      %v2048 = vadd.f32 %v1892, %v2047
      %2049 = vmatmul.bf16.gmra.mxu0 %v1967
      %v2050 = vpop.f32.mrf.mxu0
      %v2051 = vadd.f32 %v1895, %v2050
      %v2052 = vpop.f32.mrf.mxu0
      %v2053 = vadd.f32 %v1897, %v2052
      %2054 = vmatmul.bf16.gmra.mxu0 %v1970
      %v2055 = vpop.f32.mrf.mxu0
      %v2056 = vadd.f32 %v1900, %v2055
      %v2057 = vpop.f32.mrf.mxu0
      %v2058 = vadd.f32 %v1902, %v2057
      %2059 = vmatmul.bf16.gmra.mxu0 %v1973
      %v2060 = vpop.f32.mrf.mxu0
      %v2061 = vadd.f32 %v1905, %v2060
      %v2062 = vpop.f32.mrf.mxu0
      %v2063 = vadd.f32 %v1907, %v2062
      %2064 = vmatmul.bf16.gmra.mxu0 %v1976
      %v2065 = vpop.f32.mrf.mxu0
      %v2066 = vadd.f32 %v1910, %v2065
      %v2067 = vpop.f32.mrf.mxu0
      %v2068 = vadd.f32 %v1912, %v2067
      %2069 = vmatmul.bf16.gmra.mxu0 %v1979
      %v2070 = vpop.f32.mrf.mxu0
      %v2071 = vadd.f32 %v1915, %v2070
      %v2072 = vpop.f32.mrf.mxu0
      %v2073 = vadd.f32 %v1917, %v2072
      %2074 = vmatmul.bf16.gmra.mxu0 %v1982
      %v2075 = vpop.f32.mrf.mxu0
      %v2076 = vadd.f32 %v1920, %v2075
      %v2077 = vpop.f32.mrf.mxu0
      %v2078 = vadd.f32 %v1922, %v2077
      %2079 = vmatmul.bf16.gmra.mxu0 %v1985
      %v2080 = vpop.f32.mrf.mxu0
      %v2081 = vadd.f32 %v1925, %v2080
      %v2082 = vpop.f32.mrf.mxu0
      %v2083 = vadd.f32 %v1927, %v2082
      %2084 = vmatmul.bf16.gmra.mxu0 %v1988
      %v2085 = vpop.f32.mrf.mxu0
      %v2086 = vadd.f32 %v1930, %v2085
      %v2087 = vpop.f32.mrf.mxu0
      %v2088 = vadd.f32 %v1932, %v2087
      %2089 = vmatmul.bf16.gmra.mxu0 %v1991
      %v2090 = vpop.f32.mrf.mxu0
      %v2091 = vadd.f32 %v1935, %v2090
      %v2092 = vpop.f32.mrf.mxu0
      %v2093 = vadd.f32 %v1937, %v2092
      %2094 = vdwg.mxu0
      %v2095 = vld [vmem:[%s286 + $0x2] sm:$0xff]
      %v2096 = vld [vmem:[%s286 + $0xa] sm:$0xff]
      %v2097 = vld [vmem:[%s286 + $0x12] sm:$0xff]
      %v2098 = vld [vmem:[%s286 + $0x1a] sm:$0xff]
      %v2099 = vld [vmem:[%s286 + $0x22] sm:$0xff]
      %v2100 = vld [vmem:[%s286 + $0x2a] sm:$0xff]
      %v2101 = vld [vmem:[%s286 + $0x32] sm:$0xff]
      %v2102 = vld [vmem:[%s286 + $0x3a] sm:$0xff]
      %v2103 = vld [vmem:[%s286 + $0x42] sm:$0xff]
      %v2104 = vld [vmem:[%s286 + $0x4a] sm:$0xff]
      %v2105 = vld [vmem:[%s286 + $0x52] sm:$0xff]
      %v2106 = vld [vmem:[%s286 + $0x5a] sm:$0xff]
      %v2107 = vld [vmem:[%s286 + $0x62] sm:$0xff]
      %v2108 = vld [vmem:[%s286 + $0x6a] sm:$0xff]
      %v2109 = vld [vmem:[%s286 + $0x72] sm:$0xff]
      %v2110 = vld [vmem:[%s286 + $0x7a] sm:$0xff]
      %v2111 = vld [vmem:[%s286 + $0x82] sm:$0xff]
      %v2112 = vld [vmem:[%s286 + $0x8a] sm:$0xff]
      %v2113 = vld [vmem:[%s286 + $0x92] sm:$0xff]
      %v2114 = vld [vmem:[%s286 + $0x9a] sm:$0xff]
      %v2115 = vld [vmem:[%s286 + $0xa2] sm:$0xff]
      %v2116 = vld [vmem:[%s286 + $0xaa] sm:$0xff]
      %v2117 = vld [vmem:[%s286 + $0xb2] sm:$0xff]
      %v2118 = vld [vmem:[%s286 + $0xba] sm:$0xff]
      %v2119 = vld [vmem:[%s286 + $0xc2] sm:$0xff]
      %v2120 = vld [vmem:[%s286 + $0xca] sm:$0xff]
      %v2121 = vld [vmem:[%s286 + $0xd2] sm:$0xff]
      %v2122 = vld [vmem:[%s286 + $0xda] sm:$0xff]
      %v2123 = vld [vmem:[%s286 + $0xe2] sm:$0xff]
      %v2124 = vld [vmem:[%s286 + $0xea] sm:$0xff]
      %v2125 = vld [vmem:[%s286 + $0xf2] sm:$0xff]
      %v2126 = vld [vmem:[%s286 + $0xfa] sm:$0xff]
      %v2127 = vld [vmem:[%s286 + $0x102] sm:$0xff]
      %v2128 = vld [vmem:[%s286 + $0x10a] sm:$0xff]
      %v2129 = vld [vmem:[%s286 + $0x112] sm:$0xff]
      %v2130 = vld [vmem:[%s286 + $0x11a] sm:$0xff]
      %v2131 = vpack.c.bf16 %v2096, %v2095
      %v2132 = vpack.c.bf16 %v2098, %v2097
      %v2133 = vpack.c.bf16 %v2100, %v2099
      %v2134 = vpack.c.bf16 %v2102, %v2101
      %v2135 = vpack.c.bf16 %v2104, %v2103
      %v2136 = vpack.c.bf16 %v2106, %v2105
      %v2137 = vpack.c.bf16 %v2108, %v2107
      %v2138 = vpack.c.bf16 %v2110, %v2109
      %v2139 = vpack.c.bf16 %v2112, %v2111
      %v2140 = vpack.c.bf16 %v2114, %v2113
      %v2141 = vpack.c.bf16 %v2116, %v2115
      %v2142 = vpack.c.bf16 %v2118, %v2117
      %v2143 = vpack.c.bf16 %v2120, %v2119
      %v2144 = vpack.c.bf16 %v2122, %v2121
      %v2145 = vpack.c.bf16 %v2124, %v2123
      %v2146 = vpack.c.bf16 %v2126, %v2125
      %v2147 = vpack.c.bf16 %v2128, %v2127
      %v2148 = vpack.c.bf16 %v2130, %v2129
      %s2149 = scalar_lea.vmem %s3, 8
      %v2150 = vld [vmem:[%s2149] sm:$0xf]
      %v2152 = vsel %vm1781, %v2131, 0
      %v2155 = vsel %vm1781, %v2132, 0
      %v2158 = vsel %vm1781, %v2133, 0
      %v2161 = vsel %vm1781, %v2134, 0
      %v2164 = vsel %vm1781, %v2135, 0
      %v2167 = vsel %vm1781, %v2136, 0
      %v2170 = vsel %vm1781, %v2137, 0
      %v2173 = vsel %vm1781, %v2138, 0
      %v2176 = vsel %vm1781, %v2139, 0
      %v2179 = vsel %vm1781, %v2140, 0
      %v2182 = vsel %vm1781, %v2141, 0
      %v2185 = vsel %vm1781, %v2142, 0
      %v2188 = vsel %vm1781, %v2143, 0
      %v2191 = vsel %vm1781, %v2144, 0
      %v2194 = vsel %vm1781, %v2145, 0
      %v2197 = vsel %vm1781, %v2146, 0
      %v2200 = vsel %vm1781, %v2147, 0
      %v2203 = vsel %vm1781, %v2148, 0
      %v2206 = vsel %vm1836, %v2150, 0
      %2208 = vmatpush.bf16.msra.mxu0 0
      %2209 = vmatpush.bf16.msra.mxu0 0
      %2210 = vmatpush.bf16.msra.mxu0 0
      %2211 = vmatpush.bf16.msra.mxu0 0
      %2212 = vmatpush.bf16.msra.mxu0 0
      %2213 = vmatpush.bf16.msra.mxu0 0
      %2214 = vmatpush.bf16.msra.mxu0 0
      %2215 = vmatpush.bf16.msra.mxu0 %v2206
      %2216 = vmatmul.bf16.gmra.mxu0 %v2152
      %v2217 = vpop.f32.mrf.mxu0
      %v2218 = vadd.f32 0.0, %v2217
      %v2219 = vpop.f32.mrf.mxu0
      %v2220 = vadd.f32 0.0, %v2219
      %2221 = vmatmul.bf16.gmra.mxu0 %v2155
      %v2222 = vpop.f32.mrf.mxu0
      %v2223 = vadd.f32 0.0, %v2222
      %v2224 = vpop.f32.mrf.mxu0
      %v2225 = vadd.f32 0.0, %v2224
      %2226 = vmatmul.bf16.gmra.mxu0 %v2158
      %v2227 = vpop.f32.mrf.mxu0
      %v2228 = vadd.f32 0.0, %v2227
      %v2229 = vpop.f32.mrf.mxu0
      %v2230 = vadd.f32 0.0, %v2229
      %2231 = vmatmul.bf16.gmra.mxu0 %v2161
      %v2232 = vpop.f32.mrf.mxu0
      %v2233 = vadd.f32 0.0, %v2232
      %v2234 = vpop.f32.mrf.mxu0
      %v2235 = vadd.f32 0.0, %v2234
      %2236 = vmatmul.bf16.gmra.mxu0 %v2164
      %v2237 = vpop.f32.mrf.mxu0
      %v2238 = vadd.f32 0.0, %v2237
      %v2239 = vpop.f32.mrf.mxu0
      %v2240 = vadd.f32 0.0, %v2239
      %2241 = vmatmul.bf16.gmra.mxu0 %v2167
      %v2242 = vpop.f32.mrf.mxu0
      %v2243 = vadd.f32 0.0, %v2242
      %v2244 = vpop.f32.mrf.mxu0
      %v2245 = vadd.f32 0.0, %v2244
      %2246 = vmatmul.bf16.gmra.mxu0 %v2170
      %v2247 = vpop.f32.mrf.mxu0
      %v2248 = vadd.f32 0.0, %v2247
      %v2249 = vpop.f32.mrf.mxu0
      %v2250 = vadd.f32 0.0, %v2249
      %2251 = vmatmul.bf16.gmra.mxu0 %v2173
      %v2252 = vpop.f32.mrf.mxu0
      %v2253 = vadd.f32 0.0, %v2252
      %v2254 = vpop.f32.mrf.mxu0
      %v2255 = vadd.f32 0.0, %v2254
      %2256 = vmatmul.bf16.gmra.mxu0 %v2176
      %v2257 = vpop.f32.mrf.mxu0
      %v2258 = vadd.f32 0.0, %v2257
      %v2259 = vpop.f32.mrf.mxu0
      %v2260 = vadd.f32 0.0, %v2259
      %2261 = vmatmul.bf16.gmra.mxu0 %v2179
      %v2262 = vpop.f32.mrf.mxu0
      %v2263 = vadd.f32 0.0, %v2262
      %v2264 = vpop.f32.mrf.mxu0
      %v2265 = vadd.f32 0.0, %v2264
      %2266 = vmatmul.bf16.gmra.mxu0 %v2182
      %v2267 = vpop.f32.mrf.mxu0
      %v2268 = vadd.f32 0.0, %v2267
      %v2269 = vpop.f32.mrf.mxu0
      %v2270 = vadd.f32 0.0, %v2269
      %2271 = vmatmul.bf16.gmra.mxu0 %v2185
      %v2272 = vpop.f32.mrf.mxu0
      %v2273 = vadd.f32 0.0, %v2272
      %v2274 = vpop.f32.mrf.mxu0
      %v2275 = vadd.f32 0.0, %v2274
      %2276 = vmatmul.bf16.gmra.mxu0 %v2188
      %v2277 = vpop.f32.mrf.mxu0
      %v2278 = vadd.f32 0.0, %v2277
      %v2279 = vpop.f32.mrf.mxu0
      %v2280 = vadd.f32 0.0, %v2279
      %2281 = vmatmul.bf16.gmra.mxu0 %v2191
      %v2282 = vpop.f32.mrf.mxu0
      %v2283 = vadd.f32 0.0, %v2282
      %v2284 = vpop.f32.mrf.mxu0
      %v2285 = vadd.f32 0.0, %v2284
      %2286 = vmatmul.bf16.gmra.mxu0 %v2194
      %v2287 = vpop.f32.mrf.mxu0
      %v2288 = vadd.f32 0.0, %v2287
      %v2289 = vpop.f32.mrf.mxu0
      %v2290 = vadd.f32 0.0, %v2289
      %2291 = vmatmul.bf16.gmra.mxu0 %v2197
      %v2292 = vpop.f32.mrf.mxu0
      %v2293 = vadd.f32 0.0, %v2292
      %v2294 = vpop.f32.mrf.mxu0
      %v2295 = vadd.f32 0.0, %v2294
      %2296 = vmatmul.bf16.gmra.mxu0 %v2200
      %v2297 = vpop.f32.mrf.mxu0
      %v2298 = vadd.f32 0.0, %v2297
      %v2299 = vpop.f32.mrf.mxu0
      %v2300 = vadd.f32 0.0, %v2299
      %2301 = vmatmul.bf16.gmra.mxu0 %v2203
      %v2302 = vpop.f32.mrf.mxu0
      %v2303 = vadd.f32 0.0, %v2302
      %v2304 = vpop.f32.mrf.mxu0
      %v2305 = vadd.f32 0.0, %v2304
      %2306 = vdwg.mxu0
      %v2307 = vadd.f32 %v2006, %v2218
      %v2308 = vadd.f32 %v2008, %v2220
      %v2309 = vadd.f32 %v2011, %v2223
      %v2310 = vadd.f32 %v2013, %v2225
      %v2311 = vadd.f32 %v2016, %v2228
      %v2312 = vadd.f32 %v2018, %v2230
      %v2313 = vadd.f32 %v2021, %v2233
      %v2314 = vadd.f32 %v2023, %v2235
      %v2315 = vadd.f32 %v2026, %v2238
      %v2316 = vadd.f32 %v2028, %v2240
      %v2317 = vadd.f32 %v2031, %v2243
      %v2318 = vadd.f32 %v2033, %v2245
      %v2319 = vadd.f32 %v2036, %v2248
      %v2320 = vadd.f32 %v2038, %v2250
      %v2321 = vadd.f32 %v2041, %v2253
      %v2322 = vadd.f32 %v2043, %v2255
      %v2323 = vadd.f32 %v2046, %v2258
      %v2324 = vadd.f32 %v2048, %v2260
      %v2325 = vadd.f32 %v2051, %v2263
      %v2326 = vadd.f32 %v2053, %v2265
      %v2327 = vadd.f32 %v2056, %v2268
      %v2328 = vadd.f32 %v2058, %v2270
      %v2329 = vadd.f32 %v2061, %v2273
      %v2330 = vadd.f32 %v2063, %v2275
      %v2331 = vadd.f32 %v2066, %v2278
      %v2332 = vadd.f32 %v2068, %v2280
      %v2333 = vadd.f32 %v2071, %v2283
      %v2334 = vadd.f32 %v2073, %v2285
      %v2335 = vadd.f32 %v2076, %v2288
      %v2336 = vadd.f32 %v2078, %v2290
      %v2337 = vadd.f32 %v2081, %v2293
      %v2338 = vadd.f32 %v2083, %v2295
      %v2339 = vadd.f32 %v2086, %v2298
      %v2340 = vadd.f32 %v2088, %v2300
      %v2341 = vadd.f32 %v2091, %v2303
      %v2342 = vadd.f32 %v2093, %v2305
      %v2343 = vld [vmem:[%s286 + $0x12] sm:$0xff]
      %v2344 = vld [vmem:[%s286 + $0x1a] sm:$0xff]
      %v2345 = vld [vmem:[%s286 + $0x22] sm:$0xff]
      %v2346 = vld [vmem:[%s286 + $0x2a] sm:$0xff]
      %v2347 = vld [vmem:[%s286 + $0x32] sm:$0xff]
      %v2348 = vld [vmem:[%s286 + $0x3a] sm:$0xff]
      %v2349 = vld [vmem:[%s286 + $0x42] sm:$0xff]
      %v2350 = vld [vmem:[%s286 + $0x4a] sm:$0xff]
      %v2351 = vld [vmem:[%s286 + $0x52] sm:$0xff]
      %v2352 = vld [vmem:[%s286 + $0x5a] sm:$0xff]
      %v2353 = vld [vmem:[%s286 + $0x62] sm:$0xff]
      %v2354 = vld [vmem:[%s286 + $0x6a] sm:$0xff]
      %v2355 = vld [vmem:[%s286 + $0x72] sm:$0xff]
      %v2356 = vld [vmem:[%s286 + $0x7a] sm:$0xff]
      %v2357 = vld [vmem:[%s286 + $0x82] sm:$0xff]
      %v2358 = vld [vmem:[%s286 + $0x8a] sm:$0xff]
      %v2359 = vld [vmem:[%s286 + $0x92] sm:$0xff]
      %v2360 = vld [vmem:[%s286 + $0x9a] sm:$0xff]
      %v2361 = vld [vmem:[%s286 + $0xa2] sm:$0xff]
      %v2362 = vld [vmem:[%s286 + $0xaa] sm:$0xff]
      %v2363 = vld [vmem:[%s286 + $0xb2] sm:$0xff]
      %v2364 = vld [vmem:[%s286 + $0xba] sm:$0xff]
      %v2365 = vld [vmem:[%s286 + $0xc2] sm:$0xff]
      %v2366 = vld [vmem:[%s286 + $0xca] sm:$0xff]
      %v2367 = vld [vmem:[%s286 + $0xd2] sm:$0xff]
      %v2368 = vld [vmem:[%s286 + $0xda] sm:$0xff]
      %v2369 = vld [vmem:[%s286 + $0xe2] sm:$0xff]
      %v2370 = vld [vmem:[%s286 + $0xea] sm:$0xff]
      %v2371 = vld [vmem:[%s286 + $0xf2] sm:$0xff]
      %v2372 = vld [vmem:[%s286 + $0xfa] sm:$0xff]
      %v2373 = vld [vmem:[%s286 + $0x102] sm:$0xff]
      %v2374 = vld [vmem:[%s286 + $0x10a] sm:$0xff]
      %v2375 = vld [vmem:[%s286 + $0x112] sm:$0xff]
      %v2376 = vld [vmem:[%s286 + $0x11a] sm:$0xff]
      %v2377 = vld [vmem:[%s286 + $0x122] sm:$0xff]
      %v2378 = vld [vmem:[%s286 + $0x12a] sm:$0xff]
      %v2379 = vpack.c.bf16 %v2344, %v2343
      %v2380 = vpack.c.bf16 %v2346, %v2345
      %v2381 = vpack.c.bf16 %v2348, %v2347
      %v2382 = vpack.c.bf16 %v2350, %v2349
      %v2383 = vpack.c.bf16 %v2352, %v2351
      %v2384 = vpack.c.bf16 %v2354, %v2353
      %v2385 = vpack.c.bf16 %v2356, %v2355
      %v2386 = vpack.c.bf16 %v2358, %v2357
      %v2387 = vpack.c.bf16 %v2360, %v2359
      %v2388 = vpack.c.bf16 %v2362, %v2361
      %v2389 = vpack.c.bf16 %v2364, %v2363
      %v2390 = vpack.c.bf16 %v2366, %v2365
      %v2391 = vpack.c.bf16 %v2368, %v2367
      %v2392 = vpack.c.bf16 %v2370, %v2369
      %v2393 = vpack.c.bf16 %v2372, %v2371
      %v2394 = vpack.c.bf16 %v2374, %v2373
      %v2395 = vpack.c.bf16 %v2376, %v2375
      %v2396 = vpack.c.bf16 %v2378, %v2377
      %s2397 = scalar_lea.vmem %s3, 12
      %v2398 = vld [vmem:[%s2397] sm:$0xf]
      %v2400 = vsel %vm1781, %v2379, 0
      %v2403 = vsel %vm1781, %v2380, 0
      %v2406 = vsel %vm1781, %v2381, 0
      %v2409 = vsel %vm1781, %v2382, 0
      %v2412 = vsel %vm1781, %v2383, 0
      %v2415 = vsel %vm1781, %v2384, 0
      %v2418 = vsel %vm1781, %v2385, 0
      %v2421 = vsel %vm1781, %v2386, 0
      %v2424 = vsel %vm1781, %v2387, 0
      %v2427 = vsel %vm1781, %v2388, 0
      %v2430 = vsel %vm1781, %v2389, 0
      %v2433 = vsel %vm1781, %v2390, 0
      %v2436 = vsel %vm1781, %v2391, 0
      %v2439 = vsel %vm1781, %v2392, 0
      %v2442 = vsel %vm1781, %v2393, 0
      %v2445 = vsel %vm1781, %v2394, 0
      %v2448 = vsel %vm1781, %v2395, 0
      %v2451 = vsel %vm1781, %v2396, 0
      %v2454 = vsel %vm1836, %v2398, 0
      %2456 = vmatpush.bf16.msra.mxu0 0
      %2457 = vmatpush.bf16.msra.mxu0 0
      %2458 = vmatpush.bf16.msra.mxu0 0
      %2459 = vmatpush.bf16.msra.mxu0 0
      %2460 = vmatpush.bf16.msra.mxu0 0
      %2461 = vmatpush.bf16.msra.mxu0 0
      %2462 = vmatpush.bf16.msra.mxu0 0
      %2463 = vmatpush.bf16.msra.mxu0 %v2454
      %2464 = vmatmul.bf16.gmra.mxu0 %v2400
      %v2465 = vpop.f32.mrf.mxu0
      %v2466 = vadd.f32 0.0, %v2465
      %v2467 = vpop.f32.mrf.mxu0
      %v2468 = vadd.f32 0.0, %v2467
      %2469 = vmatmul.bf16.gmra.mxu0 %v2403
      %v2470 = vpop.f32.mrf.mxu0
      %v2471 = vadd.f32 0.0, %v2470
      %v2472 = vpop.f32.mrf.mxu0
      %v2473 = vadd.f32 0.0, %v2472
      %2474 = vmatmul.bf16.gmra.mxu0 %v2406
      %v2475 = vpop.f32.mrf.mxu0
      %v2476 = vadd.f32 0.0, %v2475
      %v2477 = vpop.f32.mrf.mxu0
      %v2478 = vadd.f32 0.0, %v2477
      %2479 = vmatmul.bf16.gmra.mxu0 %v2409
      %v2480 = vpop.f32.mrf.mxu0
      %v2481 = vadd.f32 0.0, %v2480
      %v2482 = vpop.f32.mrf.mxu0
      %v2483 = vadd.f32 0.0, %v2482
      %2484 = vmatmul.bf16.gmra.mxu0 %v2412
      %v2485 = vpop.f32.mrf.mxu0
      %v2486 = vadd.f32 0.0, %v2485
      %v2487 = vpop.f32.mrf.mxu0
      %v2488 = vadd.f32 0.0, %v2487
      %2489 = vmatmul.bf16.gmra.mxu0 %v2415
      %v2490 = vpop.f32.mrf.mxu0
      %v2491 = vadd.f32 0.0, %v2490
      %v2492 = vpop.f32.mrf.mxu0
      %v2493 = vadd.f32 0.0, %v2492
      %2494 = vmatmul.bf16.gmra.mxu0 %v2418
      %v2495 = vpop.f32.mrf.mxu0
      %v2496 = vadd.f32 0.0, %v2495
      %v2497 = vpop.f32.mrf.mxu0
      %v2498 = vadd.f32 0.0, %v2497
      %2499 = vmatmul.bf16.gmra.mxu0 %v2421
      %v2500 = vpop.f32.mrf.mxu0
      %v2501 = vadd.f32 0.0, %v2500
      %v2502 = vpop.f32.mrf.mxu0
      %v2503 = vadd.f32 0.0, %v2502
      %2504 = vmatmul.bf16.gmra.mxu0 %v2424
      %v2505 = vpop.f32.mrf.mxu0
      %v2506 = vadd.f32 0.0, %v2505
      %v2507 = vpop.f32.mrf.mxu0
      %v2508 = vadd.f32 0.0, %v2507
      %2509 = vmatmul.bf16.gmra.mxu0 %v2427
      %v2510 = vpop.f32.mrf.mxu0
      %v2511 = vadd.f32 0.0, %v2510
      %v2512 = vpop.f32.mrf.mxu0
      %v2513 = vadd.f32 0.0, %v2512
      %2514 = vmatmul.bf16.gmra.mxu0 %v2430
      %v2515 = vpop.f32.mrf.mxu0
      %v2516 = vadd.f32 0.0, %v2515
      %v2517 = vpop.f32.mrf.mxu0
      %v2518 = vadd.f32 0.0, %v2517
      %2519 = vmatmul.bf16.gmra.mxu0 %v2433
      %v2520 = vpop.f32.mrf.mxu0
      %v2521 = vadd.f32 0.0, %v2520
      %v2522 = vpop.f32.mrf.mxu0
      %v2523 = vadd.f32 0.0, %v2522
      %2524 = vmatmul.bf16.gmra.mxu0 %v2436
      %v2525 = vpop.f32.mrf.mxu0
      %v2526 = vadd.f32 0.0, %v2525
      %v2527 = vpop.f32.mrf.mxu0
      %v2528 = vadd.f32 0.0, %v2527
      %2529 = vmatmul.bf16.gmra.mxu0 %v2439
      %v2530 = vpop.f32.mrf.mxu0
      %v2531 = vadd.f32 0.0, %v2530
      %v2532 = vpop.f32.mrf.mxu0
      %v2533 = vadd.f32 0.0, %v2532
      %2534 = vmatmul.bf16.gmra.mxu0 %v2442
      %v2535 = vpop.f32.mrf.mxu0
      %v2536 = vadd.f32 0.0, %v2535
      %v2537 = vpop.f32.mrf.mxu0
      %v2538 = vadd.f32 0.0, %v2537
      %2539 = vmatmul.bf16.gmra.mxu0 %v2445
      %v2540 = vpop.f32.mrf.mxu0
      %v2541 = vadd.f32 0.0, %v2540
      %v2542 = vpop.f32.mrf.mxu0
      %v2543 = vadd.f32 0.0, %v2542
      %2544 = vmatmul.bf16.gmra.mxu0 %v2448
      %v2545 = vpop.f32.mrf.mxu0
      %v2546 = vadd.f32 0.0, %v2545
      %v2547 = vpop.f32.mrf.mxu0
      %v2548 = vadd.f32 0.0, %v2547
      %2549 = vmatmul.bf16.gmra.mxu0 %v2451
      %v2550 = vpop.f32.mrf.mxu0
      %v2551 = vadd.f32 0.0, %v2550
      %v2552 = vpop.f32.mrf.mxu0
      %v2553 = vadd.f32 0.0, %v2552
      %2554 = vdwg.mxu0
      %v2555 = vadd.f32 %v2307, %v2466
      %v2556 = vadd.f32 %v2308, %v2468
      %v2557 = vadd.f32 %v2309, %v2471
      %v2558 = vadd.f32 %v2310, %v2473
      %v2559 = vadd.f32 %v2311, %v2476
      %v2560 = vadd.f32 %v2312, %v2478
      %v2561 = vadd.f32 %v2313, %v2481
      %v2562 = vadd.f32 %v2314, %v2483
      %v2563 = vadd.f32 %v2315, %v2486
      %v2564 = vadd.f32 %v2316, %v2488
      %v2565 = vadd.f32 %v2317, %v2491
      %v2566 = vadd.f32 %v2318, %v2493
      %v2567 = vadd.f32 %v2319, %v2496
      %v2568 = vadd.f32 %v2320, %v2498
      %v2569 = vadd.f32 %v2321, %v2501
      %v2570 = vadd.f32 %v2322, %v2503
      %v2571 = vadd.f32 %v2323, %v2506
      %v2572 = vadd.f32 %v2324, %v2508
      %v2573 = vadd.f32 %v2325, %v2511
      %v2574 = vadd.f32 %v2326, %v2513
      %v2575 = vadd.f32 %v2327, %v2516
      %v2576 = vadd.f32 %v2328, %v2518
      %v2577 = vadd.f32 %v2329, %v2521
      %v2578 = vadd.f32 %v2330, %v2523
      %v2579 = vadd.f32 %v2331, %v2526
      %v2580 = vadd.f32 %v2332, %v2528
      %v2581 = vadd.f32 %v2333, %v2531
      %v2582 = vadd.f32 %v2334, %v2533
      %v2583 = vadd.f32 %v2335, %v2536
      %v2584 = vadd.f32 %v2336, %v2538
      %v2585 = vadd.f32 %v2337, %v2541
      %v2586 = vadd.f32 %v2338, %v2543
      %v2587 = vadd.f32 %v2339, %v2546
      %v2588 = vadd.f32 %v2340, %v2548
      %v2589 = vadd.f32 %v2341, %v2551
      %v2590 = vadd.f32 %v2342, %v2553
      %v2591 = vld [vmem:[%s286 + $0x13] sm:$0xff]
      %v2592 = vld [vmem:[%s286 + $0x1b] sm:$0xff]
      %v2593 = vld [vmem:[%s286 + $0x23] sm:$0xff]
      %v2594 = vld [vmem:[%s286 + $0x2b] sm:$0xff]
      %v2595 = vld [vmem:[%s286 + $0x33] sm:$0xff]
      %v2596 = vld [vmem:[%s286 + $0x3b] sm:$0xff]
      %v2597 = vld [vmem:[%s286 + $0x43] sm:$0xff]
      %v2598 = vld [vmem:[%s286 + $0x4b] sm:$0xff]
      %v2599 = vld [vmem:[%s286 + $0x53] sm:$0xff]
      %v2600 = vld [vmem:[%s286 + $0x5b] sm:$0xff]
      %v2601 = vld [vmem:[%s286 + $0x63] sm:$0xff]
      %v2602 = vld [vmem:[%s286 + $0x6b] sm:$0xff]
      %v2603 = vld [vmem:[%s286 + $0x73] sm:$0xff]
      %v2604 = vld [vmem:[%s286 + $0x7b] sm:$0xff]
      %v2605 = vld [vmem:[%s286 + $0x83] sm:$0xff]
      %v2606 = vld [vmem:[%s286 + $0x8b] sm:$0xff]
      %v2607 = vld [vmem:[%s286 + $0x93] sm:$0xff]
      %v2608 = vld [vmem:[%s286 + $0x9b] sm:$0xff]
      %v2609 = vld [vmem:[%s286 + $0xa3] sm:$0xff]
      %v2610 = vld [vmem:[%s286 + $0xab] sm:$0xff]
      %v2611 = vld [vmem:[%s286 + $0xb3] sm:$0xff]
      %v2612 = vld [vmem:[%s286 + $0xbb] sm:$0xff]
      %v2613 = vld [vmem:[%s286 + $0xc3] sm:$0xff]
      %v2614 = vld [vmem:[%s286 + $0xcb] sm:$0xff]
      %v2615 = vld [vmem:[%s286 + $0xd3] sm:$0xff]
      %v2616 = vld [vmem:[%s286 + $0xdb] sm:$0xff]
      %v2617 = vld [vmem:[%s286 + $0xe3] sm:$0xff]
      %v2618 = vld [vmem:[%s286 + $0xeb] sm:$0xff]
      %v2619 = vld [vmem:[%s286 + $0xf3] sm:$0xff]
      %v2620 = vld [vmem:[%s286 + $0xfb] sm:$0xff]
      %v2621 = vld [vmem:[%s286 + $0x103] sm:$0xff]
      %v2622 = vld [vmem:[%s286 + $0x10b] sm:$0xff]
      %v2623 = vld [vmem:[%s286 + $0x113] sm:$0xff]
      %v2624 = vld [vmem:[%s286 + $0x11b] sm:$0xff]
      %v2625 = vld [vmem:[%s286 + $0x123] sm:$0xff]
      %v2626 = vld [vmem:[%s286 + $0x12b] sm:$0xff]
      %v2627 = vpack.c.bf16 %v2592, %v2591
      %v2628 = vpack.c.bf16 %v2594, %v2593
      %v2629 = vpack.c.bf16 %v2596, %v2595
      %v2630 = vpack.c.bf16 %v2598, %v2597
      %v2631 = vpack.c.bf16 %v2600, %v2599
      %v2632 = vpack.c.bf16 %v2602, %v2601
      %v2633 = vpack.c.bf16 %v2604, %v2603
      %v2634 = vpack.c.bf16 %v2606, %v2605
      %v2635 = vpack.c.bf16 %v2608, %v2607
      %v2636 = vpack.c.bf16 %v2610, %v2609
      %v2637 = vpack.c.bf16 %v2612, %v2611
      %v2638 = vpack.c.bf16 %v2614, %v2613
      %v2639 = vpack.c.bf16 %v2616, %v2615
      %v2640 = vpack.c.bf16 %v2618, %v2617
      %v2641 = vpack.c.bf16 %v2620, %v2619
      %v2642 = vpack.c.bf16 %v2622, %v2621
      %v2643 = vpack.c.bf16 %v2624, %v2623
      %v2644 = vpack.c.bf16 %v2626, %v2625
      %s2645 = scalar_lea.vmem %s3, 16
      %v2646 = vld [vmem:[%s2645] sm:$0xf]
      %v2648 = vsel %vm1781, %v2627, 0
      %v2651 = vsel %vm1781, %v2628, 0
      %v2654 = vsel %vm1781, %v2629, 0
      %v2657 = vsel %vm1781, %v2630, 0
      %v2660 = vsel %vm1781, %v2631, 0
      %v2663 = vsel %vm1781, %v2632, 0
      %v2666 = vsel %vm1781, %v2633, 0
      %v2669 = vsel %vm1781, %v2634, 0
      %v2672 = vsel %vm1781, %v2635, 0
      %v2675 = vsel %vm1781, %v2636, 0
      %v2678 = vsel %vm1781, %v2637, 0
      %v2681 = vsel %vm1781, %v2638, 0
      %v2684 = vsel %vm1781, %v2639, 0
      %v2687 = vsel %vm1781, %v2640, 0
      %v2690 = vsel %vm1781, %v2641, 0
      %v2693 = vsel %vm1781, %v2642, 0
      %v2696 = vsel %vm1781, %v2643, 0
      %v2699 = vsel %vm1781, %v2644, 0
      %v2702 = vsel %vm1836, %v2646, 0
      %2704 = vmatpush.bf16.msra.mxu0 0
      %2705 = vmatpush.bf16.msra.mxu0 0
      %2706 = vmatpush.bf16.msra.mxu0 0
      %2707 = vmatpush.bf16.msra.mxu0 0
      %2708 = vmatpush.bf16.msra.mxu0 0
      %2709 = vmatpush.bf16.msra.mxu0 0
      %2710 = vmatpush.bf16.msra.mxu0 0
      %2711 = vmatpush.bf16.msra.mxu0 %v2702
      %2712 = vmatmul.bf16.gmra.mxu0 %v2648
      %v2713 = vpop.f32.mrf.mxu0
      %v2714 = vadd.f32 0.0, %v2713
      %v2715 = vpop.f32.mrf.mxu0
      %v2716 = vadd.f32 0.0, %v2715
      %2717 = vmatmul.bf16.gmra.mxu0 %v2651
      %v2718 = vpop.f32.mrf.mxu0
      %v2719 = vadd.f32 0.0, %v2718
      %v2720 = vpop.f32.mrf.mxu0
      %v2721 = vadd.f32 0.0, %v2720
      %2722 = vmatmul.bf16.gmra.mxu0 %v2654
      %v2723 = vpop.f32.mrf.mxu0
      %v2724 = vadd.f32 0.0, %v2723
      %v2725 = vpop.f32.mrf.mxu0
      %v2726 = vadd.f32 0.0, %v2725
      %2727 = vmatmul.bf16.gmra.mxu0 %v2657
      %v2728 = vpop.f32.mrf.mxu0
      %v2729 = vadd.f32 0.0, %v2728
      %v2730 = vpop.f32.mrf.mxu0
      %v2731 = vadd.f32 0.0, %v2730
      %2732 = vmatmul.bf16.gmra.mxu0 %v2660
      %v2733 = vpop.f32.mrf.mxu0
      %v2734 = vadd.f32 0.0, %v2733
      %v2735 = vpop.f32.mrf.mxu0
      %v2736 = vadd.f32 0.0, %v2735
      %2737 = vmatmul.bf16.gmra.mxu0 %v2663
      %v2738 = vpop.f32.mrf.mxu0
      %v2739 = vadd.f32 0.0, %v2738
      %v2740 = vpop.f32.mrf.mxu0
      %v2741 = vadd.f32 0.0, %v2740
      %2742 = vmatmul.bf16.gmra.mxu0 %v2666
      %v2743 = vpop.f32.mrf.mxu0
      %v2744 = vadd.f32 0.0, %v2743
      %v2745 = vpop.f32.mrf.mxu0
      %v2746 = vadd.f32 0.0, %v2745
      %2747 = vmatmul.bf16.gmra.mxu0 %v2669
      %v2748 = vpop.f32.mrf.mxu0
      %v2749 = vadd.f32 0.0, %v2748
      %v2750 = vpop.f32.mrf.mxu0
      %v2751 = vadd.f32 0.0, %v2750
      %2752 = vmatmul.bf16.gmra.mxu0 %v2672
      %v2753 = vpop.f32.mrf.mxu0
      %v2754 = vadd.f32 0.0, %v2753
      %v2755 = vpop.f32.mrf.mxu0
      %v2756 = vadd.f32 0.0, %v2755
      %2757 = vmatmul.bf16.gmra.mxu0 %v2675
      %v2758 = vpop.f32.mrf.mxu0
      %v2759 = vadd.f32 0.0, %v2758
      %v2760 = vpop.f32.mrf.mxu0
      %v2761 = vadd.f32 0.0, %v2760
      %2762 = vmatmul.bf16.gmra.mxu0 %v2678
      %v2763 = vpop.f32.mrf.mxu0
      %v2764 = vadd.f32 0.0, %v2763
      %v2765 = vpop.f32.mrf.mxu0
      %v2766 = vadd.f32 0.0, %v2765
      %2767 = vmatmul.bf16.gmra.mxu0 %v2681
      %v2768 = vpop.f32.mrf.mxu0
      %v2769 = vadd.f32 0.0, %v2768
      %v2770 = vpop.f32.mrf.mxu0
      %v2771 = vadd.f32 0.0, %v2770
      %2772 = vmatmul.bf16.gmra.mxu0 %v2684
      %v2773 = vpop.f32.mrf.mxu0
      %v2774 = vadd.f32 0.0, %v2773
      %v2775 = vpop.f32.mrf.mxu0
      %v2776 = vadd.f32 0.0, %v2775
      %2777 = vmatmul.bf16.gmra.mxu0 %v2687
      %v2778 = vpop.f32.mrf.mxu0
      %v2779 = vadd.f32 0.0, %v2778
      %v2780 = vpop.f32.mrf.mxu0
      %v2781 = vadd.f32 0.0, %v2780
      %2782 = vmatmul.bf16.gmra.mxu0 %v2690
      %v2783 = vpop.f32.mrf.mxu0
      %v2784 = vadd.f32 0.0, %v2783
      %v2785 = vpop.f32.mrf.mxu0
      %v2786 = vadd.f32 0.0, %v2785
      %2787 = vmatmul.bf16.gmra.mxu0 %v2693
      %v2788 = vpop.f32.mrf.mxu0
      %v2789 = vadd.f32 0.0, %v2788
      %v2790 = vpop.f32.mrf.mxu0
      %v2791 = vadd.f32 0.0, %v2790
      %2792 = vmatmul.bf16.gmra.mxu0 %v2696
      %v2793 = vpop.f32.mrf.mxu0
      %v2794 = vadd.f32 0.0, %v2793
      %v2795 = vpop.f32.mrf.mxu0
      %v2796 = vadd.f32 0.0, %v2795
      %2797 = vmatmul.bf16.gmra.mxu0 %v2699
      %v2798 = vpop.f32.mrf.mxu0
      %v2799 = vadd.f32 0.0, %v2798
      %v2800 = vpop.f32.mrf.mxu0
      %v2801 = vadd.f32 0.0, %v2800
      %2802 = vdwg.mxu0
      %v2803 = vadd.f32 %v2555, %v2714
      %v2804 = vadd.f32 %v2556, %v2716
      %v2805 = vadd.f32 %v2557, %v2719
      %v2806 = vadd.f32 %v2558, %v2721
      %v2807 = vadd.f32 %v2559, %v2724
      %v2808 = vadd.f32 %v2560, %v2726
      %v2809 = vadd.f32 %v2561, %v2729
      %v2810 = vadd.f32 %v2562, %v2731
      %v2811 = vadd.f32 %v2563, %v2734
      %v2812 = vadd.f32 %v2564, %v2736
      %v2813 = vadd.f32 %v2565, %v2739
      %v2814 = vadd.f32 %v2566, %v2741
      %v2815 = vadd.f32 %v2567, %v2744
      %v2816 = vadd.f32 %v2568, %v2746
      %v2817 = vadd.f32 %v2569, %v2749
      %v2818 = vadd.f32 %v2570, %v2751
      %v2819 = vadd.f32 %v2571, %v2754
      %v2820 = vadd.f32 %v2572, %v2756
      %v2821 = vadd.f32 %v2573, %v2759
      %v2822 = vadd.f32 %v2574, %v2761
      %v2823 = vadd.f32 %v2575, %v2764
      %v2824 = vadd.f32 %v2576, %v2766
      %v2825 = vadd.f32 %v2577, %v2769
      %v2826 = vadd.f32 %v2578, %v2771
      %v2827 = vadd.f32 %v2579, %v2774
      %v2828 = vadd.f32 %v2580, %v2776
      %v2829 = vadd.f32 %v2581, %v2779
      %v2830 = vadd.f32 %v2582, %v2781
      %v2831 = vadd.f32 %v2583, %v2784
      %v2832 = vadd.f32 %v2584, %v2786
      %v2833 = vadd.f32 %v2585, %v2789
      %v2834 = vadd.f32 %v2586, %v2791
      %v2835 = vadd.f32 %v2587, %v2794
      %v2836 = vadd.f32 %v2588, %v2796
      %v2837 = vadd.f32 %v2589, %v2799
      %v2838 = vadd.f32 %v2590, %v2801
      %v2839 = vld [vmem:[%s286 + $0x14] sm:$0xff]
      %v2840 = vld [vmem:[%s286 + $0x1c] sm:$0xff]
      %v2841 = vld [vmem:[%s286 + $0x24] sm:$0xff]
      %v2842 = vld [vmem:[%s286 + $0x2c] sm:$0xff]
      %v2843 = vld [vmem:[%s286 + $0x34] sm:$0xff]
      %v2844 = vld [vmem:[%s286 + $0x3c] sm:$0xff]
      %v2845 = vld [vmem:[%s286 + $0x44] sm:$0xff]
      %v2846 = vld [vmem:[%s286 + $0x4c] sm:$0xff]
      %v2847 = vld [vmem:[%s286 + $0x54] sm:$0xff]
      %v2848 = vld [vmem:[%s286 + $0x5c] sm:$0xff]
      %v2849 = vld [vmem:[%s286 + $0x64] sm:$0xff]
      %v2850 = vld [vmem:[%s286 + $0x6c] sm:$0xff]
      %v2851 = vld [vmem:[%s286 + $0x74] sm:$0xff]
      %v2852 = vld [vmem:[%s286 + $0x7c] sm:$0xff]
      %v2853 = vld [vmem:[%s286 + $0x84] sm:$0xff]
      %v2854 = vld [vmem:[%s286 + $0x8c] sm:$0xff]
      %v2855 = vld [vmem:[%s286 + $0x94] sm:$0xff]
      %v2856 = vld [vmem:[%s286 + $0x9c] sm:$0xff]
      %v2857 = vld [vmem:[%s286 + $0xa4] sm:$0xff]
      %v2858 = vld [vmem:[%s286 + $0xac] sm:$0xff]
      %v2859 = vld [vmem:[%s286 + $0xb4] sm:$0xff]
      %v2860 = vld [vmem:[%s286 + $0xbc] sm:$0xff]
      %v2861 = vld [vmem:[%s286 + $0xc4] sm:$0xff]
      %v2862 = vld [vmem:[%s286 + $0xcc] sm:$0xff]
      %v2863 = vld [vmem:[%s286 + $0xd4] sm:$0xff]
      %v2864 = vld [vmem:[%s286 + $0xdc] sm:$0xff]
      %v2865 = vld [vmem:[%s286 + $0xe4] sm:$0xff]
      %v2866 = vld [vmem:[%s286 + $0xec] sm:$0xff]
      %v2867 = vld [vmem:[%s286 + $0xf4] sm:$0xff]
      %v2868 = vld [vmem:[%s286 + $0xfc] sm:$0xff]
      %v2869 = vld [vmem:[%s286 + $0x104] sm:$0xff]
      %v2870 = vld [vmem:[%s286 + $0x10c] sm:$0xff]
      %v2871 = vld [vmem:[%s286 + $0x114] sm:$0xff]
      %v2872 = vld [vmem:[%s286 + $0x11c] sm:$0xff]
      %v2873 = vld [vmem:[%s286 + $0x124] sm:$0xff]
      %v2874 = vld [vmem:[%s286 + $0x12c] sm:$0xff]
      %v2875 = vpack.c.bf16 %v2840, %v2839
      %v2876 = vpack.c.bf16 %v2842, %v2841
      %v2877 = vpack.c.bf16 %v2844, %v2843
      %v2878 = vpack.c.bf16 %v2846, %v2845
      %v2879 = vpack.c.bf16 %v2848, %v2847
      %v2880 = vpack.c.bf16 %v2850, %v2849
      %v2881 = vpack.c.bf16 %v2852, %v2851
      %v2882 = vpack.c.bf16 %v2854, %v2853
      %v2883 = vpack.c.bf16 %v2856, %v2855
      %v2884 = vpack.c.bf16 %v2858, %v2857
      %v2885 = vpack.c.bf16 %v2860, %v2859
      %v2886 = vpack.c.bf16 %v2862, %v2861
      %v2887 = vpack.c.bf16 %v2864, %v2863
      %v2888 = vpack.c.bf16 %v2866, %v2865
      %v2889 = vpack.c.bf16 %v2868, %v2867
      %v2890 = vpack.c.bf16 %v2870, %v2869
      %v2891 = vpack.c.bf16 %v2872, %v2871
      %v2892 = vpack.c.bf16 %v2874, %v2873
      %s2893 = scalar_lea.vmem %s3, 20
      %v2894 = vld [vmem:[%s2893] sm:$0xf]
      %v2896 = vsel %vm1781, %v2875, 0
      %v2899 = vsel %vm1781, %v2876, 0
      %v2902 = vsel %vm1781, %v2877, 0
      %v2905 = vsel %vm1781, %v2878, 0
      %v2908 = vsel %vm1781, %v2879, 0
      %v2911 = vsel %vm1781, %v2880, 0
      %v2914 = vsel %vm1781, %v2881, 0
      %v2917 = vsel %vm1781, %v2882, 0
      %v2920 = vsel %vm1781, %v2883, 0
      %v2923 = vsel %vm1781, %v2884, 0
      %v2926 = vsel %vm1781, %v2885, 0
      %v2929 = vsel %vm1781, %v2886, 0
      %v2932 = vsel %vm1781, %v2887, 0
      %v2935 = vsel %vm1781, %v2888, 0
      %v2938 = vsel %vm1781, %v2889, 0
      %v2941 = vsel %vm1781, %v2890, 0
      %v2944 = vsel %vm1781, %v2891, 0
      %v2947 = vsel %vm1781, %v2892, 0
      %v2950 = vsel %vm1836, %v2894, 0
      %2952 = vmatpush.bf16.msra.mxu0 0
      %2953 = vmatpush.bf16.msra.mxu0 0
      %2954 = vmatpush.bf16.msra.mxu0 0
      %2955 = vmatpush.bf16.msra.mxu0 0
      %2956 = vmatpush.bf16.msra.mxu0 0
      %2957 = vmatpush.bf16.msra.mxu0 0
      %2958 = vmatpush.bf16.msra.mxu0 0
      %2959 = vmatpush.bf16.msra.mxu0 %v2950
      %2960 = vmatmul.bf16.gmra.mxu0 %v2896
      %v2961 = vpop.f32.mrf.mxu0
      %v2962 = vadd.f32 0.0, %v2961
      %v2963 = vpop.f32.mrf.mxu0
      %v2964 = vadd.f32 0.0, %v2963
      %2965 = vmatmul.bf16.gmra.mxu0 %v2899
      %v2966 = vpop.f32.mrf.mxu0
      %v2967 = vadd.f32 0.0, %v2966
      %v2968 = vpop.f32.mrf.mxu0
      %v2969 = vadd.f32 0.0, %v2968
      %2970 = vmatmul.bf16.gmra.mxu0 %v2902
      %v2971 = vpop.f32.mrf.mxu0
      %v2972 = vadd.f32 0.0, %v2971
      %v2973 = vpop.f32.mrf.mxu0
      %v2974 = vadd.f32 0.0, %v2973
      %2975 = vmatmul.bf16.gmra.mxu0 %v2905
      %v2976 = vpop.f32.mrf.mxu0
      %v2977 = vadd.f32 0.0, %v2976
      %v2978 = vpop.f32.mrf.mxu0
      %v2979 = vadd.f32 0.0, %v2978
      %2980 = vmatmul.bf16.gmra.mxu0 %v2908
      %v2981 = vpop.f32.mrf.mxu0
      %v2982 = vadd.f32 0.0, %v2981
      %v2983 = vpop.f32.mrf.mxu0
      %v2984 = vadd.f32 0.0, %v2983
      %2985 = vmatmul.bf16.gmra.mxu0 %v2911
      %v2986 = vpop.f32.mrf.mxu0
      %v2987 = vadd.f32 0.0, %v2986
      %v2988 = vpop.f32.mrf.mxu0
      %v2989 = vadd.f32 0.0, %v2988
      %2990 = vmatmul.bf16.gmra.mxu0 %v2914
      %v2991 = vpop.f32.mrf.mxu0
      %v2992 = vadd.f32 0.0, %v2991
      %v2993 = vpop.f32.mrf.mxu0
      %v2994 = vadd.f32 0.0, %v2993
      %2995 = vmatmul.bf16.gmra.mxu0 %v2917
      %v2996 = vpop.f32.mrf.mxu0
      %v2997 = vadd.f32 0.0, %v2996
      %v2998 = vpop.f32.mrf.mxu0
      %v2999 = vadd.f32 0.0, %v2998
      %3000 = vmatmul.bf16.gmra.mxu0 %v2920
      %v3001 = vpop.f32.mrf.mxu0
      %v3002 = vadd.f32 0.0, %v3001
      %v3003 = vpop.f32.mrf.mxu0
      %v3004 = vadd.f32 0.0, %v3003
      %3005 = vmatmul.bf16.gmra.mxu0 %v2923
      %v3006 = vpop.f32.mrf.mxu0
      %v3007 = vadd.f32 0.0, %v3006
      %v3008 = vpop.f32.mrf.mxu0
      %v3009 = vadd.f32 0.0, %v3008
      %3010 = vmatmul.bf16.gmra.mxu0 %v2926
      %v3011 = vpop.f32.mrf.mxu0
      %v3012 = vadd.f32 0.0, %v3011
      %v3013 = vpop.f32.mrf.mxu0
      %v3014 = vadd.f32 0.0, %v3013
      %3015 = vmatmul.bf16.gmra.mxu0 %v2929
      %v3016 = vpop.f32.mrf.mxu0
      %v3017 = vadd.f32 0.0, %v3016
      %v3018 = vpop.f32.mrf.mxu0
      %v3019 = vadd.f32 0.0, %v3018
      %3020 = vmatmul.bf16.gmra.mxu0 %v2932
      %v3021 = vpop.f32.mrf.mxu0
      %v3022 = vadd.f32 0.0, %v3021
      %v3023 = vpop.f32.mrf.mxu0
      %v3024 = vadd.f32 0.0, %v3023
      %3025 = vmatmul.bf16.gmra.mxu0 %v2935
      %v3026 = vpop.f32.mrf.mxu0
      %v3027 = vadd.f32 0.0, %v3026
      %v3028 = vpop.f32.mrf.mxu0
      %v3029 = vadd.f32 0.0, %v3028
      %3030 = vmatmul.bf16.gmra.mxu0 %v2938
      %v3031 = vpop.f32.mrf.mxu0
      %v3032 = vadd.f32 0.0, %v3031
      %v3033 = vpop.f32.mrf.mxu0
      %v3034 = vadd.f32 0.0, %v3033
      %3035 = vmatmul.bf16.gmra.mxu0 %v2941
      %v3036 = vpop.f32.mrf.mxu0
      %v3037 = vadd.f32 0.0, %v3036
      %v3038 = vpop.f32.mrf.mxu0
      %v3039 = vadd.f32 0.0, %v3038
      %3040 = vmatmul.bf16.gmra.mxu0 %v2944
      %v3041 = vpop.f32.mrf.mxu0
      %v3042 = vadd.f32 0.0, %v3041
      %v3043 = vpop.f32.mrf.mxu0
      %v3044 = vadd.f32 0.0, %v3043
      %3045 = vmatmul.bf16.gmra.mxu0 %v2947
      %v3046 = vpop.f32.mrf.mxu0
      %v3047 = vadd.f32 0.0, %v3046
      %v3048 = vpop.f32.mrf.mxu0
      %v3049 = vadd.f32 0.0, %v3048
      %3050 = vdwg.mxu0
      %v3051 = vadd.f32 %v2803, %v2962
      %v3052 = vadd.f32 %v2804, %v2964
      %v3053 = vadd.f32 %v2805, %v2967
      %v3054 = vadd.f32 %v2806, %v2969
      %v3055 = vadd.f32 %v2807, %v2972
      %v3056 = vadd.f32 %v2808, %v2974
      %v3057 = vadd.f32 %v2809, %v2977
      %v3058 = vadd.f32 %v2810, %v2979
      %v3059 = vadd.f32 %v2811, %v2982
      %v3060 = vadd.f32 %v2812, %v2984
      %v3061 = vadd.f32 %v2813, %v2987
      %v3062 = vadd.f32 %v2814, %v2989
      %v3063 = vadd.f32 %v2815, %v2992
      %v3064 = vadd.f32 %v2816, %v2994
      %v3065 = vadd.f32 %v2817, %v2997
      %v3066 = vadd.f32 %v2818, %v2999
      %v3067 = vadd.f32 %v2819, %v3002
      %v3068 = vadd.f32 %v2820, %v3004
      %v3069 = vadd.f32 %v2821, %v3007
      %v3070 = vadd.f32 %v2822, %v3009
      %v3071 = vadd.f32 %v2823, %v3012
      %v3072 = vadd.f32 %v2824, %v3014
      %v3073 = vadd.f32 %v2825, %v3017
      %v3074 = vadd.f32 %v2826, %v3019
      %v3075 = vadd.f32 %v2827, %v3022
      %v3076 = vadd.f32 %v2828, %v3024
      %v3077 = vadd.f32 %v2829, %v3027
      %v3078 = vadd.f32 %v2830, %v3029
      %v3079 = vadd.f32 %v2831, %v3032
      %v3080 = vadd.f32 %v2832, %v3034
      %v3081 = vadd.f32 %v2833, %v3037
      %v3082 = vadd.f32 %v2834, %v3039
      %v3083 = vadd.f32 %v2835, %v3042
      %v3084 = vadd.f32 %v2836, %v3044
      %v3085 = vadd.f32 %v2837, %v3047
      %v3086 = vadd.f32 %v2838, %v3049
      %v3087 = vld [vmem:[%s286 + $0x24] sm:$0xff]
      %v3088 = vld [vmem:[%s286 + $0x2c] sm:$0xff]
      %v3089 = vld [vmem:[%s286 + $0x34] sm:$0xff]
      %v3090 = vld [vmem:[%s286 + $0x3c] sm:$0xff]
      %v3091 = vld [vmem:[%s286 + $0x44] sm:$0xff]
      %v3092 = vld [vmem:[%s286 + $0x4c] sm:$0xff]
      %v3093 = vld [vmem:[%s286 + $0x54] sm:$0xff]
      %v3094 = vld [vmem:[%s286 + $0x5c] sm:$0xff]
      %v3095 = vld [vmem:[%s286 + $0x64] sm:$0xff]
      %v3096 = vld [vmem:[%s286 + $0x6c] sm:$0xff]
      %v3097 = vld [vmem:[%s286 + $0x74] sm:$0xff]
      %v3098 = vld [vmem:[%s286 + $0x7c] sm:$0xff]
      %v3099 = vld [vmem:[%s286 + $0x84] sm:$0xff]
      %v3100 = vld [vmem:[%s286 + $0x8c] sm:$0xff]
      %v3101 = vld [vmem:[%s286 + $0x94] sm:$0xff]
      %v3102 = vld [vmem:[%s286 + $0x9c] sm:$0xff]
      %v3103 = vld [vmem:[%s286 + $0xa4] sm:$0xff]
      %v3104 = vld [vmem:[%s286 + $0xac] sm:$0xff]
      %v3105 = vld [vmem:[%s286 + $0xb4] sm:$0xff]
      %v3106 = vld [vmem:[%s286 + $0xbc] sm:$0xff]
      %v3107 = vld [vmem:[%s286 + $0xc4] sm:$0xff]
      %v3108 = vld [vmem:[%s286 + $0xcc] sm:$0xff]
      %v3109 = vld [vmem:[%s286 + $0xd4] sm:$0xff]
      %v3110 = vld [vmem:[%s286 + $0xdc] sm:$0xff]
      %v3111 = vld [vmem:[%s286 + $0xe4] sm:$0xff]
      %v3112 = vld [vmem:[%s286 + $0xec] sm:$0xff]
      %v3113 = vld [vmem:[%s286 + $0xf4] sm:$0xff]
      %v3114 = vld [vmem:[%s286 + $0xfc] sm:$0xff]
      %v3115 = vld [vmem:[%s286 + $0x104] sm:$0xff]
      %v3116 = vld [vmem:[%s286 + $0x10c] sm:$0xff]
      %v3117 = vld [vmem:[%s286 + $0x114] sm:$0xff]
      %v3118 = vld [vmem:[%s286 + $0x11c] sm:$0xff]
      %v3119 = vld [vmem:[%s286 + $0x124] sm:$0xff]
      %v3120 = vld [vmem:[%s286 + $0x12c] sm:$0xff]
      %v3121 = vld [vmem:[%s286 + $0x134] sm:$0xff]
      %v3122 = vld [vmem:[%s286 + $0x13c] sm:$0xff]
      %v3123 = vpack.c.bf16 %v3088, %v3087
      %v3124 = vpack.c.bf16 %v3090, %v3089
      %v3125 = vpack.c.bf16 %v3092, %v3091
      %v3126 = vpack.c.bf16 %v3094, %v3093
      %v3127 = vpack.c.bf16 %v3096, %v3095
      %v3128 = vpack.c.bf16 %v3098, %v3097
      %v3129 = vpack.c.bf16 %v3100, %v3099
      %v3130 = vpack.c.bf16 %v3102, %v3101
      %v3131 = vpack.c.bf16 %v3104, %v3103
      %v3132 = vpack.c.bf16 %v3106, %v3105
      %v3133 = vpack.c.bf16 %v3108, %v3107
      %v3134 = vpack.c.bf16 %v3110, %v3109
      %v3135 = vpack.c.bf16 %v3112, %v3111
      %v3136 = vpack.c.bf16 %v3114, %v3113
      %v3137 = vpack.c.bf16 %v3116, %v3115
      %v3138 = vpack.c.bf16 %v3118, %v3117
      %v3139 = vpack.c.bf16 %v3120, %v3119
      %v3140 = vpack.c.bf16 %v3122, %v3121
      %s3141 = scalar_lea.vmem %s3, 24
      %v3142 = vld [vmem:[%s3141] sm:$0xf]
      %v3144 = vsel %vm1781, %v3123, 0
      %v3147 = vsel %vm1781, %v3124, 0
      %v3150 = vsel %vm1781, %v3125, 0
      %v3153 = vsel %vm1781, %v3126, 0
      %v3156 = vsel %vm1781, %v3127, 0
      %v3159 = vsel %vm1781, %v3128, 0
      %v3162 = vsel %vm1781, %v3129, 0
      %v3165 = vsel %vm1781, %v3130, 0
      %v3168 = vsel %vm1781, %v3131, 0
      %v3171 = vsel %vm1781, %v3132, 0
      %v3174 = vsel %vm1781, %v3133, 0
      %v3177 = vsel %vm1781, %v3134, 0
      %v3180 = vsel %vm1781, %v3135, 0
      %v3183 = vsel %vm1781, %v3136, 0
      %v3186 = vsel %vm1781, %v3137, 0
      %v3189 = vsel %vm1781, %v3138, 0
      %v3192 = vsel %vm1781, %v3139, 0
      %v3195 = vsel %vm1781, %v3140, 0
      %v3198 = vsel %vm1836, %v3142, 0
      %3200 = vmatpush.bf16.msra.mxu0 0
      %3201 = vmatpush.bf16.msra.mxu0 0
      %3202 = vmatpush.bf16.msra.mxu0 0
      %3203 = vmatpush.bf16.msra.mxu0 0
      %3204 = vmatpush.bf16.msra.mxu0 0
      %3205 = vmatpush.bf16.msra.mxu0 0
      %3206 = vmatpush.bf16.msra.mxu0 0
      %3207 = vmatpush.bf16.msra.mxu0 %v3198
      %3208 = vmatmul.bf16.gmra.mxu0 %v3144
      %v3209 = vpop.f32.mrf.mxu0
      %v3210 = vadd.f32 0.0, %v3209
      %v3211 = vpop.f32.mrf.mxu0
      %v3212 = vadd.f32 0.0, %v3211
      %3213 = vmatmul.bf16.gmra.mxu0 %v3147
      %v3214 = vpop.f32.mrf.mxu0
      %v3215 = vadd.f32 0.0, %v3214
      %v3216 = vpop.f32.mrf.mxu0
      %v3217 = vadd.f32 0.0, %v3216
      %3218 = vmatmul.bf16.gmra.mxu0 %v3150
      %v3219 = vpop.f32.mrf.mxu0
      %v3220 = vadd.f32 0.0, %v3219
      %v3221 = vpop.f32.mrf.mxu0
      %v3222 = vadd.f32 0.0, %v3221
      %3223 = vmatmul.bf16.gmra.mxu0 %v3153
      %v3224 = vpop.f32.mrf.mxu0
      %v3225 = vadd.f32 0.0, %v3224
      %v3226 = vpop.f32.mrf.mxu0
      %v3227 = vadd.f32 0.0, %v3226
      %3228 = vmatmul.bf16.gmra.mxu0 %v3156
      %v3229 = vpop.f32.mrf.mxu0
      %v3230 = vadd.f32 0.0, %v3229
      %v3231 = vpop.f32.mrf.mxu0
      %v3232 = vadd.f32 0.0, %v3231
      %3233 = vmatmul.bf16.gmra.mxu0 %v3159
      %v3234 = vpop.f32.mrf.mxu0
      %v3235 = vadd.f32 0.0, %v3234
      %v3236 = vpop.f32.mrf.mxu0
      %v3237 = vadd.f32 0.0, %v3236
      %3238 = vmatmul.bf16.gmra.mxu0 %v3162
      %v3239 = vpop.f32.mrf.mxu0
      %v3240 = vadd.f32 0.0, %v3239
      %v3241 = vpop.f32.mrf.mxu0
      %v3242 = vadd.f32 0.0, %v3241
      %3243 = vmatmul.bf16.gmra.mxu0 %v3165
      %v3244 = vpop.f32.mrf.mxu0
      %v3245 = vadd.f32 0.0, %v3244
      %v3246 = vpop.f32.mrf.mxu0
      %v3247 = vadd.f32 0.0, %v3246
      %3248 = vmatmul.bf16.gmra.mxu0 %v3168
      %v3249 = vpop.f32.mrf.mxu0
      %v3250 = vadd.f32 0.0, %v3249
      %v3251 = vpop.f32.mrf.mxu0
      %v3252 = vadd.f32 0.0, %v3251
      %3253 = vmatmul.bf16.gmra.mxu0 %v3171
      %v3254 = vpop.f32.mrf.mxu0
      %v3255 = vadd.f32 0.0, %v3254
      %v3256 = vpop.f32.mrf.mxu0
      %v3257 = vadd.f32 0.0, %v3256
      %3258 = vmatmul.bf16.gmra.mxu0 %v3174
      %v3259 = vpop.f32.mrf.mxu0
      %v3260 = vadd.f32 0.0, %v3259
      %v3261 = vpop.f32.mrf.mxu0
      %v3262 = vadd.f32 0.0, %v3261
      %3263 = vmatmul.bf16.gmra.mxu0 %v3177
      %v3264 = vpop.f32.mrf.mxu0
      %v3265 = vadd.f32 0.0, %v3264
      %v3266 = vpop.f32.mrf.mxu0
      %v3267 = vadd.f32 0.0, %v3266
      %3268 = vmatmul.bf16.gmra.mxu0 %v3180
      %v3269 = vpop.f32.mrf.mxu0
      %v3270 = vadd.f32 0.0, %v3269
      %v3271 = vpop.f32.mrf.mxu0
      %v3272 = vadd.f32 0.0, %v3271
      %3273 = vmatmul.bf16.gmra.mxu0 %v3183
      %v3274 = vpop.f32.mrf.mxu0
      %v3275 = vadd.f32 0.0, %v3274
      %v3276 = vpop.f32.mrf.mxu0
      %v3277 = vadd.f32 0.0, %v3276
      %3278 = vmatmul.bf16.gmra.mxu0 %v3186
      %v3279 = vpop.f32.mrf.mxu0
      %v3280 = vadd.f32 0.0, %v3279
      %v3281 = vpop.f32.mrf.mxu0
      %v3282 = vadd.f32 0.0, %v3281
      %3283 = vmatmul.bf16.gmra.mxu0 %v3189
      %v3284 = vpop.f32.mrf.mxu0
      %v3285 = vadd.f32 0.0, %v3284
      %v3286 = vpop.f32.mrf.mxu0
      %v3287 = vadd.f32 0.0, %v3286
      %3288 = vmatmul.bf16.gmra.mxu0 %v3192
      %v3289 = vpop.f32.mrf.mxu0
      %v3290 = vadd.f32 0.0, %v3289
      %v3291 = vpop.f32.mrf.mxu0
      %v3292 = vadd.f32 0.0, %v3291
      %3293 = vmatmul.bf16.gmra.mxu0 %v3195
      %v3294 = vpop.f32.mrf.mxu0
      %v3295 = vadd.f32 0.0, %v3294
      %v3296 = vpop.f32.mrf.mxu0
      %v3297 = vadd.f32 0.0, %v3296
      %3298 = vdwg.mxu0
      %v3299 = vadd.f32 %v3051, %v3210
      %v3300 = vadd.f32 %v3052, %v3212
      %v3301 = vadd.f32 %v3053, %v3215
      %v3302 = vadd.f32 %v3054, %v3217
      %v3303 = vadd.f32 %v3055, %v3220
      %v3304 = vadd.f32 %v3056, %v3222
      %v3305 = vadd.f32 %v3057, %v3225
      %v3306 = vadd.f32 %v3058, %v3227
      %v3307 = vadd.f32 %v3059, %v3230
      %v3308 = vadd.f32 %v3060, %v3232
      %v3309 = vadd.f32 %v3061, %v3235
      %v3310 = vadd.f32 %v3062, %v3237
      %v3311 = vadd.f32 %v3063, %v3240
      %v3312 = vadd.f32 %v3064, %v3242
      %v3313 = vadd.f32 %v3065, %v3245
      %v3314 = vadd.f32 %v3066, %v3247
      %v3315 = vadd.f32 %v3067, %v3250
      %v3316 = vadd.f32 %v3068, %v3252
      %v3317 = vadd.f32 %v3069, %v3255
      %v3318 = vadd.f32 %v3070, %v3257
      %v3319 = vadd.f32 %v3071, %v3260
      %v3320 = vadd.f32 %v3072, %v3262
      %v3321 = vadd.f32 %v3073, %v3265
      %v3322 = vadd.f32 %v3074, %v3267
      %v3323 = vadd.f32 %v3075, %v3270
      %v3324 = vadd.f32 %v3076, %v3272
      %v3325 = vadd.f32 %v3077, %v3275
      %v3326 = vadd.f32 %v3078, %v3277
      %v3327 = vadd.f32 %v3079, %v3280
      %v3328 = vadd.f32 %v3080, %v3282
      %v3329 = vadd.f32 %v3081, %v3285
      %v3330 = vadd.f32 %v3082, %v3287
      %v3331 = vadd.f32 %v3083, %v3290
      %v3332 = vadd.f32 %v3084, %v3292
      %v3333 = vadd.f32 %v3085, %v3295
      %v3334 = vadd.f32 %v3086, %v3297
      %v3335 = vld [vmem:[%s286 + $0x25] sm:$0xff]
      %v3336 = vld [vmem:[%s286 + $0x2d] sm:$0xff]
      %v3337 = vld [vmem:[%s286 + $0x35] sm:$0xff]
      %v3338 = vld [vmem:[%s286 + $0x3d] sm:$0xff]
      %v3339 = vld [vmem:[%s286 + $0x45] sm:$0xff]
      %v3340 = vld [vmem:[%s286 + $0x4d] sm:$0xff]
      %v3341 = vld [vmem:[%s286 + $0x55] sm:$0xff]
      %v3342 = vld [vmem:[%s286 + $0x5d] sm:$0xff]
      %v3343 = vld [vmem:[%s286 + $0x65] sm:$0xff]
      %v3344 = vld [vmem:[%s286 + $0x6d] sm:$0xff]
      %v3345 = vld [vmem:[%s286 + $0x75] sm:$0xff]
      %v3346 = vld [vmem:[%s286 + $0x7d] sm:$0xff]
      %v3347 = vld [vmem:[%s286 + $0x85] sm:$0xff]
      %v3348 = vld [vmem:[%s286 + $0x8d] sm:$0xff]
      %v3349 = vld [vmem:[%s286 + $0x95] sm:$0xff]
      %v3350 = vld [vmem:[%s286 + $0x9d] sm:$0xff]
      %v3351 = vld [vmem:[%s286 + $0xa5] sm:$0xff]
      %v3352 = vld [vmem:[%s286 + $0xad] sm:$0xff]
      %v3353 = vld [vmem:[%s286 + $0xb5] sm:$0xff]
      %v3354 = vld [vmem:[%s286 + $0xbd] sm:$0xff]
      %v3355 = vld [vmem:[%s286 + $0xc5] sm:$0xff]
      %v3356 = vld [vmem:[%s286 + $0xcd] sm:$0xff]
      %v3357 = vld [vmem:[%s286 + $0xd5] sm:$0xff]
      %v3358 = vld [vmem:[%s286 + $0xdd] sm:$0xff]
      %v3359 = vld [vmem:[%s286 + $0xe5] sm:$0xff]
      %v3360 = vld [vmem:[%s286 + $0xed] sm:$0xff]
      %v3361 = vld [vmem:[%s286 + $0xf5] sm:$0xff]
      %v3362 = vld [vmem:[%s286 + $0xfd] sm:$0xff]
      %v3363 = vld [vmem:[%s286 + $0x105] sm:$0xff]
      %v3364 = vld [vmem:[%s286 + $0x10d] sm:$0xff]
      %v3365 = vld [vmem:[%s286 + $0x115] sm:$0xff]
      %v3366 = vld [vmem:[%s286 + $0x11d] sm:$0xff]
      %v3367 = vld [vmem:[%s286 + $0x125] sm:$0xff]
      %v3368 = vld [vmem:[%s286 + $0x12d] sm:$0xff]
      %v3369 = vld [vmem:[%s286 + $0x135] sm:$0xff]
      %v3370 = vld [vmem:[%s286 + $0x13d] sm:$0xff]
      %v3371 = vpack.c.bf16 %v3336, %v3335
      %v3372 = vpack.c.bf16 %v3338, %v3337
      %v3373 = vpack.c.bf16 %v3340, %v3339
      %v3374 = vpack.c.bf16 %v3342, %v3341
      %v3375 = vpack.c.bf16 %v3344, %v3343
      %v3376 = vpack.c.bf16 %v3346, %v3345
      %v3377 = vpack.c.bf16 %v3348, %v3347
      %v3378 = vpack.c.bf16 %v3350, %v3349
      %v3379 = vpack.c.bf16 %v3352, %v3351
      %v3380 = vpack.c.bf16 %v3354, %v3353
      %v3381 = vpack.c.bf16 %v3356, %v3355
      %v3382 = vpack.c.bf16 %v3358, %v3357
      %v3383 = vpack.c.bf16 %v3360, %v3359
      %v3384 = vpack.c.bf16 %v3362, %v3361
      %v3385 = vpack.c.bf16 %v3364, %v3363
      %v3386 = vpack.c.bf16 %v3366, %v3365
      %v3387 = vpack.c.bf16 %v3368, %v3367
      %v3388 = vpack.c.bf16 %v3370, %v3369
      %s3389 = scalar_lea.vmem %s3, 28
      %v3390 = vld [vmem:[%s3389] sm:$0xf]
      %v3392 = vsel %vm1781, %v3371, 0
      %v3395 = vsel %vm1781, %v3372, 0
      %v3398 = vsel %vm1781, %v3373, 0
      %v3401 = vsel %vm1781, %v3374, 0
      %v3404 = vsel %vm1781, %v3375, 0
      %v3407 = vsel %vm1781, %v3376, 0
      %v3410 = vsel %vm1781, %v3377, 0
      %v3413 = vsel %vm1781, %v3378, 0
      %v3416 = vsel %vm1781, %v3379, 0
      %v3419 = vsel %vm1781, %v3380, 0
      %v3422 = vsel %vm1781, %v3381, 0
      %v3425 = vsel %vm1781, %v3382, 0
      %v3428 = vsel %vm1781, %v3383, 0
      %v3431 = vsel %vm1781, %v3384, 0
      %v3434 = vsel %vm1781, %v3385, 0
      %v3437 = vsel %vm1781, %v3386, 0
      %v3440 = vsel %vm1781, %v3387, 0
      %v3443 = vsel %vm1781, %v3388, 0
      %v3446 = vsel %vm1836, %v3390, 0
      %3448 = vmatpush.bf16.msra.mxu0 0
      %3449 = vmatpush.bf16.msra.mxu0 0
      %3450 = vmatpush.bf16.msra.mxu0 0
      %3451 = vmatpush.bf16.msra.mxu0 0
      %3452 = vmatpush.bf16.msra.mxu0 0
      %3453 = vmatpush.bf16.msra.mxu0 0
      %3454 = vmatpush.bf16.msra.mxu0 0
      %3455 = vmatpush.bf16.msra.mxu0 %v3446
      %3456 = vmatmul.bf16.gmra.mxu0 %v3392
      %v3457 = vpop.f32.mrf.mxu0
      %v3458 = vadd.f32 0.0, %v3457
      %v3459 = vpop.f32.mrf.mxu0
      %v3460 = vadd.f32 0.0, %v3459
      %3461 = vmatmul.bf16.gmra.mxu0 %v3395
      %v3462 = vpop.f32.mrf.mxu0
      %v3463 = vadd.f32 0.0, %v3462
      %v3464 = vpop.f32.mrf.mxu0
      %v3465 = vadd.f32 0.0, %v3464
      %3466 = vmatmul.bf16.gmra.mxu0 %v3398
      %v3467 = vpop.f32.mrf.mxu0
      %v3468 = vadd.f32 0.0, %v3467
      %v3469 = vpop.f32.mrf.mxu0
      %v3470 = vadd.f32 0.0, %v3469
      %3471 = vmatmul.bf16.gmra.mxu0 %v3401
      %v3472 = vpop.f32.mrf.mxu0
      %v3473 = vadd.f32 0.0, %v3472
      %v3474 = vpop.f32.mrf.mxu0
      %v3475 = vadd.f32 0.0, %v3474
      %3476 = vmatmul.bf16.gmra.mxu0 %v3404
      %v3477 = vpop.f32.mrf.mxu0
      %v3478 = vadd.f32 0.0, %v3477
      %v3479 = vpop.f32.mrf.mxu0
      %v3480 = vadd.f32 0.0, %v3479
      %3481 = vmatmul.bf16.gmra.mxu0 %v3407
      %v3482 = vpop.f32.mrf.mxu0
      %v3483 = vadd.f32 0.0, %v3482
      %v3484 = vpop.f32.mrf.mxu0
      %v3485 = vadd.f32 0.0, %v3484
      %3486 = vmatmul.bf16.gmra.mxu0 %v3410
      %v3487 = vpop.f32.mrf.mxu0
      %v3488 = vadd.f32 0.0, %v3487
      %v3489 = vpop.f32.mrf.mxu0
      %v3490 = vadd.f32 0.0, %v3489
      %3491 = vmatmul.bf16.gmra.mxu0 %v3413
      %v3492 = vpop.f32.mrf.mxu0
      %v3493 = vadd.f32 0.0, %v3492
      %v3494 = vpop.f32.mrf.mxu0
      %v3495 = vadd.f32 0.0, %v3494
      %3496 = vmatmul.bf16.gmra.mxu0 %v3416
      %v3497 = vpop.f32.mrf.mxu0
      %v3498 = vadd.f32 0.0, %v3497
      %v3499 = vpop.f32.mrf.mxu0
      %v3500 = vadd.f32 0.0, %v3499
      %3501 = vmatmul.bf16.gmra.mxu0 %v3419
      %v3502 = vpop.f32.mrf.mxu0
      %v3503 = vadd.f32 0.0, %v3502
      %v3504 = vpop.f32.mrf.mxu0
      %v3505 = vadd.f32 0.0, %v3504
      %3506 = vmatmul.bf16.gmra.mxu0 %v3422
      %v3507 = vpop.f32.mrf.mxu0
      %v3508 = vadd.f32 0.0, %v3507
      %v3509 = vpop.f32.mrf.mxu0
      %v3510 = vadd.f32 0.0, %v3509
      %3511 = vmatmul.bf16.gmra.mxu0 %v3425
      %v3512 = vpop.f32.mrf.mxu0
      %v3513 = vadd.f32 0.0, %v3512
      %v3514 = vpop.f32.mrf.mxu0
      %v3515 = vadd.f32 0.0, %v3514
      %3516 = vmatmul.bf16.gmra.mxu0 %v3428
      %v3517 = vpop.f32.mrf.mxu0
      %v3518 = vadd.f32 0.0, %v3517
      %v3519 = vpop.f32.mrf.mxu0
      %v3520 = vadd.f32 0.0, %v3519
      %3521 = vmatmul.bf16.gmra.mxu0 %v3431
      %v3522 = vpop.f32.mrf.mxu0
      %v3523 = vadd.f32 0.0, %v3522
      %v3524 = vpop.f32.mrf.mxu0
      %v3525 = vadd.f32 0.0, %v3524
      %3526 = vmatmul.bf16.gmra.mxu0 %v3434
      %v3527 = vpop.f32.mrf.mxu0
      %v3528 = vadd.f32 0.0, %v3527
      %v3529 = vpop.f32.mrf.mxu0
      %v3530 = vadd.f32 0.0, %v3529
      %3531 = vmatmul.bf16.gmra.mxu0 %v3437
      %v3532 = vpop.f32.mrf.mxu0
      %v3533 = vadd.f32 0.0, %v3532
      %v3534 = vpop.f32.mrf.mxu0
      %v3535 = vadd.f32 0.0, %v3534
      %3536 = vmatmul.bf16.gmra.mxu0 %v3440
      %v3537 = vpop.f32.mrf.mxu0
      %v3538 = vadd.f32 0.0, %v3537
      %v3539 = vpop.f32.mrf.mxu0
      %v3540 = vadd.f32 0.0, %v3539
      %3541 = vmatmul.bf16.gmra.mxu0 %v3443
      %v3542 = vpop.f32.mrf.mxu0
      %v3543 = vadd.f32 0.0, %v3542
      %v3544 = vpop.f32.mrf.mxu0
      %v3545 = vadd.f32 0.0, %v3544
      %3546 = vdwg.mxu0
      %v3547 = vadd.f32 %v3299, %v3458
      %v3548 = vadd.f32 %v3300, %v3460
      %v3549 = vadd.f32 %v3301, %v3463
      %v3550 = vadd.f32 %v3302, %v3465
      %v3551 = vadd.f32 %v3303, %v3468
      %v3552 = vadd.f32 %v3304, %v3470
      %v3553 = vadd.f32 %v3305, %v3473
      %v3554 = vadd.f32 %v3306, %v3475
      %v3555 = vadd.f32 %v3307, %v3478
      %v3556 = vadd.f32 %v3308, %v3480
      %v3557 = vadd.f32 %v3309, %v3483
      %v3558 = vadd.f32 %v3310, %v3485
      %v3559 = vadd.f32 %v3311, %v3488
      %v3560 = vadd.f32 %v3312, %v3490
      %v3561 = vadd.f32 %v3313, %v3493
      %v3562 = vadd.f32 %v3314, %v3495
      %v3563 = vadd.f32 %v3315, %v3498
      %v3564 = vadd.f32 %v3316, %v3500
      %v3565 = vadd.f32 %v3317, %v3503
      %v3566 = vadd.f32 %v3318, %v3505
      %v3567 = vadd.f32 %v3319, %v3508
      %v3568 = vadd.f32 %v3320, %v3510
      %v3569 = vadd.f32 %v3321, %v3513
      %v3570 = vadd.f32 %v3322, %v3515
      %v3571 = vadd.f32 %v3323, %v3518
      %v3572 = vadd.f32 %v3324, %v3520
      %v3573 = vadd.f32 %v3325, %v3523
      %v3574 = vadd.f32 %v3326, %v3525
      %v3575 = vadd.f32 %v3327, %v3528
      %v3576 = vadd.f32 %v3328, %v3530
      %v3577 = vadd.f32 %v3329, %v3533
      %v3578 = vadd.f32 %v3330, %v3535
      %v3579 = vadd.f32 %v3331, %v3538
      %v3580 = vadd.f32 %v3332, %v3540
      %v3581 = vadd.f32 %v3333, %v3543
      %v3582 = vadd.f32 %v3334, %v3545
      %v3583 = vld [vmem:[%s286 + $0x26] sm:$0xff]
      %v3584 = vld [vmem:[%s286 + $0x2e] sm:$0xff]
      %v3585 = vld [vmem:[%s286 + $0x36] sm:$0xff]
      %v3586 = vld [vmem:[%s286 + $0x3e] sm:$0xff]
      %v3587 = vld [vmem:[%s286 + $0x46] sm:$0xff]
      %v3588 = vld [vmem:[%s286 + $0x4e] sm:$0xff]
      %v3589 = vld [vmem:[%s286 + $0x56] sm:$0xff]
      %v3590 = vld [vmem:[%s286 + $0x5e] sm:$0xff]
      %v3591 = vld [vmem:[%s286 + $0x66] sm:$0xff]
      %v3592 = vld [vmem:[%s286 + $0x6e] sm:$0xff]
      %v3593 = vld [vmem:[%s286 + $0x76] sm:$0xff]
      %v3594 = vld [vmem:[%s286 + $0x7e] sm:$0xff]
      %v3595 = vld [vmem:[%s286 + $0x86] sm:$0xff]
      %v3596 = vld [vmem:[%s286 + $0x8e] sm:$0xff]
      %v3597 = vld [vmem:[%s286 + $0x96] sm:$0xff]
      %v3598 = vld [vmem:[%s286 + $0x9e] sm:$0xff]
      %v3599 = vld [vmem:[%s286 + $0xa6] sm:$0xff]
      %v3600 = vld [vmem:[%s286 + $0xae] sm:$0xff]
      %v3601 = vld [vmem:[%s286 + $0xb6] sm:$0xff]
      %v3602 = vld [vmem:[%s286 + $0xbe] sm:$0xff]
      %v3603 = vld [vmem:[%s286 + $0xc6] sm:$0xff]
      %v3604 = vld [vmem:[%s286 + $0xce] sm:$0xff]
      %v3605 = vld [vmem:[%s286 + $0xd6] sm:$0xff]
      %v3606 = vld [vmem:[%s286 + $0xde] sm:$0xff]
      %v3607 = vld [vmem:[%s286 + $0xe6] sm:$0xff]
      %v3608 = vld [vmem:[%s286 + $0xee] sm:$0xff]
      %v3609 = vld [vmem:[%s286 + $0xf6] sm:$0xff]
      %v3610 = vld [vmem:[%s286 + $0xfe] sm:$0xff]
      %v3611 = vld [vmem:[%s286 + $0x106] sm:$0xff]
      %v3612 = vld [vmem:[%s286 + $0x10e] sm:$0xff]
      %v3613 = vld [vmem:[%s286 + $0x116] sm:$0xff]
      %v3614 = vld [vmem:[%s286 + $0x11e] sm:$0xff]
      %v3615 = vld [vmem:[%s286 + $0x126] sm:$0xff]
      %v3616 = vld [vmem:[%s286 + $0x12e] sm:$0xff]
      %v3617 = vld [vmem:[%s286 + $0x136] sm:$0xff]
      %v3618 = vld [vmem:[%s286 + $0x13e] sm:$0xff]
      %v3619 = vpack.c.bf16 %v3584, %v3583
      %v3620 = vpack.c.bf16 %v3586, %v3585
      %v3621 = vpack.c.bf16 %v3588, %v3587
      %v3622 = vpack.c.bf16 %v3590, %v3589
      %v3623 = vpack.c.bf16 %v3592, %v3591
      %v3624 = vpack.c.bf16 %v3594, %v3593
      %v3625 = vpack.c.bf16 %v3596, %v3595
      %v3626 = vpack.c.bf16 %v3598, %v3597
      %v3627 = vpack.c.bf16 %v3600, %v3599
      %v3628 = vpack.c.bf16 %v3602, %v3601
      %v3629 = vpack.c.bf16 %v3604, %v3603
      %v3630 = vpack.c.bf16 %v3606, %v3605
      %v3631 = vpack.c.bf16 %v3608, %v3607
      %v3632 = vpack.c.bf16 %v3610, %v3609
      %v3633 = vpack.c.bf16 %v3612, %v3611
      %v3634 = vpack.c.bf16 %v3614, %v3613
      %v3635 = vpack.c.bf16 %v3616, %v3615
      %v3636 = vpack.c.bf16 %v3618, %v3617
      %s3637 = scalar_lea.vmem %s3, 32
      %v3638 = vld [vmem:[%s3637] sm:$0xf]
      %v3640 = vsel %vm1781, %v3619, 0
      %v3643 = vsel %vm1781, %v3620, 0
      %v3646 = vsel %vm1781, %v3621, 0
      %v3649 = vsel %vm1781, %v3622, 0
      %v3652 = vsel %vm1781, %v3623, 0
      %v3655 = vsel %vm1781, %v3624, 0
      %v3658 = vsel %vm1781, %v3625, 0
      %v3661 = vsel %vm1781, %v3626, 0
      %v3664 = vsel %vm1781, %v3627, 0
      %v3667 = vsel %vm1781, %v3628, 0
      %v3670 = vsel %vm1781, %v3629, 0
      %v3673 = vsel %vm1781, %v3630, 0
      %v3676 = vsel %vm1781, %v3631, 0
      %v3679 = vsel %vm1781, %v3632, 0
      %v3682 = vsel %vm1781, %v3633, 0
      %v3685 = vsel %vm1781, %v3634, 0
      %v3688 = vsel %vm1781, %v3635, 0
      %v3691 = vsel %vm1781, %v3636, 0
      %v3694 = vsel %vm1836, %v3638, 0
      %3696 = vmatpush.bf16.msra.mxu0 0
      %3697 = vmatpush.bf16.msra.mxu0 0
      %3698 = vmatpush.bf16.msra.mxu0 0
      %3699 = vmatpush.bf16.msra.mxu0 0
      %3700 = vmatpush.bf16.msra.mxu0 0
      %3701 = vmatpush.bf16.msra.mxu0 0
      %3702 = vmatpush.bf16.msra.mxu0 0
      %3703 = vmatpush.bf16.msra.mxu0 %v3694
      %3704 = vmatmul.bf16.gmra.mxu0 %v3640
      %v3705 = vpop.f32.mrf.mxu0
      %v3706 = vadd.f32 0.0, %v3705
      %v3707 = vpop.f32.mrf.mxu0
      %v3708 = vadd.f32 0.0, %v3707
      %3709 = vmatmul.bf16.gmra.mxu0 %v3643
      %v3710 = vpop.f32.mrf.mxu0
      %v3711 = vadd.f32 0.0, %v3710
      %v3712 = vpop.f32.mrf.mxu0
      %v3713 = vadd.f32 0.0, %v3712
      %3714 = vmatmul.bf16.gmra.mxu0 %v3646
      %v3715 = vpop.f32.mrf.mxu0
      %v3716 = vadd.f32 0.0, %v3715
      %v3717 = vpop.f32.mrf.mxu0
      %v3718 = vadd.f32 0.0, %v3717
      %3719 = vmatmul.bf16.gmra.mxu0 %v3649
      %v3720 = vpop.f32.mrf.mxu0
      %v3721 = vadd.f32 0.0, %v3720
      %v3722 = vpop.f32.mrf.mxu0
      %v3723 = vadd.f32 0.0, %v3722
      %3724 = vmatmul.bf16.gmra.mxu0 %v3652
      %v3725 = vpop.f32.mrf.mxu0
      %v3726 = vadd.f32 0.0, %v3725
      %v3727 = vpop.f32.mrf.mxu0
      %v3728 = vadd.f32 0.0, %v3727
      %3729 = vmatmul.bf16.gmra.mxu0 %v3655
      %v3730 = vpop.f32.mrf.mxu0
      %v3731 = vadd.f32 0.0, %v3730
      %v3732 = vpop.f32.mrf.mxu0
      %v3733 = vadd.f32 0.0, %v3732
      %3734 = vmatmul.bf16.gmra.mxu0 %v3658
      %v3735 = vpop.f32.mrf.mxu0
      %v3736 = vadd.f32 0.0, %v3735
      %v3737 = vpop.f32.mrf.mxu0
      %v3738 = vadd.f32 0.0, %v3737
      %3739 = vmatmul.bf16.gmra.mxu0 %v3661
      %v3740 = vpop.f32.mrf.mxu0
      %v3741 = vadd.f32 0.0, %v3740
      %v3742 = vpop.f32.mrf.mxu0
      %v3743 = vadd.f32 0.0, %v3742
      %3744 = vmatmul.bf16.gmra.mxu0 %v3664
      %v3745 = vpop.f32.mrf.mxu0
      %v3746 = vadd.f32 0.0, %v3745
      %v3747 = vpop.f32.mrf.mxu0
      %v3748 = vadd.f32 0.0, %v3747
      %3749 = vmatmul.bf16.gmra.mxu0 %v3667
      %v3750 = vpop.f32.mrf.mxu0
      %v3751 = vadd.f32 0.0, %v3750
      %v3752 = vpop.f32.mrf.mxu0
      %v3753 = vadd.f32 0.0, %v3752
      %3754 = vmatmul.bf16.gmra.mxu0 %v3670
      %v3755 = vpop.f32.mrf.mxu0
      %v3756 = vadd.f32 0.0, %v3755
      %v3757 = vpop.f32.mrf.mxu0
      %v3758 = vadd.f32 0.0, %v3757
      %3759 = vmatmul.bf16.gmra.mxu0 %v3673
      %v3760 = vpop.f32.mrf.mxu0
      %v3761 = vadd.f32 0.0, %v3760
      %v3762 = vpop.f32.mrf.mxu0
      %v3763 = vadd.f32 0.0, %v3762
      %3764 = vmatmul.bf16.gmra.mxu0 %v3676
      %v3765 = vpop.f32.mrf.mxu0
      %v3766 = vadd.f32 0.0, %v3765
      %v3767 = vpop.f32.mrf.mxu0
      %v3768 = vadd.f32 0.0, %v3767
      %3769 = vmatmul.bf16.gmra.mxu0 %v3679
      %v3770 = vpop.f32.mrf.mxu0
      %v3771 = vadd.f32 0.0, %v3770
      %v3772 = vpop.f32.mrf.mxu0
      %v3773 = vadd.f32 0.0, %v3772
      %3774 = vmatmul.bf16.gmra.mxu0 %v3682
      %v3775 = vpop.f32.mrf.mxu0
      %v3776 = vadd.f32 0.0, %v3775
      %v3777 = vpop.f32.mrf.mxu0
      %v3778 = vadd.f32 0.0, %v3777
      %3779 = vmatmul.bf16.gmra.mxu0 %v3685
      %v3780 = vpop.f32.mrf.mxu0
      %v3781 = vadd.f32 0.0, %v3780
      %v3782 = vpop.f32.mrf.mxu0
      %v3783 = vadd.f32 0.0, %v3782
      %3784 = vmatmul.bf16.gmra.mxu0 %v3688
      %v3785 = vpop.f32.mrf.mxu0
      %v3786 = vadd.f32 0.0, %v3785
      %v3787 = vpop.f32.mrf.mxu0
      %v3788 = vadd.f32 0.0, %v3787
      %3789 = vmatmul.bf16.gmra.mxu0 %v3691
      %v3790 = vpop.f32.mrf.mxu0
      %v3791 = vadd.f32 0.0, %v3790
      %v3792 = vpop.f32.mrf.mxu0
      %v3793 = vadd.f32 0.0, %v3792
      %3794 = vdwg.mxu0
      %v3795 = vadd.f32 %v3547, %v3706
      %v3796 = vadd.f32 %v3548, %v3708
      %v3797 = vadd.f32 %v3549, %v3711
      %v3798 = vadd.f32 %v3550, %v3713
      %v3799 = vadd.f32 %v3551, %v3716
      %v3800 = vadd.f32 %v3552, %v3718
      %v3801 = vadd.f32 %v3553, %v3721
      %v3802 = vadd.f32 %v3554, %v3723
      %v3803 = vadd.f32 %v3555, %v3726
      %v3804 = vadd.f32 %v3556, %v3728
      %v3805 = vadd.f32 %v3557, %v3731
      %v3806 = vadd.f32 %v3558, %v3733
      %v3807 = vadd.f32 %v3559, %v3736
      %v3808 = vadd.f32 %v3560, %v3738
      %v3809 = vadd.f32 %v3561, %v3741
      %v3810 = vadd.f32 %v3562, %v3743
      %v3811 = vadd.f32 %v3563, %v3746
      %v3812 = vadd.f32 %v3564, %v3748
      %v3813 = vadd.f32 %v3565, %v3751
      %v3814 = vadd.f32 %v3566, %v3753
      %v3815 = vadd.f32 %v3567, %v3756
      %v3816 = vadd.f32 %v3568, %v3758
      %v3817 = vadd.f32 %v3569, %v3761
      %v3818 = vadd.f32 %v3570, %v3763
      %v3819 = vadd.f32 %v3571, %v3766
      %v3820 = vadd.f32 %v3572, %v3768
      %v3821 = vadd.f32 %v3573, %v3771
      %v3822 = vadd.f32 %v3574, %v3773
      %v3823 = vadd.f32 %v3575, %v3776
      %v3824 = vadd.f32 %v3576, %v3778
      %v3825 = vadd.f32 %v3577, %v3781
      %v3826 = vadd.f32 %v3578, %v3783
      %v3827 = vadd.f32 %v3579, %v3786
      %v3828 = vadd.f32 %v3580, %v3788
      %v3829 = vadd.f32 %v3581, %v3791
      %v3830 = vadd.f32 %v3582, %v3793
      %v3831 = vld [vmem:[%s1] sm:$0x1]
      %v3833 = vperm.slane %v3831, 0
      %v3835 = vmul.f32 %v3795, %v3833
      %v3836 = vmul.f32 %v3796, %v3833
      %v3837 = vmul.f32 %v3797, %v3833
      %v3838 = vmul.f32 %v3798, %v3833
      %v3839 = vmul.f32 %v3799, %v3833
      %v3840 = vmul.f32 %v3800, %v3833
      %v3841 = vmul.f32 %v3801, %v3833
      %v3842 = vmul.f32 %v3802, %v3833
      %v3843 = vmul.f32 %v3803, %v3833
      %v3844 = vmul.f32 %v3804, %v3833
      %v3845 = vmul.f32 %v3805, %v3833
      %v3846 = vmul.f32 %v3806, %v3833
      %v3847 = vmul.f32 %v3807, %v3833
      %v3848 = vmul.f32 %v3808, %v3833
      %v3849 = vmul.f32 %v3809, %v3833
      %v3850 = vmul.f32 %v3810, %v3833
      %v3851 = vmul.f32 %v3811, %v3833
      %v3852 = vmul.f32 %v3812, %v3833
      %v3853 = vmul.f32 %v3813, %v3833
      %v3854 = vmul.f32 %v3814, %v3833
      %v3855 = vmul.f32 %v3815, %v3833
      %v3856 = vmul.f32 %v3816, %v3833
      %v3857 = vmul.f32 %v3817, %v3833
      %v3858 = vmul.f32 %v3818, %v3833
      %v3859 = vmul.f32 %v3819, %v3833
      %v3860 = vmul.f32 %v3820, %v3833
      %v3861 = vmul.f32 %v3821, %v3833
      %v3862 = vmul.f32 %v3822, %v3833
      %v3863 = vmul.f32 %v3823, %v3833
      %v3864 = vmul.f32 %v3824, %v3833
      %v3865 = vmul.f32 %v3825, %v3833
      %v3866 = vmul.f32 %v3826, %v3833
      %v3867 = vmul.f32 %v3827, %v3833
      %v3868 = vmul.f32 %v3828, %v3833
      %v3869 = vmul.f32 %v3829, %v3833
      %v3870 = vmul.f32 %v3830, %v3833
      %v3871 = vld [vmem:[%s2] sm:$0x1]
      %v3873 = vperm.slane %v3871, 0
      %v3875 = vadd.f32 %v3835, %v3873
      %v3876 = vadd.f32 %v3836, %v3873
      %v3877 = vadd.f32 %v3837, %v3873
      %v3878 = vadd.f32 %v3838, %v3873
      %v3879 = vadd.f32 %v3839, %v3873
      %v3880 = vadd.f32 %v3840, %v3873
      %v3881 = vadd.f32 %v3841, %v3873
      %v3882 = vadd.f32 %v3842, %v3873
      %v3883 = vadd.f32 %v3843, %v3873
      %v3884 = vadd.f32 %v3844, %v3873
      %v3885 = vadd.f32 %v3845, %v3873
      %v3886 = vadd.f32 %v3846, %v3873
      %v3887 = vadd.f32 %v3847, %v3873
      %v3888 = vadd.f32 %v3848, %v3873
      %v3889 = vadd.f32 %v3849, %v3873
      %v3890 = vadd.f32 %v3850, %v3873
      %v3891 = vadd.f32 %v3851, %v3873
      %v3892 = vadd.f32 %v3852, %v3873
      %v3893 = vadd.f32 %v3853, %v3873
      %v3894 = vadd.f32 %v3854, %v3873
      %v3895 = vadd.f32 %v3855, %v3873
      %v3896 = vadd.f32 %v3856, %v3873
      %v3897 = vadd.f32 %v3857, %v3873
      %v3898 = vadd.f32 %v3858, %v3873
      %v3899 = vadd.f32 %v3859, %v3873
      %v3900 = vadd.f32 %v3860, %v3873
      %v3901 = vadd.f32 %v3861, %v3873
      %v3902 = vadd.f32 %v3862, %v3873
      %v3903 = vadd.f32 %v3863, %v3873
      %v3904 = vadd.f32 %v3864, %v3873
      %v3905 = vadd.f32 %v3865, %v3873
      %v3906 = vadd.f32 %v3866, %v3873
      %v3907 = vadd.f32 %v3867, %v3873
      %v3908 = vadd.f32 %v3868, %v3873
      %v3909 = vadd.f32 %v3869, %v3873
      %v3910 = vadd.f32 %v3870, %v3873
      %v3911 = vmax.f32 %v3875, 0.0
      %v3912 = vmax.f32 %v3876, 0.0
      %v3913 = vmax.f32 %v3877, 0.0
      %v3914 = vmax.f32 %v3878, 0.0
      %v3915 = vmax.f32 %v3879, 0.0
      %v3916 = vmax.f32 %v3880, 0.0
      %v3917 = vmax.f32 %v3881, 0.0
      %v3918 = vmax.f32 %v3882, 0.0
      %v3919 = vmax.f32 %v3883, 0.0
      %v3920 = vmax.f32 %v3884, 0.0
      %v3921 = vmax.f32 %v3885, 0.0
      %v3922 = vmax.f32 %v3886, 0.0
      %v3923 = vmax.f32 %v3887, 0.0
      %v3924 = vmax.f32 %v3888, 0.0
      %v3925 = vmax.f32 %v3889, 0.0
      %v3926 = vmax.f32 %v3890, 0.0
      %v3927 = vmax.f32 %v3891, 0.0
      %v3928 = vmax.f32 %v3892, 0.0
      %v3929 = vmax.f32 %v3893, 0.0
      %v3930 = vmax.f32 %v3894, 0.0
      %v3931 = vmax.f32 %v3895, 0.0
      %v3932 = vmax.f32 %v3896, 0.0
      %v3933 = vmax.f32 %v3897, 0.0
      %v3934 = vmax.f32 %v3898, 0.0
      %v3935 = vmax.f32 %v3899, 0.0
      %v3936 = vmax.f32 %v3900, 0.0
      %v3937 = vmax.f32 %v3901, 0.0
      %v3938 = vmax.f32 %v3902, 0.0
      %v3939 = vmax.f32 %v3903, 0.0
      %v3940 = vmax.f32 %v3904, 0.0
      %v3941 = vmax.f32 %v3905, 0.0
      %v3942 = vmax.f32 %v3906, 0.0
      %v3943 = vmax.f32 %v3907, 0.0
      %v3944 = vmax.f32 %v3908, 0.0
      %v3945 = vmax.f32 %v3909, 0.0
      %v3946 = vmax.f32 %v3910, 0.0
      %v3947 = vmul.f32 %v3911, %v1634
      %v3948 = vmul.f32 %v3912, %v1635
      %v3949 = vmul.f32 %v3913, %v1636
      %v3950 = vmul.f32 %v3914, %v1637
      %v3951 = vmul.f32 %v3915, %v1638
      %v3952 = vmul.f32 %v3916, %v1639
      %v3953 = vmul.f32 %v3917, %v1640
      %v3954 = vmul.f32 %v3918, %v1641
      %v3955 = vmul.f32 %v3919, %v1642
      %v3956 = vmul.f32 %v3920, %v1643
      %v3957 = vmul.f32 %v3921, %v1644
      %v3958 = vmul.f32 %v3922, %v1645
      %v3959 = vmul.f32 %v3923, %v1646
      %v3960 = vmul.f32 %v3924, %v1647
      %v3961 = vmul.f32 %v3925, %v1648
      %v3962 = vmul.f32 %v3926, %v1649
      %v3963 = vmul.f32 %v3927, %v1650
      %v3964 = vmul.f32 %v3928, %v1651
      %v3965 = vmul.f32 %v3929, %v1652
      %v3966 = vmul.f32 %v3930, %v1653
      %v3967 = vmul.f32 %v3931, %v1654
      %v3968 = vmul.f32 %v3932, %v1655
      %v3969 = vmul.f32 %v3933, %v1656
      %v3970 = vmul.f32 %v3934, %v1657
      %v3971 = vmul.f32 %v3935, %v1658
      %v3972 = vmul.f32 %v3936, %v1659
      %v3973 = vmul.f32 %v3937, %v1660
      %v3974 = vmul.f32 %v3938, %v1661
      %v3975 = vmul.f32 %v3939, %v1662
      %v3976 = vmul.f32 %v3940, %v1663
      %v3977 = vmul.f32 %v3941, %v1664
      %v3978 = vmul.f32 %v3942, %v1665
      %v3979 = vmul.f32 %v3943, %v1666
      %v3980 = vmul.f32 %v3944, %v1667
      %v3981 = vmul.f32 %v3945, %v1668
      %v3982 = vmul.f32 %v3946, %v1669
      %3983 = vst [vmem:[#allocation2] sm:$0xf] 0
      %3984 = vst [vmem:[#allocation2 + $0x4] sm:$0xf] 0
      %3985 = vst [vmem:[#allocation2 + $0x8] sm:$0xf] 0
      %3986 = vst [vmem:[#allocation2 + $0xc] sm:$0xf] 0
      %3987 = vst [vmem:[#allocation2 + $0xa0] sm:$0xf] 0
      %3988 = vst [vmem:[#allocation2 + $0xa4] sm:$0xf] 0
      %3989 = vst [vmem:[#allocation2 + $0xa8] sm:$0xf] 0
      %3990 = vst [vmem:[#allocation2 + $0xac] sm:$0xf] 0
      %v3991 = vpack.c.bf16 %v3947, %v3947
      %v3992 = vpack.c.bf16 %v3948, %v3948
      %v3993 = vpack.c.bf16 %v3949, %v3949
      %v3994 = vpack.c.bf16 %v3950, %v3950
      %v3995 = vpack.c.bf16 %v3951, %v3951
      %v3996 = vpack.c.bf16 %v3952, %v3952
      %v3997 = vpack.c.bf16 %v3953, %v3953
      %v3998 = vpack.c.bf16 %v3954, %v3954
      %v3999 = vpack.c.bf16 %v3955, %v3955
      %v4000 = vpack.c.bf16 %v3956, %v3956
      %v4001 = vpack.c.bf16 %v3957, %v3957
      %v4002 = vpack.c.bf16 %v3958, %v3958
      %v4003 = vpack.c.bf16 %v3959, %v3959
      %v4004 = vpack.c.bf16 %v3960, %v3960
      %v4005 = vpack.c.bf16 %v3961, %v3961
      %v4006 = vpack.c.bf16 %v3962, %v3962
      %v4007 = vpack.c.bf16 %v3963, %v3963
      %v4008 = vpack.c.bf16 %v3964, %v3964
      %v4009 = vpack.c.bf16 %v3965, %v3965
      %v4010 = vpack.c.bf16 %v3966, %v3966
      %v4011 = vpack.c.bf16 %v3967, %v3967
      %v4012 = vpack.c.bf16 %v3968, %v3968
      %v4013 = vpack.c.bf16 %v3969, %v3969
      %v4014 = vpack.c.bf16 %v3970, %v3970
      %v4015 = vpack.c.bf16 %v3971, %v3971
      %v4016 = vpack.c.bf16 %v3972, %v3972
      %v4017 = vpack.c.bf16 %v3973, %v3973
      %v4018 = vpack.c.bf16 %v3974, %v3974
      %v4019 = vpack.c.bf16 %v3975, %v3975
      %v4020 = vpack.c.bf16 %v3976, %v3976
      %v4021 = vpack.c.bf16 %v3977, %v3977
      %v4022 = vpack.c.bf16 %v3978, %v3978
      %v4023 = vpack.c.bf16 %v3979, %v3979
      %v4024 = vpack.c.bf16 %v3980, %v3980
      %v4025 = vpack.c.bf16 %v3981, %v3981
      %v4026 = vpack.c.bf16 %v3982, %v3982
      %4027 = vst [vmem:[#allocation2 + $0x10] sm:$0xf] %v3991
      %4028 = vst [vmem:[#allocation2 + $0x14] sm:$0xf] %v3992
      %4029 = vst [vmem:[#allocation2 + $0x18] sm:$0xf] %v3993
      %4030 = vst [vmem:[#allocation2 + $0x1c] sm:$0xf] %v3994
      %4031 = vst [vmem:[#allocation2 + $0x20] sm:$0xf] %v3995
      %4032 = vst [vmem:[#allocation2 + $0x24] sm:$0xf] %v3996
      %4033 = vst [vmem:[#allocation2 + $0x28] sm:$0xf] %v3997
      %4034 = vst [vmem:[#allocation2 + $0x2c] sm:$0xf] %v3998
      %4035 = vst [vmem:[#allocation2 + $0x30] sm:$0xf] %v3999
      %4036 = vst [vmem:[#allocation2 + $0x34] sm:$0xf] %v4000
      %4037 = vst [vmem:[#allocation2 + $0x38] sm:$0xf] %v4001
      %4038 = vst [vmem:[#allocation2 + $0x3c] sm:$0xf] %v4002
      %4039 = vst [vmem:[#allocation2 + $0x40] sm:$0xf] %v4003
      %4040 = vst [vmem:[#allocation2 + $0x44] sm:$0xf] %v4004
      %4041 = vst [vmem:[#allocation2 + $0x48] sm:$0xf] %v4005
      %4042 = vst [vmem:[#allocation2 + $0x4c] sm:$0xf] %v4006
      %4043 = vst [vmem:[#allocation2 + $0x50] sm:$0xf] %v4007
      %4044 = vst [vmem:[#allocation2 + $0x54] sm:$0xf] %v4008
      %4045 = vst [vmem:[#allocation2 + $0x58] sm:$0xf] %v4009
      %4046 = vst [vmem:[#allocation2 + $0x5c] sm:$0xf] %v4010
      %4047 = vst [vmem:[#allocation2 + $0x60] sm:$0xf] %v4011
      %4048 = vst [vmem:[#allocation2 + $0x64] sm:$0xf] %v4012
      %4049 = vst [vmem:[#allocation2 + $0x68] sm:$0xf] %v4013
      %4050 = vst [vmem:[#allocation2 + $0x6c] sm:$0xf] %v4014
      %4051 = vst [vmem:[#allocation2 + $0x70] sm:$0xf] %v4015
      %4052 = vst [vmem:[#allocation2 + $0x74] sm:$0xf] %v4016
      %4053 = vst [vmem:[#allocation2 + $0x78] sm:$0xf] %v4017
      %4054 = vst [vmem:[#allocation2 + $0x7c] sm:$0xf] %v4018
      %4055 = vst [vmem:[#allocation2 + $0x80] sm:$0xf] %v4019
      %4056 = vst [vmem:[#allocation2 + $0x84] sm:$0xf] %v4020
      %4057 = vst [vmem:[#allocation2 + $0x88] sm:$0xf] %v4021
      %4058 = vst [vmem:[#allocation2 + $0x8c] sm:$0xf] %v4022
      %4059 = vst [vmem:[#allocation2 + $0x90] sm:$0xf] %v4023
      %4060 = vst [vmem:[#allocation2 + $0x94] sm:$0xf] %v4024
      %4061 = vst [vmem:[#allocation2 + $0x98] sm:$0xf] %v4025
      %4062 = vst [vmem:[#allocation2 + $0x9c] sm:$0xf] %v4026
      %v4063 = vld [vmem:[#allocation2 + $0x4] sm:$0xc]
      %v4064 = vld [vmem:[#allocation2 + $0x8] sm:$0xf]
      %v4065 = vld [vmem:[#allocation2 + $0xc] sm:$0xf]
      %v4066 = vld [vmem:[#allocation2 + $0x10] sm:$0xf]
      %v4067 = vld [vmem:[#allocation2 + $0x14] sm:$0xf]
      %v4068 = vld [vmem:[#allocation2 + $0x18] sm:$0xf]
      %v4069 = vld [vmem:[#allocation2 + $0x1c] sm:$0xf]
      %v4070 = vld [vmem:[#allocation2 + $0x20] sm:$0xf]
      %v4071 = vld [vmem:[#allocation2 + $0x24] sm:$0xf]
      %v4072 = vld [vmem:[#allocation2 + $0x28] sm:$0xf]
      %v4073 = vld [vmem:[#allocation2 + $0x2c] sm:$0xf]
      %v4074 = vld [vmem:[#allocation2 + $0x30] sm:$0xf]
      %v4075 = vld [vmem:[#allocation2 + $0x34] sm:$0xf]
      %v4076 = vld [vmem:[#allocation2 + $0x38] sm:$0xf]
      %v4077 = vld [vmem:[#allocation2 + $0x3c] sm:$0xf]
      %v4078 = vld [vmem:[#allocation2 + $0x40] sm:$0xf]
      %v4079 = vld [vmem:[#allocation2 + $0x44] sm:$0xf]
      %v4080 = vld [vmem:[#allocation2 + $0x48] sm:$0xf]
      %v4081 = vld [vmem:[#allocation2 + $0x4c] sm:$0xf]
      %v4082 = vld [vmem:[#allocation2 + $0x50] sm:$0xf]
      %v4083 = vld [vmem:[#allocation2 + $0x54] sm:$0xf]
      %v4084 = vld [vmem:[#allocation2 + $0x58] sm:$0xf]
      %v4085 = vld [vmem:[#allocation2 + $0x5c] sm:$0xf]
      %v4086 = vld [vmem:[#allocation2 + $0x60] sm:$0xf]
      %v4087 = vld [vmem:[#allocation2 + $0x64] sm:$0xf]
      %v4088 = vld [vmem:[#allocation2 + $0x68] sm:$0xf]
      %v4089 = vld [vmem:[#allocation2 + $0x6c] sm:$0xf]
      %v4090 = vld [vmem:[#allocation2 + $0x70] sm:$0xf]
      %v4091 = vld [vmem:[#allocation2 + $0x74] sm:$0xf]
      %v4092 = vld [vmem:[#allocation2 + $0x78] sm:$0xf]
      %v4093 = vld [vmem:[#allocation2 + $0x7c] sm:$0xf]
      %v4094 = vld [vmem:[#allocation2 + $0x80] sm:$0xf]
      %v4095 = vld [vmem:[#allocation2 + $0x84] sm:$0xf]
      %v4096 = vld [vmem:[#allocation2 + $0x88] sm:$0xf]
      %v4097 = vld [vmem:[#allocation2 + $0x8c] sm:$0xf]
      %v4098 = vld [vmem:[#allocation2 + $0x90] sm:$0xf]
      %v4099 = vld [vmem:[#allocation2 + $0x94] sm:$0x7]
      %v4100 = vld [vmem:[%s4] sm:$0xf]
      %v4101 = vld [vmem:[%s4 + $0x4] sm:$0xf]
      %v4102 = vld [vmem:[%s4 + $0x8] sm:$0xf]
      %v4103 = vld [vmem:[%s4 + $0xc] sm:$0xf]
      %v4104 = vld [vmem:[%s4 + $0x10] sm:$0xf]
      %v4105 = vld [vmem:[%s4 + $0x14] sm:$0xf]
      %v4106 = vld [vmem:[%s4 + $0x18] sm:$0xf]
      %v4107 = vld [vmem:[%s4 + $0x1c] sm:$0xf]
      %v4108 = vld [vmem:[%s4 + $0x20] sm:$0xf]
      %v4109 = vld [vmem:[%s4 + $0x24] sm:$0xf]
      %v4110 = vld [vmem:[%s4 + $0x28] sm:$0xf]
      %v4111 = vld [vmem:[%s4 + $0x2c] sm:$0xf]
      %v4112 = vld [vmem:[%s4 + $0x30] sm:$0xf]
      %v4113 = vld [vmem:[%s4 + $0x34] sm:$0xf]
      %v4114 = vld [vmem:[%s4 + $0x38] sm:$0xf]
      %v4115 = vld [vmem:[%s4 + $0x3c] sm:$0xf]
      %v4116 = vld [vmem:[#allocation2 + $0x4] sm:$0x8]
      %s4117 = scalar_lea.vmem %s4, 64
      %v4118 = vld [vmem:[%s4117] sm:$0xf]
      %v4119 = vld [vmem:[%s4117 + $0x4] sm:$0xf]
      %v4120 = vld [vmem:[%s4117 + $0x8] sm:$0xf]
      %v4121 = vld [vmem:[%s4117 + $0xc] sm:$0xf]
      %v4122 = vld [vmem:[%s4117 + $0x10] sm:$0xf]
      %v4123 = vld [vmem:[%s4117 + $0x14] sm:$0xf]
      %v4124 = vld [vmem:[%s4117 + $0x18] sm:$0xf]
      %v4125 = vld [vmem:[%s4117 + $0x1c] sm:$0xf]
      %v4126 = vld [vmem:[%s4117 + $0x20] sm:$0xf]
      %v4127 = vld [vmem:[%s4117 + $0x24] sm:$0xf]
      %v4128 = vld [vmem:[%s4117 + $0x28] sm:$0xf]
      %v4129 = vld [vmem:[%s4117 + $0x2c] sm:$0xf]
      %v4130 = vld [vmem:[%s4117 + $0x30] sm:$0xf]
      %v4131 = vld [vmem:[%s4117 + $0x34] sm:$0xf]
      %v4132 = vld [vmem:[%s4117 + $0x38] sm:$0xf]
      %v4133 = vld [vmem:[%s4117 + $0x3c] sm:$0xf]
      %v4171 = vunpack.c.l.b16 %v4116
      %v4172 = vunpack.c.l.b16 %v4064
      %v4173 = vunpack.c.l.b16 %v4065
      %v4174 = vunpack.c.l.b16 %v4066
      %v4175 = vunpack.c.l.b16 %v4067
      %v4176 = vunpack.c.l.b16 %v4068
      %v4177 = vunpack.c.l.b16 %v4069
      %v4178 = vunpack.c.l.b16 %v4070
      %v4179 = vunpack.c.l.b16 %v4071
      %v4180 = vunpack.c.l.b16 %v4072
      %v4181 = vunpack.c.l.b16 %v4073
      %v4182 = vunpack.c.l.b16 %v4074
      %v4183 = vunpack.c.l.b16 %v4075
      %v4184 = vunpack.c.l.b16 %v4076
      %v4185 = vunpack.c.l.b16 %v4077
      %v4186 = vunpack.c.l.b16 %v4078
      %v4187 = vunpack.c.l.b16 %v4079
      %v4188 = vunpack.c.l.b16 %v4080
      %v4189 = vunpack.c.l.b16 %v4081
      %v4190 = vunpack.c.l.b16 %v4082
      %v4191 = vunpack.c.l.b16 %v4083
      %v4192 = vunpack.c.l.b16 %v4084
      %v4193 = vunpack.c.l.b16 %v4085
      %v4194 = vunpack.c.l.b16 %v4086
      %v4195 = vunpack.c.l.b16 %v4087
      %v4196 = vunpack.c.l.b16 %v4088
      %v4197 = vunpack.c.l.b16 %v4089
      %v4198 = vunpack.c.l.b16 %v4090
      %v4199 = vunpack.c.l.b16 %v4091
      %v4200 = vunpack.c.l.b16 %v4092
      %v4201 = vunpack.c.l.b16 %v4093
      %v4202 = vunpack.c.l.b16 %v4094
      %v4203 = vunpack.c.l.b16 %v4095
      %v4204 = vunpack.c.l.b16 %v4096
      %v4205 = vunpack.c.l.b16 %v4097
      %v4206 = vunpack.c.l.b16 %v4098
      %v4207 = vunpack.c.l.b16 %v4099
      %v4208 = vpack.c.b16 %v4172, %v4171
      %v4209 = vpack.c.b16 %v4174, %v4173
      %v4210 = vpack.c.b16 %v4176, %v4175
      %v4211 = vpack.c.b16 %v4178, %v4177
      %v4212 = vpack.c.b16 %v4180, %v4179
      %v4213 = vpack.c.b16 %v4182, %v4181
      %v4214 = vpack.c.b16 %v4184, %v4183
      %v4215 = vpack.c.b16 %v4186, %v4185
      %v4216 = vpack.c.b16 %v4188, %v4187
      %v4217 = vpack.c.b16 %v4190, %v4189
      %v4218 = vpack.c.b16 %v4192, %v4191
      %v4219 = vpack.c.b16 %v4194, %v4193
      %v4220 = vpack.c.b16 %v4196, %v4195
      %v4221 = vpack.c.b16 %v4198, %v4197
      %v4222 = vpack.c.b16 %v4200, %v4199
      %v4223 = vpack.c.b16 %v4202, %v4201
      %v4224 = vpack.c.b16 %v4204, %v4203
      %v4225 = vpack.c.b16 %v4206, %v4205
      %v4226 = vpack.c.b16 %v4207, %v4207
      %vm4227 = vcmask 1044480
      %v4228 = vrot.slane %v4208, 3
      %v4229 = vrot.slane %v4209, 3
      %v4230 = vsel %vm4227, %v4228, %v4229
      %v4231 = vrot.slane %v4210, 3
      %v4232 = vsel %vm4227, %v4229, %v4231
      %v4233 = vrot.slane %v4211, 3
      %v4234 = vsel %vm4227, %v4231, %v4233
      %v4235 = vrot.slane %v4212, 3
      %v4236 = vsel %vm4227, %v4233, %v4235
      %v4237 = vrot.slane %v4213, 3
      %v4238 = vsel %vm4227, %v4235, %v4237
      %v4239 = vrot.slane %v4214, 3
      %v4240 = vsel %vm4227, %v4237, %v4239
      %v4241 = vrot.slane %v4215, 3
      %v4242 = vsel %vm4227, %v4239, %v4241
      %v4243 = vrot.slane %v4216, 3
      %v4244 = vsel %vm4227, %v4241, %v4243
      %v4245 = vrot.slane %v4217, 3
      %v4246 = vsel %vm4227, %v4243, %v4245
      %v4247 = vrot.slane %v4218, 3
      %v4248 = vsel %vm4227, %v4245, %v4247
      %v4249 = vrot.slane %v4219, 3
      %v4250 = vsel %vm4227, %v4247, %v4249
      %v4251 = vrot.slane %v4220, 3
      %v4252 = vsel %vm4227, %v4249, %v4251
      %v4253 = vrot.slane %v4221, 3
      %v4254 = vsel %vm4227, %v4251, %v4253
      %v4255 = vrot.slane %v4222, 3
      %v4256 = vsel %vm4227, %v4253, %v4255
      %v4257 = vrot.slane %v4223, 3
      %v4258 = vsel %vm4227, %v4255, %v4257
      %v4259 = vrot.slane %v4224, 3
      %v4260 = vsel %vm4227, %v4257, %v4259
      %v4261 = vrot.slane %v4225, 3
      %v4262 = vsel %vm4227, %v4259, %v4261
      %v4263 = vrot.slane %v4226, 3
      %v4264 = vsel %vm4227, %v4261, %v4263
      %v4299 = vunpack.c.l.b16 %v4118
      %v4300 = vunpack.c.l.b16 %v4119
      %v4301 = vunpack.c.l.b16 %v4120
      %v4302 = vunpack.c.l.b16 %v4121
      %v4303 = vunpack.c.l.b16 %v4122
      %v4304 = vunpack.c.l.b16 %v4123
      %v4305 = vunpack.c.l.b16 %v4124
      %v4306 = vunpack.c.l.b16 %v4125
      %v4307 = vunpack.c.l.b16 %v4126
      %v4308 = vunpack.c.l.b16 %v4127
      %v4309 = vunpack.c.l.b16 %v4128
      %v4310 = vunpack.c.l.b16 %v4129
      %v4311 = vunpack.c.l.b16 %v4130
      %v4312 = vunpack.c.l.b16 %v4131
      %v4313 = vunpack.c.l.b16 %v4132
      %v4314 = vunpack.c.l.b16 %v4133
      %v4315 = vpack.c.b16 %v4300, %v4299
      %v4316 = vpack.c.b16 %v4302, %v4301
      %v4317 = vpack.c.b16 %v4304, %v4303
      %v4318 = vpack.c.b16 %v4306, %v4305
      %v4319 = vpack.c.b16 %v4308, %v4307
      %v4320 = vpack.c.b16 %v4310, %v4309
      %v4321 = vpack.c.b16 %v4312, %v4311
      %v4322 = vpack.c.b16 %v4314, %v4313
      %4331 = vmatpush.bf16.msra.mxu0 %v4322
      %4332 = vmatpush.bf16.msra.mxu0 %v4321
      %4333 = vmatpush.bf16.msra.mxu0 %v4320
      %4334 = vmatpush.bf16.msra.mxu0 %v4319
      %4335 = vmatpush.bf16.msra.mxu0 %v4318
      %4336 = vmatpush.bf16.msra.mxu0 %v4317
      %4337 = vmatpush.bf16.msra.mxu0 %v4316
      %4338 = vmatpush.bf16.msra.mxu0 %v4315
      %4339 = vmatmul.bf16.gmra.mxu0 %v4230
      %v4340 = vpop.f32.mrf.mxu0
      %v4341 = vadd.f32 0.0, %v4340
      %v4342 = vpop.f32.mrf.mxu0
      %v4343 = vadd.f32 0.0, %v4342
      %4344 = vmatmul.bf16.gmra.mxu0 %v4232
      %v4345 = vpop.f32.mrf.mxu0
      %v4346 = vadd.f32 0.0, %v4345
      %v4347 = vpop.f32.mrf.mxu0
      %v4348 = vadd.f32 0.0, %v4347
      %4349 = vmatmul.bf16.gmra.mxu0 %v4234
      %v4350 = vpop.f32.mrf.mxu0
      %v4351 = vadd.f32 0.0, %v4350
      %v4352 = vpop.f32.mrf.mxu0
      %v4353 = vadd.f32 0.0, %v4352
      %4354 = vmatmul.bf16.gmra.mxu0 %v4236
      %v4355 = vpop.f32.mrf.mxu0
      %v4356 = vadd.f32 0.0, %v4355
      %v4357 = vpop.f32.mrf.mxu0
      %v4358 = vadd.f32 0.0, %v4357
      %4359 = vmatmul.bf16.gmra.mxu0 %v4238
      %v4360 = vpop.f32.mrf.mxu0
      %v4361 = vadd.f32 0.0, %v4360
      %v4362 = vpop.f32.mrf.mxu0
      %v4363 = vadd.f32 0.0, %v4362
      %4364 = vmatmul.bf16.gmra.mxu0 %v4240
      %v4365 = vpop.f32.mrf.mxu0
      %v4366 = vadd.f32 0.0, %v4365
      %v4367 = vpop.f32.mrf.mxu0
      %v4368 = vadd.f32 0.0, %v4367
      %4369 = vmatmul.bf16.gmra.mxu0 %v4242
      %v4370 = vpop.f32.mrf.mxu0
      %v4371 = vadd.f32 0.0, %v4370
      %v4372 = vpop.f32.mrf.mxu0
      %v4373 = vadd.f32 0.0, %v4372
      %4374 = vmatmul.bf16.gmra.mxu0 %v4244
      %v4375 = vpop.f32.mrf.mxu0
      %v4376 = vadd.f32 0.0, %v4375
      %v4377 = vpop.f32.mrf.mxu0
      %v4378 = vadd.f32 0.0, %v4377
      %4379 = vmatmul.bf16.gmra.mxu0 %v4246
      %v4380 = vpop.f32.mrf.mxu0
      %v4381 = vadd.f32 0.0, %v4380
      %v4382 = vpop.f32.mrf.mxu0
      %v4383 = vadd.f32 0.0, %v4382
      %4384 = vmatmul.bf16.gmra.mxu0 %v4248
      %v4385 = vpop.f32.mrf.mxu0
      %v4386 = vadd.f32 0.0, %v4385
      %v4387 = vpop.f32.mrf.mxu0
      %v4388 = vadd.f32 0.0, %v4387
      %4389 = vmatmul.bf16.gmra.mxu0 %v4250
      %v4390 = vpop.f32.mrf.mxu0
      %v4391 = vadd.f32 0.0, %v4390
      %v4392 = vpop.f32.mrf.mxu0
      %v4393 = vadd.f32 0.0, %v4392
      %4394 = vmatmul.bf16.gmra.mxu0 %v4252
      %v4395 = vpop.f32.mrf.mxu0
      %v4396 = vadd.f32 0.0, %v4395
      %v4397 = vpop.f32.mrf.mxu0
      %v4398 = vadd.f32 0.0, %v4397
      %4399 = vmatmul.bf16.gmra.mxu0 %v4254
      %v4400 = vpop.f32.mrf.mxu0
      %v4401 = vadd.f32 0.0, %v4400
      %v4402 = vpop.f32.mrf.mxu0
      %v4403 = vadd.f32 0.0, %v4402
      %4404 = vmatmul.bf16.gmra.mxu0 %v4256
      %v4405 = vpop.f32.mrf.mxu0
      %v4406 = vadd.f32 0.0, %v4405
      %v4407 = vpop.f32.mrf.mxu0
      %v4408 = vadd.f32 0.0, %v4407
      %4409 = vmatmul.bf16.gmra.mxu0 %v4258
      %v4410 = vpop.f32.mrf.mxu0
      %v4411 = vadd.f32 0.0, %v4410
      %v4412 = vpop.f32.mrf.mxu0
      %v4413 = vadd.f32 0.0, %v4412
      %4414 = vmatmul.bf16.gmra.mxu0 %v4260
      %v4415 = vpop.f32.mrf.mxu0
      %v4416 = vadd.f32 0.0, %v4415
      %v4417 = vpop.f32.mrf.mxu0
      %v4418 = vadd.f32 0.0, %v4417
      %4419 = vmatmul.bf16.gmra.mxu0 %v4262
      %v4420 = vpop.f32.mrf.mxu0
      %v4421 = vadd.f32 0.0, %v4420
      %v4422 = vpop.f32.mrf.mxu0
      %v4423 = vadd.f32 0.0, %v4422
      %4424 = vmatmul.bf16.gmra.mxu0 %v4264
      %v4425 = vpop.f32.mrf.mxu0
      %v4426 = vadd.f32 0.0, %v4425
      %v4427 = vpop.f32.mrf.mxu0
      %v4428 = vadd.f32 0.0, %v4427
      %4429 = vdwg.mxu0
      %v4431 = vunpack.c.l.b16 %v4063
      %v4432 = vpack.c.b16 %v4172, %v4431
      %vm4433 = vsmask.f32 5376
      %v4435 = vshrl.u32 %v4432, 16
      %v4437 = vrot.slane %v4435, 2
      %v4438 = vshll.u32 %v4432, 16
      %v4440 = vrot.slane %v4438, 3
      %v4441 = vor.u32 %v4437, %v4440
      %v4443 = vshrl.u32 %v4209, 16
      %v4445 = vrot.slane %v4443, 2
      %v4446 = vshll.u32 %v4209, 16
      %v4448 = vrot.slane %v4446, 3
      %v4449 = vor.u32 %v4445, %v4448
      %v4450 = vsel %vm4433, %v4441, %v4449
      %v4452 = vshrl.u32 %v4210, 16
      %v4454 = vrot.slane %v4452, 2
      %v4455 = vshll.u32 %v4210, 16
      %v4457 = vrot.slane %v4455, 3
      %v4458 = vor.u32 %v4454, %v4457
      %v4459 = vsel %vm4433, %v4449, %v4458
      %v4461 = vshrl.u32 %v4211, 16
      %v4463 = vrot.slane %v4461, 2
      %v4464 = vshll.u32 %v4211, 16
      %v4466 = vrot.slane %v4464, 3
      %v4467 = vor.u32 %v4463, %v4466
      %v4468 = vsel %vm4433, %v4458, %v4467
      %v4470 = vshrl.u32 %v4212, 16
      %v4472 = vrot.slane %v4470, 2
      %v4473 = vshll.u32 %v4212, 16
      %v4475 = vrot.slane %v4473, 3
      %v4476 = vor.u32 %v4472, %v4475
      %v4477 = vsel %vm4433, %v4467, %v4476
      %v4479 = vshrl.u32 %v4213, 16
      %v4481 = vrot.slane %v4479, 2
      %v4482 = vshll.u32 %v4213, 16
      %v4484 = vrot.slane %v4482, 3
      %v4485 = vor.u32 %v4481, %v4484
      %v4486 = vsel %vm4433, %v4476, %v4485
      %v4488 = vshrl.u32 %v4214, 16
      %v4490 = vrot.slane %v4488, 2
      %v4491 = vshll.u32 %v4214, 16
      %v4493 = vrot.slane %v4491, 3
      %v4494 = vor.u32 %v4490, %v4493
      %v4495 = vsel %vm4433, %v4485, %v4494
      %v4497 = vshrl.u32 %v4215, 16
      %v4499 = vrot.slane %v4497, 2
      %v4500 = vshll.u32 %v4215, 16
      %v4502 = vrot.slane %v4500, 3
      %v4503 = vor.u32 %v4499, %v4502
      %v4504 = vsel %vm4433, %v4494, %v4503
      %v4506 = vshrl.u32 %v4216, 16
      %v4508 = vrot.slane %v4506, 2
      %v4509 = vshll.u32 %v4216, 16
      %v4511 = vrot.slane %v4509, 3
      %v4512 = vor.u32 %v4508, %v4511
      %v4513 = vsel %vm4433, %v4503, %v4512
      %v4515 = vshrl.u32 %v4217, 16
      %v4517 = vrot.slane %v4515, 2
      %v4518 = vshll.u32 %v4217, 16
      %v4520 = vrot.slane %v4518, 3
      %v4521 = vor.u32 %v4517, %v4520
      %v4522 = vsel %vm4433, %v4512, %v4521
      %v4524 = vshrl.u32 %v4218, 16
      %v4526 = vrot.slane %v4524, 2
      %v4527 = vshll.u32 %v4218, 16
      %v4529 = vrot.slane %v4527, 3
      %v4530 = vor.u32 %v4526, %v4529
      %v4531 = vsel %vm4433, %v4521, %v4530
      %v4533 = vshrl.u32 %v4219, 16
      %v4535 = vrot.slane %v4533, 2
      %v4536 = vshll.u32 %v4219, 16
      %v4538 = vrot.slane %v4536, 3
      %v4539 = vor.u32 %v4535, %v4538
      %v4540 = vsel %vm4433, %v4530, %v4539
      %v4542 = vshrl.u32 %v4220, 16
      %v4544 = vrot.slane %v4542, 2
      %v4545 = vshll.u32 %v4220, 16
      %v4547 = vrot.slane %v4545, 3
      %v4548 = vor.u32 %v4544, %v4547
      %v4549 = vsel %vm4433, %v4539, %v4548
      %v4551 = vshrl.u32 %v4221, 16
      %v4553 = vrot.slane %v4551, 2
      %v4554 = vshll.u32 %v4221, 16
      %v4556 = vrot.slane %v4554, 3
      %v4557 = vor.u32 %v4553, %v4556
      %v4558 = vsel %vm4433, %v4548, %v4557
      %v4560 = vshrl.u32 %v4222, 16
      %v4562 = vrot.slane %v4560, 2
      %v4563 = vshll.u32 %v4222, 16
      %v4565 = vrot.slane %v4563, 3
      %v4566 = vor.u32 %v4562, %v4565
      %v4567 = vsel %vm4433, %v4557, %v4566
      %v4569 = vshrl.u32 %v4223, 16
      %v4571 = vrot.slane %v4569, 2
      %v4572 = vshll.u32 %v4223, 16
      %v4574 = vrot.slane %v4572, 3
      %v4575 = vor.u32 %v4571, %v4574
      %v4576 = vsel %vm4433, %v4566, %v4575
      %v4578 = vshrl.u32 %v4224, 16
      %v4580 = vrot.slane %v4578, 2
      %v4581 = vshll.u32 %v4224, 16
      %v4583 = vrot.slane %v4581, 3
      %v4584 = vor.u32 %v4580, %v4583
      %v4585 = vsel %vm4433, %v4575, %v4584
      %v4587 = vshrl.u32 %v4225, 16
      %v4589 = vrot.slane %v4587, 2
      %v4590 = vshll.u32 %v4225, 16
      %v4592 = vrot.slane %v4590, 3
      %v4593 = vor.u32 %v4589, %v4592
      %v4594 = vsel %vm4433, %v4584, %v4593
      %v4596 = vshrl.u32 %v4226, 16
      %v4598 = vrot.slane %v4596, 2
      %v4599 = vshll.u32 %v4226, 16
      %v4601 = vrot.slane %v4599, 3
      %v4602 = vor.u32 %v4598, %v4601
      %v4603 = vsel %vm4433, %v4593, %v4602
      %v4638 = vunpack.c.l.b16 %v4100
      %v4639 = vunpack.c.l.b16 %v4101
      %v4640 = vunpack.c.l.b16 %v4102
      %v4641 = vunpack.c.l.b16 %v4103
      %v4642 = vunpack.c.l.b16 %v4104
      %v4643 = vunpack.c.l.b16 %v4105
      %v4644 = vunpack.c.l.b16 %v4106
      %v4645 = vunpack.c.l.b16 %v4107
      %v4646 = vunpack.c.l.b16 %v4108
      %v4647 = vunpack.c.l.b16 %v4109
      %v4648 = vunpack.c.l.b16 %v4110
      %v4649 = vunpack.c.l.b16 %v4111
      %v4650 = vunpack.c.l.b16 %v4112
      %v4651 = vunpack.c.l.b16 %v4113
      %v4652 = vunpack.c.l.b16 %v4114
      %v4653 = vunpack.c.l.b16 %v4115
      %v4654 = vpack.c.b16 %v4639, %v4638
      %v4655 = vpack.c.b16 %v4641, %v4640
      %v4656 = vpack.c.b16 %v4643, %v4642
      %v4657 = vpack.c.b16 %v4645, %v4644
      %v4658 = vpack.c.b16 %v4647, %v4646
      %v4659 = vpack.c.b16 %v4649, %v4648
      %v4660 = vpack.c.b16 %v4651, %v4650
      %v4661 = vpack.c.b16 %v4653, %v4652
      %4670 = vmatpush.bf16.msra.mxu0 %v4661
      %4671 = vmatpush.bf16.msra.mxu0 %v4660
      %4672 = vmatpush.bf16.msra.mxu0 %v4659
      %4673 = vmatpush.bf16.msra.mxu0 %v4658
      %4674 = vmatpush.bf16.msra.mxu0 %v4657
      %4675 = vmatpush.bf16.msra.mxu0 %v4656
      %4676 = vmatpush.bf16.msra.mxu0 %v4655
      %4677 = vmatpush.bf16.msra.mxu0 %v4654
      %4678 = vmatmul.bf16.gmra.mxu0 %v4450
      %v4679 = vpop.f32.mrf.mxu0
      %v4680 = vadd.f32 %v4341, %v4679
      %v4681 = vpop.f32.mrf.mxu0
      %v4682 = vadd.f32 %v4343, %v4681
      %4683 = vmatmul.bf16.gmra.mxu0 %v4459
      %v4684 = vpop.f32.mrf.mxu0
      %v4685 = vadd.f32 %v4346, %v4684
      %v4686 = vpop.f32.mrf.mxu0
      %v4687 = vadd.f32 %v4348, %v4686
      %4688 = vmatmul.bf16.gmra.mxu0 %v4468
      %v4689 = vpop.f32.mrf.mxu0
      %v4690 = vadd.f32 %v4351, %v4689
      %v4691 = vpop.f32.mrf.mxu0
      %v4692 = vadd.f32 %v4353, %v4691
      %4693 = vmatmul.bf16.gmra.mxu0 %v4477
      %v4694 = vpop.f32.mrf.mxu0
      %v4695 = vadd.f32 %v4356, %v4694
      %v4696 = vpop.f32.mrf.mxu0
      %v4697 = vadd.f32 %v4358, %v4696
      %4698 = vmatmul.bf16.gmra.mxu0 %v4486
      %v4699 = vpop.f32.mrf.mxu0
      %v4700 = vadd.f32 %v4361, %v4699
      %v4701 = vpop.f32.mrf.mxu0
      %v4702 = vadd.f32 %v4363, %v4701
      %4703 = vmatmul.bf16.gmra.mxu0 %v4495
      %v4704 = vpop.f32.mrf.mxu0
      %v4705 = vadd.f32 %v4366, %v4704
      %v4706 = vpop.f32.mrf.mxu0
      %v4707 = vadd.f32 %v4368, %v4706
      %4708 = vmatmul.bf16.gmra.mxu0 %v4504
      %v4709 = vpop.f32.mrf.mxu0
      %v4710 = vadd.f32 %v4371, %v4709
      %v4711 = vpop.f32.mrf.mxu0
      %v4712 = vadd.f32 %v4373, %v4711
      %4713 = vmatmul.bf16.gmra.mxu0 %v4513
      %v4714 = vpop.f32.mrf.mxu0
      %v4715 = vadd.f32 %v4376, %v4714
      %v4716 = vpop.f32.mrf.mxu0
      %v4717 = vadd.f32 %v4378, %v4716
      %4718 = vmatmul.bf16.gmra.mxu0 %v4522
      %v4719 = vpop.f32.mrf.mxu0
      %v4720 = vadd.f32 %v4381, %v4719
      %v4721 = vpop.f32.mrf.mxu0
      %v4722 = vadd.f32 %v4383, %v4721
      %4723 = vmatmul.bf16.gmra.mxu0 %v4531
      %v4724 = vpop.f32.mrf.mxu0
      %v4725 = vadd.f32 %v4386, %v4724
      %v4726 = vpop.f32.mrf.mxu0
      %v4727 = vadd.f32 %v4388, %v4726
      %4728 = vmatmul.bf16.gmra.mxu0 %v4540
      %v4729 = vpop.f32.mrf.mxu0
      %v4730 = vadd.f32 %v4391, %v4729
      %v4731 = vpop.f32.mrf.mxu0
      %v4732 = vadd.f32 %v4393, %v4731
      %4733 = vmatmul.bf16.gmra.mxu0 %v4549
      %v4734 = vpop.f32.mrf.mxu0
      %v4735 = vadd.f32 %v4396, %v4734
      %v4736 = vpop.f32.mrf.mxu0
      %v4737 = vadd.f32 %v4398, %v4736
      %4738 = vmatmul.bf16.gmra.mxu0 %v4558
      %v4739 = vpop.f32.mrf.mxu0
      %v4740 = vadd.f32 %v4401, %v4739
      %v4741 = vpop.f32.mrf.mxu0
      %v4742 = vadd.f32 %v4403, %v4741
      %4743 = vmatmul.bf16.gmra.mxu0 %v4567
      %v4744 = vpop.f32.mrf.mxu0
      %v4745 = vadd.f32 %v4406, %v4744
      %v4746 = vpop.f32.mrf.mxu0
      %v4747 = vadd.f32 %v4408, %v4746
      %4748 = vmatmul.bf16.gmra.mxu0 %v4576
      %v4749 = vpop.f32.mrf.mxu0
      %v4750 = vadd.f32 %v4411, %v4749
      %v4751 = vpop.f32.mrf.mxu0
      %v4752 = vadd.f32 %v4413, %v4751
      %4753 = vmatmul.bf16.gmra.mxu0 %v4585
      %v4754 = vpop.f32.mrf.mxu0
      %v4755 = vadd.f32 %v4416, %v4754
      %v4756 = vpop.f32.mrf.mxu0
      %v4757 = vadd.f32 %v4418, %v4756
      %4758 = vmatmul.bf16.gmra.mxu0 %v4594
      %v4759 = vpop.f32.mrf.mxu0
      %v4760 = vadd.f32 %v4421, %v4759
      %v4761 = vpop.f32.mrf.mxu0
      %v4762 = vadd.f32 %v4423, %v4761
      %4763 = vmatmul.bf16.gmra.mxu0 %v4603
      %v4764 = vpop.f32.mrf.mxu0
      %v4765 = vadd.f32 %v4426, %v4764
      %v4766 = vpop.f32.mrf.mxu0
      %v4767 = vadd.f32 %v4428, %v4766
      %4768 = vdwg.mxu0
      %v4769 = vld [vmem:[#allocation2 + $0x94] sm:$0xf]
      %s4770 = scalar_lea.vmem %s4, 128
      %v4771 = vld [vmem:[%s4770] sm:$0xf]
      %v4772 = vld [vmem:[%s4770 + $0x4] sm:$0xf]
      %v4773 = vld [vmem:[%s4770 + $0x8] sm:$0xf]
      %v4774 = vld [vmem:[%s4770 + $0xc] sm:$0xf]
      %v4775 = vld [vmem:[%s4770 + $0x10] sm:$0xf]
      %v4776 = vld [vmem:[%s4770 + $0x14] sm:$0xf]
      %v4777 = vld [vmem:[%s4770 + $0x18] sm:$0xf]
      %v4778 = vld [vmem:[%s4770 + $0x1c] sm:$0xf]
      %v4779 = vld [vmem:[%s4770 + $0x20] sm:$0xf]
      %v4780 = vld [vmem:[%s4770 + $0x24] sm:$0xf]
      %v4781 = vld [vmem:[%s4770 + $0x28] sm:$0xf]
      %v4782 = vld [vmem:[%s4770 + $0x2c] sm:$0xf]
      %v4783 = vld [vmem:[%s4770 + $0x30] sm:$0xf]
      %v4784 = vld [vmem:[%s4770 + $0x34] sm:$0xf]
      %v4785 = vld [vmem:[%s4770 + $0x38] sm:$0xf]
      %v4786 = vld [vmem:[%s4770 + $0x3c] sm:$0xf]
      %v4788 = vunpack.c.l.b16 %v4769
      %v4789 = vpack.c.b16 %v4788, %v4788
      %vm4790 = vsmask.f32 4352
      %v4792 = vshrl.u32 %v4208, 16
      %v4794 = vrot.slane %v4792, 3
      %v4795 = vshll.u32 %v4208, 16
      %v4797 = vrot.slane %v4795, 4
      %v4798 = vor.u32 %v4794, %v4797
      %v4799 = vrot.slane %v4443, 3
      %v4800 = vrot.slane %v4446, 4
      %v4801 = vor.u32 %v4799, %v4800
      %v4802 = vsel %vm4790, %v4798, %v4801
      %v4803 = vrot.slane %v4452, 3
      %v4804 = vrot.slane %v4455, 4
      %v4805 = vor.u32 %v4803, %v4804
      %v4806 = vsel %vm4790, %v4801, %v4805
      %v4807 = vrot.slane %v4461, 3
      %v4808 = vrot.slane %v4464, 4
      %v4809 = vor.u32 %v4807, %v4808
      %v4810 = vsel %vm4790, %v4805, %v4809
      %v4811 = vrot.slane %v4470, 3
      %v4812 = vrot.slane %v4473, 4
      %v4813 = vor.u32 %v4811, %v4812
      %v4814 = vsel %vm4790, %v4809, %v4813
      %v4815 = vrot.slane %v4479, 3
      %v4816 = vrot.slane %v4482, 4
      %v4817 = vor.u32 %v4815, %v4816
      %v4818 = vsel %vm4790, %v4813, %v4817
      %v4819 = vrot.slane %v4488, 3
      %v4820 = vrot.slane %v4491, 4
      %v4821 = vor.u32 %v4819, %v4820
      %v4822 = vsel %vm4790, %v4817, %v4821
      %v4823 = vrot.slane %v4497, 3
      %v4824 = vrot.slane %v4500, 4
      %v4825 = vor.u32 %v4823, %v4824
      %v4826 = vsel %vm4790, %v4821, %v4825
      %v4827 = vrot.slane %v4506, 3
      %v4828 = vrot.slane %v4509, 4
      %v4829 = vor.u32 %v4827, %v4828
      %v4830 = vsel %vm4790, %v4825, %v4829
      %v4831 = vrot.slane %v4515, 3
      %v4832 = vrot.slane %v4518, 4
      %v4833 = vor.u32 %v4831, %v4832
      %v4834 = vsel %vm4790, %v4829, %v4833
      %v4835 = vrot.slane %v4524, 3
      %v4836 = vrot.slane %v4527, 4
      %v4837 = vor.u32 %v4835, %v4836
      %v4838 = vsel %vm4790, %v4833, %v4837
      %v4839 = vrot.slane %v4533, 3
      %v4840 = vrot.slane %v4536, 4
      %v4841 = vor.u32 %v4839, %v4840
      %v4842 = vsel %vm4790, %v4837, %v4841
      %v4843 = vrot.slane %v4542, 3
      %v4844 = vrot.slane %v4545, 4
      %v4845 = vor.u32 %v4843, %v4844
      %v4846 = vsel %vm4790, %v4841, %v4845
      %v4847 = vrot.slane %v4551, 3
      %v4848 = vrot.slane %v4554, 4
      %v4849 = vor.u32 %v4847, %v4848
      %v4850 = vsel %vm4790, %v4845, %v4849
      %v4851 = vrot.slane %v4560, 3
      %v4852 = vrot.slane %v4563, 4
      %v4853 = vor.u32 %v4851, %v4852
      %v4854 = vsel %vm4790, %v4849, %v4853
      %v4855 = vrot.slane %v4569, 3
      %v4856 = vrot.slane %v4572, 4
      %v4857 = vor.u32 %v4855, %v4856
      %v4858 = vsel %vm4790, %v4853, %v4857
      %v4859 = vrot.slane %v4578, 3
      %v4860 = vrot.slane %v4581, 4
      %v4861 = vor.u32 %v4859, %v4860
      %v4862 = vsel %vm4790, %v4857, %v4861
      %v4863 = vrot.slane %v4587, 3
      %v4864 = vrot.slane %v4590, 4
      %v4865 = vor.u32 %v4863, %v4864
      %v4866 = vsel %vm4790, %v4861, %v4865
      %v4868 = vshrl.u32 %v4789, 16
      %v4870 = vrot.slane %v4868, 3
      %v4871 = vshll.u32 %v4789, 16
      %v4873 = vrot.slane %v4871, 4
      %v4874 = vor.u32 %v4870, %v4873
      %v4875 = vsel %vm4790, %v4865, %v4874
      %v4910 = vunpack.c.l.b16 %v4771
      %v4911 = vunpack.c.l.b16 %v4772
      %v4912 = vunpack.c.l.b16 %v4773
      %v4913 = vunpack.c.l.b16 %v4774
      %v4914 = vunpack.c.l.b16 %v4775
      %v4915 = vunpack.c.l.b16 %v4776
      %v4916 = vunpack.c.l.b16 %v4777
      %v4917 = vunpack.c.l.b16 %v4778
      %v4918 = vunpack.c.l.b16 %v4779
      %v4919 = vunpack.c.l.b16 %v4780
      %v4920 = vunpack.c.l.b16 %v4781
      %v4921 = vunpack.c.l.b16 %v4782
      %v4922 = vunpack.c.l.b16 %v4783
      %v4923 = vunpack.c.l.b16 %v4784
      %v4924 = vunpack.c.l.b16 %v4785
      %v4925 = vunpack.c.l.b16 %v4786
      %v4926 = vpack.c.b16 %v4911, %v4910
      %v4927 = vpack.c.b16 %v4913, %v4912
      %v4928 = vpack.c.b16 %v4915, %v4914
      %v4929 = vpack.c.b16 %v4917, %v4916
      %v4930 = vpack.c.b16 %v4919, %v4918
      %v4931 = vpack.c.b16 %v4921, %v4920
      %v4932 = vpack.c.b16 %v4923, %v4922
      %v4933 = vpack.c.b16 %v4925, %v4924
      %4942 = vmatpush.bf16.msra.mxu0 %v4933
      %4943 = vmatpush.bf16.msra.mxu0 %v4932
      %4944 = vmatpush.bf16.msra.mxu0 %v4931
      %4945 = vmatpush.bf16.msra.mxu0 %v4930
      %4946 = vmatpush.bf16.msra.mxu0 %v4929
      %4947 = vmatpush.bf16.msra.mxu0 %v4928
      %4948 = vmatpush.bf16.msra.mxu0 %v4927
      %4949 = vmatpush.bf16.msra.mxu0 %v4926
      %4950 = vmatmul.bf16.gmra.mxu0 %v4802
      %v4951 = vpop.f32.mrf.mxu0
      %v4952 = vadd.f32 0.0, %v4951
      %v4953 = vpop.f32.mrf.mxu0
      %v4954 = vadd.f32 0.0, %v4953
      %4955 = vmatmul.bf16.gmra.mxu0 %v4806
      %v4956 = vpop.f32.mrf.mxu0
      %v4957 = vadd.f32 0.0, %v4956
      %v4958 = vpop.f32.mrf.mxu0
      %v4959 = vadd.f32 0.0, %v4958
      %4960 = vmatmul.bf16.gmra.mxu0 %v4810
      %v4961 = vpop.f32.mrf.mxu0
      %v4962 = vadd.f32 0.0, %v4961
      %v4963 = vpop.f32.mrf.mxu0
      %v4964 = vadd.f32 0.0, %v4963
      %4965 = vmatmul.bf16.gmra.mxu0 %v4814
      %v4966 = vpop.f32.mrf.mxu0
      %v4967 = vadd.f32 0.0, %v4966
      %v4968 = vpop.f32.mrf.mxu0
      %v4969 = vadd.f32 0.0, %v4968
      %4970 = vmatmul.bf16.gmra.mxu0 %v4818
      %v4971 = vpop.f32.mrf.mxu0
      %v4972 = vadd.f32 0.0, %v4971
      %v4973 = vpop.f32.mrf.mxu0
      %v4974 = vadd.f32 0.0, %v4973
      %4975 = vmatmul.bf16.gmra.mxu0 %v4822
      %v4976 = vpop.f32.mrf.mxu0
      %v4977 = vadd.f32 0.0, %v4976
      %v4978 = vpop.f32.mrf.mxu0
      %v4979 = vadd.f32 0.0, %v4978
      %4980 = vmatmul.bf16.gmra.mxu0 %v4826
      %v4981 = vpop.f32.mrf.mxu0
      %v4982 = vadd.f32 0.0, %v4981
      %v4983 = vpop.f32.mrf.mxu0
      %v4984 = vadd.f32 0.0, %v4983
      %4985 = vmatmul.bf16.gmra.mxu0 %v4830
      %v4986 = vpop.f32.mrf.mxu0
      %v4987 = vadd.f32 0.0, %v4986
      %v4988 = vpop.f32.mrf.mxu0
      %v4989 = vadd.f32 0.0, %v4988
      %4990 = vmatmul.bf16.gmra.mxu0 %v4834
      %v4991 = vpop.f32.mrf.mxu0
      %v4992 = vadd.f32 0.0, %v4991
      %v4993 = vpop.f32.mrf.mxu0
      %v4994 = vadd.f32 0.0, %v4993
      %4995 = vmatmul.bf16.gmra.mxu0 %v4838
      %v4996 = vpop.f32.mrf.mxu0
      %v4997 = vadd.f32 0.0, %v4996
      %v4998 = vpop.f32.mrf.mxu0
      %v4999 = vadd.f32 0.0, %v4998
      %5000 = vmatmul.bf16.gmra.mxu0 %v4842
      %v5001 = vpop.f32.mrf.mxu0
      %v5002 = vadd.f32 0.0, %v5001
      %v5003 = vpop.f32.mrf.mxu0
      %v5004 = vadd.f32 0.0, %v5003
      %5005 = vmatmul.bf16.gmra.mxu0 %v4846
      %v5006 = vpop.f32.mrf.mxu0
      %v5007 = vadd.f32 0.0, %v5006
      %v5008 = vpop.f32.mrf.mxu0
      %v5009 = vadd.f32 0.0, %v5008
      %5010 = vmatmul.bf16.gmra.mxu0 %v4850
      %v5011 = vpop.f32.mrf.mxu0
      %v5012 = vadd.f32 0.0, %v5011
      %v5013 = vpop.f32.mrf.mxu0
      %v5014 = vadd.f32 0.0, %v5013
      %5015 = vmatmul.bf16.gmra.mxu0 %v4854
      %v5016 = vpop.f32.mrf.mxu0
      %v5017 = vadd.f32 0.0, %v5016
      %v5018 = vpop.f32.mrf.mxu0
      %v5019 = vadd.f32 0.0, %v5018
      %5020 = vmatmul.bf16.gmra.mxu0 %v4858
      %v5021 = vpop.f32.mrf.mxu0
      %v5022 = vadd.f32 0.0, %v5021
      %v5023 = vpop.f32.mrf.mxu0
      %v5024 = vadd.f32 0.0, %v5023
      %5025 = vmatmul.bf16.gmra.mxu0 %v4862
      %v5026 = vpop.f32.mrf.mxu0
      %v5027 = vadd.f32 0.0, %v5026
      %v5028 = vpop.f32.mrf.mxu0
      %v5029 = vadd.f32 0.0, %v5028
      %5030 = vmatmul.bf16.gmra.mxu0 %v4866
      %v5031 = vpop.f32.mrf.mxu0
      %v5032 = vadd.f32 0.0, %v5031
      %v5033 = vpop.f32.mrf.mxu0
      %v5034 = vadd.f32 0.0, %v5033
      %5035 = vmatmul.bf16.gmra.mxu0 %v4875
      %v5036 = vpop.f32.mrf.mxu0
      %v5037 = vadd.f32 0.0, %v5036
      %v5038 = vpop.f32.mrf.mxu0
      %v5039 = vadd.f32 0.0, %v5038
      %5040 = vdwg.mxu0
      %v5041 = vadd.f32 %v4680, %v4952
      %v5042 = vadd.f32 %v4682, %v4954
      %v5043 = vadd.f32 %v4685, %v4957
      %v5044 = vadd.f32 %v4687, %v4959
      %v5045 = vadd.f32 %v4690, %v4962
      %v5046 = vadd.f32 %v4692, %v4964
      %v5047 = vadd.f32 %v4695, %v4967
      %v5048 = vadd.f32 %v4697, %v4969
      %v5049 = vadd.f32 %v4700, %v4972
      %v5050 = vadd.f32 %v4702, %v4974
      %v5051 = vadd.f32 %v4705, %v4977
      %v5052 = vadd.f32 %v4707, %v4979
      %v5053 = vadd.f32 %v4710, %v4982
      %v5054 = vadd.f32 %v4712, %v4984
      %v5055 = vadd.f32 %v4715, %v4987
      %v5056 = vadd.f32 %v4717, %v4989
      %v5057 = vadd.f32 %v4720, %v4992
      %v5058 = vadd.f32 %v4722, %v4994
      %v5059 = vadd.f32 %v4725, %v4997
      %v5060 = vadd.f32 %v4727, %v4999
      %v5061 = vadd.f32 %v4730, %v5002
      %v5062 = vadd.f32 %v4732, %v5004
      %v5063 = vadd.f32 %v4735, %v5007
      %v5064 = vadd.f32 %v4737, %v5009
      %v5065 = vadd.f32 %v4740, %v5012
      %v5066 = vadd.f32 %v4742, %v5014
      %v5067 = vadd.f32 %v4745, %v5017
      %v5068 = vadd.f32 %v4747, %v5019
      %v5069 = vadd.f32 %v4750, %v5022
      %v5070 = vadd.f32 %v4752, %v5024
      %v5071 = vadd.f32 %v4755, %v5027
      %v5072 = vadd.f32 %v4757, %v5029
      %v5073 = vadd.f32 %v4760, %v5032
      %v5074 = vadd.f32 %v4762, %v5034
      %v5075 = vadd.f32 %v4765, %v5037
      %v5076 = vadd.f32 %v4767, %v5039
      %v5077 = vld [vmem:[#allocation2 + $0xc] sm:$0x8]
      %v5078 = vld [vmem:[#allocation2 + $0x10] sm:$0xf]
      %v5079 = vld [vmem:[#allocation2 + $0x14] sm:$0xf]
      %v5080 = vld [vmem:[#allocation2 + $0x18] sm:$0xf]
      %v5081 = vld [vmem:[#allocation2 + $0x1c] sm:$0xf]
      %v5082 = vld [vmem:[#allocation2 + $0x20] sm:$0xf]
      %v5083 = vld [vmem:[#allocation2 + $0x24] sm:$0xf]
      %v5084 = vld [vmem:[#allocation2 + $0x28] sm:$0xf]
      %v5085 = vld [vmem:[#allocation2 + $0x2c] sm:$0xf]
      %v5086 = vld [vmem:[#allocation2 + $0x30] sm:$0xf]
      %v5087 = vld [vmem:[#allocation2 + $0x34] sm:$0xf]
      %v5088 = vld [vmem:[#allocation2 + $0x38] sm:$0xf]
      %v5089 = vld [vmem:[#allocation2 + $0x3c] sm:$0xf]
      %v5090 = vld [vmem:[#allocation2 + $0x40] sm:$0xf]
      %v5091 = vld [vmem:[#allocation2 + $0x44] sm:$0xf]
      %v5092 = vld [vmem:[#allocation2 + $0x48] sm:$0xf]
      %v5093 = vld [vmem:[#allocation2 + $0x4c] sm:$0xf]
      %v5094 = vld [vmem:[#allocation2 + $0x50] sm:$0xf]
      %v5095 = vld [vmem:[#allocation2 + $0x54] sm:$0xf]
      %v5096 = vld [vmem:[#allocation2 + $0x58] sm:$0xf]
      %v5097 = vld [vmem:[#allocation2 + $0x5c] sm:$0xf]
      %v5098 = vld [vmem:[#allocation2 + $0x60] sm:$0xf]
      %v5099 = vld [vmem:[#allocation2 + $0x64] sm:$0xf]
      %v5100 = vld [vmem:[#allocation2 + $0x68] sm:$0xf]
      %v5101 = vld [vmem:[#allocation2 + $0x6c] sm:$0xf]
      %v5102 = vld [vmem:[#allocation2 + $0x70] sm:$0xf]
      %v5103 = vld [vmem:[#allocation2 + $0x74] sm:$0xf]
      %v5104 = vld [vmem:[#allocation2 + $0x78] sm:$0xf]
      %v5105 = vld [vmem:[#allocation2 + $0x7c] sm:$0xf]
      %v5106 = vld [vmem:[#allocation2 + $0x80] sm:$0xf]
      %v5107 = vld [vmem:[#allocation2 + $0x84] sm:$0xf]
      %v5108 = vld [vmem:[#allocation2 + $0x88] sm:$0xf]
      %v5109 = vld [vmem:[#allocation2 + $0x8c] sm:$0xf]
      %v5110 = vld [vmem:[#allocation2 + $0x90] sm:$0xf]
      %v5111 = vld [vmem:[#allocation2 + $0x94] sm:$0xf]
      %v5112 = vld [vmem:[#allocation2 + $0x98] sm:$0xf]
      %v5113 = vld [vmem:[#allocation2 + $0x9c] sm:$0xf]
      %s5114 = scalar_lea.vmem %s4, 192
      %v5115 = vld [vmem:[%s5114] sm:$0xf]
      %v5116 = vld [vmem:[%s5114 + $0x4] sm:$0xf]
      %v5117 = vld [vmem:[%s5114 + $0x8] sm:$0xf]
      %v5118 = vld [vmem:[%s5114 + $0xc] sm:$0xf]
      %v5119 = vld [vmem:[%s5114 + $0x10] sm:$0xf]
      %v5120 = vld [vmem:[%s5114 + $0x14] sm:$0xf]
      %v5121 = vld [vmem:[%s5114 + $0x18] sm:$0xf]
      %v5122 = vld [vmem:[%s5114 + $0x1c] sm:$0xf]
      %v5123 = vld [vmem:[%s5114 + $0x20] sm:$0xf]
      %v5124 = vld [vmem:[%s5114 + $0x24] sm:$0xf]
      %v5125 = vld [vmem:[%s5114 + $0x28] sm:$0xf]
      %v5126 = vld [vmem:[%s5114 + $0x2c] sm:$0xf]
      %v5127 = vld [vmem:[%s5114 + $0x30] sm:$0xf]
      %v5128 = vld [vmem:[%s5114 + $0x34] sm:$0xf]
      %v5129 = vld [vmem:[%s5114 + $0x38] sm:$0xf]
      %v5130 = vld [vmem:[%s5114 + $0x3c] sm:$0xf]
      %v5168 = vunpack.c.l.b16 %v5077
      %v5169 = vunpack.c.l.b16 %v5078
      %v5170 = vunpack.c.l.b16 %v5079
      %v5171 = vunpack.c.l.b16 %v5080
      %v5172 = vunpack.c.l.b16 %v5081
      %v5173 = vunpack.c.l.b16 %v5082
      %v5174 = vunpack.c.l.b16 %v5083
      %v5175 = vunpack.c.l.b16 %v5084
      %v5176 = vunpack.c.l.b16 %v5085
      %v5177 = vunpack.c.l.b16 %v5086
      %v5178 = vunpack.c.l.b16 %v5087
      %v5179 = vunpack.c.l.b16 %v5088
      %v5180 = vunpack.c.l.b16 %v5089
      %v5181 = vunpack.c.l.b16 %v5090
      %v5182 = vunpack.c.l.b16 %v5091
      %v5183 = vunpack.c.l.b16 %v5092
      %v5184 = vunpack.c.l.b16 %v5093
      %v5185 = vunpack.c.l.b16 %v5094
      %v5186 = vunpack.c.l.b16 %v5095
      %v5187 = vunpack.c.l.b16 %v5096
      %v5188 = vunpack.c.l.b16 %v5097
      %v5189 = vunpack.c.l.b16 %v5098
      %v5190 = vunpack.c.l.b16 %v5099
      %v5191 = vunpack.c.l.b16 %v5100
      %v5192 = vunpack.c.l.b16 %v5101
      %v5193 = vunpack.c.l.b16 %v5102
      %v5194 = vunpack.c.l.b16 %v5103
      %v5195 = vunpack.c.l.b16 %v5104
      %v5196 = vunpack.c.l.b16 %v5105
      %v5197 = vunpack.c.l.b16 %v5106
      %v5198 = vunpack.c.l.b16 %v5107
      %v5199 = vunpack.c.l.b16 %v5108
      %v5200 = vunpack.c.l.b16 %v5109
      %v5201 = vunpack.c.l.b16 %v5110
      %v5202 = vunpack.c.l.b16 %v5111
      %v5203 = vunpack.c.l.b16 %v5112
      %v5204 = vunpack.c.l.b16 %v5113
      %v5205 = vpack.c.b16 %v5169, %v5168
      %v5206 = vpack.c.b16 %v5171, %v5170
      %v5207 = vpack.c.b16 %v5173, %v5172
      %v5208 = vpack.c.b16 %v5175, %v5174
      %v5209 = vpack.c.b16 %v5177, %v5176
      %v5210 = vpack.c.b16 %v5179, %v5178
      %v5211 = vpack.c.b16 %v5181, %v5180
      %v5212 = vpack.c.b16 %v5183, %v5182
      %v5213 = vpack.c.b16 %v5185, %v5184
      %v5214 = vpack.c.b16 %v5187, %v5186
      %v5215 = vpack.c.b16 %v5189, %v5188
      %v5216 = vpack.c.b16 %v5191, %v5190
      %v5217 = vpack.c.b16 %v5193, %v5192
      %v5218 = vpack.c.b16 %v5195, %v5194
      %v5219 = vpack.c.b16 %v5197, %v5196
      %v5220 = vpack.c.b16 %v5199, %v5198
      %v5221 = vpack.c.b16 %v5201, %v5200
      %v5222 = vpack.c.b16 %v5203, %v5202
      %v5223 = vpack.c.b16 %v5204, %v5204
      %v5225 = vshrl.u32 %v5205, 16
      %v5227 = vrot.slane %v5225, 3
      %v5228 = vshll.u32 %v5205, 16
      %v5230 = vrot.slane %v5228, 4
      %v5231 = vor.u32 %v5227, %v5230
      %v5233 = vshrl.u32 %v5206, 16
      %v5235 = vrot.slane %v5233, 3
      %v5236 = vshll.u32 %v5206, 16
      %v5238 = vrot.slane %v5236, 4
      %v5239 = vor.u32 %v5235, %v5238
      %v5240 = vsel %vm4790, %v5231, %v5239
      %v5242 = vshrl.u32 %v5207, 16
      %v5244 = vrot.slane %v5242, 3
      %v5245 = vshll.u32 %v5207, 16
      %v5247 = vrot.slane %v5245, 4
      %v5248 = vor.u32 %v5244, %v5247
      %v5249 = vsel %vm4790, %v5239, %v5248
      %v5251 = vshrl.u32 %v5208, 16
      %v5253 = vrot.slane %v5251, 3
      %v5254 = vshll.u32 %v5208, 16
      %v5256 = vrot.slane %v5254, 4
      %v5257 = vor.u32 %v5253, %v5256
      %v5258 = vsel %vm4790, %v5248, %v5257
      %v5260 = vshrl.u32 %v5209, 16
      %v5262 = vrot.slane %v5260, 3
      %v5263 = vshll.u32 %v5209, 16
      %v5265 = vrot.slane %v5263, 4
      %v5266 = vor.u32 %v5262, %v5265
      %v5267 = vsel %vm4790, %v5257, %v5266
      %v5269 = vshrl.u32 %v5210, 16
      %v5271 = vrot.slane %v5269, 3
      %v5272 = vshll.u32 %v5210, 16
      %v5274 = vrot.slane %v5272, 4
      %v5275 = vor.u32 %v5271, %v5274
      %v5276 = vsel %vm4790, %v5266, %v5275
      %v5278 = vshrl.u32 %v5211, 16
      %v5280 = vrot.slane %v5278, 3
      %v5281 = vshll.u32 %v5211, 16
      %v5283 = vrot.slane %v5281, 4
      %v5284 = vor.u32 %v5280, %v5283
      %v5285 = vsel %vm4790, %v5275, %v5284
      %v5287 = vshrl.u32 %v5212, 16
      %v5289 = vrot.slane %v5287, 3
      %v5290 = vshll.u32 %v5212, 16
      %v5292 = vrot.slane %v5290, 4
      %v5293 = vor.u32 %v5289, %v5292
      %v5294 = vsel %vm4790, %v5284, %v5293
      %v5296 = vshrl.u32 %v5213, 16
      %v5298 = vrot.slane %v5296, 3
      %v5299 = vshll.u32 %v5213, 16
      %v5301 = vrot.slane %v5299, 4
      %v5302 = vor.u32 %v5298, %v5301
      %v5303 = vsel %vm4790, %v5293, %v5302
      %v5305 = vshrl.u32 %v5214, 16
      %v5307 = vrot.slane %v5305, 3
      %v5308 = vshll.u32 %v5214, 16
      %v5310 = vrot.slane %v5308, 4
      %v5311 = vor.u32 %v5307, %v5310
      %v5312 = vsel %vm4790, %v5302, %v5311
      %v5314 = vshrl.u32 %v5215, 16
      %v5316 = vrot.slane %v5314, 3
      %v5317 = vshll.u32 %v5215, 16
      %v5319 = vrot.slane %v5317, 4
      %v5320 = vor.u32 %v5316, %v5319
      %v5321 = vsel %vm4790, %v5311, %v5320
      %v5323 = vshrl.u32 %v5216, 16
      %v5325 = vrot.slane %v5323, 3
      %v5326 = vshll.u32 %v5216, 16
      %v5328 = vrot.slane %v5326, 4
      %v5329 = vor.u32 %v5325, %v5328
      %v5330 = vsel %vm4790, %v5320, %v5329
      %v5332 = vshrl.u32 %v5217, 16
      %v5334 = vrot.slane %v5332, 3
      %v5335 = vshll.u32 %v5217, 16
      %v5337 = vrot.slane %v5335, 4
      %v5338 = vor.u32 %v5334, %v5337
      %v5339 = vsel %vm4790, %v5329, %v5338
      %v5341 = vshrl.u32 %v5218, 16
      %v5343 = vrot.slane %v5341, 3
      %v5344 = vshll.u32 %v5218, 16
      %v5346 = vrot.slane %v5344, 4
      %v5347 = vor.u32 %v5343, %v5346
      %v5348 = vsel %vm4790, %v5338, %v5347
      %v5350 = vshrl.u32 %v5219, 16
      %v5352 = vrot.slane %v5350, 3
      %v5353 = vshll.u32 %v5219, 16
      %v5355 = vrot.slane %v5353, 4
      %v5356 = vor.u32 %v5352, %v5355
      %v5357 = vsel %vm4790, %v5347, %v5356
      %v5359 = vshrl.u32 %v5220, 16
      %v5361 = vrot.slane %v5359, 3
      %v5362 = vshll.u32 %v5220, 16
      %v5364 = vrot.slane %v5362, 4
      %v5365 = vor.u32 %v5361, %v5364
      %v5366 = vsel %vm4790, %v5356, %v5365
      %v5368 = vshrl.u32 %v5221, 16
      %v5370 = vrot.slane %v5368, 3
      %v5371 = vshll.u32 %v5221, 16
      %v5373 = vrot.slane %v5371, 4
      %v5374 = vor.u32 %v5370, %v5373
      %v5375 = vsel %vm4790, %v5365, %v5374
      %v5377 = vshrl.u32 %v5222, 16
      %v5379 = vrot.slane %v5377, 3
      %v5380 = vshll.u32 %v5222, 16
      %v5382 = vrot.slane %v5380, 4
      %v5383 = vor.u32 %v5379, %v5382
      %v5384 = vsel %vm4790, %v5374, %v5383
      %v5386 = vshrl.u32 %v5223, 16
      %v5388 = vrot.slane %v5386, 3
      %v5389 = vshll.u32 %v5223, 16
      %v5391 = vrot.slane %v5389, 4
      %v5392 = vor.u32 %v5388, %v5391
      %v5393 = vsel %vm4790, %v5383, %v5392
      %v5428 = vunpack.c.l.b16 %v5115
      %v5429 = vunpack.c.l.b16 %v5116
      %v5430 = vunpack.c.l.b16 %v5117
      %v5431 = vunpack.c.l.b16 %v5118
      %v5432 = vunpack.c.l.b16 %v5119
      %v5433 = vunpack.c.l.b16 %v5120
      %v5434 = vunpack.c.l.b16 %v5121
      %v5435 = vunpack.c.l.b16 %v5122
      %v5436 = vunpack.c.l.b16 %v5123
      %v5437 = vunpack.c.l.b16 %v5124
      %v5438 = vunpack.c.l.b16 %v5125
      %v5439 = vunpack.c.l.b16 %v5126
      %v5440 = vunpack.c.l.b16 %v5127
      %v5441 = vunpack.c.l.b16 %v5128
      %v5442 = vunpack.c.l.b16 %v5129
      %v5443 = vunpack.c.l.b16 %v5130
      %v5444 = vpack.c.b16 %v5429, %v5428
      %v5445 = vpack.c.b16 %v5431, %v5430
      %v5446 = vpack.c.b16 %v5433, %v5432
      %v5447 = vpack.c.b16 %v5435, %v5434
      %v5448 = vpack.c.b16 %v5437, %v5436
      %v5449 = vpack.c.b16 %v5439, %v5438
      %v5450 = vpack.c.b16 %v5441, %v5440
      %v5451 = vpack.c.b16 %v5443, %v5442
      %5460 = vmatpush.bf16.msra.mxu0 %v5451
      %5461 = vmatpush.bf16.msra.mxu0 %v5450
      %5462 = vmatpush.bf16.msra.mxu0 %v5449
      %5463 = vmatpush.bf16.msra.mxu0 %v5448
      %5464 = vmatpush.bf16.msra.mxu0 %v5447
      %5465 = vmatpush.bf16.msra.mxu0 %v5446
      %5466 = vmatpush.bf16.msra.mxu0 %v5445
      %5467 = vmatpush.bf16.msra.mxu0 %v5444
      %5468 = vmatmul.bf16.gmra.mxu0 %v5240
      %v5469 = vpop.f32.mrf.mxu0
      %v5470 = vadd.f32 0.0, %v5469
      %v5471 = vpop.f32.mrf.mxu0
      %v5472 = vadd.f32 0.0, %v5471
      %5473 = vmatmul.bf16.gmra.mxu0 %v5249
      %v5474 = vpop.f32.mrf.mxu0
      %v5475 = vadd.f32 0.0, %v5474
      %v5476 = vpop.f32.mrf.mxu0
      %v5477 = vadd.f32 0.0, %v5476
      %5478 = vmatmul.bf16.gmra.mxu0 %v5258
      %v5479 = vpop.f32.mrf.mxu0
      %v5480 = vadd.f32 0.0, %v5479
      %v5481 = vpop.f32.mrf.mxu0
      %v5482 = vadd.f32 0.0, %v5481
      %5483 = vmatmul.bf16.gmra.mxu0 %v5267
      %v5484 = vpop.f32.mrf.mxu0
      %v5485 = vadd.f32 0.0, %v5484
      %v5486 = vpop.f32.mrf.mxu0
      %v5487 = vadd.f32 0.0, %v5486
      %5488 = vmatmul.bf16.gmra.mxu0 %v5276
      %v5489 = vpop.f32.mrf.mxu0
      %v5490 = vadd.f32 0.0, %v5489
      %v5491 = vpop.f32.mrf.mxu0
      %v5492 = vadd.f32 0.0, %v5491
      %5493 = vmatmul.bf16.gmra.mxu0 %v5285
      %v5494 = vpop.f32.mrf.mxu0
      %v5495 = vadd.f32 0.0, %v5494
      %v5496 = vpop.f32.mrf.mxu0
      %v5497 = vadd.f32 0.0, %v5496
      %5498 = vmatmul.bf16.gmra.mxu0 %v5294
      %v5499 = vpop.f32.mrf.mxu0
      %v5500 = vadd.f32 0.0, %v5499
      %v5501 = vpop.f32.mrf.mxu0
      %v5502 = vadd.f32 0.0, %v5501
      %5503 = vmatmul.bf16.gmra.mxu0 %v5303
      %v5504 = vpop.f32.mrf.mxu0
      %v5505 = vadd.f32 0.0, %v5504
      %v5506 = vpop.f32.mrf.mxu0
      %v5507 = vadd.f32 0.0, %v5506
      %5508 = vmatmul.bf16.gmra.mxu0 %v5312
      %v5509 = vpop.f32.mrf.mxu0
      %v5510 = vadd.f32 0.0, %v5509
      %v5511 = vpop.f32.mrf.mxu0
      %v5512 = vadd.f32 0.0, %v5511
      %5513 = vmatmul.bf16.gmra.mxu0 %v5321
      %v5514 = vpop.f32.mrf.mxu0
      %v5515 = vadd.f32 0.0, %v5514
      %v5516 = vpop.f32.mrf.mxu0
      %v5517 = vadd.f32 0.0, %v5516
      %5518 = vmatmul.bf16.gmra.mxu0 %v5330
      %v5519 = vpop.f32.mrf.mxu0
      %v5520 = vadd.f32 0.0, %v5519
      %v5521 = vpop.f32.mrf.mxu0
      %v5522 = vadd.f32 0.0, %v5521
      %5523 = vmatmul.bf16.gmra.mxu0 %v5339
      %v5524 = vpop.f32.mrf.mxu0
      %v5525 = vadd.f32 0.0, %v5524
      %v5526 = vpop.f32.mrf.mxu0
      %v5527 = vadd.f32 0.0, %v5526
      %5528 = vmatmul.bf16.gmra.mxu0 %v5348
      %v5529 = vpop.f32.mrf.mxu0
      %v5530 = vadd.f32 0.0, %v5529
      %v5531 = vpop.f32.mrf.mxu0
      %v5532 = vadd.f32 0.0, %v5531
      %5533 = vmatmul.bf16.gmra.mxu0 %v5357
      %v5534 = vpop.f32.mrf.mxu0
      %v5535 = vadd.f32 0.0, %v5534
      %v5536 = vpop.f32.mrf.mxu0
      %v5537 = vadd.f32 0.0, %v5536
      %5538 = vmatmul.bf16.gmra.mxu0 %v5366
      %v5539 = vpop.f32.mrf.mxu0
      %v5540 = vadd.f32 0.0, %v5539
      %v5541 = vpop.f32.mrf.mxu0
      %v5542 = vadd.f32 0.0, %v5541
      %5543 = vmatmul.bf16.gmra.mxu0 %v5375
      %v5544 = vpop.f32.mrf.mxu0
      %v5545 = vadd.f32 0.0, %v5544
      %v5546 = vpop.f32.mrf.mxu0
      %v5547 = vadd.f32 0.0, %v5546
      %5548 = vmatmul.bf16.gmra.mxu0 %v5384
      %v5549 = vpop.f32.mrf.mxu0
      %v5550 = vadd.f32 0.0, %v5549
      %v5551 = vpop.f32.mrf.mxu0
      %v5552 = vadd.f32 0.0, %v5551
      %5553 = vmatmul.bf16.gmra.mxu0 %v5393
      %v5554 = vpop.f32.mrf.mxu0
      %v5555 = vadd.f32 0.0, %v5554
      %v5556 = vpop.f32.mrf.mxu0
      %v5557 = vadd.f32 0.0, %v5556
      %5558 = vdwg.mxu0
      %v5559 = vadd.f32 %v5041, %v5470
      %v5560 = vadd.f32 %v5042, %v5472
      %v5561 = vadd.f32 %v5043, %v5475
      %v5562 = vadd.f32 %v5044, %v5477
      %v5563 = vadd.f32 %v5045, %v5480
      %v5564 = vadd.f32 %v5046, %v5482
      %v5565 = vadd.f32 %v5047, %v5485
      %v5566 = vadd.f32 %v5048, %v5487
      %v5567 = vadd.f32 %v5049, %v5490
      %v5568 = vadd.f32 %v5050, %v5492
      %v5569 = vadd.f32 %v5051, %v5495
      %v5570 = vadd.f32 %v5052, %v5497
      %v5571 = vadd.f32 %v5053, %v5500
      %v5572 = vadd.f32 %v5054, %v5502
      %v5573 = vadd.f32 %v5055, %v5505
      %v5574 = vadd.f32 %v5056, %v5507
      %v5575 = vadd.f32 %v5057, %v5510
      %v5576 = vadd.f32 %v5058, %v5512
      %v5577 = vadd.f32 %v5059, %v5515
      %v5578 = vadd.f32 %v5060, %v5517
      %v5579 = vadd.f32 %v5061, %v5520
      %v5580 = vadd.f32 %v5062, %v5522
      %v5581 = vadd.f32 %v5063, %v5525
      %v5582 = vadd.f32 %v5064, %v5527
      %v5583 = vadd.f32 %v5065, %v5530
      %v5584 = vadd.f32 %v5066, %v5532
      %v5585 = vadd.f32 %v5067, %v5535
      %v5586 = vadd.f32 %v5068, %v5537
      %v5587 = vadd.f32 %v5069, %v5540
      %v5588 = vadd.f32 %v5070, %v5542
      %v5589 = vadd.f32 %v5071, %v5545
      %v5590 = vadd.f32 %v5072, %v5547
      %v5591 = vadd.f32 %v5073, %v5550
      %v5592 = vadd.f32 %v5074, %v5552
      %v5593 = vadd.f32 %v5075, %v5555
      %v5594 = vadd.f32 %v5076, %v5557
      %s5595 = scalar_lea.vmem %s4, 256
      %v5596 = vld [vmem:[%s5595] sm:$0xf]
      %v5597 = vld [vmem:[%s5595 + $0x4] sm:$0xf]
      %v5598 = vld [vmem:[%s5595 + $0x8] sm:$0xf]
      %v5599 = vld [vmem:[%s5595 + $0xc] sm:$0xf]
      %v5600 = vld [vmem:[%s5595 + $0x10] sm:$0xf]
      %v5601 = vld [vmem:[%s5595 + $0x14] sm:$0xf]
      %v5602 = vld [vmem:[%s5595 + $0x18] sm:$0xf]
      %v5603 = vld [vmem:[%s5595 + $0x1c] sm:$0xf]
      %v5604 = vld [vmem:[%s5595 + $0x20] sm:$0xf]
      %v5605 = vld [vmem:[%s5595 + $0x24] sm:$0xf]
      %v5606 = vld [vmem:[%s5595 + $0x28] sm:$0xf]
      %v5607 = vld [vmem:[%s5595 + $0x2c] sm:$0xf]
      %v5608 = vld [vmem:[%s5595 + $0x30] sm:$0xf]
      %v5609 = vld [vmem:[%s5595 + $0x34] sm:$0xf]
      %v5610 = vld [vmem:[%s5595 + $0x38] sm:$0xf]
      %v5611 = vld [vmem:[%s5595 + $0x3c] sm:$0xf]
      %v5612 = vpack.c.b16 %v5170, %v5169
      %v5613 = vpack.c.b16 %v5172, %v5171
      %v5614 = vpack.c.b16 %v5174, %v5173
      %v5615 = vpack.c.b16 %v5176, %v5175
      %v5616 = vpack.c.b16 %v5178, %v5177
      %v5617 = vpack.c.b16 %v5180, %v5179
      %v5618 = vpack.c.b16 %v5182, %v5181
      %v5619 = vpack.c.b16 %v5184, %v5183
      %v5620 = vpack.c.b16 %v5186, %v5185
      %v5621 = vpack.c.b16 %v5188, %v5187
      %v5622 = vpack.c.b16 %v5190, %v5189
      %v5623 = vpack.c.b16 %v5192, %v5191
      %v5624 = vpack.c.b16 %v5194, %v5193
      %v5625 = vpack.c.b16 %v5196, %v5195
      %v5626 = vpack.c.b16 %v5198, %v5197
      %v5627 = vpack.c.b16 %v5200, %v5199
      %v5628 = vpack.c.b16 %v5202, %v5201
      %v5629 = vpack.c.b16 %v5204, %v5203
      %v5664 = vunpack.c.l.b16 %v5596
      %v5665 = vunpack.c.l.b16 %v5597
      %v5666 = vunpack.c.l.b16 %v5598
      %v5667 = vunpack.c.l.b16 %v5599
      %v5668 = vunpack.c.l.b16 %v5600
      %v5669 = vunpack.c.l.b16 %v5601
      %v5670 = vunpack.c.l.b16 %v5602
      %v5671 = vunpack.c.l.b16 %v5603
      %v5672 = vunpack.c.l.b16 %v5604
      %v5673 = vunpack.c.l.b16 %v5605
      %v5674 = vunpack.c.l.b16 %v5606
      %v5675 = vunpack.c.l.b16 %v5607
      %v5676 = vunpack.c.l.b16 %v5608
      %v5677 = vunpack.c.l.b16 %v5609
      %v5678 = vunpack.c.l.b16 %v5610
      %v5679 = vunpack.c.l.b16 %v5611
      %v5680 = vpack.c.b16 %v5665, %v5664
      %v5681 = vpack.c.b16 %v5667, %v5666
      %v5682 = vpack.c.b16 %v5669, %v5668
      %v5683 = vpack.c.b16 %v5671, %v5670
      %v5684 = vpack.c.b16 %v5673, %v5672
      %v5685 = vpack.c.b16 %v5675, %v5674
      %v5686 = vpack.c.b16 %v5677, %v5676
      %v5687 = vpack.c.b16 %v5679, %v5678
      %5696 = vmatpush.bf16.msra.mxu0 %v5687
      %5697 = vmatpush.bf16.msra.mxu0 %v5686
      %5698 = vmatpush.bf16.msra.mxu0 %v5685
      %5699 = vmatpush.bf16.msra.mxu0 %v5684
      %5700 = vmatpush.bf16.msra.mxu0 %v5683
      %5701 = vmatpush.bf16.msra.mxu0 %v5682
      %5702 = vmatpush.bf16.msra.mxu0 %v5681
      %5703 = vmatpush.bf16.msra.mxu0 %v5680
      %5704 = vmatmul.bf16.gmra.mxu0 %v5612
      %v5705 = vpop.f32.mrf.mxu0
      %v5706 = vadd.f32 0.0, %v5705
      %v5707 = vpop.f32.mrf.mxu0
      %v5708 = vadd.f32 0.0, %v5707
      %5709 = vmatmul.bf16.gmra.mxu0 %v5613
      %v5710 = vpop.f32.mrf.mxu0
      %v5711 = vadd.f32 0.0, %v5710
      %v5712 = vpop.f32.mrf.mxu0
      %v5713 = vadd.f32 0.0, %v5712
      %5714 = vmatmul.bf16.gmra.mxu0 %v5614
      %v5715 = vpop.f32.mrf.mxu0
      %v5716 = vadd.f32 0.0, %v5715
      %v5717 = vpop.f32.mrf.mxu0
      %v5718 = vadd.f32 0.0, %v5717
      %5719 = vmatmul.bf16.gmra.mxu0 %v5615
      %v5720 = vpop.f32.mrf.mxu0
      %v5721 = vadd.f32 0.0, %v5720
      %v5722 = vpop.f32.mrf.mxu0
      %v5723 = vadd.f32 0.0, %v5722
      %5724 = vmatmul.bf16.gmra.mxu0 %v5616
      %v5725 = vpop.f32.mrf.mxu0
      %v5726 = vadd.f32 0.0, %v5725
      %v5727 = vpop.f32.mrf.mxu0
      %v5728 = vadd.f32 0.0, %v5727
      %5729 = vmatmul.bf16.gmra.mxu0 %v5617
      %v5730 = vpop.f32.mrf.mxu0
      %v5731 = vadd.f32 0.0, %v5730
      %v5732 = vpop.f32.mrf.mxu0
      %v5733 = vadd.f32 0.0, %v5732
      %5734 = vmatmul.bf16.gmra.mxu0 %v5618
      %v5735 = vpop.f32.mrf.mxu0
      %v5736 = vadd.f32 0.0, %v5735
      %v5737 = vpop.f32.mrf.mxu0
      %v5738 = vadd.f32 0.0, %v5737
      %5739 = vmatmul.bf16.gmra.mxu0 %v5619
      %v5740 = vpop.f32.mrf.mxu0
      %v5741 = vadd.f32 0.0, %v5740
      %v5742 = vpop.f32.mrf.mxu0
      %v5743 = vadd.f32 0.0, %v5742
      %5744 = vmatmul.bf16.gmra.mxu0 %v5620
      %v5745 = vpop.f32.mrf.mxu0
      %v5746 = vadd.f32 0.0, %v5745
      %v5747 = vpop.f32.mrf.mxu0
      %v5748 = vadd.f32 0.0, %v5747
      %5749 = vmatmul.bf16.gmra.mxu0 %v5621
      %v5750 = vpop.f32.mrf.mxu0
      %v5751 = vadd.f32 0.0, %v5750
      %v5752 = vpop.f32.mrf.mxu0
      %v5753 = vadd.f32 0.0, %v5752
      %5754 = vmatmul.bf16.gmra.mxu0 %v5622
      %v5755 = vpop.f32.mrf.mxu0
      %v5756 = vadd.f32 0.0, %v5755
      %v5757 = vpop.f32.mrf.mxu0
      %v5758 = vadd.f32 0.0, %v5757
      %5759 = vmatmul.bf16.gmra.mxu0 %v5623
      %v5760 = vpop.f32.mrf.mxu0
      %v5761 = vadd.f32 0.0, %v5760
      %v5762 = vpop.f32.mrf.mxu0
      %v5763 = vadd.f32 0.0, %v5762
      %5764 = vmatmul.bf16.gmra.mxu0 %v5624
      %v5765 = vpop.f32.mrf.mxu0
      %v5766 = vadd.f32 0.0, %v5765
      %v5767 = vpop.f32.mrf.mxu0
      %v5768 = vadd.f32 0.0, %v5767
      %5769 = vmatmul.bf16.gmra.mxu0 %v5625
      %v5770 = vpop.f32.mrf.mxu0
      %v5771 = vadd.f32 0.0, %v5770
      %v5772 = vpop.f32.mrf.mxu0
      %v5773 = vadd.f32 0.0, %v5772
      %5774 = vmatmul.bf16.gmra.mxu0 %v5626
      %v5775 = vpop.f32.mrf.mxu0
      %v5776 = vadd.f32 0.0, %v5775
      %v5777 = vpop.f32.mrf.mxu0
      %v5778 = vadd.f32 0.0, %v5777
      %5779 = vmatmul.bf16.gmra.mxu0 %v5627
      %v5780 = vpop.f32.mrf.mxu0
      %v5781 = vadd.f32 0.0, %v5780
      %v5782 = vpop.f32.mrf.mxu0
      %v5783 = vadd.f32 0.0, %v5782
      %5784 = vmatmul.bf16.gmra.mxu0 %v5628
      %v5785 = vpop.f32.mrf.mxu0
      %v5786 = vadd.f32 0.0, %v5785
      %v5787 = vpop.f32.mrf.mxu0
      %v5788 = vadd.f32 0.0, %v5787
      %5789 = vmatmul.bf16.gmra.mxu0 %v5629
      %v5790 = vpop.f32.mrf.mxu0
      %v5791 = vadd.f32 0.0, %v5790
      %v5792 = vpop.f32.mrf.mxu0
      %v5793 = vadd.f32 0.0, %v5792
      %5794 = vdwg.mxu0
      %v5795 = vadd.f32 %v5559, %v5706
      %v5796 = vadd.f32 %v5560, %v5708
      %v5797 = vadd.f32 %v5561, %v5711
      %v5798 = vadd.f32 %v5562, %v5713
      %v5799 = vadd.f32 %v5563, %v5716
      %v5800 = vadd.f32 %v5564, %v5718
      %v5801 = vadd.f32 %v5565, %v5721
      %v5802 = vadd.f32 %v5566, %v5723
      %v5803 = vadd.f32 %v5567, %v5726
      %v5804 = vadd.f32 %v5568, %v5728
      %v5805 = vadd.f32 %v5569, %v5731
      %v5806 = vadd.f32 %v5570, %v5733
      %v5807 = vadd.f32 %v5571, %v5736
      %v5808 = vadd.f32 %v5572, %v5738
      %v5809 = vadd.f32 %v5573, %v5741
      %v5810 = vadd.f32 %v5574, %v5743
      %v5811 = vadd.f32 %v5575, %v5746
      %v5812 = vadd.f32 %v5576, %v5748
      %v5813 = vadd.f32 %v5577, %v5751
      %v5814 = vadd.f32 %v5578, %v5753
      %v5815 = vadd.f32 %v5579, %v5756
      %v5816 = vadd.f32 %v5580, %v5758
      %v5817 = vadd.f32 %v5581, %v5761
      %v5818 = vadd.f32 %v5582, %v5763
      %v5819 = vadd.f32 %v5583, %v5766
      %v5820 = vadd.f32 %v5584, %v5768
      %v5821 = vadd.f32 %v5585, %v5771
      %v5822 = vadd.f32 %v5586, %v5773
      %v5823 = vadd.f32 %v5587, %v5776
      %v5824 = vadd.f32 %v5588, %v5778
      %v5825 = vadd.f32 %v5589, %v5781
      %v5826 = vadd.f32 %v5590, %v5783
      %v5827 = vadd.f32 %v5591, %v5786
      %v5828 = vadd.f32 %v5592, %v5788
      %v5829 = vadd.f32 %v5593, %v5791
      %v5830 = vadd.f32 %v5594, %v5793
      %v5831 = vld [vmem:[#allocation2 + $0x10] sm:$0xf]
      %v5832 = vld [vmem:[#allocation2 + $0x14] sm:$0xf]
      %v5833 = vld [vmem:[#allocation2 + $0x18] sm:$0xf]
      %v5834 = vld [vmem:[#allocation2 + $0x1c] sm:$0xf]
      %v5835 = vld [vmem:[#allocation2 + $0x20] sm:$0xf]
      %v5836 = vld [vmem:[#allocation2 + $0x24] sm:$0xf]
      %v5837 = vld [vmem:[#allocation2 + $0x28] sm:$0xf]
      %v5838 = vld [vmem:[#allocation2 + $0x2c] sm:$0xf]
      %v5839 = vld [vmem:[#allocation2 + $0x30] sm:$0xf]
      %v5840 = vld [vmem:[#allocation2 + $0x34] sm:$0xf]
      %v5841 = vld [vmem:[#allocation2 + $0x38] sm:$0xf]
      %v5842 = vld [vmem:[#allocation2 + $0x3c] sm:$0xf]
      %v5843 = vld [vmem:[#allocation2 + $0x40] sm:$0xf]
      %v5844 = vld [vmem:[#allocation2 + $0x44] sm:$0xf]
      %v5845 = vld [vmem:[#allocation2 + $0x48] sm:$0xf]
      %v5846 = vld [vmem:[#allocation2 + $0x4c] sm:$0xf]
      %v5847 = vld [vmem:[#allocation2 + $0x50] sm:$0xf]
      %v5848 = vld [vmem:[#allocation2 + $0x54] sm:$0xf]
      %v5849 = vld [vmem:[#allocation2 + $0x58] sm:$0xf]
      %v5850 = vld [vmem:[#allocation2 + $0x5c] sm:$0xf]
      %v5851 = vld [vmem:[#allocation2 + $0x60] sm:$0xf]
      %v5852 = vld [vmem:[#allocation2 + $0x64] sm:$0xf]
      %v5853 = vld [vmem:[#allocation2 + $0x68] sm:$0xf]
      %v5854 = vld [vmem:[#allocation2 + $0x6c] sm:$0xf]
      %v5855 = vld [vmem:[#allocation2 + $0x70] sm:$0xf]
      %v5856 = vld [vmem:[#allocation2 + $0x74] sm:$0xf]
      %v5857 = vld [vmem:[#allocation2 + $0x78] sm:$0xf]
      %v5858 = vld [vmem:[#allocation2 + $0x7c] sm:$0xf]
      %v5859 = vld [vmem:[#allocation2 + $0x80] sm:$0xf]
      %v5860 = vld [vmem:[#allocation2 + $0x84] sm:$0xf]
      %v5861 = vld [vmem:[#allocation2 + $0x88] sm:$0xf]
      %v5862 = vld [vmem:[#allocation2 + $0x8c] sm:$0xf]
      %v5863 = vld [vmem:[#allocation2 + $0x90] sm:$0xf]
      %v5864 = vld [vmem:[#allocation2 + $0x94] sm:$0xf]
      %v5865 = vld [vmem:[#allocation2 + $0x98] sm:$0xf]
      %v5866 = vld [vmem:[#allocation2 + $0x9c] sm:$0xf]
      %v5867 = vld [vmem:[#allocation2 + $0xa0] sm:$0x1]
      %s5868 = scalar_lea.vmem %s4, 320
      %v5869 = vld [vmem:[%s5868] sm:$0xf]
      %v5870 = vld [vmem:[%s5868 + $0x4] sm:$0xf]
      %v5871 = vld [vmem:[%s5868 + $0x8] sm:$0xf]
      %v5872 = vld [vmem:[%s5868 + $0xc] sm:$0xf]
      %v5873 = vld [vmem:[%s5868 + $0x10] sm:$0xf]
      %v5874 = vld [vmem:[%s5868 + $0x14] sm:$0xf]
      %v5875 = vld [vmem:[%s5868 + $0x18] sm:$0xf]
      %v5876 = vld [vmem:[%s5868 + $0x1c] sm:$0xf]
      %v5877 = vld [vmem:[%s5868 + $0x20] sm:$0xf]
      %v5878 = vld [vmem:[%s5868 + $0x24] sm:$0xf]
      %v5879 = vld [vmem:[%s5868 + $0x28] sm:$0xf]
      %v5880 = vld [vmem:[%s5868 + $0x2c] sm:$0xf]
      %v5881 = vld [vmem:[%s5868 + $0x30] sm:$0xf]
      %v5882 = vld [vmem:[%s5868 + $0x34] sm:$0xf]
      %v5883 = vld [vmem:[%s5868 + $0x38] sm:$0xf]
      %v5884 = vld [vmem:[%s5868 + $0x3c] sm:$0xf]
      %v5922 = vunpack.c.l.b16 %v5831
      %v5923 = vunpack.c.l.b16 %v5832
      %v5924 = vunpack.c.l.b16 %v5833
      %v5925 = vunpack.c.l.b16 %v5834
      %v5926 = vunpack.c.l.b16 %v5835
      %v5927 = vunpack.c.l.b16 %v5836
      %v5928 = vunpack.c.l.b16 %v5837
      %v5929 = vunpack.c.l.b16 %v5838
      %v5930 = vunpack.c.l.b16 %v5839
      %v5931 = vunpack.c.l.b16 %v5840
      %v5932 = vunpack.c.l.b16 %v5841
      %v5933 = vunpack.c.l.b16 %v5842
      %v5934 = vunpack.c.l.b16 %v5843
      %v5935 = vunpack.c.l.b16 %v5844
      %v5936 = vunpack.c.l.b16 %v5845
      %v5937 = vunpack.c.l.b16 %v5846
      %v5938 = vunpack.c.l.b16 %v5847
      %v5939 = vunpack.c.l.b16 %v5848
      %v5940 = vunpack.c.l.b16 %v5849
      %v5941 = vunpack.c.l.b16 %v5850
      %v5942 = vunpack.c.l.b16 %v5851
      %v5943 = vunpack.c.l.b16 %v5852
      %v5944 = vunpack.c.l.b16 %v5853
      %v5945 = vunpack.c.l.b16 %v5854
      %v5946 = vunpack.c.l.b16 %v5855
      %v5947 = vunpack.c.l.b16 %v5856
      %v5948 = vunpack.c.l.b16 %v5857
      %v5949 = vunpack.c.l.b16 %v5858
      %v5950 = vunpack.c.l.b16 %v5859
      %v5951 = vunpack.c.l.b16 %v5860
      %v5952 = vunpack.c.l.b16 %v5861
      %v5953 = vunpack.c.l.b16 %v5862
      %v5954 = vunpack.c.l.b16 %v5863
      %v5955 = vunpack.c.l.b16 %v5864
      %v5956 = vunpack.c.l.b16 %v5865
      %v5957 = vunpack.c.l.b16 %v5866
      %v5958 = vunpack.c.l.b16 %v5867
      %v5959 = vpack.c.b16 %v5923, %v5922
      %v5960 = vpack.c.b16 %v5925, %v5924
      %v5961 = vpack.c.b16 %v5927, %v5926
      %v5962 = vpack.c.b16 %v5929, %v5928
      %v5963 = vpack.c.b16 %v5931, %v5930
      %v5964 = vpack.c.b16 %v5933, %v5932
      %v5965 = vpack.c.b16 %v5935, %v5934
      %v5966 = vpack.c.b16 %v5937, %v5936
      %v5967 = vpack.c.b16 %v5939, %v5938
      %v5968 = vpack.c.b16 %v5941, %v5940
      %v5969 = vpack.c.b16 %v5943, %v5942
      %v5970 = vpack.c.b16 %v5945, %v5944
      %v5971 = vpack.c.b16 %v5947, %v5946
      %v5972 = vpack.c.b16 %v5949, %v5948
      %v5973 = vpack.c.b16 %v5951, %v5950
      %v5974 = vpack.c.b16 %v5953, %v5952
      %v5975 = vpack.c.b16 %v5955, %v5954
      %v5976 = vpack.c.b16 %v5957, %v5956
      %v5977 = vpack.c.b16 %v5958, %v5958
      %vm5978 = vsmask.f32 7424
      %v5980 = vshrl.u32 %v5959, 16
      %v5982 = vshll.u32 %v5959, 16
      %v5984 = vrot.slane %v5982, 1
      %v5985 = vor.u32 %v5980, %v5984
      %v5987 = vshll.u32 %v5960, 16
      %v5989 = vrot.slane %v5987, 1
      %v5990 = vsel %vm5978, %v5985, %v5989
      %v5991 = vshrl.u32 %v5960, 16
      %v5993 = vor.u32 %v5991, %v5989
      %v5995 = vshll.u32 %v5961, 16
      %v5997 = vrot.slane %v5995, 1
      %v5998 = vsel %vm5978, %v5993, %v5997
      %v5999 = vshrl.u32 %v5961, 16
      %v6001 = vor.u32 %v5999, %v5997
      %v6003 = vshll.u32 %v5962, 16
      %v6005 = vrot.slane %v6003, 1
      %v6006 = vsel %vm5978, %v6001, %v6005
      %v6007 = vshrl.u32 %v5962, 16
      %v6009 = vor.u32 %v6007, %v6005
      %v6011 = vshll.u32 %v5963, 16
      %v6013 = vrot.slane %v6011, 1
      %v6014 = vsel %vm5978, %v6009, %v6013
      %v6015 = vshrl.u32 %v5963, 16
      %v6017 = vor.u32 %v6015, %v6013
      %v6019 = vshll.u32 %v5964, 16
      %v6021 = vrot.slane %v6019, 1
      %v6022 = vsel %vm5978, %v6017, %v6021
      %v6023 = vshrl.u32 %v5964, 16
      %v6025 = vor.u32 %v6023, %v6021
      %v6027 = vshll.u32 %v5965, 16
      %v6029 = vrot.slane %v6027, 1
      %v6030 = vsel %vm5978, %v6025, %v6029
      %v6031 = vshrl.u32 %v5965, 16
      %v6033 = vor.u32 %v6031, %v6029
      %v6035 = vshll.u32 %v5966, 16
      %v6037 = vrot.slane %v6035, 1
      %v6038 = vsel %vm5978, %v6033, %v6037
      %v6039 = vshrl.u32 %v5966, 16
      %v6041 = vor.u32 %v6039, %v6037
      %v6043 = vshll.u32 %v5967, 16
      %v6045 = vrot.slane %v6043, 1
      %v6046 = vsel %vm5978, %v6041, %v6045
      %v6047 = vshrl.u32 %v5967, 16
      %v6049 = vor.u32 %v6047, %v6045
      %v6051 = vshll.u32 %v5968, 16
      %v6053 = vrot.slane %v6051, 1
      %v6054 = vsel %vm5978, %v6049, %v6053
      %v6055 = vshrl.u32 %v5968, 16
      %v6057 = vor.u32 %v6055, %v6053
      %v6059 = vshll.u32 %v5969, 16
      %v6061 = vrot.slane %v6059, 1
      %v6062 = vsel %vm5978, %v6057, %v6061
      %v6063 = vshrl.u32 %v5969, 16
      %v6065 = vor.u32 %v6063, %v6061
      %v6067 = vshll.u32 %v5970, 16
      %v6069 = vrot.slane %v6067, 1
      %v6070 = vsel %vm5978, %v6065, %v6069
      %v6071 = vshrl.u32 %v5970, 16
      %v6073 = vor.u32 %v6071, %v6069
      %v6075 = vshll.u32 %v5971, 16
      %v6077 = vrot.slane %v6075, 1
      %v6078 = vsel %vm5978, %v6073, %v6077
      %v6079 = vshrl.u32 %v5971, 16
      %v6081 = vor.u32 %v6079, %v6077
      %v6083 = vshll.u32 %v5972, 16
      %v6085 = vrot.slane %v6083, 1
      %v6086 = vsel %vm5978, %v6081, %v6085
      %v6087 = vshrl.u32 %v5972, 16
      %v6089 = vor.u32 %v6087, %v6085
      %v6091 = vshll.u32 %v5973, 16
      %v6093 = vrot.slane %v6091, 1
      %v6094 = vsel %vm5978, %v6089, %v6093
      %v6095 = vshrl.u32 %v5973, 16
      %v6097 = vor.u32 %v6095, %v6093
      %v6099 = vshll.u32 %v5974, 16
      %v6101 = vrot.slane %v6099, 1
      %v6102 = vsel %vm5978, %v6097, %v6101
      %v6103 = vshrl.u32 %v5974, 16
      %v6105 = vor.u32 %v6103, %v6101
      %v6107 = vshll.u32 %v5975, 16
      %v6109 = vrot.slane %v6107, 1
      %v6110 = vsel %vm5978, %v6105, %v6109
      %v6111 = vshrl.u32 %v5975, 16
      %v6113 = vor.u32 %v6111, %v6109
      %v6115 = vshll.u32 %v5976, 16
      %v6117 = vrot.slane %v6115, 1
      %v6118 = vsel %vm5978, %v6113, %v6117
      %v6119 = vshrl.u32 %v5976, 16
      %v6121 = vor.u32 %v6119, %v6117
      %v6123 = vshll.u32 %v5977, 16
      %v6125 = vrot.slane %v6123, 1
      %v6126 = vsel %vm5978, %v6121, %v6125
      %v6161 = vunpack.c.l.b16 %v5869
      %v6162 = vunpack.c.l.b16 %v5870
      %v6163 = vunpack.c.l.b16 %v5871
      %v6164 = vunpack.c.l.b16 %v5872
      %v6165 = vunpack.c.l.b16 %v5873
      %v6166 = vunpack.c.l.b16 %v5874
      %v6167 = vunpack.c.l.b16 %v5875
      %v6168 = vunpack.c.l.b16 %v5876
      %v6169 = vunpack.c.l.b16 %v5877
      %v6170 = vunpack.c.l.b16 %v5878
      %v6171 = vunpack.c.l.b16 %v5879
      %v6172 = vunpack.c.l.b16 %v5880
      %v6173 = vunpack.c.l.b16 %v5881
      %v6174 = vunpack.c.l.b16 %v5882
      %v6175 = vunpack.c.l.b16 %v5883
      %v6176 = vunpack.c.l.b16 %v5884
      %v6177 = vpack.c.b16 %v6162, %v6161
      %v6178 = vpack.c.b16 %v6164, %v6163
      %v6179 = vpack.c.b16 %v6166, %v6165
      %v6180 = vpack.c.b16 %v6168, %v6167
      %v6181 = vpack.c.b16 %v6170, %v6169
      %v6182 = vpack.c.b16 %v6172, %v6171
      %v6183 = vpack.c.b16 %v6174, %v6173
      %v6184 = vpack.c.b16 %v6176, %v6175
      %6193 = vmatpush.bf16.msra.mxu0 %v6184
      %6194 = vmatpush.bf16.msra.mxu0 %v6183
      %6195 = vmatpush.bf16.msra.mxu0 %v6182
      %6196 = vmatpush.bf16.msra.mxu0 %v6181
      %6197 = vmatpush.bf16.msra.mxu0 %v6180
      %6198 = vmatpush.bf16.msra.mxu0 %v6179
      %6199 = vmatpush.bf16.msra.mxu0 %v6178
      %6200 = vmatpush.bf16.msra.mxu0 %v6177
      %6201 = vmatmul.bf16.gmra.mxu0 %v5990
      %v6202 = vpop.f32.mrf.mxu0
      %v6203 = vadd.f32 0.0, %v6202
      %v6204 = vpop.f32.mrf.mxu0
      %v6205 = vadd.f32 0.0, %v6204
      %6206 = vmatmul.bf16.gmra.mxu0 %v5998
      %v6207 = vpop.f32.mrf.mxu0
      %v6208 = vadd.f32 0.0, %v6207
      %v6209 = vpop.f32.mrf.mxu0
      %v6210 = vadd.f32 0.0, %v6209
      %6211 = vmatmul.bf16.gmra.mxu0 %v6006
      %v6212 = vpop.f32.mrf.mxu0
      %v6213 = vadd.f32 0.0, %v6212
      %v6214 = vpop.f32.mrf.mxu0
      %v6215 = vadd.f32 0.0, %v6214
      %6216 = vmatmul.bf16.gmra.mxu0 %v6014
      %v6217 = vpop.f32.mrf.mxu0
      %v6218 = vadd.f32 0.0, %v6217
      %v6219 = vpop.f32.mrf.mxu0
      %v6220 = vadd.f32 0.0, %v6219
      %6221 = vmatmul.bf16.gmra.mxu0 %v6022
      %v6222 = vpop.f32.mrf.mxu0
      %v6223 = vadd.f32 0.0, %v6222
      %v6224 = vpop.f32.mrf.mxu0
      %v6225 = vadd.f32 0.0, %v6224
      %6226 = vmatmul.bf16.gmra.mxu0 %v6030
      %v6227 = vpop.f32.mrf.mxu0
      %v6228 = vadd.f32 0.0, %v6227
      %v6229 = vpop.f32.mrf.mxu0
      %v6230 = vadd.f32 0.0, %v6229
      %6231 = vmatmul.bf16.gmra.mxu0 %v6038
      %v6232 = vpop.f32.mrf.mxu0
      %v6233 = vadd.f32 0.0, %v6232
      %v6234 = vpop.f32.mrf.mxu0
      %v6235 = vadd.f32 0.0, %v6234
      %6236 = vmatmul.bf16.gmra.mxu0 %v6046
      %v6237 = vpop.f32.mrf.mxu0
      %v6238 = vadd.f32 0.0, %v6237
      %v6239 = vpop.f32.mrf.mxu0
      %v6240 = vadd.f32 0.0, %v6239
      %6241 = vmatmul.bf16.gmra.mxu0 %v6054
      %v6242 = vpop.f32.mrf.mxu0
      %v6243 = vadd.f32 0.0, %v6242
      %v6244 = vpop.f32.mrf.mxu0
      %v6245 = vadd.f32 0.0, %v6244
      %6246 = vmatmul.bf16.gmra.mxu0 %v6062
      %v6247 = vpop.f32.mrf.mxu0
      %v6248 = vadd.f32 0.0, %v6247
      %v6249 = vpop.f32.mrf.mxu0
      %v6250 = vadd.f32 0.0, %v6249
      %6251 = vmatmul.bf16.gmra.mxu0 %v6070
      %v6252 = vpop.f32.mrf.mxu0
      %v6253 = vadd.f32 0.0, %v6252
      %v6254 = vpop.f32.mrf.mxu0
      %v6255 = vadd.f32 0.0, %v6254
      %6256 = vmatmul.bf16.gmra.mxu0 %v6078
      %v6257 = vpop.f32.mrf.mxu0
      %v6258 = vadd.f32 0.0, %v6257
      %v6259 = vpop.f32.mrf.mxu0
      %v6260 = vadd.f32 0.0, %v6259
      %6261 = vmatmul.bf16.gmra.mxu0 %v6086
      %v6262 = vpop.f32.mrf.mxu0
      %v6263 = vadd.f32 0.0, %v6262
      %v6264 = vpop.f32.mrf.mxu0
      %v6265 = vadd.f32 0.0, %v6264
      %6266 = vmatmul.bf16.gmra.mxu0 %v6094
      %v6267 = vpop.f32.mrf.mxu0
      %v6268 = vadd.f32 0.0, %v6267
      %v6269 = vpop.f32.mrf.mxu0
      %v6270 = vadd.f32 0.0, %v6269
      %6271 = vmatmul.bf16.gmra.mxu0 %v6102
      %v6272 = vpop.f32.mrf.mxu0
      %v6273 = vadd.f32 0.0, %v6272
      %v6274 = vpop.f32.mrf.mxu0
      %v6275 = vadd.f32 0.0, %v6274
      %6276 = vmatmul.bf16.gmra.mxu0 %v6110
      %v6277 = vpop.f32.mrf.mxu0
      %v6278 = vadd.f32 0.0, %v6277
      %v6279 = vpop.f32.mrf.mxu0
      %v6280 = vadd.f32 0.0, %v6279
      %6281 = vmatmul.bf16.gmra.mxu0 %v6118
      %v6282 = vpop.f32.mrf.mxu0
      %v6283 = vadd.f32 0.0, %v6282
      %v6284 = vpop.f32.mrf.mxu0
      %v6285 = vadd.f32 0.0, %v6284
      %6286 = vmatmul.bf16.gmra.mxu0 %v6126
      %v6287 = vpop.f32.mrf.mxu0
      %v6288 = vadd.f32 0.0, %v6287
      %v6289 = vpop.f32.mrf.mxu0
      %v6290 = vadd.f32 0.0, %v6289
      %6291 = vdwg.mxu0
      %v6292 = vadd.f32 %v5795, %v6203
      %v6293 = vadd.f32 %v5796, %v6205
      %v6294 = vadd.f32 %v5797, %v6208
      %v6295 = vadd.f32 %v5798, %v6210
      %v6296 = vadd.f32 %v5799, %v6213
      %v6297 = vadd.f32 %v5800, %v6215
      %v6298 = vadd.f32 %v5801, %v6218
      %v6299 = vadd.f32 %v5802, %v6220
      %v6300 = vadd.f32 %v5803, %v6223
      %v6301 = vadd.f32 %v5804, %v6225
      %v6302 = vadd.f32 %v5805, %v6228
      %v6303 = vadd.f32 %v5806, %v6230
      %v6304 = vadd.f32 %v5807, %v6233
      %v6305 = vadd.f32 %v5808, %v6235
      %v6306 = vadd.f32 %v5809, %v6238
      %v6307 = vadd.f32 %v5810, %v6240
      %v6308 = vadd.f32 %v5811, %v6243
      %v6309 = vadd.f32 %v5812, %v6245
      %v6310 = vadd.f32 %v5813, %v6248
      %v6311 = vadd.f32 %v5814, %v6250
      %v6312 = vadd.f32 %v5815, %v6253
      %v6313 = vadd.f32 %v5816, %v6255
      %v6314 = vadd.f32 %v5817, %v6258
      %v6315 = vadd.f32 %v5818, %v6260
      %v6316 = vadd.f32 %v5819, %v6263
      %v6317 = vadd.f32 %v5820, %v6265
      %v6318 = vadd.f32 %v5821, %v6268
      %v6319 = vadd.f32 %v5822, %v6270
      %v6320 = vadd.f32 %v5823, %v6273
      %v6321 = vadd.f32 %v5824, %v6275
      %v6322 = vadd.f32 %v5825, %v6278
      %v6323 = vadd.f32 %v5826, %v6280
      %v6324 = vadd.f32 %v5827, %v6283
      %v6325 = vadd.f32 %v5828, %v6285
      %v6326 = vadd.f32 %v5829, %v6288
      %v6327 = vadd.f32 %v5830, %v6290
      %v6328 = vld [vmem:[#allocation2 + $0x18] sm:$0xf]
      %v6329 = vld [vmem:[#allocation2 + $0x1c] sm:$0xf]
      %v6330 = vld [vmem:[#allocation2 + $0x20] sm:$0xf]
      %v6331 = vld [vmem:[#allocation2 + $0x24] sm:$0xf]
      %v6332 = vld [vmem:[#allocation2 + $0x28] sm:$0xf]
      %v6333 = vld [vmem:[#allocation2 + $0x2c] sm:$0xf]
      %v6334 = vld [vmem:[#allocation2 + $0x30] sm:$0xf]
      %v6335 = vld [vmem:[#allocation2 + $0x34] sm:$0xf]
      %v6336 = vld [vmem:[#allocation2 + $0x38] sm:$0xf]
      %v6337 = vld [vmem:[#allocation2 + $0x3c] sm:$0xf]
      %v6338 = vld [vmem:[#allocation2 + $0x40] sm:$0xf]
      %v6339 = vld [vmem:[#allocation2 + $0x44] sm:$0xf]
      %v6340 = vld [vmem:[#allocation2 + $0x48] sm:$0xf]
      %v6341 = vld [vmem:[#allocation2 + $0x4c] sm:$0xf]
      %v6342 = vld [vmem:[#allocation2 + $0x50] sm:$0xf]
      %v6343 = vld [vmem:[#allocation2 + $0x54] sm:$0xf]
      %v6344 = vld [vmem:[#allocation2 + $0x58] sm:$0xf]
      %v6345 = vld [vmem:[#allocation2 + $0x5c] sm:$0xf]
      %v6346 = vld [vmem:[#allocation2 + $0x60] sm:$0xf]
      %v6347 = vld [vmem:[#allocation2 + $0x64] sm:$0xf]
      %v6348 = vld [vmem:[#allocation2 + $0x68] sm:$0xf]
      %v6349 = vld [vmem:[#allocation2 + $0x6c] sm:$0xf]
      %v6350 = vld [vmem:[#allocation2 + $0x70] sm:$0xf]
      %v6351 = vld [vmem:[#allocation2 + $0x74] sm:$0xf]
      %v6352 = vld [vmem:[#allocation2 + $0x78] sm:$0xf]
      %v6353 = vld [vmem:[#allocation2 + $0x7c] sm:$0xf]
      %v6354 = vld [vmem:[#allocation2 + $0x80] sm:$0xf]
      %v6355 = vld [vmem:[#allocation2 + $0x84] sm:$0xf]
      %v6356 = vld [vmem:[#allocation2 + $0x88] sm:$0xf]
      %v6357 = vld [vmem:[#allocation2 + $0x8c] sm:$0xf]
      %v6358 = vld [vmem:[#allocation2 + $0x90] sm:$0xf]
      %v6359 = vld [vmem:[#allocation2 + $0x94] sm:$0xf]
      %v6360 = vld [vmem:[#allocation2 + $0x98] sm:$0xf]
      %v6361 = vld [vmem:[#allocation2 + $0x9c] sm:$0xf]
      %v6362 = vld [vmem:[#allocation2 + $0xa0] sm:$0xf]
      %v6363 = vld [vmem:[#allocation2 + $0xa4] sm:$0xf]
      %v6364 = vld [vmem:[#allocation2 + $0xa8] sm:$0x1]
      %s6365 = scalar_lea.vmem %s4, 384
      %v6366 = vld [vmem:[%s6365] sm:$0xf]
      %v6367 = vld [vmem:[%s6365 + $0x4] sm:$0xf]
      %v6368 = vld [vmem:[%s6365 + $0x8] sm:$0xf]
      %v6369 = vld [vmem:[%s6365 + $0xc] sm:$0xf]
      %v6370 = vld [vmem:[%s6365 + $0x10] sm:$0xf]
      %v6371 = vld [vmem:[%s6365 + $0x14] sm:$0xf]
      %v6372 = vld [vmem:[%s6365 + $0x18] sm:$0xf]
      %v6373 = vld [vmem:[%s6365 + $0x1c] sm:$0xf]
      %v6374 = vld [vmem:[%s6365 + $0x20] sm:$0xf]
      %v6375 = vld [vmem:[%s6365 + $0x24] sm:$0xf]
      %v6376 = vld [vmem:[%s6365 + $0x28] sm:$0xf]
      %v6377 = vld [vmem:[%s6365 + $0x2c] sm:$0xf]
      %v6378 = vld [vmem:[%s6365 + $0x30] sm:$0xf]
      %v6379 = vld [vmem:[%s6365 + $0x34] sm:$0xf]
      %v6380 = vld [vmem:[%s6365 + $0x38] sm:$0xf]
      %v6381 = vld [vmem:[%s6365 + $0x3c] sm:$0xf]
      %v6419 = vunpack.c.l.b16 %v6328
      %v6420 = vunpack.c.l.b16 %v6329
      %v6421 = vunpack.c.l.b16 %v6330
      %v6422 = vunpack.c.l.b16 %v6331
      %v6423 = vunpack.c.l.b16 %v6332
      %v6424 = vunpack.c.l.b16 %v6333
      %v6425 = vunpack.c.l.b16 %v6334
      %v6426 = vunpack.c.l.b16 %v6335
      %v6427 = vunpack.c.l.b16 %v6336
      %v6428 = vunpack.c.l.b16 %v6337
      %v6429 = vunpack.c.l.b16 %v6338
      %v6430 = vunpack.c.l.b16 %v6339
      %v6431 = vunpack.c.l.b16 %v6340
      %v6432 = vunpack.c.l.b16 %v6341
      %v6433 = vunpack.c.l.b16 %v6342
      %v6434 = vunpack.c.l.b16 %v6343
      %v6435 = vunpack.c.l.b16 %v6344
      %v6436 = vunpack.c.l.b16 %v6345
      %v6437 = vunpack.c.l.b16 %v6346
      %v6438 = vunpack.c.l.b16 %v6347
      %v6439 = vunpack.c.l.b16 %v6348
      %v6440 = vunpack.c.l.b16 %v6349
      %v6441 = vunpack.c.l.b16 %v6350
      %v6442 = vunpack.c.l.b16 %v6351
      %v6443 = vunpack.c.l.b16 %v6352
      %v6444 = vunpack.c.l.b16 %v6353
      %v6445 = vunpack.c.l.b16 %v6354
      %v6446 = vunpack.c.l.b16 %v6355
      %v6447 = vunpack.c.l.b16 %v6356
      %v6448 = vunpack.c.l.b16 %v6357
      %v6449 = vunpack.c.l.b16 %v6358
      %v6450 = vunpack.c.l.b16 %v6359
      %v6451 = vunpack.c.l.b16 %v6360
      %v6452 = vunpack.c.l.b16 %v6361
      %v6453 = vunpack.c.l.b16 %v6362
      %v6454 = vunpack.c.l.b16 %v6363
      %v6455 = vunpack.c.l.b16 %v6364
      %v6456 = vpack.c.b16 %v6420, %v6419
      %v6457 = vpack.c.b16 %v6422, %v6421
      %v6458 = vpack.c.b16 %v6424, %v6423
      %v6459 = vpack.c.b16 %v6426, %v6425
      %v6460 = vpack.c.b16 %v6428, %v6427
      %v6461 = vpack.c.b16 %v6430, %v6429
      %v6462 = vpack.c.b16 %v6432, %v6431
      %v6463 = vpack.c.b16 %v6434, %v6433
      %v6464 = vpack.c.b16 %v6436, %v6435
      %v6465 = vpack.c.b16 %v6438, %v6437
      %v6466 = vpack.c.b16 %v6440, %v6439
      %v6467 = vpack.c.b16 %v6442, %v6441
      %v6468 = vpack.c.b16 %v6444, %v6443
      %v6469 = vpack.c.b16 %v6446, %v6445
      %v6470 = vpack.c.b16 %v6448, %v6447
      %v6471 = vpack.c.b16 %v6450, %v6449
      %v6472 = vpack.c.b16 %v6452, %v6451
      %v6473 = vpack.c.b16 %v6454, %v6453
      %v6474 = vpack.c.b16 %v6455, %v6455
      %v6476 = vshrl.u32 %v6456, 16
      %v6478 = vshll.u32 %v6456, 16
      %v6480 = vrot.slane %v6478, 1
      %v6481 = vor.u32 %v6476, %v6480
      %v6483 = vshll.u32 %v6457, 16
      %v6485 = vrot.slane %v6483, 1
      %v6486 = vsel %vm5978, %v6481, %v6485
      %v6487 = vshrl.u32 %v6457, 16
      %v6489 = vor.u32 %v6487, %v6485
      %v6491 = vshll.u32 %v6458, 16
      %v6493 = vrot.slane %v6491, 1
      %v6494 = vsel %vm5978, %v6489, %v6493
      %v6495 = vshrl.u32 %v6458, 16
      %v6497 = vor.u32 %v6495, %v6493
      %v6499 = vshll.u32 %v6459, 16
      %v6501 = vrot.slane %v6499, 1
      %v6502 = vsel %vm5978, %v6497, %v6501
      %v6503 = vshrl.u32 %v6459, 16
      %v6505 = vor.u32 %v6503, %v6501
      %v6507 = vshll.u32 %v6460, 16
      %v6509 = vrot.slane %v6507, 1
      %v6510 = vsel %vm5978, %v6505, %v6509
      %v6511 = vshrl.u32 %v6460, 16
      %v6513 = vor.u32 %v6511, %v6509
      %v6515 = vshll.u32 %v6461, 16
      %v6517 = vrot.slane %v6515, 1
      %v6518 = vsel %vm5978, %v6513, %v6517
      %v6519 = vshrl.u32 %v6461, 16
      %v6521 = vor.u32 %v6519, %v6517
      %v6523 = vshll.u32 %v6462, 16
      %v6525 = vrot.slane %v6523, 1
      %v6526 = vsel %vm5978, %v6521, %v6525
      %v6527 = vshrl.u32 %v6462, 16
      %v6529 = vor.u32 %v6527, %v6525
      %v6531 = vshll.u32 %v6463, 16
      %v6533 = vrot.slane %v6531, 1
      %v6534 = vsel %vm5978, %v6529, %v6533
      %v6535 = vshrl.u32 %v6463, 16
      %v6537 = vor.u32 %v6535, %v6533
      %v6539 = vshll.u32 %v6464, 16
      %v6541 = vrot.slane %v6539, 1
      %v6542 = vsel %vm5978, %v6537, %v6541
      %v6543 = vshrl.u32 %v6464, 16
      %v6545 = vor.u32 %v6543, %v6541
      %v6547 = vshll.u32 %v6465, 16
      %v6549 = vrot.slane %v6547, 1
      %v6550 = vsel %vm5978, %v6545, %v6549
      %v6551 = vshrl.u32 %v6465, 16
      %v6553 = vor.u32 %v6551, %v6549
      %v6555 = vshll.u32 %v6466, 16
      %v6557 = vrot.slane %v6555, 1
      %v6558 = vsel %vm5978, %v6553, %v6557
      %v6559 = vshrl.u32 %v6466, 16
      %v6561 = vor.u32 %v6559, %v6557
      %v6563 = vshll.u32 %v6467, 16
      %v6565 = vrot.slane %v6563, 1
      %v6566 = vsel %vm5978, %v6561, %v6565
      %v6567 = vshrl.u32 %v6467, 16
      %v6569 = vor.u32 %v6567, %v6565
      %v6571 = vshll.u32 %v6468, 16
      %v6573 = vrot.slane %v6571, 1
      %v6574 = vsel %vm5978, %v6569, %v6573
      %v6575 = vshrl.u32 %v6468, 16
      %v6577 = vor.u32 %v6575, %v6573
      %v6579 = vshll.u32 %v6469, 16
      %v6581 = vrot.slane %v6579, 1
      %v6582 = vsel %vm5978, %v6577, %v6581
      %v6583 = vshrl.u32 %v6469, 16
      %v6585 = vor.u32 %v6583, %v6581
      %v6587 = vshll.u32 %v6470, 16
      %v6589 = vrot.slane %v6587, 1
      %v6590 = vsel %vm5978, %v6585, %v6589
      %v6591 = vshrl.u32 %v6470, 16
      %v6593 = vor.u32 %v6591, %v6589
      %v6595 = vshll.u32 %v6471, 16
      %v6597 = vrot.slane %v6595, 1
      %v6598 = vsel %vm5978, %v6593, %v6597
      %v6599 = vshrl.u32 %v6471, 16
      %v6601 = vor.u32 %v6599, %v6597
      %v6603 = vshll.u32 %v6472, 16
      %v6605 = vrot.slane %v6603, 1
      %v6606 = vsel %vm5978, %v6601, %v6605
      %v6607 = vshrl.u32 %v6472, 16
      %v6609 = vor.u32 %v6607, %v6605
      %v6611 = vshll.u32 %v6473, 16
      %v6613 = vrot.slane %v6611, 1
      %v6614 = vsel %vm5978, %v6609, %v6613
      %v6615 = vshrl.u32 %v6473, 16
      %v6617 = vor.u32 %v6615, %v6613
      %v6619 = vshll.u32 %v6474, 16
      %v6621 = vrot.slane %v6619, 1
      %v6622 = vsel %vm5978, %v6617, %v6621
      %v6657 = vunpack.c.l.b16 %v6366
      %v6658 = vunpack.c.l.b16 %v6367
      %v6659 = vunpack.c.l.b16 %v6368
      %v6660 = vunpack.c.l.b16 %v6369
      %v6661 = vunpack.c.l.b16 %v6370
      %v6662 = vunpack.c.l.b16 %v6371
      %v6663 = vunpack.c.l.b16 %v6372
      %v6664 = vunpack.c.l.b16 %v6373
      %v6665 = vunpack.c.l.b16 %v6374
      %v6666 = vunpack.c.l.b16 %v6375
      %v6667 = vunpack.c.l.b16 %v6376
      %v6668 = vunpack.c.l.b16 %v6377
      %v6669 = vunpack.c.l.b16 %v6378
      %v6670 = vunpack.c.l.b16 %v6379
      %v6671 = vunpack.c.l.b16 %v6380
      %v6672 = vunpack.c.l.b16 %v6381
      %v6673 = vpack.c.b16 %v6658, %v6657
      %v6674 = vpack.c.b16 %v6660, %v6659
      %v6675 = vpack.c.b16 %v6662, %v6661
      %v6676 = vpack.c.b16 %v6664, %v6663
      %v6677 = vpack.c.b16 %v6666, %v6665
      %v6678 = vpack.c.b16 %v6668, %v6667
      %v6679 = vpack.c.b16 %v6670, %v6669
      %v6680 = vpack.c.b16 %v6672, %v6671
      %6689 = vmatpush.bf16.msra.mxu0 %v6680
      %6690 = vmatpush.bf16.msra.mxu0 %v6679
      %6691 = vmatpush.bf16.msra.mxu0 %v6678
      %6692 = vmatpush.bf16.msra.mxu0 %v6677
      %6693 = vmatpush.bf16.msra.mxu0 %v6676
      %6694 = vmatpush.bf16.msra.mxu0 %v6675
      %6695 = vmatpush.bf16.msra.mxu0 %v6674
      %6696 = vmatpush.bf16.msra.mxu0 %v6673
      %6697 = vmatmul.bf16.gmra.mxu0 %v6486
      %v6698 = vpop.f32.mrf.mxu0
      %v6699 = vadd.f32 0.0, %v6698
      %v6700 = vpop.f32.mrf.mxu0
      %v6701 = vadd.f32 0.0, %v6700
      %6702 = vmatmul.bf16.gmra.mxu0 %v6494
      %v6703 = vpop.f32.mrf.mxu0
      %v6704 = vadd.f32 0.0, %v6703
      %v6705 = vpop.f32.mrf.mxu0
      %v6706 = vadd.f32 0.0, %v6705
      %6707 = vmatmul.bf16.gmra.mxu0 %v6502
      %v6708 = vpop.f32.mrf.mxu0
      %v6709 = vadd.f32 0.0, %v6708
      %v6710 = vpop.f32.mrf.mxu0
      %v6711 = vadd.f32 0.0, %v6710
      %6712 = vmatmul.bf16.gmra.mxu0 %v6510
      %v6713 = vpop.f32.mrf.mxu0
      %v6714 = vadd.f32 0.0, %v6713
      %v6715 = vpop.f32.mrf.mxu0
      %v6716 = vadd.f32 0.0, %v6715
      %6717 = vmatmul.bf16.gmra.mxu0 %v6518
      %v6718 = vpop.f32.mrf.mxu0
      %v6719 = vadd.f32 0.0, %v6718
      %v6720 = vpop.f32.mrf.mxu0
      %v6721 = vadd.f32 0.0, %v6720
      %6722 = vmatmul.bf16.gmra.mxu0 %v6526
      %v6723 = vpop.f32.mrf.mxu0
      %v6724 = vadd.f32 0.0, %v6723
      %v6725 = vpop.f32.mrf.mxu0
      %v6726 = vadd.f32 0.0, %v6725
      %6727 = vmatmul.bf16.gmra.mxu0 %v6534
      %v6728 = vpop.f32.mrf.mxu0
      %v6729 = vadd.f32 0.0, %v6728
      %v6730 = vpop.f32.mrf.mxu0
      %v6731 = vadd.f32 0.0, %v6730
      %6732 = vmatmul.bf16.gmra.mxu0 %v6542
      %v6733 = vpop.f32.mrf.mxu0
      %v6734 = vadd.f32 0.0, %v6733
      %v6735 = vpop.f32.mrf.mxu0
      %v6736 = vadd.f32 0.0, %v6735
      %6737 = vmatmul.bf16.gmra.mxu0 %v6550
      %v6738 = vpop.f32.mrf.mxu0
      %v6739 = vadd.f32 0.0, %v6738
      %v6740 = vpop.f32.mrf.mxu0
      %v6741 = vadd.f32 0.0, %v6740
      %6742 = vmatmul.bf16.gmra.mxu0 %v6558
      %v6743 = vpop.f32.mrf.mxu0
      %v6744 = vadd.f32 0.0, %v6743
      %v6745 = vpop.f32.mrf.mxu0
      %v6746 = vadd.f32 0.0, %v6745
      %6747 = vmatmul.bf16.gmra.mxu0 %v6566
      %v6748 = vpop.f32.mrf.mxu0
      %v6749 = vadd.f32 0.0, %v6748
      %v6750 = vpop.f32.mrf.mxu0
      %v6751 = vadd.f32 0.0, %v6750
      %6752 = vmatmul.bf16.gmra.mxu0 %v6574
      %v6753 = vpop.f32.mrf.mxu0
      %v6754 = vadd.f32 0.0, %v6753
      %v6755 = vpop.f32.mrf.mxu0
      %v6756 = vadd.f32 0.0, %v6755
      %6757 = vmatmul.bf16.gmra.mxu0 %v6582
      %v6758 = vpop.f32.mrf.mxu0
      %v6759 = vadd.f32 0.0, %v6758
      %v6760 = vpop.f32.mrf.mxu0
      %v6761 = vadd.f32 0.0, %v6760
      %6762 = vmatmul.bf16.gmra.mxu0 %v6590
      %v6763 = vpop.f32.mrf.mxu0
      %v6764 = vadd.f32 0.0, %v6763
      %v6765 = vpop.f32.mrf.mxu0
      %v6766 = vadd.f32 0.0, %v6765
      %6767 = vmatmul.bf16.gmra.mxu0 %v6598
      %v6768 = vpop.f32.mrf.mxu0
      %v6769 = vadd.f32 0.0, %v6768
      %v6770 = vpop.f32.mrf.mxu0
      %v6771 = vadd.f32 0.0, %v6770
      %6772 = vmatmul.bf16.gmra.mxu0 %v6606
      %v6773 = vpop.f32.mrf.mxu0
      %v6774 = vadd.f32 0.0, %v6773
      %v6775 = vpop.f32.mrf.mxu0
      %v6776 = vadd.f32 0.0, %v6775
      %6777 = vmatmul.bf16.gmra.mxu0 %v6614
      %v6778 = vpop.f32.mrf.mxu0
      %v6779 = vadd.f32 0.0, %v6778
      %v6780 = vpop.f32.mrf.mxu0
      %v6781 = vadd.f32 0.0, %v6780
      %6782 = vmatmul.bf16.gmra.mxu0 %v6622
      %v6783 = vpop.f32.mrf.mxu0
      %v6784 = vadd.f32 0.0, %v6783
      %v6785 = vpop.f32.mrf.mxu0
      %v6786 = vadd.f32 0.0, %v6785
      %6787 = vdwg.mxu0
      %v6788 = vadd.f32 %v6292, %v6699
      %v6789 = vadd.f32 %v6293, %v6701
      %v6790 = vadd.f32 %v6294, %v6704
      %v6791 = vadd.f32 %v6295, %v6706
      %v6792 = vadd.f32 %v6296, %v6709
      %v6793 = vadd.f32 %v6297, %v6711
      %v6794 = vadd.f32 %v6298, %v6714
      %v6795 = vadd.f32 %v6299, %v6716
      %v6796 = vadd.f32 %v6300, %v6719
      %v6797 = vadd.f32 %v6301, %v6721
      %v6798 = vadd.f32 %v6302, %v6724
      %v6799 = vadd.f32 %v6303, %v6726
      %v6800 = vadd.f32 %v6304, %v6729
      %v6801 = vadd.f32 %v6305, %v6731
      %v6802 = vadd.f32 %v6306, %v6734
      %v6803 = vadd.f32 %v6307, %v6736
      %v6804 = vadd.f32 %v6308, %v6739
      %v6805 = vadd.f32 %v6309, %v6741
      %v6806 = vadd.f32 %v6310, %v6744
      %v6807 = vadd.f32 %v6311, %v6746
      %v6808 = vadd.f32 %v6312, %v6749
      %v6809 = vadd.f32 %v6313, %v6751
      %v6810 = vadd.f32 %v6314, %v6754
      %v6811 = vadd.f32 %v6315, %v6756
      %v6812 = vadd.f32 %v6316, %v6759
      %v6813 = vadd.f32 %v6317, %v6761
      %v6814 = vadd.f32 %v6318, %v6764
      %v6815 = vadd.f32 %v6319, %v6766
      %v6816 = vadd.f32 %v6320, %v6769
      %v6817 = vadd.f32 %v6321, %v6771
      %v6818 = vadd.f32 %v6322, %v6774
      %v6819 = vadd.f32 %v6323, %v6776
      %v6820 = vadd.f32 %v6324, %v6779
      %v6821 = vadd.f32 %v6325, %v6781
      %v6822 = vadd.f32 %v6326, %v6784
      %v6823 = vadd.f32 %v6327, %v6786
      %v6824 = vld [vmem:[#allocation2 + $0x18] sm:$0xe]
      %s6825 = scalar_lea.vmem %s4, 448
      %v6826 = vld [vmem:[%s6825] sm:$0xf]
      %v6827 = vld [vmem:[%s6825 + $0x4] sm:$0xf]
      %v6828 = vld [vmem:[%s6825 + $0x8] sm:$0xf]
      %v6829 = vld [vmem:[%s6825 + $0xc] sm:$0xf]
      %v6830 = vld [vmem:[%s6825 + $0x10] sm:$0xf]
      %v6831 = vld [vmem:[%s6825 + $0x14] sm:$0xf]
      %v6832 = vld [vmem:[%s6825 + $0x18] sm:$0xf]
      %v6833 = vld [vmem:[%s6825 + $0x1c] sm:$0xf]
      %v6834 = vld [vmem:[%s6825 + $0x20] sm:$0xf]
      %v6835 = vld [vmem:[%s6825 + $0x24] sm:$0xf]
      %v6836 = vld [vmem:[%s6825 + $0x28] sm:$0xf]
      %v6837 = vld [vmem:[%s6825 + $0x2c] sm:$0xf]
      %v6838 = vld [vmem:[%s6825 + $0x30] sm:$0xf]
      %v6839 = vld [vmem:[%s6825 + $0x34] sm:$0xf]
      %v6840 = vld [vmem:[%s6825 + $0x38] sm:$0xf]
      %v6841 = vld [vmem:[%s6825 + $0x3c] sm:$0xf]
      %v6843 = vunpack.c.l.b16 %v6824
      %v6844 = vpack.c.b16 %v6420, %v6843
      %vm6845 = vcmask 1046528
      %v6846 = vrot.slane %v6844, 1
      %v6847 = vrot.slane %v6457, 1
      %v6848 = vsel %vm6845, %v6846, %v6847
      %v6849 = vrot.slane %v6458, 1
      %v6850 = vsel %vm6845, %v6847, %v6849
      %v6851 = vrot.slane %v6459, 1
      %v6852 = vsel %vm6845, %v6849, %v6851
      %v6853 = vrot.slane %v6460, 1
      %v6854 = vsel %vm6845, %v6851, %v6853
      %v6855 = vrot.slane %v6461, 1
      %v6856 = vsel %vm6845, %v6853, %v6855
      %v6857 = vrot.slane %v6462, 1
      %v6858 = vsel %vm6845, %v6855, %v6857
      %v6859 = vrot.slane %v6463, 1
      %v6860 = vsel %vm6845, %v6857, %v6859
      %v6861 = vrot.slane %v6464, 1
      %v6862 = vsel %vm6845, %v6859, %v6861
      %v6863 = vrot.slane %v6465, 1
      %v6864 = vsel %vm6845, %v6861, %v6863
      %v6865 = vrot.slane %v6466, 1
      %v6866 = vsel %vm6845, %v6863, %v6865
      %v6867 = vrot.slane %v6467, 1
      %v6868 = vsel %vm6845, %v6865, %v6867
      %v6869 = vrot.slane %v6468, 1
      %v6870 = vsel %vm6845, %v6867, %v6869
      %v6871 = vrot.slane %v6469, 1
      %v6872 = vsel %vm6845, %v6869, %v6871
      %v6873 = vrot.slane %v6470, 1
      %v6874 = vsel %vm6845, %v6871, %v6873
      %v6875 = vrot.slane %v6471, 1
      %v6876 = vsel %vm6845, %v6873, %v6875
      %v6877 = vrot.slane %v6472, 1
      %v6878 = vsel %vm6845, %v6875, %v6877
      %v6879 = vrot.slane %v6473, 1
      %v6880 = vsel %vm6845, %v6877, %v6879
      %v6881 = vrot.slane %v6474, 1
      %v6882 = vsel %vm6845, %v6879, %v6881
      %v6917 = vunpack.c.l.b16 %v6826
      %v6918 = vunpack.c.l.b16 %v6827
      %v6919 = vunpack.c.l.b16 %v6828
      %v6920 = vunpack.c.l.b16 %v6829
      %v6921 = vunpack.c.l.b16 %v6830
      %v6922 = vunpack.c.l.b16 %v6831
      %v6923 = vunpack.c.l.b16 %v6832
      %v6924 = vunpack.c.l.b16 %v6833
      %v6925 = vunpack.c.l.b16 %v6834
      %v6926 = vunpack.c.l.b16 %v6835
      %v6927 = vunpack.c.l.b16 %v6836
      %v6928 = vunpack.c.l.b16 %v6837
      %v6929 = vunpack.c.l.b16 %v6838
      %v6930 = vunpack.c.l.b16 %v6839
      %v6931 = vunpack.c.l.b16 %v6840
      %v6932 = vunpack.c.l.b16 %v6841
      %v6933 = vpack.c.b16 %v6918, %v6917
      %v6934 = vpack.c.b16 %v6920, %v6919
      %v6935 = vpack.c.b16 %v6922, %v6921
      %v6936 = vpack.c.b16 %v6924, %v6923
      %v6937 = vpack.c.b16 %v6926, %v6925
      %v6938 = vpack.c.b16 %v6928, %v6927
      %v6939 = vpack.c.b16 %v6930, %v6929
      %v6940 = vpack.c.b16 %v6932, %v6931
      %6949 = vmatpush.bf16.msra.mxu0 %v6940
      %6950 = vmatpush.bf16.msra.mxu0 %v6939
      %6951 = vmatpush.bf16.msra.mxu0 %v6938
      %6952 = vmatpush.bf16.msra.mxu0 %v6937
      %6953 = vmatpush.bf16.msra.mxu0 %v6936
      %6954 = vmatpush.bf16.msra.mxu0 %v6935
      %6955 = vmatpush.bf16.msra.mxu0 %v6934
      %6956 = vmatpush.bf16.msra.mxu0 %v6933
      %6957 = vmatmul.bf16.gmra.mxu0 %v6848
      %v6958 = vpop.f32.mrf.mxu0
      %v6959 = vadd.f32 0.0, %v6958
      %v6960 = vpop.f32.mrf.mxu0
      %v6961 = vadd.f32 0.0, %v6960
      %6962 = vmatmul.bf16.gmra.mxu0 %v6850
      %v6963 = vpop.f32.mrf.mxu0
      %v6964 = vadd.f32 0.0, %v6963
      %v6965 = vpop.f32.mrf.mxu0
      %v6966 = vadd.f32 0.0, %v6965
      %6967 = vmatmul.bf16.gmra.mxu0 %v6852
      %v6968 = vpop.f32.mrf.mxu0
      %v6969 = vadd.f32 0.0, %v6968
      %v6970 = vpop.f32.mrf.mxu0
      %v6971 = vadd.f32 0.0, %v6970
      %6972 = vmatmul.bf16.gmra.mxu0 %v6854
      %v6973 = vpop.f32.mrf.mxu0
      %v6974 = vadd.f32 0.0, %v6973
      %v6975 = vpop.f32.mrf.mxu0
      %v6976 = vadd.f32 0.0, %v6975
      %6977 = vmatmul.bf16.gmra.mxu0 %v6856
      %v6978 = vpop.f32.mrf.mxu0
      %v6979 = vadd.f32 0.0, %v6978
      %v6980 = vpop.f32.mrf.mxu0
      %v6981 = vadd.f32 0.0, %v6980
      %6982 = vmatmul.bf16.gmra.mxu0 %v6858
      %v6983 = vpop.f32.mrf.mxu0
      %v6984 = vadd.f32 0.0, %v6983
      %v6985 = vpop.f32.mrf.mxu0
      %v6986 = vadd.f32 0.0, %v6985
      %6987 = vmatmul.bf16.gmra.mxu0 %v6860
      %v6988 = vpop.f32.mrf.mxu0
      %v6989 = vadd.f32 0.0, %v6988
      %v6990 = vpop.f32.mrf.mxu0
      %v6991 = vadd.f32 0.0, %v6990
      %6992 = vmatmul.bf16.gmra.mxu0 %v6862
      %v6993 = vpop.f32.mrf.mxu0
      %v6994 = vadd.f32 0.0, %v6993
      %v6995 = vpop.f32.mrf.mxu0
      %v6996 = vadd.f32 0.0, %v6995
      %6997 = vmatmul.bf16.gmra.mxu0 %v6864
      %v6998 = vpop.f32.mrf.mxu0
      %v6999 = vadd.f32 0.0, %v6998
      %v7000 = vpop.f32.mrf.mxu0
      %v7001 = vadd.f32 0.0, %v7000
      %7002 = vmatmul.bf16.gmra.mxu0 %v6866
      %v7003 = vpop.f32.mrf.mxu0
      %v7004 = vadd.f32 0.0, %v7003
      %v7005 = vpop.f32.mrf.mxu0
      %v7006 = vadd.f32 0.0, %v7005
      %7007 = vmatmul.bf16.gmra.mxu0 %v6868
      %v7008 = vpop.f32.mrf.mxu0
      %v7009 = vadd.f32 0.0, %v7008
      %v7010 = vpop.f32.mrf.mxu0
      %v7011 = vadd.f32 0.0, %v7010
      %7012 = vmatmul.bf16.gmra.mxu0 %v6870
      %v7013 = vpop.f32.mrf.mxu0
      %v7014 = vadd.f32 0.0, %v7013
      %v7015 = vpop.f32.mrf.mxu0
      %v7016 = vadd.f32 0.0, %v7015
      %7017 = vmatmul.bf16.gmra.mxu0 %v6872
      %v7018 = vpop.f32.mrf.mxu0
      %v7019 = vadd.f32 0.0, %v7018
      %v7020 = vpop.f32.mrf.mxu0
      %v7021 = vadd.f32 0.0, %v7020
      %7022 = vmatmul.bf16.gmra.mxu0 %v6874
      %v7023 = vpop.f32.mrf.mxu0
      %v7024 = vadd.f32 0.0, %v7023
      %v7025 = vpop.f32.mrf.mxu0
      %v7026 = vadd.f32 0.0, %v7025
      %7027 = vmatmul.bf16.gmra.mxu0 %v6876
      %v7028 = vpop.f32.mrf.mxu0
      %v7029 = vadd.f32 0.0, %v7028
      %v7030 = vpop.f32.mrf.mxu0
      %v7031 = vadd.f32 0.0, %v7030
      %7032 = vmatmul.bf16.gmra.mxu0 %v6878
      %v7033 = vpop.f32.mrf.mxu0
      %v7034 = vadd.f32 0.0, %v7033
      %v7035 = vpop.f32.mrf.mxu0
      %v7036 = vadd.f32 0.0, %v7035
      %7037 = vmatmul.bf16.gmra.mxu0 %v6880
      %v7038 = vpop.f32.mrf.mxu0
      %v7039 = vadd.f32 0.0, %v7038
      %v7040 = vpop.f32.mrf.mxu0
      %v7041 = vadd.f32 0.0, %v7040
      %7042 = vmatmul.bf16.gmra.mxu0 %v6882
      %v7043 = vpop.f32.mrf.mxu0
      %v7044 = vadd.f32 0.0, %v7043
      %v7045 = vpop.f32.mrf.mxu0
      %v7046 = vadd.f32 0.0, %v7045
      %7047 = vdwg.mxu0
      %v7048 = vadd.f32 %v6788, %v6959
      %v7049 = vadd.f32 %v6789, %v6961
      %v7050 = vadd.f32 %v6790, %v6964
      %v7051 = vadd.f32 %v6791, %v6966
      %v7052 = vadd.f32 %v6792, %v6969
      %v7053 = vadd.f32 %v6793, %v6971
      %v7054 = vadd.f32 %v6794, %v6974
      %v7055 = vadd.f32 %v6795, %v6976
      %v7056 = vadd.f32 %v6796, %v6979
      %v7057 = vadd.f32 %v6797, %v6981
      %v7058 = vadd.f32 %v6798, %v6984
      %v7059 = vadd.f32 %v6799, %v6986
      %v7060 = vadd.f32 %v6800, %v6989
      %v7061 = vadd.f32 %v6801, %v6991
      %v7062 = vadd.f32 %v6802, %v6994
      %v7063 = vadd.f32 %v6803, %v6996
      %v7064 = vadd.f32 %v6804, %v6999
      %v7065 = vadd.f32 %v6805, %v7001
      %v7066 = vadd.f32 %v6806, %v7004
      %v7067 = vadd.f32 %v6807, %v7006
      %v7068 = vadd.f32 %v6808, %v7009
      %v7069 = vadd.f32 %v6809, %v7011
      %v7070 = vadd.f32 %v6810, %v7014
      %v7071 = vadd.f32 %v6811, %v7016
      %v7072 = vadd.f32 %v6812, %v7019
      %v7073 = vadd.f32 %v6813, %v7021
      %v7074 = vadd.f32 %v6814, %v7024
      %v7075 = vadd.f32 %v6815, %v7026
      %v7076 = vadd.f32 %v6816, %v7029
      %v7077 = vadd.f32 %v6817, %v7031
      %v7078 = vadd.f32 %v6818, %v7034
      %v7079 = vadd.f32 %v6819, %v7036
      %v7080 = vadd.f32 %v6820, %v7039
      %v7081 = vadd.f32 %v6821, %v7041
      %v7082 = vadd.f32 %v6822, %v7044
      %v7083 = vadd.f32 %v6823, %v7046
      %v7084 = vld [vmem:[#allocation2 + $0xa8] sm:$0x3]
      %s7085 = scalar_lea.vmem %s4, 512
      %v7086 = vld [vmem:[%s7085] sm:$0xf]
      %v7087 = vld [vmem:[%s7085 + $0x4] sm:$0xf]
      %v7088 = vld [vmem:[%s7085 + $0x8] sm:$0xf]
      %v7089 = vld [vmem:[%s7085 + $0xc] sm:$0xf]
      %v7090 = vld [vmem:[%s7085 + $0x10] sm:$0xf]
      %v7091 = vld [vmem:[%s7085 + $0x14] sm:$0xf]
      %v7092 = vld [vmem:[%s7085 + $0x18] sm:$0xf]
      %v7093 = vld [vmem:[%s7085 + $0x1c] sm:$0xf]
      %v7094 = vld [vmem:[%s7085 + $0x20] sm:$0xf]
      %v7095 = vld [vmem:[%s7085 + $0x24] sm:$0xf]
      %v7096 = vld [vmem:[%s7085 + $0x28] sm:$0xf]
      %v7097 = vld [vmem:[%s7085 + $0x2c] sm:$0xf]
      %v7098 = vld [vmem:[%s7085 + $0x30] sm:$0xf]
      %v7099 = vld [vmem:[%s7085 + $0x34] sm:$0xf]
      %v7100 = vld [vmem:[%s7085 + $0x38] sm:$0xf]
      %v7101 = vld [vmem:[%s7085 + $0x3c] sm:$0xf]
      %v7103 = vunpack.c.l.b16 %v7084
      %v7104 = vpack.c.b16 %v7103, %v7103
      %vm7105 = vsmask.f32 6400
      %v7107 = vshrl.u32 %v6844, 16
      %v7109 = vrot.slane %v7107, 1
      %v7110 = vshll.u32 %v6844, 16
      %v7112 = vrot.slane %v7110, 2
      %v7113 = vor.u32 %v7109, %v7112
      %v7114 = vrot.slane %v6487, 1
      %v7115 = vrot.slane %v6483, 2
      %v7116 = vor.u32 %v7114, %v7115
      %v7117 = vsel %vm7105, %v7113, %v7116
      %v7118 = vrot.slane %v6495, 1
      %v7119 = vrot.slane %v6491, 2
      %v7120 = vor.u32 %v7118, %v7119
      %v7121 = vsel %vm7105, %v7116, %v7120
      %v7122 = vrot.slane %v6503, 1
      %v7123 = vrot.slane %v6499, 2
      %v7124 = vor.u32 %v7122, %v7123
      %v7125 = vsel %vm7105, %v7120, %v7124
      %v7126 = vrot.slane %v6511, 1
      %v7127 = vrot.slane %v6507, 2
      %v7128 = vor.u32 %v7126, %v7127
      %v7129 = vsel %vm7105, %v7124, %v7128
      %v7130 = vrot.slane %v6519, 1
      %v7131 = vrot.slane %v6515, 2
      %v7132 = vor.u32 %v7130, %v7131
      %v7133 = vsel %vm7105, %v7128, %v7132
      %v7134 = vrot.slane %v6527, 1
      %v7135 = vrot.slane %v6523, 2
      %v7136 = vor.u32 %v7134, %v7135
      %v7137 = vsel %vm7105, %v7132, %v7136
      %v7138 = vrot.slane %v6535, 1
      %v7139 = vrot.slane %v6531, 2
      %v7140 = vor.u32 %v7138, %v7139
      %v7141 = vsel %vm7105, %v7136, %v7140
      %v7142 = vrot.slane %v6543, 1
      %v7143 = vrot.slane %v6539, 2
      %v7144 = vor.u32 %v7142, %v7143
      %v7145 = vsel %vm7105, %v7140, %v7144
      %v7146 = vrot.slane %v6551, 1
      %v7147 = vrot.slane %v6547, 2
      %v7148 = vor.u32 %v7146, %v7147
      %v7149 = vsel %vm7105, %v7144, %v7148
      %v7150 = vrot.slane %v6559, 1
      %v7151 = vrot.slane %v6555, 2
      %v7152 = vor.u32 %v7150, %v7151
      %v7153 = vsel %vm7105, %v7148, %v7152
      %v7154 = vrot.slane %v6567, 1
      %v7155 = vrot.slane %v6563, 2
      %v7156 = vor.u32 %v7154, %v7155
      %v7157 = vsel %vm7105, %v7152, %v7156
      %v7158 = vrot.slane %v6575, 1
      %v7159 = vrot.slane %v6571, 2
      %v7160 = vor.u32 %v7158, %v7159
      %v7161 = vsel %vm7105, %v7156, %v7160
      %v7162 = vrot.slane %v6583, 1
      %v7163 = vrot.slane %v6579, 2
      %v7164 = vor.u32 %v7162, %v7163
      %v7165 = vsel %vm7105, %v7160, %v7164
      %v7166 = vrot.slane %v6591, 1
      %v7167 = vrot.slane %v6587, 2
      %v7168 = vor.u32 %v7166, %v7167
      %v7169 = vsel %vm7105, %v7164, %v7168
      %v7170 = vrot.slane %v6599, 1
      %v7171 = vrot.slane %v6595, 2
      %v7172 = vor.u32 %v7170, %v7171
      %v7173 = vsel %vm7105, %v7168, %v7172
      %v7174 = vrot.slane %v6607, 1
      %v7175 = vrot.slane %v6603, 2
      %v7176 = vor.u32 %v7174, %v7175
      %v7177 = vsel %vm7105, %v7172, %v7176
      %v7178 = vrot.slane %v6615, 1
      %v7179 = vrot.slane %v6611, 2
      %v7180 = vor.u32 %v7178, %v7179
      %v7181 = vsel %vm7105, %v7176, %v7180
      %v7183 = vshrl.u32 %v7104, 16
      %v7185 = vrot.slane %v7183, 1
      %v7186 = vshll.u32 %v7104, 16
      %v7188 = vrot.slane %v7186, 2
      %v7189 = vor.u32 %v7185, %v7188
      %v7190 = vsel %vm7105, %v7180, %v7189
      %v7225 = vunpack.c.l.b16 %v7086
      %v7226 = vunpack.c.l.b16 %v7087
      %v7227 = vunpack.c.l.b16 %v7088
      %v7228 = vunpack.c.l.b16 %v7089
      %v7229 = vunpack.c.l.b16 %v7090
      %v7230 = vunpack.c.l.b16 %v7091
      %v7231 = vunpack.c.l.b16 %v7092
      %v7232 = vunpack.c.l.b16 %v7093
      %v7233 = vunpack.c.l.b16 %v7094
      %v7234 = vunpack.c.l.b16 %v7095
      %v7235 = vunpack.c.l.b16 %v7096
      %v7236 = vunpack.c.l.b16 %v7097
      %v7237 = vunpack.c.l.b16 %v7098
      %v7238 = vunpack.c.l.b16 %v7099
      %v7239 = vunpack.c.l.b16 %v7100
      %v7240 = vunpack.c.l.b16 %v7101
      %v7241 = vpack.c.b16 %v7226, %v7225
      %v7242 = vpack.c.b16 %v7228, %v7227
      %v7243 = vpack.c.b16 %v7230, %v7229
      %v7244 = vpack.c.b16 %v7232, %v7231
      %v7245 = vpack.c.b16 %v7234, %v7233
      %v7246 = vpack.c.b16 %v7236, %v7235
      %v7247 = vpack.c.b16 %v7238, %v7237
      %v7248 = vpack.c.b16 %v7240, %v7239
      %7257 = vmatpush.bf16.msra.mxu0 %v7248
      %7258 = vmatpush.bf16.msra.mxu0 %v7247
      %7259 = vmatpush.bf16.msra.mxu0 %v7246
      %7260 = vmatpush.bf16.msra.mxu0 %v7245
      %7261 = vmatpush.bf16.msra.mxu0 %v7244
      %7262 = vmatpush.bf16.msra.mxu0 %v7243
      %7263 = vmatpush.bf16.msra.mxu0 %v7242
      %7264 = vmatpush.bf16.msra.mxu0 %v7241
      %7265 = vmatmul.bf16.gmra.mxu0 %v7117
      %v7266 = vpop.f32.mrf.mxu0
      %v7267 = vadd.f32 0.0, %v7266
      %v7268 = vpop.f32.mrf.mxu0
      %v7269 = vadd.f32 0.0, %v7268
      %7270 = vmatmul.bf16.gmra.mxu0 %v7121
      %v7271 = vpop.f32.mrf.mxu0
      %v7272 = vadd.f32 0.0, %v7271
      %v7273 = vpop.f32.mrf.mxu0
      %v7274 = vadd.f32 0.0, %v7273
      %7275 = vmatmul.bf16.gmra.mxu0 %v7125
      %v7276 = vpop.f32.mrf.mxu0
      %v7277 = vadd.f32 0.0, %v7276
      %v7278 = vpop.f32.mrf.mxu0
      %v7279 = vadd.f32 0.0, %v7278
      %7280 = vmatmul.bf16.gmra.mxu0 %v7129
      %v7281 = vpop.f32.mrf.mxu0
      %v7282 = vadd.f32 0.0, %v7281
      %v7283 = vpop.f32.mrf.mxu0
      %v7284 = vadd.f32 0.0, %v7283
      %7285 = vmatmul.bf16.gmra.mxu0 %v7133
      %v7286 = vpop.f32.mrf.mxu0
      %v7287 = vadd.f32 0.0, %v7286
      %v7288 = vpop.f32.mrf.mxu0
      %v7289 = vadd.f32 0.0, %v7288
      %7290 = vmatmul.bf16.gmra.mxu0 %v7137
      %v7291 = vpop.f32.mrf.mxu0
      %v7292 = vadd.f32 0.0, %v7291
      %v7293 = vpop.f32.mrf.mxu0
      %v7294 = vadd.f32 0.0, %v7293
      %7295 = vmatmul.bf16.gmra.mxu0 %v7141
      %v7296 = vpop.f32.mrf.mxu0
      %v7297 = vadd.f32 0.0, %v7296
      %v7298 = vpop.f32.mrf.mxu0
      %v7299 = vadd.f32 0.0, %v7298
      %7300 = vmatmul.bf16.gmra.mxu0 %v7145
      %v7301 = vpop.f32.mrf.mxu0
      %v7302 = vadd.f32 0.0, %v7301
      %v7303 = vpop.f32.mrf.mxu0
      %v7304 = vadd.f32 0.0, %v7303
      %7305 = vmatmul.bf16.gmra.mxu0 %v7149
      %v7306 = vpop.f32.mrf.mxu0
      %v7307 = vadd.f32 0.0, %v7306
      %v7308 = vpop.f32.mrf.mxu0
      %v7309 = vadd.f32 0.0, %v7308
      %7310 = vmatmul.bf16.gmra.mxu0 %v7153
      %v7311 = vpop.f32.mrf.mxu0
      %v7312 = vadd.f32 0.0, %v7311
      %v7313 = vpop.f32.mrf.mxu0
      %v7314 = vadd.f32 0.0, %v7313
      %7315 = vmatmul.bf16.gmra.mxu0 %v7157
      %v7316 = vpop.f32.mrf.mxu0
      %v7317 = vadd.f32 0.0, %v7316
      %v7318 = vpop.f32.mrf.mxu0
      %v7319 = vadd.f32 0.0, %v7318
      %7320 = vmatmul.bf16.gmra.mxu0 %v7161
      %v7321 = vpop.f32.mrf.mxu0
      %v7322 = vadd.f32 0.0, %v7321
      %v7323 = vpop.f32.mrf.mxu0
      %v7324 = vadd.f32 0.0, %v7323
      %7325 = vmatmul.bf16.gmra.mxu0 %v7165
      %v7326 = vpop.f32.mrf.mxu0
      %v7327 = vadd.f32 0.0, %v7326
      %v7328 = vpop.f32.mrf.mxu0
      %v7329 = vadd.f32 0.0, %v7328
      %7330 = vmatmul.bf16.gmra.mxu0 %v7169
      %v7331 = vpop.f32.mrf.mxu0
      %v7332 = vadd.f32 0.0, %v7331
      %v7333 = vpop.f32.mrf.mxu0
      %v7334 = vadd.f32 0.0, %v7333
      %7335 = vmatmul.bf16.gmra.mxu0 %v7173
      %v7336 = vpop.f32.mrf.mxu0
      %v7337 = vadd.f32 0.0, %v7336
      %v7338 = vpop.f32.mrf.mxu0
      %v7339 = vadd.f32 0.0, %v7338
      %7340 = vmatmul.bf16.gmra.mxu0 %v7177
      %v7341 = vpop.f32.mrf.mxu0
      %v7342 = vadd.f32 0.0, %v7341
      %v7343 = vpop.f32.mrf.mxu0
      %v7344 = vadd.f32 0.0, %v7343
      %7345 = vmatmul.bf16.gmra.mxu0 %v7181
      %v7346 = vpop.f32.mrf.mxu0
      %v7347 = vadd.f32 0.0, %v7346
      %v7348 = vpop.f32.mrf.mxu0
      %v7349 = vadd.f32 0.0, %v7348
      %7350 = vmatmul.bf16.gmra.mxu0 %v7190
      %v7351 = vpop.f32.mrf.mxu0
      %v7352 = vadd.f32 0.0, %v7351
      %v7353 = vpop.f32.mrf.mxu0
      %v7354 = vadd.f32 0.0, %v7353
      %7355 = vdwg.mxu0
      %v7356 = vadd.f32 %v7048, %v7267
      %v7357 = vadd.f32 %v7049, %v7269
      %v7358 = vadd.f32 %v7050, %v7272
      %v7359 = vadd.f32 %v7051, %v7274
      %v7360 = vadd.f32 %v7052, %v7277
      %v7361 = vadd.f32 %v7053, %v7279
      %v7362 = vadd.f32 %v7054, %v7282
      %v7363 = vadd.f32 %v7055, %v7284
      %v7364 = vadd.f32 %v7056, %v7287
      %v7365 = vadd.f32 %v7057, %v7289
      %v7366 = vadd.f32 %v7058, %v7292
      %v7367 = vadd.f32 %v7059, %v7294
      %v7368 = vadd.f32 %v7060, %v7297
      %v7369 = vadd.f32 %v7061, %v7299
      %v7370 = vadd.f32 %v7062, %v7302
      %v7371 = vadd.f32 %v7063, %v7304
      %v7372 = vadd.f32 %v7064, %v7307
      %v7373 = vadd.f32 %v7065, %v7309
      %v7374 = vadd.f32 %v7066, %v7312
      %v7375 = vadd.f32 %v7067, %v7314
      %v7376 = vadd.f32 %v7068, %v7317
      %v7377 = vadd.f32 %v7069, %v7319
      %v7378 = vadd.f32 %v7070, %v7322
      %v7379 = vadd.f32 %v7071, %v7324
      %v7380 = vadd.f32 %v7072, %v7327
      %v7381 = vadd.f32 %v7073, %v7329
      %v7382 = vadd.f32 %v7074, %v7332
      %v7383 = vadd.f32 %v7075, %v7334
      %v7384 = vadd.f32 %v7076, %v7337
      %v7385 = vadd.f32 %v7077, %v7339
      %v7386 = vadd.f32 %v7078, %v7342
      %v7387 = vadd.f32 %v7079, %v7344
      %v7388 = vadd.f32 %v7080, %v7347
      %v7389 = vadd.f32 %v7081, %v7349
      %v7390 = vadd.f32 %v7082, %v7352
      %v7391 = vadd.f32 %v7083, %v7354
      %7392 = vst [vmem:[%s291] sm:$0xff] %v7356
      %7393 = vst [vmem:[%s291 + $0x8] sm:$0xff] %v7357
      %7394 = vst [vmem:[%s291 + $0x10] sm:$0xff] %v7358
      %7395 = vst [vmem:[%s291 + $0x18] sm:$0xff] %v7359
      %7396 = vst [vmem:[%s291 + $0x20] sm:$0xff] %v7360
      %7397 = vst [vmem:[%s291 + $0x28] sm:$0xff] %v7361
      %7398 = vst [vmem:[%s291 + $0x30] sm:$0xff] %v7362
      %7399 = vst [vmem:[%s291 + $0x38] sm:$0xff] %v7363
      %7400 = vst [vmem:[%s291 + $0x40] sm:$0xff] %v7364
      %7401 = vst [vmem:[%s291 + $0x48] sm:$0xff] %v7365
      %7402 = vst [vmem:[%s291 + $0x50] sm:$0xff] %v7366
      %7403 = vst [vmem:[%s291 + $0x58] sm:$0xff] %v7367
      %7404 = vst [vmem:[%s291 + $0x60] sm:$0xff] %v7368
      %7405 = vst [vmem:[%s291 + $0x68] sm:$0xff] %v7369
      %7406 = vst [vmem:[%s291 + $0x70] sm:$0xff] %v7370
      %7407 = vst [vmem:[%s291 + $0x78] sm:$0xff] %v7371
      %7408 = vst [vmem:[%s291 + $0x80] sm:$0xff] %v7372
      %7409 = vst [vmem:[%s291 + $0x88] sm:$0xff] %v7373
      %7410 = vst [vmem:[%s291 + $0x90] sm:$0xff] %v7374
      %7411 = vst [vmem:[%s291 + $0x98] sm:$0xff] %v7375
      %7412 = vst [vmem:[%s291 + $0xa0] sm:$0xff] %v7376
      %7413 = vst [vmem:[%s291 + $0xa8] sm:$0xff] %v7377
      %7414 = vst [vmem:[%s291 + $0xb0] sm:$0xff] %v7378
      %7415 = vst [vmem:[%s291 + $0xb8] sm:$0xff] %v7379
      %7416 = vst [vmem:[%s291 + $0xc0] sm:$0xff] %v7380
      %7417 = vst [vmem:[%s291 + $0xc8] sm:$0xff] %v7381
      %7418 = vst [vmem:[%s291 + $0xd0] sm:$0xff] %v7382
      %7419 = vst [vmem:[%s291 + $0xd8] sm:$0xff] %v7383
      %7420 = vst [vmem:[%s291 + $0xe0] sm:$0xff] %v7384
      %7421 = vst [vmem:[%s291 + $0xe8] sm:$0xff] %v7385
      %7422 = vst [vmem:[%s291 + $0xf0] sm:$0xff] %v7386
      %7423 = vst [vmem:[%s291 + $0xf8] sm:$0xff] %v7387
      %7424 = vst [vmem:[%s291 + $0x100] sm:$0xff] %v7388
      %7425 = vst [vmem:[%s291 + $0x108] sm:$0xff] %v7389
      %7426 = vst [vmem:[%s291 + $0x110] sm:$0xff] %v7390
      %7427 = vst [vmem:[%s291 + $0x118] sm:$0xff] %v7391
      %v7428 = vmul.f32 %v7356, %v1634
      %v7429 = vmul.f32 %v7357, %v1635
      %v7430 = vmul.f32 %v7358, %v1636
      %v7431 = vmul.f32 %v7359, %v1637
      %v7432 = vmul.f32 %v7360, %v1638
      %v7433 = vmul.f32 %v7361, %v1639
      %v7434 = vmul.f32 %v7362, %v1640
      %v7435 = vmul.f32 %v7363, %v1641
      %v7436 = vmul.f32 %v7364, %v1642
      %v7437 = vmul.f32 %v7365, %v1643
      %v7438 = vmul.f32 %v7366, %v1644
      %v7439 = vmul.f32 %v7367, %v1645
      %v7440 = vmul.f32 %v7368, %v1646
      %v7441 = vmul.f32 %v7369, %v1647
      %v7442 = vmul.f32 %v7370, %v1648
      %v7443 = vmul.f32 %v7371, %v1649
      %v7444 = vmul.f32 %v7372, %v1650
      %v7445 = vmul.f32 %v7373, %v1651
      %v7446 = vmul.f32 %v7374, %v1652
      %v7447 = vmul.f32 %v7375, %v1653
      %v7448 = vmul.f32 %v7376, %v1654
      %v7449 = vmul.f32 %v7377, %v1655
      %v7450 = vmul.f32 %v7378, %v1656
      %v7451 = vmul.f32 %v7379, %v1657
      %v7452 = vmul.f32 %v7380, %v1658
      %v7453 = vmul.f32 %v7381, %v1659
      %v7454 = vmul.f32 %v7382, %v1660
      %v7455 = vmul.f32 %v7383, %v1661
      %v7456 = vmul.f32 %v7384, %v1662
      %v7457 = vmul.f32 %v7385, %v1663
      %v7458 = vmul.f32 %v7386, %v1664
      %v7459 = vmul.f32 %v7387, %v1665
      %v7460 = vmul.f32 %v7388, %v1666
      %v7461 = vmul.f32 %v7389, %v1667
      %v7462 = vmul.f32 %v7390, %v1668
      %v7463 = vmul.f32 %v7391, %v1669
      %v7464 = vadd.f32 %v7428, %v7429
      %v7465 = vadd.f32 %v7464, %v7430
      %v7466 = vadd.f32 %v7465, %v7431
      %v7467 = vadd.f32 %v7466, %v7432
      %v7468 = vadd.f32 %v7467, %v7433
      %v7469 = vadd.f32 %v7468, %v7434
      %v7470 = vadd.f32 %v7469, %v7435
      %v7471 = vadd.f32 %v7470, %v7436
      %v7472 = vadd.f32 %v7471, %v7437
      %v7473 = vadd.f32 %v7472, %v7438
      %v7474 = vadd.f32 %v7473, %v7439
      %v7475 = vadd.f32 %v7474, %v7440
      %v7476 = vadd.f32 %v7475, %v7441
      %v7477 = vadd.f32 %v7476, %v7442
      %v7478 = vadd.f32 %v7477, %v7443
      %v7479 = vadd.f32 %v7478, %v7444
      %v7480 = vadd.f32 %v7479, %v7445
      %v7481 = vadd.f32 %v7480, %v7446
      %v7482 = vadd.f32 %v7481, %v7447
      %v7483 = vadd.f32 %v7482, %v7448
      %v7484 = vadd.f32 %v7483, %v7449
      %v7485 = vadd.f32 %v7484, %v7450
      %v7486 = vadd.f32 %v7485, %v7451
      %v7487 = vadd.f32 %v7486, %v7452
      %v7488 = vadd.f32 %v7487, %v7453
      %v7489 = vadd.f32 %v7488, %v7454
      %v7490 = vadd.f32 %v7489, %v7455
      %v7491 = vadd.f32 %v7490, %v7456
      %v7492 = vadd.f32 %v7491, %v7457
      %v7493 = vadd.f32 %v7492, %v7458
      %v7494 = vadd.f32 %v7493, %v7459
      %v7495 = vadd.f32 %v7494, %v7460
      %v7496 = vadd.f32 %v7495, %v7461
      %v7497 = vadd.f32 %v7496, %v7462
      %v7498 = vadd.f32 %v7497, %v7463
      %v7499 = vrot.slane %v7498, 4
      %v7500 = vadd.f32 %v7498, %v7499
      %v7501 = vrot.slane %v7500, 2
      %v7502 = vadd.f32 %v7500, %v7501
      %v7503 = vrot.slane %v7502, 1
      %v7504 = vadd.f32 %v7502, %v7503
      %7505 = vst [vmem:[%s295] sm:$0xff] %v7504
      %v7506 = vmul.f32 %v7428, %v7428
      %v7507 = vmul.f32 %v7429, %v7429
      %v7508 = vmul.f32 %v7430, %v7430
      %v7509 = vmul.f32 %v7431, %v7431
      %v7510 = vmul.f32 %v7432, %v7432
      %v7511 = vmul.f32 %v7433, %v7433
      %v7512 = vmul.f32 %v7434, %v7434
      %v7513 = vmul.f32 %v7435, %v7435
      %v7514 = vmul.f32 %v7436, %v7436
      %v7515 = vmul.f32 %v7437, %v7437
      %v7516 = vmul.f32 %v7438, %v7438
      %v7517 = vmul.f32 %v7439, %v7439
      %v7518 = vmul.f32 %v7440, %v7440
      %v7519 = vmul.f32 %v7441, %v7441
      %v7520 = vmul.f32 %v7442, %v7442
      %v7521 = vmul.f32 %v7443, %v7443
      %v7522 = vmul.f32 %v7444, %v7444
      %v7523 = vmul.f32 %v7445, %v7445
      %v7524 = vmul.f32 %v7446, %v7446
      %v7525 = vmul.f32 %v7447, %v7447
      %v7526 = vmul.f32 %v7448, %v7448
      %v7527 = vmul.f32 %v7449, %v7449
      %v7528 = vmul.f32 %v7450, %v7450
      %v7529 = vmul.f32 %v7451, %v7451
      %v7530 = vmul.f32 %v7452, %v7452
      %v7531 = vmul.f32 %v7453, %v7453
      %v7532 = vmul.f32 %v7454, %v7454
      %v7533 = vmul.f32 %v7455, %v7455
      %v7534 = vmul.f32 %v7456, %v7456
      %v7535 = vmul.f32 %v7457, %v7457
      %v7536 = vmul.f32 %v7458, %v7458
      %v7537 = vmul.f32 %v7459, %v7459
      %v7538 = vmul.f32 %v7460, %v7460
      %v7539 = vmul.f32 %v7461, %v7461
      %v7540 = vmul.f32 %v7462, %v7462
      %v7541 = vmul.f32 %v7463, %v7463
      %v7542 = vadd.f32 %v7506, %v7507
      %v7543 = vadd.f32 %v7542, %v7508
      %v7544 = vadd.f32 %v7543, %v7509
      %v7545 = vadd.f32 %v7544, %v7510
      %v7546 = vadd.f32 %v7545, %v7511
      %v7547 = vadd.f32 %v7546, %v7512
      %v7548 = vadd.f32 %v7547, %v7513
      %v7549 = vadd.f32 %v7548, %v7514
      %v7550 = vadd.f32 %v7549, %v7515
      %v7551 = vadd.f32 %v7550, %v7516
      %v7552 = vadd.f32 %v7551, %v7517
      %v7553 = vadd.f32 %v7552, %v7518
      %v7554 = vadd.f32 %v7553, %v7519
      %v7555 = vadd.f32 %v7554, %v7520
      %v7556 = vadd.f32 %v7555, %v7521
      %v7557 = vadd.f32 %v7556, %v7522
      %v7558 = vadd.f32 %v7557, %v7523
      %v7559 = vadd.f32 %v7558, %v7524
      %v7560 = vadd.f32 %v7559, %v7525
      %v7561 = vadd.f32 %v7560, %v7526
      %v7562 = vadd.f32 %v7561, %v7527
      %v7563 = vadd.f32 %v7562, %v7528
      %v7564 = vadd.f32 %v7563, %v7529
      %v7565 = vadd.f32 %v7564, %v7530
      %v7566 = vadd.f32 %v7565, %v7531
      %v7567 = vadd.f32 %v7566, %v7532
      %v7568 = vadd.f32 %v7567, %v7533
      %v7569 = vadd.f32 %v7568, %v7534
      %v7570 = vadd.f32 %v7569, %v7535
      %v7571 = vadd.f32 %v7570, %v7536
      %v7572 = vadd.f32 %v7571, %v7537
      %v7573 = vadd.f32 %v7572, %v7538
      %v7574 = vadd.f32 %v7573, %v7539
      %v7575 = vadd.f32 %v7574, %v7540
      %v7576 = vadd.f32 %v7575, %v7541
      %v7577 = vrot.slane %v7576, 4
      %v7578 = vadd.f32 %v7576, %v7577
      %v7579 = vrot.slane %v7578, 2
      %v7580 = vadd.f32 %v7578, %v7579
      %v7581 = vrot.slane %v7580, 1
      %v7582 = vadd.f32 %v7580, %v7581
      %7583 = vst [vmem:[%s299] sm:$0xff] %v7582
      %p7584 = scmp.lt.s32.totalorder %s19, 1
      %s7585 = scalar_select %p7584, %s19, 1
      %s7586 = smul.addr %s7585, 36
      %s7587 = smul.addr %s7586, 8
      %s7588 = scalar_lea.vmem %s5, %s7587
      %p7589 = scmp.lt.s32.totalorder %s19, 1
      %s7590 = scalar_select %p7589, %s19, 1
      %s7591 = smul.addr %s7590, 8
      %s7592 = scalar_lea.vmem %s6, %s7591
      %p7593 = scmp.lt.s32.totalorder %s19, 1
      %s7594 = scalar_select %p7593, %s19, 1
      %s7595 = smul.addr %s7594, 8
      %s7596 = scalar_lea.vmem %s7, %s7595
      // Predicated region
      $region41: #{basic_block_forward.4} parent=39 // pred_check
        %p7597 = pneg %p147
      $region42: #{basic_block_forward.4} parent=39 // pred_check_branch
        %7599 = sbr.rel (%p7597) target = $region44
      $region43: #{basic_block_forward.4} parent=39 // pred_region
        _
      $region44: #{basic_block_forward.4} parent=39 // pred_fallthru
        _
      // Predicated region
      $region45: #{basic_block_forward.4} parent=39 // pred_check
        %p7600 = pneg %p173
      $region46: #{basic_block_forward.4} parent=39 // pred_check_branch
        %7602 = sbr.rel (%p7600) target = $region48
      $region47: #{basic_block_forward.4} parent=39 // pred_region
        _
      $region48: #{basic_block_forward.4} parent=39 // pred_fallthru
        _
      // Predicated region
      $region49: #{basic_block_forward.4} parent=39 // pred_check
        %p7603 = pneg %p199
      $region50: #{basic_block_forward.4} parent=39 // pred_check_branch
        %7605 = sbr.rel (%p7603) target = $region52
      $region51: #{basic_block_forward.4} parent=39 // pred_region
        _
      $region52: #{basic_block_forward.4} parent=39 // pred_fallthru
        _
    $region40: #{basic_block_forward.4} parent=5 // pred_fallthru
      _
    %p7606 = scmp.le.s32.totalorder 2, %s14
    // Predicated region
    $region53: #{basic_block_forward.4} parent=5 // pred_check
      %p7607 = pneg %p7606
    $region54: #{basic_block_forward.4} parent=5 // pred_check_branch
      %7609 = sbr.rel (%p7607) target = $region56
    $region55: #{basic_block_forward.4} parent=5 // pred_region
      %s7610 = ssub.s32 %s14, 2
      // Predicated region
      $region57: #{basic_block_forward.4} parent=55 // pred_check
        %p7611 = pneg %p153
      $region58: #{basic_block_forward.4} parent=55 // pred_check_branch
        %7613 = sbr.rel (%p7611) target = $region60
      $region59: #{basic_block_forward.4} parent=55 // pred_region
        %p7614 = scmp.lt.s32.totalorder %s20, 1
        %s7615 = scalar_select %p7614, %s20, 1
        %s7616 = smul.addr %s7615, 36
        %s7617 = smul.addr %s7616, 8
        %s7618 = scalar_lea.vmem %s5, %s7617
      $region60: #{basic_block_forward.4} parent=55 // pred_fallthru
        _
      // Predicated region
      $region61: #{basic_block_forward.4} parent=55 // pred_check
        %p7619 = pneg %p179
      $region62: #{basic_block_forward.4} parent=55 // pred_check_branch
        %7621 = sbr.rel (%p7619) target = $region64
      $region63: #{basic_block_forward.4} parent=55 // pred_region
        %p7622 = scmp.lt.s32.totalorder %s20, 1
        %s7623 = scalar_select %p7622, %s20, 1
        %s7624 = smul.addr %s7623, 8
        %s7625 = scalar_lea.vmem %s6, %s7624
      $region64: #{basic_block_forward.4} parent=55 // pred_fallthru
        _
      // Predicated region
      $region65: #{basic_block_forward.4} parent=55 // pred_check
        %p7626 = pneg %p205
      $region66: #{basic_block_forward.4} parent=55 // pred_check_branch
        %7628 = sbr.rel (%p7626) target = $region68
      $region67: #{basic_block_forward.4} parent=55 // pred_region
        %p7629 = scmp.lt.s32.totalorder %s20, 1
        %s7630 = scalar_select %p7629, %s20, 1
        %s7631 = smul.addr %s7630, 8
        %s7632 = scalar_lea.vmem %s7, %s7631
      $region68: #{basic_block_forward.4} parent=55 // pred_fallthru
        _
    $region56: #{basic_block_forward.4} parent=5 // pred_fallthru
      _
  $region6: #{basic_block_forward.4} parent=0 // loop_footer
    %s18 = sadd.s32 1, %s14
  $region7: #{basic_block_forward.4} parent=0 // loop_footer_branch
    %13 = sbr.rel target = $region3
  $region8: #{basic_block_forward.4} parent=0 // loop_exit
    _

</llo_original>
